<compile_context>
chip_gen: v7x
topology: tpu7x:2x2x1
jax: 0.10.0
libtpu: 0.0.40
codegen_flags: <defaults>
</compile_context>

<pallas_src>
import numpy as np

import jax
import jax.numpy as jnp
from jax import lax
from jax.experimental import pallas as pl
from jax.experimental.pallas import tpu as pltpu

BN_EPS = 1e-5
LRELU_SLOPE = 0.01  # nn.LeakyReLU() default negative_slope


# ----------------------------------------------------------------------------
# One-time host-side parameter preparation (hoisted out of the forward pass)
# ----------------------------------------------------------------------------
def _conv_out_size(n, stride):
    # kernel=3, padding=1
    return (n + 2 - 3) // stride + 1


def _build_selection_operators(batch, h, w, stride):
    """0/1 operators S[t]: (M_out, M_in) with (S[t] @ X)[r_out] == x_pad[tap t of r_out].

    X is the layer input flattened row-major over (n, h, w) with channels as columns;
    result rows are output positions (n, ho, wo).  All-zero rows encode the padding=1
    border, so zero-padding falls out of the matmul for free.
    """
    ho, wo = _conv_out_size(h, stride), _conv_out_size(w, stride)
    m_in, m_out = batch * h * w, batch * ho * wo
    sel = np.zeros((9, m_out, m_in), np.float32)
    for t in range(9):
        di, dj = t // 3, t % 3
        for n in range(batch):
            for oy in range(ho):
                iy = stride * oy + di - 1
                if iy < 0 or iy >= h:
                    continue
                for ox in range(wo):
                    ix = stride * ox + dj - 1
                    if ix < 0 or ix >= w:
                        continue
                    sel[t, (n * ho + oy) * wo + ox, (n * h + iy) * w + ix] = 1.0
    return sel, ho, wo


def prepare_params(params, input_shape):
    """One-time re-layout: bf16 tap-major weights, bf16 selection operators, f32 BN params."""
    batch, cin, h, w = input_shape
    layers, meta = [], []
    for (w_oihw, b, gamma, beta, stride) in params:
        cout = w_oihw.shape[0]
        sel, ho, wo = _build_selection_operators(batch, h, w, stride)
        w_taps = (jnp.transpose(w_oihw, (2, 3, 1, 0))          # (3, 3, Cin, Cout), tap-major
                  .reshape(9, cin, cout).astype(jnp.bfloat16))
        bias = (jnp.zeros((1, cout), jnp.float32) if b is None
                else jnp.asarray(b, jnp.float32).reshape(1, cout))
        layers.append(dict(
            sel=jnp.asarray(sel, jnp.bfloat16),                 # 0/1 values: exact in bf16
            w=w_taps,
            bias=bias,
            gamma=jnp.asarray(gamma, jnp.float32).reshape(1, cout),
            beta=jnp.asarray(beta, jnp.float32).reshape(1, cout),
        ))
        meta.append((ho, wo, cout))
        h, w, cin = ho, wo, cout
    return layers, meta


# ----------------------------------------------------------------------------
# Fused Pallas kernel: 4 x (conv 3x3 -> BatchNorm(train) -> LeakyReLU), VMEM-resident
# ----------------------------------------------------------------------------
def _fused_encoder_kernel(
        x_ref,
        s1, w1, cb1, g1, b1,
        s2, w2, cb2, g2, b2,
        s3, w3, cb3, g3, b3,
        s4, w4, cb4, g4, b4,
        o_ref):

    def layer(x_bf16, s_ref, w_ref, cb_ref, g_ref, b_ref):
        m_out = s_ref.shape[1]
        c_out = w_ref.shape[2]
        acc = jnp.zeros((m_out, c_out), jnp.float32)
        # conv = sum over 9 taps of (row-selection matmul) @ (per-tap weight).
        # bf16 MXU inputs, f32 accumulation.  The selection matmul is an exact gather
        # (0/1 operands), so casting its result back to bf16 is lossless.
        for t in range(9):
            tap = jnp.dot(s_ref[t], x_bf16,
                          preferred_element_type=jnp.float32).astype(jnp.bfloat16)
            acc = acc + jnp.dot(tap, w_ref[t], preferred_element_type=jnp.float32)
        y = acc + cb_ref[...]                                   # conv bias (zeros if bias=False)
        # BatchNorm2d, training mode: one-pass batch stats over all rows (= N*Ho*Wo), in f32.
        mean = jnp.mean(y, axis=0, keepdims=True)
        var = jnp.maximum(jnp.mean(y * y, axis=0, keepdims=True) - mean * mean, 0.0)
        z = (y - mean) * lax.rsqrt(var + BN_EPS) * g_ref[...] + b_ref[...]
        return jnp.where(z >= 0.0, z, LRELU_SLOPE * z)          # LeakyReLU, f32

    h = x_ref[...]                                              # bf16 (N*H*W, Cin)
    h = layer(h, s1, w1, cb1, g1, b1).astype(jnp.bfloat16)      # cast only the matmul operand
    h = layer(h, s2, w2, cb2, g2, b2).astype(jnp.bfloat16)
    h = layer(h, s3, w3, cb3, g3, b3).astype(jnp.bfloat16)
    o_ref[...] = layer(h, s4, w4, cb4, g4, b4)                  # final output stays f32


def _full_block_spec(shape):
    ndim = len(shape)
    return pl.BlockSpec(shape, lambda i: (0,) * ndim)


def conv_encoder_forward(x_nchw, prepped):
    layers, meta = prepped
    n, cin, h, w = x_nchw.shape
    # NCHW -> rows ordered (n, h, w), channels as lanes; cast matmul operand to bf16.
    x2d = jnp.transpose(x_nchw, (0, 2, 3, 1)).reshape(n * h * w, cin).astype(jnp.bfloat16)

    args = [x2d]
    for layer in layers:
        args += [layer["sel"], layer["w"], layer["bias"], layer["gamma"], layer["beta"]]

    ho4, wo4, c4 = meta[-1]
    m4 = n * ho4 * wo4
    y = pl.pallas_call(
        _fused_encoder_kernel,
        out_shape=jax.ShapeDtypeStruct((m4, c4), jnp.float32),
        grid=(1,),
        in_specs=[_full_block_spec(a.shape) for a in args],
        out_specs=_full_block_spec((m4, c4)),
        compiler_params=pltpu.CompilerParams(
            dimension_semantics=("arbitrary",),
            vmem_limit_bytes=32 * 1024 * 1024,
        ),
    )(*args)
    # Match PyTorch's z.reshape(N, -1) applied to the NCHW tensor.
    return y.reshape(n, ho4, wo4, c4).transpose(0, 3, 1, 2).reshape(n, -1)


# ----------------------------------------------------------------------------
# Reference: module-faithful conv/BN/LeakyReLU chain in f32, with the conv operands
# rounded to bf16 to mirror the kernel's mixed-precision policy (everything else f32).
# ----------------------------------------------------------------------------
def reference_forward(x_nchw, params):
    h = x_nchw
    for (w_oihw, b, gamma, beta, stride) in params:
        hq = h.astype(jnp.bfloat16).astype(jnp.float32)
        wq = w_oihw.astype(jnp.bfloat16).astype(jnp.float32)
        y = lax.conv_general_dilated(
            hq, wq, (stride, stride), ((1, 1), (1, 1)),
            dimension_numbers=("NCHW", "OIHW", "NCHW"),
            precision=lax.Precision.HIGHEST,
        )
        if b is not None:
            y = y + b[None, :, None, None]
        mean = y.mean(axis=(0, 2, 3), keepdims=True)
        var = ((y - mean) ** 2).mean(axis=(0, 2, 3), keepdims=True)
        z = (y - mean) * lax.rsqrt(var + BN_EPS)
        z = z * gamma[None, :, None, None] + beta[None, :, None, None]
        h = jnp.where(z >= 0.0, z, LRELU_SLOPE * z)
    return h.reshape(h.shape[0], -1)


# ----------------------------------------------------------------------------
# Deterministic parameter construction (shapes from ConvEncoder.__init__)
# ----------------------------------------------------------------------------
def make_params(key, num_channels, ngf):
    layer_defs = [
        (num_channels, ngf // 8, 2, False),
        (ngf // 8, ngf // 4, 2, False),
        (ngf // 4, ngf // 2, 4, False),
        (ngf // 2, ngf, 4, True),   # last conv has bias=True (nn.Conv2d default)
    ]
    params = []
    for (cin, cout, stride, has_bias) in layer_defs:
        key, kw, kb, kg, kbeta = jax.random.split(key, 5)
        w = jax.random.normal(kw, (cout, cin, 3, 3), jnp.float32) * 0.1
        b = (jax.random.normal(kb, (cout,), jnp.float32) * 0.1) if has_bias else None
        gamma = 1.0 + 0.1 * jax.random.normal(kg, (cout,), jnp.float32)
        beta = 0.1 * jax.random.normal(kbeta, (cout,), jnp.float32)
        params.append((w, b, gamma, beta, stride))
    return params


if __name__ == "__main__":
    NUM_CHANNELS, NGF = 4, 64          # small ngf (default 512) for a quick synthetic run
    B, H, W = 2, 16, 16

    key = jax.random.PRNGKey(0)
    key, kx = jax.random.split(key)
    x = jax.random.normal(kx, (B, NUM_CHANNELS, H, W), jnp.float32)   # NCHW like PyTorch
    params = make_params(key, NUM_CHANNELS, NGF)

    prepped = prepare_params(params, x.shape)      # one-time layout / bf16 / selection prep

    z = jax.block_until_ready(conv_encoder_forward(x, prepped))
    z_ref = jax.block_until_ready(reference_forward(x, params))

    assert z.shape == (B, NGF), f"bad output shape {z.shape}"
    max_err = jnp.max(jnp.abs(z - z_ref))
    assert jnp.allclose(z, z_ref, rtol=1e-2, atol=1e-2), \
        f"mismatch vs reference: max abs err {max_err}"

    print("KERNEL_OK")
</pallas_src>

<mosaic_0001>
module attributes {stable_mosaic.version = 11 : i64} {
  func.func @_fused_encoder_kernel(%arg0: i32, %arg1: memref<512x4xbf16, #tpu.memory_space<vmem>>, %arg2: memref<9x128x512xbf16, #tpu.memory_space<vmem>>, %arg3: memref<9x4x8xbf16, #tpu.memory_space<vmem>>, %arg4: memref<1x8xf32, #tpu.memory_space<vmem>>, %arg5: memref<1x8xf32, #tpu.memory_space<vmem>>, %arg6: memref<1x8xf32, #tpu.memory_space<vmem>>, %arg7: memref<9x32x128xbf16, #tpu.memory_space<vmem>>, %arg8: memref<9x8x16xbf16, #tpu.memory_space<vmem>>, %arg9: memref<1x16xf32, #tpu.memory_space<vmem>>, %arg10: memref<1x16xf32, #tpu.memory_space<vmem>>, %arg11: memref<1x16xf32, #tpu.memory_space<vmem>>, %arg12: memref<9x2x32xbf16, #tpu.memory_space<vmem>>, %arg13: memref<9x16x32xbf16, #tpu.memory_space<vmem>>, %arg14: memref<1x32xf32, #tpu.memory_space<vmem>>, %arg15: memref<1x32xf32, #tpu.memory_space<vmem>>, %arg16: memref<1x32xf32, #tpu.memory_space<vmem>>, %arg17: memref<9x2x2xbf16, #tpu.memory_space<vmem>>, %arg18: memref<9x32x64xbf16, #tpu.memory_space<vmem>>, %arg19: memref<1x64xf32, #tpu.memory_space<vmem>>, %arg20: memref<1x64xf32, #tpu.memory_space<vmem>>, %arg21: memref<1x64xf32, #tpu.memory_space<vmem>>, %arg22: memref<2x64xf32, #tpu.memory_space<vmem>>) attributes {dimension_semantics = [#tpu.dimension_semantics<arbitrary>], iteration_bounds = array<i64: 1>, scalar_prefetch = 0 : i64, scratch_operands = 0 : i64, tpu.core_type = #tpu.core_type<tc>, window_params = [{pipeline_mode = #tpu.pipeline_mode<synchronous>, transform_indices = @transform_0, window_bounds = array<i64: 512, 4>}, {pipeline_mode = #tpu.pipeline_mode<synchronous>, transform_indices = @transform_1, window_bounds = array<i64: 9, 128, 512>}, {pipeline_mode = #tpu.pipeline_mode<synchronous>, transform_indices = @transform_2, window_bounds = array<i64: 9, 4, 8>}, {pipeline_mode = #tpu.pipeline_mode<synchronous>, transform_indices = @transform_3, window_bounds = array<i64: 1, 8>}, {pipeline_mode = #tpu.pipeline_mode<synchronous>, transform_indices = @transform_4, window_bounds = array<i64: 1, 8>}, {pipeline_mode = #tpu.pipeline_mode<synchronous>, transform_indices = @transform_5, window_bounds = array<i64: 1, 8>}, {pipeline_mode = #tpu.pipeline_mode<synchronous>, transform_indices = @transform_6, window_bounds = array<i64: 9, 32, 128>}, {pipeline_mode = #tpu.pipeline_mode<synchronous>, transform_indices = @transform_7, window_bounds = array<i64: 9, 8, 16>}, {pipeline_mode = #tpu.pipeline_mode<synchronous>, transform_indices = @transform_8, window_bounds = array<i64: 1, 16>}, {pipeline_mode = #tpu.pipeline_mode<synchronous>, transform_indices = @transform_9, window_bounds = array<i64: 1, 16>}, {pipeline_mode = #tpu.pipeline_mode<synchronous>, transform_indices = @transform_10, window_bounds = array<i64: 1, 16>}, {pipeline_mode = #tpu.pipeline_mode<synchronous>, transform_indices = @transform_11, window_bounds = array<i64: 9, 2, 32>}, {pipeline_mode = #tpu.pipeline_mode<synchronous>, transform_indices = @transform_12, window_bounds = array<i64: 9, 16, 32>}, {pipeline_mode = #tpu.pipeline_mode<synchronous>, transform_indices = @transform_13, window_bounds = array<i64: 1, 32>}, {pipeline_mode = #tpu.pipeline_mode<synchronous>, transform_indices = @transform_14, window_bounds = array<i64: 1, 32>}, {pipeline_mode = #tpu.pipeline_mode<synchronous>, transform_indices = @transform_15, window_bounds = array<i64: 1, 32>}, {pipeline_mode = #tpu.pipeline_mode<synchronous>, transform_indices = @transform_16, window_bounds = array<i64: 9, 2, 2>}, {pipeline_mode = #tpu.pipeline_mode<synchronous>, transform_indices = @transform_17, window_bounds = array<i64: 9, 32, 64>}, {pipeline_mode = #tpu.pipeline_mode<synchronous>, transform_indices = @transform_18, window_bounds = array<i64: 1, 64>}, {pipeline_mode = #tpu.pipeline_mode<synchronous>, transform_indices = @transform_19, window_bounds = array<i64: 1, 64>}, {pipeline_mode = #tpu.pipeline_mode<synchronous>, transform_indices = @transform_20, window_bounds = array<i64: 1, 64>}, {pipeline_mode = #tpu.pipeline_mode<synchronous>, transform_indices = @transform_21, window_bounds = array<i64: 2, 64>}]} {
    %c0 = arith.constant 0 : index
    %c0_0 = arith.constant 0 : index
    %0 = vector.load %arg1[%c0, %c0_0] : memref<512x4xbf16, #tpu.memory_space<vmem>>, vector<512x4xbf16>
    %cst = arith.constant 0.000000e+00 : f32
    %1 = vector.broadcast %cst : f32 to vector<128x8xf32>
    %c0_1 = arith.constant 0 : index
    %c0_2 = arith.constant 0 : index
    %c0_3 = arith.constant 0 : index
    %2 = vector.load %arg2[%c0_1, %c0_2, %c0_3] : memref<9x128x512xbf16, #tpu.memory_space<vmem>>, vector<1x128x512xbf16>
    %3 = vector.shape_cast %2 : vector<1x128x512xbf16> to vector<128x512xbf16>
    %cst_4 = arith.constant dense<0.000000e+00> : vector<128x4xf32>
    %4 = tpu.matmul %3, %0, %cst_4 {dimension_numbers = #tpu.dot_dimension_numbers<[1], [0], [0], [1], [0, 0, 1, 1], [], []>} : vector<128x512xbf16>, vector<512x4xbf16>, vector<128x4xf32> -> vector<128x4xf32>
    %5 = arith.truncf %4 : vector<128x4xf32> to vector<128x4xbf16>
    %c0_5 = arith.constant 0 : index
    %c0_6 = arith.constant 0 : index
    %c0_7 = arith.constant 0 : index
    %6 = vector.load %arg3[%c0_5, %c0_6, %c0_7] : memref<9x4x8xbf16, #tpu.memory_space<vmem>>, vector<1x4x8xbf16>
    %7 = vector.shape_cast %6 : vector<1x4x8xbf16> to vector<4x8xbf16>
    %cst_8 = arith.constant dense<0.000000e+00> : vector<128x8xf32>
    %8 = tpu.matmul %5, %7, %cst_8 {dimension_numbers = #tpu.dot_dimension_numbers<[1], [0], [0], [1], [0, 0, 1, 1], [], []>} : vector<128x4xbf16>, vector<4x8xbf16>, vector<128x8xf32> -> vector<128x8xf32>
    %9 = arith.addf %1, %8 : vector<128x8xf32>
    %c1 = arith.constant 1 : index
    %c0_9 = arith.constant 0 : index
    %c0_10 = arith.constant 0 : index
    %10 = vector.load %arg2[%c1, %c0_9, %c0_10] : memref<9x128x512xbf16, #tpu.memory_space<vmem>>, vector<1x128x512xbf16>
    %11 = vector.shape_cast %10 : vector<1x128x512xbf16> to vector<128x512xbf16>
    %cst_11 = arith.constant dense<0.000000e+00> : vector<128x4xf32>
    %12 = tpu.matmul %11, %0, %cst_11 {dimension_numbers = #tpu.dot_dimension_numbers<[1], [0], [0], [1], [0, 0, 1, 1], [], []>} : vector<128x512xbf16>, vector<512x4xbf16>, vector<128x4xf32> -> vector<128x4xf32>
    %13 = arith.truncf %12 : vector<128x4xf32> to vector<128x4xbf16>
    %c1_12 = arith.constant 1 : index
    %c0_13 = arith.constant 0 : index
    %c0_14 = arith.constant 0 : index
    %14 = vector.load %arg3[%c1_12, %c0_13, %c0_14] : memref<9x4x8xbf16, #tpu.memory_space<vmem>>, vector<1x4x8xbf16>
    %15 = vector.shape_cast %14 : vector<1x4x8xbf16> to vector<4x8xbf16>
    %cst_15 = arith.constant dense<0.000000e+00> : vector<128x8xf32>
    %16 = tpu.matmul %13, %15, %cst_15 {dimension_numbers = #tpu.dot_dimension_numbers<[1], [0], [0], [1], [0, 0, 1, 1], [], []>} : vector<128x4xbf16>, vector<4x8xbf16>, vector<128x8xf32> -> vector<128x8xf32>
    %17 = arith.addf %9, %16 : vector<128x8xf32>
    %c2 = arith.constant 2 : index
    %c0_16 = arith.constant 0 : index
    %c0_17 = arith.constant 0 : index
    %18 = vector.load %arg2[%c2, %c0_16, %c0_17] : memref<9x128x512xbf16, #tpu.memory_space<vmem>>, vector<1x128x512xbf16>
    %19 = vector.shape_cast %18 : vector<1x128x512xbf16> to vector<128x512xbf16>
    %cst_18 = arith.constant dense<0.000000e+00> : vector<128x4xf32>
    %20 = tpu.matmul %19, %0, %cst_18 {dimension_numbers = #tpu.dot_dimension_numbers<[1], [0], [0], [1], [0, 0, 1, 1], [], []>} : vector<128x512xbf16>, vector<512x4xbf16>, vector<128x4xf32> -> vector<128x4xf32>
    %21 = arith.truncf %20 : vector<128x4xf32> to vector<128x4xbf16>
    %c2_19 = arith.constant 2 : index
    %c0_20 = arith.constant 0 : index
    %c0_21 = arith.constant 0 : index
    %22 = vector.load %arg3[%c2_19, %c0_20, %c0_21] : memref<9x4x8xbf16, #tpu.memory_space<vmem>>, vector<1x4x8xbf16>
    %23 = vector.shape_cast %22 : vector<1x4x8xbf16> to vector<4x8xbf16>
    %cst_22 = arith.constant dense<0.000000e+00> : vector<128x8xf32>
    %24 = tpu.matmul %21, %23, %cst_22 {dimension_numbers = #tpu.dot_dimension_numbers<[1], [0], [0], [1], [0, 0, 1, 1], [], []>} : vector<128x4xbf16>, vector<4x8xbf16>, vector<128x8xf32> -> vector<128x8xf32>
    %25 = arith.addf %17, %24 : vector<128x8xf32>
    %c3 = arith.constant 3 : index
    %c0_23 = arith.constant 0 : index
    %c0_24 = arith.constant 0 : index
    %26 = vector.load %arg2[%c3, %c0_23, %c0_24] : memref<9x128x512xbf16, #tpu.memory_space<vmem>>, vector<1x128x512xbf16>
    %27 = vector.shape_cast %26 : vector<1x128x512xbf16> to vector<128x512xbf16>
    %cst_25 = arith.constant dense<0.000000e+00> : vector<128x4xf32>
    %28 = tpu.matmul %27, %0, %cst_25 {dimension_numbers = #tpu.dot_dimension_numbers<[1], [0], [0], [1], [0, 0, 1, 1], [], []>} : vector<128x512xbf16>, vector<512x4xbf16>, vector<128x4xf32> -> vector<128x4xf32>
    %29 = arith.truncf %28 : vector<128x4xf32> to vector<128x4xbf16>
    %c3_26 = arith.constant 3 : index
    %c0_27 = arith.constant 0 : index
    %c0_28 = arith.constant 0 : index
    %30 = vector.load %arg3[%c3_26, %c0_27, %c0_28] : memref<9x4x8xbf16, #tpu.memory_space<vmem>>, vector<1x4x8xbf16>
    %31 = vector.shape_cast %30 : vector<1x4x8xbf16> to vector<4x8xbf16>
    %cst_29 = arith.constant dense<0.000000e+00> : vector<128x8xf32>
    %32 = tpu.matmul %29, %31, %cst_29 {dimension_numbers = #tpu.dot_dimension_numbers<[1], [0], [0], [1], [0, 0, 1, 1], [], []>} : vector<128x4xbf16>, vector<4x8xbf16>, vector<128x8xf32> -> vector<128x8xf32>
    %33 = arith.addf %25, %32 : vector<128x8xf32>
    %c4 = arith.constant 4 : index
    %c0_30 = arith.constant 0 : index
    %c0_31 = arith.constant 0 : index
    %34 = vector.load %arg2[%c4, %c0_30, %c0_31] : memref<9x128x512xbf16, #tpu.memory_space<vmem>>, vector<1x128x512xbf16>
    %35 = vector.shape_cast %34 : vector<1x128x512xbf16> to vector<128x512xbf16>
    %cst_32 = arith.constant dense<0.000000e+00> : vector<128x4xf32>
    %36 = tpu.matmul %35, %0, %cst_32 {dimension_numbers = #tpu.dot_dimension_numbers<[1], [0], [0], [1], [0, 0, 1, 1], [], []>} : vector<128x512xbf16>, vector<512x4xbf16>, vector<128x4xf32> -> vector<128x4xf32>
    %37 = arith.truncf %36 : vector<128x4xf32> to vector<128x4xbf16>
    %c4_33 = arith.constant 4 : index
    %c0_34 = arith.constant 0 : index
    %c0_35 = arith.constant 0 : index
    %38 = vector.load %arg3[%c4_33, %c0_34, %c0_35] : memref<9x4x8xbf16, #tpu.memory_space<vmem>>, vector<1x4x8xbf16>
    %39 = vector.shape_cast %38 : vector<1x4x8xbf16> to vector<4x8xbf16>
    %cst_36 = arith.constant dense<0.000000e+00> : vector<128x8xf32>
    %40 = tpu.matmul %37, %39, %cst_36 {dimension_numbers = #tpu.dot_dimension_numbers<[1], [0], [0], [1], [0, 0, 1, 1], [], []>} : vector<128x4xbf16>, vector<4x8xbf16>, vector<128x8xf32> -> vector<128x8xf32>
    %41 = arith.addf %33, %40 : vector<128x8xf32>
    %c5 = arith.constant 5 : index
    %c0_37 = arith.constant 0 : index
    %c0_38 = arith.constant 0 : index
    %42 = vector.load %arg2[%c5, %c0_37, %c0_38] : memref<9x128x512xbf16, #tpu.memory_space<vmem>>, vector<1x128x512xbf16>
    %43 = vector.shape_cast %42 : vector<1x128x512xbf16> to vector<128x512xbf16>
    %cst_39 = arith.constant dense<0.000000e+00> : vector<128x4xf32>
    %44 = tpu.matmul %43, %0, %cst_39 {dimension_numbers = #tpu.dot_dimension_numbers<[1], [0], [0], [1], [0, 0, 1, 1], [], []>} : vector<128x512xbf16>, vector<512x4xbf16>, vector<128x4xf32> -> vector<128x4xf32>
    %45 = arith.truncf %44 : vector<128x4xf32> to vector<128x4xbf16>
    %c5_40 = arith.constant 5 : index
    %c0_41 = arith.constant 0 : index
    %c0_42 = arith.constant 0 : index
    %46 = vector.load %arg3[%c5_40, %c0_41, %c0_42] : memref<9x4x8xbf16, #tpu.memory_space<vmem>>, vector<1x4x8xbf16>
    %47 = vector.shape_cast %46 : vector<1x4x8xbf16> to vector<4x8xbf16>
    %cst_43 = arith.constant dense<0.000000e+00> : vector<128x8xf32>
    %48 = tpu.matmul %45, %47, %cst_43 {dimension_numbers = #tpu.dot_dimension_numbers<[1], [0], [0], [1], [0, 0, 1, 1], [], []>} : vector<128x4xbf16>, vector<4x8xbf16>, vector<128x8xf32> -> vector<128x8xf32>
    %49 = arith.addf %41, %48 : vector<128x8xf32>
    %c6 = arith.constant 6 : index
    %c0_44 = arith.constant 0 : index
    %c0_45 = arith.constant 0 : index
    %50 = vector.load %arg2[%c6, %c0_44, %c0_45] : memref<9x128x512xbf16, #tpu.memory_space<vmem>>, vector<1x128x512xbf16>
    %51 = vector.shape_cast %50 : vector<1x128x512xbf16> to vector<128x512xbf16>
    %cst_46 = arith.constant dense<0.000000e+00> : vector<128x4xf32>
    %52 = tpu.matmul %51, %0, %cst_46 {dimension_numbers = #tpu.dot_dimension_numbers<[1], [0], [0], [1], [0, 0, 1, 1], [], []>} : vector<128x512xbf16>, vector<512x4xbf16>, vector<128x4xf32> -> vector<128x4xf32>
    %53 = arith.truncf %52 : vector<128x4xf32> to vector<128x4xbf16>
    %c6_47 = arith.constant 6 : index
    %c0_48 = arith.constant 0 : index
    %c0_49 = arith.constant 0 : index
    %54 = vector.load %arg3[%c6_47, %c0_48, %c0_49] : memref<9x4x8xbf16, #tpu.memory_space<vmem>>, vector<1x4x8xbf16>
    %55 = vector.shape_cast %54 : vector<1x4x8xbf16> to vector<4x8xbf16>
    %cst_50 = arith.constant dense<0.000000e+00> : vector<128x8xf32>
    %56 = tpu.matmul %53, %55, %cst_50 {dimension_numbers = #tpu.dot_dimension_numbers<[1], [0], [0], [1], [0, 0, 1, 1], [], []>} : vector<128x4xbf16>, vector<4x8xbf16>, vector<128x8xf32> -> vector<128x8xf32>
    %57 = arith.addf %49, %56 : vector<128x8xf32>
    %c7 = arith.constant 7 : index
    %c0_51 = arith.constant 0 : index
    %c0_52 = arith.constant 0 : index
    %58 = vector.load %arg2[%c7, %c0_51, %c0_52] : memref<9x128x512xbf16, #tpu.memory_space<vmem>>, vector<1x128x512xbf16>
    %59 = vector.shape_cast %58 : vector<1x128x512xbf16> to vector<128x512xbf16>
    %cst_53 = arith.constant dense<0.000000e+00> : vector<128x4xf32>
    %60 = tpu.matmul %59, %0, %cst_53 {dimension_numbers = #tpu.dot_dimension_numbers<[1], [0], [0], [1], [0, 0, 1, 1], [], []>} : vector<128x512xbf16>, vector<512x4xbf16>, vector<128x4xf32> -> vector<128x4xf32>
    %61 = arith.truncf %60 : vector<128x4xf32> to vector<128x4xbf16>
    %c7_54 = arith.constant 7 : index
    %c0_55 = arith.constant 0 : index
    %c0_56 = arith.constant 0 : index
    %62 = vector.load %arg3[%c7_54, %c0_55, %c0_56] : memref<9x4x8xbf16, #tpu.memory_space<vmem>>, vector<1x4x8xbf16>
    %63 = vector.shape_cast %62 : vector<1x4x8xbf16> to vector<4x8xbf16>
    %cst_57 = arith.constant dense<0.000000e+00> : vector<128x8xf32>
    %64 = tpu.matmul %61, %63, %cst_57 {dimension_numbers = #tpu.dot_dimension_numbers<[1], [0], [0], [1], [0, 0, 1, 1], [], []>} : vector<128x4xbf16>, vector<4x8xbf16>, vector<128x8xf32> -> vector<128x8xf32>
    %65 = arith.addf %57, %64 : vector<128x8xf32>
    %c8 = arith.constant 8 : index
    %c0_58 = arith.constant 0 : index
    %c0_59 = arith.constant 0 : index
    %66 = vector.load %arg2[%c8, %c0_58, %c0_59] : memref<9x128x512xbf16, #tpu.memory_space<vmem>>, vector<1x128x512xbf16>
    %67 = vector.shape_cast %66 : vector<1x128x512xbf16> to vector<128x512xbf16>
    %cst_60 = arith.constant dense<0.000000e+00> : vector<128x4xf32>
    %68 = tpu.matmul %67, %0, %cst_60 {dimension_numbers = #tpu.dot_dimension_numbers<[1], [0], [0], [1], [0, 0, 1, 1], [], []>} : vector<128x512xbf16>, vector<512x4xbf16>, vector<128x4xf32> -> vector<128x4xf32>
    %69 = arith.truncf %68 : vector<128x4xf32> to vector<128x4xbf16>
    %c8_61 = arith.constant 8 : index
    %c0_62 = arith.constant 0 : index
    %c0_63 = arith.constant 0 : index
    %70 = vector.load %arg3[%c8_61, %c0_62, %c0_63] : memref<9x4x8xbf16, #tpu.memory_space<vmem>>, vector<1x4x8xbf16>
    %71 = vector.shape_cast %70 : vector<1x4x8xbf16> to vector<4x8xbf16>
    %cst_64 = arith.constant dense<0.000000e+00> : vector<128x8xf32>
    %72 = tpu.matmul %69, %71, %cst_64 {dimension_numbers = #tpu.dot_dimension_numbers<[1], [0], [0], [1], [0, 0, 1, 1], [], []>} : vector<128x4xbf16>, vector<4x8xbf16>, vector<128x8xf32> -> vector<128x8xf32>
    %73 = arith.addf %65, %72 : vector<128x8xf32>
    %c0_65 = arith.constant 0 : index
    %c0_66 = arith.constant 0 : index
    %74 = vector.load %arg4[%c0_65, %c0_66] : memref<1x8xf32, #tpu.memory_space<vmem>>, vector<1x8xf32>
    %75 = vector.broadcast %74 : vector<1x8xf32> to vector<128x8xf32>
    %76 = arith.addf %73, %75 : vector<128x8xf32>
    %cst_67 = arith.constant dense<0.000000e+00> : vector<8xf32>
    %77 = vector.multi_reduction <add>, %76, %cst_67 [0] : vector<128x8xf32> to vector<8xf32>
    %78 = vector.shape_cast %77 : vector<8xf32> to vector<1x8xf32>
    %cst_68 = arith.constant 1.280000e+02 : f32
    %79 = vector.broadcast %cst_68 : f32 to vector<1x8xf32>
    %80 = arith.divf %78, %79 : vector<1x8xf32>
    %81 = arith.mulf %76, %76 : vector<128x8xf32>
    %cst_69 = arith.constant dense<0.000000e+00> : vector<8xf32>
    %82 = vector.multi_reduction <add>, %81, %cst_69 [0] : vector<128x8xf32> to vector<8xf32>
    %83 = vector.shape_cast %82 : vector<8xf32> to vector<1x8xf32>
    %cst_70 = arith.constant 1.280000e+02 : f32
    %84 = vector.broadcast %cst_70 : f32 to vector<1x8xf32>
    %85 = arith.divf %83, %84 : vector<1x8xf32>
    %86 = arith.mulf %80, %80 : vector<1x8xf32>
    %87 = arith.subf %85, %86 : vector<1x8xf32>
    %cst_71 = arith.constant 0.000000e+00 : f32
    %88 = vector.broadcast %cst_71 : f32 to vector<1x8xf32>
    %89 = arith.maximumf %87, %88 : vector<1x8xf32>
    %90 = vector.broadcast %80 : vector<1x8xf32> to vector<128x8xf32>
    %91 = arith.subf %76, %90 : vector<128x8xf32>
    %cst_72 = arith.constant 9.99999974E-6 : f32
    %92 = vector.broadcast %cst_72 : f32 to vector<1x8xf32>
    %93 = arith.addf %89, %92 : vector<1x8xf32>
    %94 = math.rsqrt %93 : vector<1x8xf32>
    %95 = vector.broadcast %94 : vector<1x8xf32> to vector<128x8xf32>
    %96 = arith.mulf %91, %95 : vector<128x8xf32>
    %c0_73 = arith.constant 0 : index
    %c0_74 = arith.constant 0 : index
    %97 = vector.load %arg5[%c0_73, %c0_74] : memref<1x8xf32, #tpu.memory_space<vmem>>, vector<1x8xf32>
    %98 = vector.broadcast %97 : vector<1x8xf32> to vector<128x8xf32>
    %99 = arith.mulf %96, %98 : vector<128x8xf32>
    %c0_75 = arith.constant 0 : index
    %c0_76 = arith.constant 0 : index
    %100 = vector.load %arg6[%c0_75, %c0_76] : memref<1x8xf32, #tpu.memory_space<vmem>>, vector<1x8xf32>
    %101 = vector.broadcast %100 : vector<1x8xf32> to vector<128x8xf32>
    %102 = arith.addf %99, %101 : vector<128x8xf32>
    %cst_77 = arith.constant 0.000000e+00 : f32
    %103 = vector.broadcast %cst_77 : f32 to vector<128x8xf32>
    %104 = arith.cmpf oge, %102, %103 : vector<128x8xf32>
    %cst_78 = arith.constant 0.00999999977 : f32
    %105 = vector.broadcast %cst_78 : f32 to vector<128x8xf32>
    %106 = arith.mulf %105, %102 : vector<128x8xf32>
    %107 = arith.select %104, %102, %106 : vector<128x8xi1>, vector<128x8xf32>
    %108 = arith.truncf %107 : vector<128x8xf32> to vector<128x8xbf16>
    %cst_79 = arith.constant 0.000000e+00 : f32
    %109 = vector.broadcast %cst_79 : f32 to vector<32x16xf32>
    %c0_80 = arith.constant 0 : index
    %c0_81 = arith.constant 0 : index
    %c0_82 = arith.constant 0 : index
    %110 = vector.load %arg7[%c0_80, %c0_81, %c0_82] : memref<9x32x128xbf16, #tpu.memory_space<vmem>>, vector<1x32x128xbf16>
    %111 = vector.shape_cast %110 : vector<1x32x128xbf16> to vector<32x128xbf16>
    %cst_83 = arith.constant dense<0.000000e+00> : vector<32x8xf32>
    %112 = tpu.matmul %111, %108, %cst_83 {dimension_numbers = #tpu.dot_dimension_numbers<[1], [0], [0], [1], [0, 0, 1, 1], [], []>} : vector<32x128xbf16>, vector<128x8xbf16>, vector<32x8xf32> -> vector<32x8xf32>
    %113 = arith.truncf %112 : vector<32x8xf32> to vector<32x8xbf16>
    %c0_84 = arith.constant 0 : index
    %c0_85 = arith.constant 0 : index
    %c0_86 = arith.constant 0 : index
    %114 = vector.load %arg8[%c0_84, %c0_85, %c0_86] : memref<9x8x16xbf16, #tpu.memory_space<vmem>>, vector<1x8x16xbf16>
    %115 = vector.shape_cast %114 : vector<1x8x16xbf16> to vector<8x16xbf16>
    %cst_87 = arith.constant dense<0.000000e+00> : vector<32x16xf32>
    %116 = tpu.matmul %113, %115, %cst_87 {dimension_numbers = #tpu.dot_dimension_numbers<[1], [0], [0], [1], [0, 0, 1, 1], [], []>} : vector<32x8xbf16>, vector<8x16xbf16>, vector<32x16xf32> -> vector<32x16xf32>
    %117 = arith.addf %109, %116 : vector<32x16xf32>
    %c1_88 = arith.constant 1 : index
    %c0_89 = arith.constant 0 : index
    %c0_90 = arith.constant 0 : index
    %118 = vector.load %arg7[%c1_88, %c0_89, %c0_90] : memref<9x32x128xbf16, #tpu.memory_space<vmem>>, vector<1x32x128xbf16>
    %119 = vector.shape_cast %118 : vector<1x32x128xbf16> to vector<32x128xbf16>
    %cst_91 = arith.constant dense<0.000000e+00> : vector<32x8xf32>
    %120 = tpu.matmul %119, %108, %cst_91 {dimension_numbers = #tpu.dot_dimension_numbers<[1], [0], [0], [1], [0, 0, 1, 1], [], []>} : vector<32x128xbf16>, vector<128x8xbf16>, vector<32x8xf32> -> vector<32x8xf32>
    %121 = arith.truncf %120 : vector<32x8xf32> to vector<32x8xbf16>
    %c1_92 = arith.constant 1 : index
    %c0_93 = arith.constant 0 : index
    %c0_94 = arith.constant 0 : index
    %122 = vector.load %arg8[%c1_92, %c0_93, %c0_94] : memref<9x8x16xbf16, #tpu.memory_space<vmem>>, vector<1x8x16xbf16>
    %123 = vector.shape_cast %122 : vector<1x8x16xbf16> to vector<8x16xbf16>
    %cst_95 = arith.constant dense<0.000000e+00> : vector<32x16xf32>
    %124 = tpu.matmul %121, %123, %cst_95 {dimension_numbers = #tpu.dot_dimension_numbers<[1], [0], [0], [1], [0, 0, 1, 1], [], []>} : vector<32x8xbf16>, vector<8x16xbf16>, vector<32x16xf32> -> vector<32x16xf32>
    %125 = arith.addf %117, %124 : vector<32x16xf32>
    %c2_96 = arith.constant 2 : index
    %c0_97 = arith.constant 0 : index
    %c0_98 = arith.constant 0 : index
    %126 = vector.load %arg7[%c2_96, %c0_97, %c0_98] : memref<9x32x128xbf16, #tpu.memory_space<vmem>>, vector<1x32x128xbf16>
    %127 = vector.shape_cast %126 : vector<1x32x128xbf16> to vector<32x128xbf16>
    %cst_99 = arith.constant dense<0.000000e+00> : vector<32x8xf32>
    %128 = tpu.matmul %127, %108, %cst_99 {dimension_numbers = #tpu.dot_dimension_numbers<[1], [0], [0], [1], [0, 0, 1, 1], [], []>} : vector<32x128xbf16>, vector<128x8xbf16>, vector<32x8xf32> -> vector<32x8xf32>
    %129 = arith.truncf %128 : vector<32x8xf32> to vector<32x8xbf16>
    %c2_100 = arith.constant 2 : index
    %c0_101 = arith.constant 0 : index
    %c0_102 = arith.constant 0 : index
    %130 = vector.load %arg8[%c2_100, %c0_101, %c0_102] : memref<9x8x16xbf16, #tpu.memory_space<vmem>>, vector<1x8x16xbf16>
    %131 = vector.shape_cast %130 : vector<1x8x16xbf16> to vector<8x16xbf16>
    %cst_103 = arith.constant dense<0.000000e+00> : vector<32x16xf32>
    %132 = tpu.matmul %129, %131, %cst_103 {dimension_numbers = #tpu.dot_dimension_numbers<[1], [0], [0], [1], [0, 0, 1, 1], [], []>} : vector<32x8xbf16>, vector<8x16xbf16>, vector<32x16xf32> -> vector<32x16xf32>
    %133 = arith.addf %125, %132 : vector<32x16xf32>
    %c3_104 = arith.constant 3 : index
    %c0_105 = arith.constant 0 : index
    %c0_106 = arith.constant 0 : index
    %134 = vector.load %arg7[%c3_104, %c0_105, %c0_106] : memref<9x32x128xbf16, #tpu.memory_space<vmem>>, vector<1x32x128xbf16>
    %135 = vector.shape_cast %134 : vector<1x32x128xbf16> to vector<32x128xbf16>
    %cst_107 = arith.constant dense<0.000000e+00> : vector<32x8xf32>
    %136 = tpu.matmul %135, %108, %cst_107 {dimension_numbers = #tpu.dot_dimension_numbers<[1], [0], [0], [1], [0, 0, 1, 1], [], []>} : vector<32x128xbf16>, vector<128x8xbf16>, vector<32x8xf32> -> vector<32x8xf32>
    %137 = arith.truncf %136 : vector<32x8xf32> to vector<32x8xbf16>
    %c3_108 = arith.constant 3 : index
    %c0_109 = arith.constant 0 : index
    %c0_110 = arith.constant 0 : index
    %138 = vector.load %arg8[%c3_108, %c0_109, %c0_110] : memref<9x8x16xbf16, #tpu.memory_space<vmem>>, vector<1x8x16xbf16>
    %139 = vector.shape_cast %138 : vector<1x8x16xbf16> to vector<8x16xbf16>
    %cst_111 = arith.constant dense<0.000000e+00> : vector<32x16xf32>
    %140 = tpu.matmul %137, %139, %cst_111 {dimension_numbers = #tpu.dot_dimension_numbers<[1], [0], [0], [1], [0, 0, 1, 1], [], []>} : vector<32x8xbf16>, vector<8x16xbf16>, vector<32x16xf32> -> vector<32x16xf32>
    %141 = arith.addf %133, %140 : vector<32x16xf32>
    %c4_112 = arith.constant 4 : index
    %c0_113 = arith.constant 0 : index
    %c0_114 = arith.constant 0 : index
    %142 = vector.load %arg7[%c4_112, %c0_113, %c0_114] : memref<9x32x128xbf16, #tpu.memory_space<vmem>>, vector<1x32x128xbf16>
    %143 = vector.shape_cast %142 : vector<1x32x128xbf16> to vector<32x128xbf16>
    %cst_115 = arith.constant dense<0.000000e+00> : vector<32x8xf32>
    %144 = tpu.matmul %143, %108, %cst_115 {dimension_numbers = #tpu.dot_dimension_numbers<[1], [0], [0], [1], [0, 0, 1, 1], [], []>} : vector<32x128xbf16>, vector<128x8xbf16>, vector<32x8xf32> -> vector<32x8xf32>
    %145 = arith.truncf %144 : vector<32x8xf32> to vector<32x8xbf16>
    %c4_116 = arith.constant 4 : index
    %c0_117 = arith.constant 0 : index
    %c0_118 = arith.constant 0 : index
    %146 = vector.load %arg8[%c4_116, %c0_117, %c0_118] : memref<9x8x16xbf16, #tpu.memory_space<vmem>>, vector<1x8x16xbf16>
    %147 = vector.shape_cast %146 : vector<1x8x16xbf16> to vector<8x16xbf16>
    %cst_119 = arith.constant dense<0.000000e+00> : vector<32x16xf32>
    %148 = tpu.matmul %145, %147, %cst_119 {dimension_numbers = #tpu.dot_dimension_numbers<[1], [0], [0], [1], [0, 0, 1, 1], [], []>} : vector<32x8xbf16>, vector<8x16xbf16>, vector<32x16xf32> -> vector<32x16xf32>
    %149 = arith.addf %141, %148 : vector<32x16xf32>
    %c5_120 = arith.constant 5 : index
    %c0_121 = arith.constant 0 : index
    %c0_122 = arith.constant 0 : index
    %150 = vector.load %arg7[%c5_120, %c0_121, %c0_122] : memref<9x32x128xbf16, #tpu.memory_space<vmem>>, vector<1x32x128xbf16>
    %151 = vector.shape_cast %150 : vector<1x32x128xbf16> to vector<32x128xbf16>
    %cst_123 = arith.constant dense<0.000000e+00> : vector<32x8xf32>
    %152 = tpu.matmul %151, %108, %cst_123 {dimension_numbers = #tpu.dot_dimension_numbers<[1], [0], [0], [1], [0, 0, 1, 1], [], []>} : vector<32x128xbf16>, vector<128x8xbf16>, vector<32x8xf32> -> vector<32x8xf32>
    %153 = arith.truncf %152 : vector<32x8xf32> to vector<32x8xbf16>
    %c5_124 = arith.constant 5 : index
    %c0_125 = arith.constant 0 : index
    %c0_126 = arith.constant 0 : index
    %154 = vector.load %arg8[%c5_124, %c0_125, %c0_126] : memref<9x8x16xbf16, #tpu.memory_space<vmem>>, vector<1x8x16xbf16>
    %155 = vector.shape_cast %154 : vector<1x8x16xbf16> to vector<8x16xbf16>
    %cst_127 = arith.constant dense<0.000000e+00> : vector<32x16xf32>
    %156 = tpu.matmul %153, %155, %cst_127 {dimension_numbers = #tpu.dot_dimension_numbers<[1], [0], [0], [1], [0, 0, 1, 1], [], []>} : vector<32x8xbf16>, vector<8x16xbf16>, vector<32x16xf32> -> vector<32x16xf32>
    %157 = arith.addf %149, %156 : vector<32x16xf32>
    %c6_128 = arith.constant 6 : index
    %c0_129 = arith.constant 0 : index
    %c0_130 = arith.constant 0 : index
    %158 = vector.load %arg7[%c6_128, %c0_129, %c0_130] : memref<9x32x128xbf16, #tpu.memory_space<vmem>>, vector<1x32x128xbf16>
    %159 = vector.shape_cast %158 : vector<1x32x128xbf16> to vector<32x128xbf16>
    %cst_131 = arith.constant dense<0.000000e+00> : vector<32x8xf32>
    %160 = tpu.matmul %159, %108, %cst_131 {dimension_numbers = #tpu.dot_dimension_numbers<[1], [0], [0], [1], [0, 0, 1, 1], [], []>} : vector<32x128xbf16>, vector<128x8xbf16>, vector<32x8xf32> -> vector<32x8xf32>
    %161 = arith.truncf %160 : vector<32x8xf32> to vector<32x8xbf16>
    %c6_132 = arith.constant 6 : index
    %c0_133 = arith.constant 0 : index
    %c0_134 = arith.constant 0 : index
    %162 = vector.load %arg8[%c6_132, %c0_133, %c0_134] : memref<9x8x16xbf16, #tpu.memory_space<vmem>>, vector<1x8x16xbf16>
    %163 = vector.shape_cast %162 : vector<1x8x16xbf16> to vector<8x16xbf16>
    %cst_135 = arith.constant dense<0.000000e+00> : vector<32x16xf32>
    %164 = tpu.matmul %161, %163, %cst_135 {dimension_numbers = #tpu.dot_dimension_numbers<[1], [0], [0], [1], [0, 0, 1, 1], [], []>} : vector<32x8xbf16>, vector<8x16xbf16>, vector<32x16xf32> -> vector<32x16xf32>
    %165 = arith.addf %157, %164 : vector<32x16xf32>
    %c7_136 = arith.constant 7 : index
    %c0_137 = arith.constant 0 : index
    %c0_138 = arith.constant 0 : index
    %166 = vector.load %arg7[%c7_136, %c0_137, %c0_138] : memref<9x32x128xbf16, #tpu.memory_space<vmem>>, vector<1x32x128xbf16>
    %167 = vector.shape_cast %166 : vector<1x32x128xbf16> to vector<32x128xbf16>
    %cst_139 = arith.constant dense<0.000000e+00> : vector<32x8xf32>
    %168 = tpu.matmul %167, %108, %cst_139 {dimension_numbers = #tpu.dot_dimension_numbers<[1], [0], [0], [1], [0, 0, 1, 1], [], []>} : vector<32x128xbf16>, vector<128x8xbf16>, vector<32x8xf32> -> vector<32x8xf32>
    %169 = arith.truncf %168 : vector<32x8xf32> to vector<32x8xbf16>
    %c7_140 = arith.constant 7 : index
    %c0_141 = arith.constant 0 : index
    %c0_142 = arith.constant 0 : index
    %170 = vector.load %arg8[%c7_140, %c0_141, %c0_142] : memref<9x8x16xbf16, #tpu.memory_space<vmem>>, vector<1x8x16xbf16>
    %171 = vector.shape_cast %170 : vector<1x8x16xbf16> to vector<8x16xbf16>
    %cst_143 = arith.constant dense<0.000000e+00> : vector<32x16xf32>
    %172 = tpu.matmul %169, %171, %cst_143 {dimension_numbers = #tpu.dot_dimension_numbers<[1], [0], [0], [1], [0, 0, 1, 1], [], []>} : vector<32x8xbf16>, vector<8x16xbf16>, vector<32x16xf32> -> vector<32x16xf32>
    %173 = arith.addf %165, %172 : vector<32x16xf32>
    %c8_144 = arith.constant 8 : index
    %c0_145 = arith.constant 0 : index
    %c0_146 = arith.constant 0 : index
    %174 = vector.load %arg7[%c8_144, %c0_145, %c0_146] : memref<9x32x128xbf16, #tpu.memory_space<vmem>>, vector<1x32x128xbf16>
    %175 = vector.shape_cast %174 : vector<1x32x128xbf16> to vector<32x128xbf16>
    %cst_147 = arith.constant dense<0.000000e+00> : vector<32x8xf32>
    %176 = tpu.matmul %175, %108, %cst_147 {dimension_numbers = #tpu.dot_dimension_numbers<[1], [0], [0], [1], [0, 0, 1, 1], [], []>} : vector<32x128xbf16>, vector<128x8xbf16>, vector<32x8xf32> -> vector<32x8xf32>
    %177 = arith.truncf %176 : vector<32x8xf32> to vector<32x8xbf16>
    %c8_148 = arith.constant 8 : index
    %c0_149 = arith.constant 0 : index
    %c0_150 = arith.constant 0 : index
    %178 = vector.load %arg8[%c8_148, %c0_149, %c0_150] : memref<9x8x16xbf16, #tpu.memory_space<vmem>>, vector<1x8x16xbf16>
    %179 = vector.shape_cast %178 : vector<1x8x16xbf16> to vector<8x16xbf16>
    %cst_151 = arith.constant dense<0.000000e+00> : vector<32x16xf32>
    %180 = tpu.matmul %177, %179, %cst_151 {dimension_numbers = #tpu.dot_dimension_numbers<[1], [0], [0], [1], [0, 0, 1, 1], [], []>} : vector<32x8xbf16>, vector<8x16xbf16>, vector<32x16xf32> -> vector<32x16xf32>
    %181 = arith.addf %173, %180 : vector<32x16xf32>
    %c0_152 = arith.constant 0 : index
    %c0_153 = arith.constant 0 : index
    %182 = vector.load %arg9[%c0_152, %c0_153] : memref<1x16xf32, #tpu.memory_space<vmem>>, vector<1x16xf32>
    %183 = vector.broadcast %182 : vector<1x16xf32> to vector<32x16xf32>
    %184 = arith.addf %181, %183 : vector<32x16xf32>
    %cst_154 = arith.constant dense<0.000000e+00> : vector<16xf32>
    %185 = vector.multi_reduction <add>, %184, %cst_154 [0] : vector<32x16xf32> to vector<16xf32>
    %186 = vector.shape_cast %185 : vector<16xf32> to vector<1x16xf32>
    %cst_155 = arith.constant 3.200000e+01 : f32
    %187 = vector.broadcast %cst_155 : f32 to vector<1x16xf32>
    %188 = arith.divf %186, %187 : vector<1x16xf32>
    %189 = arith.mulf %184, %184 : vector<32x16xf32>
    %cst_156 = arith.constant dense<0.000000e+00> : vector<16xf32>
    %190 = vector.multi_reduction <add>, %189, %cst_156 [0] : vector<32x16xf32> to vector<16xf32>
    %191 = vector.shape_cast %190 : vector<16xf32> to vector<1x16xf32>
    %cst_157 = arith.constant 3.200000e+01 : f32
    %192 = vector.broadcast %cst_157 : f32 to vector<1x16xf32>
    %193 = arith.divf %191, %192 : vector<1x16xf32>
    %194 = arith.mulf %188, %188 : vector<1x16xf32>
    %195 = arith.subf %193, %194 : vector<1x16xf32>
    %cst_158 = arith.constant 0.000000e+00 : f32
    %196 = vector.broadcast %cst_158 : f32 to vector<1x16xf32>
    %197 = arith.maximumf %195, %196 : vector<1x16xf32>
    %198 = vector.broadcast %188 : vector<1x16xf32> to vector<32x16xf32>
    %199 = arith.subf %184, %198 : vector<32x16xf32>
    %cst_159 = arith.constant 9.99999974E-6 : f32
    %200 = vector.broadcast %cst_159 : f32 to vector<1x16xf32>
    %201 = arith.addf %197, %200 : vector<1x16xf32>
    %202 = math.rsqrt %201 : vector<1x16xf32>
    %203 = vector.broadcast %202 : vector<1x16xf32> to vector<32x16xf32>
    %204 = arith.mulf %199, %203 : vector<32x16xf32>
    %c0_160 = arith.constant 0 : index
    %c0_161 = arith.constant 0 : index
    %205 = vector.load %arg10[%c0_160, %c0_161] : memref<1x16xf32, #tpu.memory_space<vmem>>, vector<1x16xf32>
    %206 = vector.broadcast %205 : vector<1x16xf32> to vector<32x16xf32>
    %207 = arith.mulf %204, %206 : vector<32x16xf32>
    %c0_162 = arith.constant 0 : index
    %c0_163 = arith.constant 0 : index
    %208 = vector.load %arg11[%c0_162, %c0_163] : memref<1x16xf32, #tpu.memory_space<vmem>>, vector<1x16xf32>
    %209 = vector.broadcast %208 : vector<1x16xf32> to vector<32x16xf32>
    %210 = arith.addf %207, %209 : vector<32x16xf32>
    %cst_164 = arith.constant 0.000000e+00 : f32
    %211 = vector.broadcast %cst_164 : f32 to vector<32x16xf32>
    %212 = arith.cmpf oge, %210, %211 : vector<32x16xf32>
    %cst_165 = arith.constant 0.00999999977 : f32
    %213 = vector.broadcast %cst_165 : f32 to vector<32x16xf32>
    %214 = arith.mulf %213, %210 : vector<32x16xf32>
    %215 = arith.select %212, %210, %214 : vector<32x16xi1>, vector<32x16xf32>
    %216 = arith.truncf %215 : vector<32x16xf32> to vector<32x16xbf16>
    %cst_166 = arith.constant 0.000000e+00 : f32
    %217 = vector.broadcast %cst_166 : f32 to vector<2x32xf32>
    %c0_167 = arith.constant 0 : index
    %c0_168 = arith.constant 0 : index
    %c0_169 = arith.constant 0 : index
    %218 = vector.load %arg12[%c0_167, %c0_168, %c0_169] : memref<9x2x32xbf16, #tpu.memory_space<vmem>>, vector<1x2x32xbf16>
    %219 = vector.shape_cast %218 : vector<1x2x32xbf16> to vector<2x32xbf16>
    %cst_170 = arith.constant dense<0.000000e+00> : vector<2x16xf32>
    %220 = tpu.matmul %219, %216, %cst_170 {dimension_numbers = #tpu.dot_dimension_numbers<[1], [0], [0], [1], [0, 0, 1, 1], [], []>} : vector<2x32xbf16>, vector<32x16xbf16>, vector<2x16xf32> -> vector<2x16xf32>
    %221 = arith.truncf %220 : vector<2x16xf32> to vector<2x16xbf16>
    %c0_171 = arith.constant 0 : index
    %c0_172 = arith.constant 0 : index
    %c0_173 = arith.constant 0 : index
    %222 = vector.load %arg13[%c0_171, %c0_172, %c0_173] : memref<9x16x32xbf16, #tpu.memory_space<vmem>>, vector<1x16x32xbf16>
    %223 = vector.shape_cast %222 : vector<1x16x32xbf16> to vector<16x32xbf16>
    %cst_174 = arith.constant dense<0.000000e+00> : vector<2x32xf32>
    %224 = tpu.matmul %221, %223, %cst_174 {dimension_numbers = #tpu.dot_dimension_numbers<[1], [0], [0], [1], [0, 0, 1, 1], [], []>} : vector<2x16xbf16>, vector<16x32xbf16>, vector<2x32xf32> -> vector<2x32xf32>
    %225 = arith.addf %217, %224 : vector<2x32xf32>
    %c1_175 = arith.constant 1 : index
    %c0_176 = arith.constant 0 : index
    %c0_177 = arith.constant 0 : index
    %226 = vector.load %arg12[%c1_175, %c0_176, %c0_177] : memref<9x2x32xbf16, #tpu.memory_space<vmem>>, vector<1x2x32xbf16>
    %227 = vector.shape_cast %226 : vector<1x2x32xbf16> to vector<2x32xbf16>
    %cst_178 = arith.constant dense<0.000000e+00> : vector<2x16xf32>
    %228 = tpu.matmul %227, %216, %cst_178 {dimension_numbers = #tpu.dot_dimension_numbers<[1], [0], [0], [1], [0, 0, 1, 1], [], []>} : vector<2x32xbf16>, vector<32x16xbf16>, vector<2x16xf32> -> vector<2x16xf32>
    %229 = arith.truncf %228 : vector<2x16xf32> to vector<2x16xbf16>
    %c1_179 = arith.constant 1 : index
    %c0_180 = arith.constant 0 : index
    %c0_181 = arith.constant 0 : index
    %230 = vector.load %arg13[%c1_179, %c0_180, %c0_181] : memref<9x16x32xbf16, #tpu.memory_space<vmem>>, vector<1x16x32xbf16>
    %231 = vector.shape_cast %230 : vector<1x16x32xbf16> to vector<16x32xbf16>
    %cst_182 = arith.constant dense<0.000000e+00> : vector<2x32xf32>
    %232 = tpu.matmul %229, %231, %cst_182 {dimension_numbers = #tpu.dot_dimension_numbers<[1], [0], [0], [1], [0, 0, 1, 1], [], []>} : vector<2x16xbf16>, vector<16x32xbf16>, vector<2x32xf32> -> vector<2x32xf32>
    %233 = arith.addf %225, %232 : vector<2x32xf32>
    %c2_183 = arith.constant 2 : index
    %c0_184 = arith.constant 0 : index
    %c0_185 = arith.constant 0 : index
    %234 = vector.load %arg12[%c2_183, %c0_184, %c0_185] : memref<9x2x32xbf16, #tpu.memory_space<vmem>>, vector<1x2x32xbf16>
    %235 = vector.shape_cast %234 : vector<1x2x32xbf16> to vector<2x32xbf16>
    %cst_186 = arith.constant dense<0.000000e+00> : vector<2x16xf32>
    %236 = tpu.matmul %235, %216, %cst_186 {dimension_numbers = #tpu.dot_dimension_numbers<[1], [0], [0], [1], [0, 0, 1, 1], [], []>} : vector<2x32xbf16>, vector<32x16xbf16>, vector<2x16xf32> -> vector<2x16xf32>
    %237 = arith.truncf %236 : vector<2x16xf32> to vector<2x16xbf16>
    %c2_187 = arith.constant 2 : index
    %c0_188 = arith.constant 0 : index
    %c0_189 = arith.constant 0 : index
    %238 = vector.load %arg13[%c2_187, %c0_188, %c0_189] : memref<9x16x32xbf16, #tpu.memory_space<vmem>>, vector<1x16x32xbf16>
    %239 = vector.shape_cast %238 : vector<1x16x32xbf16> to vector<16x32xbf16>
    %cst_190 = arith.constant dense<0.000000e+00> : vector<2x32xf32>
    %240 = tpu.matmul %237, %239, %cst_190 {dimension_numbers = #tpu.dot_dimension_numbers<[1], [0], [0], [1], [0, 0, 1, 1], [], []>} : vector<2x16xbf16>, vector<16x32xbf16>, vector<2x32xf32> -> vector<2x32xf32>
    %241 = arith.addf %233, %240 : vector<2x32xf32>
    %c3_191 = arith.constant 3 : index
    %c0_192 = arith.constant 0 : index
    %c0_193 = arith.constant 0 : index
    %242 = vector.load %arg12[%c3_191, %c0_192, %c0_193] : memref<9x2x32xbf16, #tpu.memory_space<vmem>>, vector<1x2x32xbf16>
    %243 = vector.shape_cast %242 : vector<1x2x32xbf16> to vector<2x32xbf16>
    %cst_194 = arith.constant dense<0.000000e+00> : vector<2x16xf32>
    %244 = tpu.matmul %243, %216, %cst_194 {dimension_numbers = #tpu.dot_dimension_numbers<[1], [0], [0], [1], [0, 0, 1, 1], [], []>} : vector<2x32xbf16>, vector<32x16xbf16>, vector<2x16xf32> -> vector<2x16xf32>
    %245 = arith.truncf %244 : vector<2x16xf32> to vector<2x16xbf16>
    %c3_195 = arith.constant 3 : index
    %c0_196 = arith.constant 0 : index
    %c0_197 = arith.constant 0 : index
    %246 = vector.load %arg13[%c3_195, %c0_196, %c0_197] : memref<9x16x32xbf16, #tpu.memory_space<vmem>>, vector<1x16x32xbf16>
    %247 = vector.shape_cast %246 : vector<1x16x32xbf16> to vector<16x32xbf16>
    %cst_198 = arith.constant dense<0.000000e+00> : vector<2x32xf32>
    %248 = tpu.matmul %245, %247, %cst_198 {dimension_numbers = #tpu.dot_dimension_numbers<[1], [0], [0], [1], [0, 0, 1, 1], [], []>} : vector<2x16xbf16>, vector<16x32xbf16>, vector<2x32xf32> -> vector<2x32xf32>
    %249 = arith.addf %241, %248 : vector<2x32xf32>
    %c4_199 = arith.constant 4 : index
    %c0_200 = arith.constant 0 : index
    %c0_201 = arith.constant 0 : index
    %250 = vector.load %arg12[%c4_199, %c0_200, %c0_201] : memref<9x2x32xbf16, #tpu.memory_space<vmem>>, vector<1x2x32xbf16>
    %251 = vector.shape_cast %250 : vector<1x2x32xbf16> to vector<2x32xbf16>
    %cst_202 = arith.constant dense<0.000000e+00> : vector<2x16xf32>
    %252 = tpu.matmul %251, %216, %cst_202 {dimension_numbers = #tpu.dot_dimension_numbers<[1], [0], [0], [1], [0, 0, 1, 1], [], []>} : vector<2x32xbf16>, vector<32x16xbf16>, vector<2x16xf32> -> vector<2x16xf32>
    %253 = arith.truncf %252 : vector<2x16xf32> to vector<2x16xbf16>
    %c4_203 = arith.constant 4 : index
    %c0_204 = arith.constant 0 : index
    %c0_205 = arith.constant 0 : index
    %254 = vector.load %arg13[%c4_203, %c0_204, %c0_205] : memref<9x16x32xbf16, #tpu.memory_space<vmem>>, vector<1x16x32xbf16>
    %255 = vector.shape_cast %254 : vector<1x16x32xbf16> to vector<16x32xbf16>
    %cst_206 = arith.constant dense<0.000000e+00> : vector<2x32xf32>
    %256 = tpu.matmul %253, %255, %cst_206 {dimension_numbers = #tpu.dot_dimension_numbers<[1], [0], [0], [1], [0, 0, 1, 1], [], []>} : vector<2x16xbf16>, vector<16x32xbf16>, vector<2x32xf32> -> vector<2x32xf32>
    %257 = arith.addf %249, %256 : vector<2x32xf32>
    %c5_207 = arith.constant 5 : index
    %c0_208 = arith.constant 0 : index
    %c0_209 = arith.constant 0 : index
    %258 = vector.load %arg12[%c5_207, %c0_208, %c0_209] : memref<9x2x32xbf16, #tpu.memory_space<vmem>>, vector<1x2x32xbf16>
    %259 = vector.shape_cast %258 : vector<1x2x32xbf16> to vector<2x32xbf16>
    %cst_210 = arith.constant dense<0.000000e+00> : vector<2x16xf32>
    %260 = tpu.matmul %259, %216, %cst_210 {dimension_numbers = #tpu.dot_dimension_numbers<[1], [0], [0], [1], [0, 0, 1, 1], [], []>} : vector<2x32xbf16>, vector<32x16xbf16>, vector<2x16xf32> -> vector<2x16xf32>
    %261 = arith.truncf %260 : vector<2x16xf32> to vector<2x16xbf16>
    %c5_211 = arith.constant 5 : index
    %c0_212 = arith.constant 0 : index
    %c0_213 = arith.constant 0 : index
    %262 = vector.load %arg13[%c5_211, %c0_212, %c0_213] : memref<9x16x32xbf16, #tpu.memory_space<vmem>>, vector<1x16x32xbf16>
    %263 = vector.shape_cast %262 : vector<1x16x32xbf16> to vector<16x32xbf16>
    %cst_214 = arith.constant dense<0.000000e+00> : vector<2x32xf32>
    %264 = tpu.matmul %261, %263, %cst_214 {dimension_numbers = #tpu.dot_dimension_numbers<[1], [0], [0], [1], [0, 0, 1, 1], [], []>} : vector<2x16xbf16>, vector<16x32xbf16>, vector<2x32xf32> -> vector<2x32xf32>
    %265 = arith.addf %257, %264 : vector<2x32xf32>
    %c6_215 = arith.constant 6 : index
    %c0_216 = arith.constant 0 : index
    %c0_217 = arith.constant 0 : index
    %266 = vector.load %arg12[%c6_215, %c0_216, %c0_217] : memref<9x2x32xbf16, #tpu.memory_space<vmem>>, vector<1x2x32xbf16>
    %267 = vector.shape_cast %266 : vector<1x2x32xbf16> to vector<2x32xbf16>
    %cst_218 = arith.constant dense<0.000000e+00> : vector<2x16xf32>
    %268 = tpu.matmul %267, %216, %cst_218 {dimension_numbers = #tpu.dot_dimension_numbers<[1], [0], [0], [1], [0, 0, 1, 1], [], []>} : vector<2x32xbf16>, vector<32x16xbf16>, vector<2x16xf32> -> vector<2x16xf32>
    %269 = arith.truncf %268 : vector<2x16xf32> to vector<2x16xbf16>
    %c6_219 = arith.constant 6 : index
    %c0_220 = arith.constant 0 : index
    %c0_221 = arith.constant 0 : index
    %270 = vector.load %arg13[%c6_219, %c0_220, %c0_221] : memref<9x16x32xbf16, #tpu.memory_space<vmem>>, vector<1x16x32xbf16>
    %271 = vector.shape_cast %270 : vector<1x16x32xbf16> to vector<16x32xbf16>
    %cst_222 = arith.constant dense<0.000000e+00> : vector<2x32xf32>
    %272 = tpu.matmul %269, %271, %cst_222 {dimension_numbers = #tpu.dot_dimension_numbers<[1], [0], [0], [1], [0, 0, 1, 1], [], []>} : vector<2x16xbf16>, vector<16x32xbf16>, vector<2x32xf32> -> vector<2x32xf32>
    %273 = arith.addf %265, %272 : vector<2x32xf32>
    %c7_223 = arith.constant 7 : index
    %c0_224 = arith.constant 0 : index
    %c0_225 = arith.constant 0 : index
    %274 = vector.load %arg12[%c7_223, %c0_224, %c0_225] : memref<9x2x32xbf16, #tpu.memory_space<vmem>>, vector<1x2x32xbf16>
    %275 = vector.shape_cast %274 : vector<1x2x32xbf16> to vector<2x32xbf16>
    %cst_226 = arith.constant dense<0.000000e+00> : vector<2x16xf32>
    %276 = tpu.matmul %275, %216, %cst_226 {dimension_numbers = #tpu.dot_dimension_numbers<[1], [0], [0], [1], [0, 0, 1, 1], [], []>} : vector<2x32xbf16>, vector<32x16xbf16>, vector<2x16xf32> -> vector<2x16xf32>
    %277 = arith.truncf %276 : vector<2x16xf32> to vector<2x16xbf16>
    %c7_227 = arith.constant 7 : index
    %c0_228 = arith.constant 0 : index
    %c0_229 = arith.constant 0 : index
    %278 = vector.load %arg13[%c7_227, %c0_228, %c0_229] : memref<9x16x32xbf16, #tpu.memory_space<vmem>>, vector<1x16x32xbf16>
    %279 = vector.shape_cast %278 : vector<1x16x32xbf16> to vector<16x32xbf16>
    %cst_230 = arith.constant dense<0.000000e+00> : vector<2x32xf32>
    %280 = tpu.matmul %277, %279, %cst_230 {dimension_numbers = #tpu.dot_dimension_numbers<[1], [0], [0], [1], [0, 0, 1, 1], [], []>} : vector<2x16xbf16>, vector<16x32xbf16>, vector<2x32xf32> -> vector<2x32xf32>
    %281 = arith.addf %273, %280 : vector<2x32xf32>
    %c8_231 = arith.constant 8 : index
    %c0_232 = arith.constant 0 : index
    %c0_233 = arith.constant 0 : index
    %282 = vector.load %arg12[%c8_231, %c0_232, %c0_233] : memref<9x2x32xbf16, #tpu.memory_space<vmem>>, vector<1x2x32xbf16>
    %283 = vector.shape_cast %282 : vector<1x2x32xbf16> to vector<2x32xbf16>
    %cst_234 = arith.constant dense<0.000000e+00> : vector<2x16xf32>
    %284 = tpu.matmul %283, %216, %cst_234 {dimension_numbers = #tpu.dot_dimension_numbers<[1], [0], [0], [1], [0, 0, 1, 1], [], []>} : vector<2x32xbf16>, vector<32x16xbf16>, vector<2x16xf32> -> vector<2x16xf32>
    %285 = arith.truncf %284 : vector<2x16xf32> to vector<2x16xbf16>
    %c8_235 = arith.constant 8 : index
    %c0_236 = arith.constant 0 : index
    %c0_237 = arith.constant 0 : index
    %286 = vector.load %arg13[%c8_235, %c0_236, %c0_237] : memref<9x16x32xbf16, #tpu.memory_space<vmem>>, vector<1x16x32xbf16>
    %287 = vector.shape_cast %286 : vector<1x16x32xbf16> to vector<16x32xbf16>
    %cst_238 = arith.constant dense<0.000000e+00> : vector<2x32xf32>
    %288 = tpu.matmul %285, %287, %cst_238 {dimension_numbers = #tpu.dot_dimension_numbers<[1], [0], [0], [1], [0, 0, 1, 1], [], []>} : vector<2x16xbf16>, vector<16x32xbf16>, vector<2x32xf32> -> vector<2x32xf32>
    %289 = arith.addf %281, %288 : vector<2x32xf32>
    %c0_239 = arith.constant 0 : index
    %c0_240 = arith.constant 0 : index
    %290 = vector.load %arg14[%c0_239, %c0_240] : memref<1x32xf32, #tpu.memory_space<vmem>>, vector<1x32xf32>
    %291 = vector.broadcast %290 : vector<1x32xf32> to vector<2x32xf32>
    %292 = arith.addf %289, %291 : vector<2x32xf32>
    %cst_241 = arith.constant dense<0.000000e+00> : vector<32xf32>
    %293 = vector.multi_reduction <add>, %292, %cst_241 [0] : vector<2x32xf32> to vector<32xf32>
    %294 = vector.shape_cast %293 : vector<32xf32> to vector<1x32xf32>
    %cst_242 = arith.constant 2.000000e+00 : f32
    %295 = vector.broadcast %cst_242 : f32 to vector<1x32xf32>
    %296 = arith.divf %294, %295 : vector<1x32xf32>
    %297 = arith.mulf %292, %292 : vector<2x32xf32>
    %cst_243 = arith.constant dense<0.000000e+00> : vector<32xf32>
    %298 = vector.multi_reduction <add>, %297, %cst_243 [0] : vector<2x32xf32> to vector<32xf32>
    %299 = vector.shape_cast %298 : vector<32xf32> to vector<1x32xf32>
    %cst_244 = arith.constant 2.000000e+00 : f32
    %300 = vector.broadcast %cst_244 : f32 to vector<1x32xf32>
    %301 = arith.divf %299, %300 : vector<1x32xf32>
    %302 = arith.mulf %296, %296 : vector<1x32xf32>
    %303 = arith.subf %301, %302 : vector<1x32xf32>
    %cst_245 = arith.constant 0.000000e+00 : f32
    %304 = vector.broadcast %cst_245 : f32 to vector<1x32xf32>
    %305 = arith.maximumf %303, %304 : vector<1x32xf32>
    %306 = vector.broadcast %296 : vector<1x32xf32> to vector<2x32xf32>
    %307 = arith.subf %292, %306 : vector<2x32xf32>
    %cst_246 = arith.constant 9.99999974E-6 : f32
    %308 = vector.broadcast %cst_246 : f32 to vector<1x32xf32>
    %309 = arith.addf %305, %308 : vector<1x32xf32>
    %310 = math.rsqrt %309 : vector<1x32xf32>
    %311 = vector.broadcast %310 : vector<1x32xf32> to vector<2x32xf32>
    %312 = arith.mulf %307, %311 : vector<2x32xf32>
    %c0_247 = arith.constant 0 : index
    %c0_248 = arith.constant 0 : index
    %313 = vector.load %arg15[%c0_247, %c0_248] : memref<1x32xf32, #tpu.memory_space<vmem>>, vector<1x32xf32>
    %314 = vector.broadcast %313 : vector<1x32xf32> to vector<2x32xf32>
    %315 = arith.mulf %312, %314 : vector<2x32xf32>
    %c0_249 = arith.constant 0 : index
    %c0_250 = arith.constant 0 : index
    %316 = vector.load %arg16[%c0_249, %c0_250] : memref<1x32xf32, #tpu.memory_space<vmem>>, vector<1x32xf32>
    %317 = vector.broadcast %316 : vector<1x32xf32> to vector<2x32xf32>
    %318 = arith.addf %315, %317 : vector<2x32xf32>
    %cst_251 = arith.constant 0.000000e+00 : f32
    %319 = vector.broadcast %cst_251 : f32 to vector<2x32xf32>
    %320 = arith.cmpf oge, %318, %319 : vector<2x32xf32>
    %cst_252 = arith.constant 0.00999999977 : f32
    %321 = vector.broadcast %cst_252 : f32 to vector<2x32xf32>
    %322 = arith.mulf %321, %318 : vector<2x32xf32>
    %323 = arith.select %320, %318, %322 : vector<2x32xi1>, vector<2x32xf32>
    %324 = arith.truncf %323 : vector<2x32xf32> to vector<2x32xbf16>
    %cst_253 = arith.constant 0.000000e+00 : f32
    %325 = vector.broadcast %cst_253 : f32 to vector<2x64xf32>
    %c0_254 = arith.constant 0 : index
    %c0_255 = arith.constant 0 : index
    %c0_256 = arith.constant 0 : index
    %326 = vector.load %arg17[%c0_254, %c0_255, %c0_256] : memref<9x2x2xbf16, #tpu.memory_space<vmem>>, vector<1x2x2xbf16>
    %327 = vector.shape_cast %326 : vector<1x2x2xbf16> to vector<2x2xbf16>
    %cst_257 = arith.constant dense<0.000000e+00> : vector<2x32xf32>
    %328 = tpu.matmul %327, %324, %cst_257 {dimension_numbers = #tpu.dot_dimension_numbers<[1], [0], [0], [1], [0, 0, 1, 1], [], []>} : vector<2x2xbf16>, vector<2x32xbf16>, vector<2x32xf32> -> vector<2x32xf32>
    %329 = arith.truncf %328 : vector<2x32xf32> to vector<2x32xbf16>
    %c0_258 = arith.constant 0 : index
    %c0_259 = arith.constant 0 : index
    %c0_260 = arith.constant 0 : index
    %330 = vector.load %arg18[%c0_258, %c0_259, %c0_260] : memref<9x32x64xbf16, #tpu.memory_space<vmem>>, vector<1x32x64xbf16>
    %331 = vector.shape_cast %330 : vector<1x32x64xbf16> to vector<32x64xbf16>
    %cst_261 = arith.constant dense<0.000000e+00> : vector<2x64xf32>
    %332 = tpu.matmul %329, %331, %cst_261 {dimension_numbers = #tpu.dot_dimension_numbers<[1], [0], [0], [1], [0, 0, 1, 1], [], []>} : vector<2x32xbf16>, vector<32x64xbf16>, vector<2x64xf32> -> vector<2x64xf32>
    %333 = arith.addf %325, %332 : vector<2x64xf32>
    %c1_262 = arith.constant 1 : index
    %c0_263 = arith.constant 0 : index
    %c0_264 = arith.constant 0 : index
    %334 = vector.load %arg17[%c1_262, %c0_263, %c0_264] : memref<9x2x2xbf16, #tpu.memory_space<vmem>>, vector<1x2x2xbf16>
    %335 = vector.shape_cast %334 : vector<1x2x2xbf16> to vector<2x2xbf16>
    %cst_265 = arith.constant dense<0.000000e+00> : vector<2x32xf32>
    %336 = tpu.matmul %335, %324, %cst_265 {dimension_numbers = #tpu.dot_dimension_numbers<[1], [0], [0], [1], [0, 0, 1, 1], [], []>} : vector<2x2xbf16>, vector<2x32xbf16>, vector<2x32xf32> -> vector<2x32xf32>
    %337 = arith.truncf %336 : vector<2x32xf32> to vector<2x32xbf16>
    %c1_266 = arith.constant 1 : index
    %c0_267 = arith.constant 0 : index
    %c0_268 = arith.constant 0 : index
    %338 = vector.load %arg18[%c1_266, %c0_267, %c0_268] : memref<9x32x64xbf16, #tpu.memory_space<vmem>>, vector<1x32x64xbf16>
    %339 = vector.shape_cast %338 : vector<1x32x64xbf16> to vector<32x64xbf16>
    %cst_269 = arith.constant dense<0.000000e+00> : vector<2x64xf32>
    %340 = tpu.matmul %337, %339, %cst_269 {dimension_numbers = #tpu.dot_dimension_numbers<[1], [0], [0], [1], [0, 0, 1, 1], [], []>} : vector<2x32xbf16>, vector<32x64xbf16>, vector<2x64xf32> -> vector<2x64xf32>
    %341 = arith.addf %333, %340 : vector<2x64xf32>
    %c2_270 = arith.constant 2 : index
    %c0_271 = arith.constant 0 : index
    %c0_272 = arith.constant 0 : index
    %342 = vector.load %arg17[%c2_270, %c0_271, %c0_272] : memref<9x2x2xbf16, #tpu.memory_space<vmem>>, vector<1x2x2xbf16>
    %343 = vector.shape_cast %342 : vector<1x2x2xbf16> to vector<2x2xbf16>
    %cst_273 = arith.constant dense<0.000000e+00> : vector<2x32xf32>
    %344 = tpu.matmul %343, %324, %cst_273 {dimension_numbers = #tpu.dot_dimension_numbers<[1], [0], [0], [1], [0, 0, 1, 1], [], []>} : vector<2x2xbf16>, vector<2x32xbf16>, vector<2x32xf32> -> vector<2x32xf32>
    %345 = arith.truncf %344 : vector<2x32xf32> to vector<2x32xbf16>
    %c2_274 = arith.constant 2 : index
    %c0_275 = arith.constant 0 : index
    %c0_276 = arith.constant 0 : index
    %346 = vector.load %arg18[%c2_274, %c0_275, %c0_276] : memref<9x32x64xbf16, #tpu.memory_space<vmem>>, vector<1x32x64xbf16>
    %347 = vector.shape_cast %346 : vector<1x32x64xbf16> to vector<32x64xbf16>
    %cst_277 = arith.constant dense<0.000000e+00> : vector<2x64xf32>
    %348 = tpu.matmul %345, %347, %cst_277 {dimension_numbers = #tpu.dot_dimension_numbers<[1], [0], [0], [1], [0, 0, 1, 1], [], []>} : vector<2x32xbf16>, vector<32x64xbf16>, vector<2x64xf32> -> vector<2x64xf32>
    %349 = arith.addf %341, %348 : vector<2x64xf32>
    %c3_278 = arith.constant 3 : index
    %c0_279 = arith.constant 0 : index
    %c0_280 = arith.constant 0 : index
    %350 = vector.load %arg17[%c3_278, %c0_279, %c0_280] : memref<9x2x2xbf16, #tpu.memory_space<vmem>>, vector<1x2x2xbf16>
    %351 = vector.shape_cast %350 : vector<1x2x2xbf16> to vector<2x2xbf16>
    %cst_281 = arith.constant dense<0.000000e+00> : vector<2x32xf32>
    %352 = tpu.matmul %351, %324, %cst_281 {dimension_numbers = #tpu.dot_dimension_numbers<[1], [0], [0], [1], [0, 0, 1, 1], [], []>} : vector<2x2xbf16>, vector<2x32xbf16>, vector<2x32xf32> -> vector<2x32xf32>
    %353 = arith.truncf %352 : vector<2x32xf32> to vector<2x32xbf16>
    %c3_282 = arith.constant 3 : index
    %c0_283 = arith.constant 0 : index
    %c0_284 = arith.constant 0 : index
    %354 = vector.load %arg18[%c3_282, %c0_283, %c0_284] : memref<9x32x64xbf16, #tpu.memory_space<vmem>>, vector<1x32x64xbf16>
    %355 = vector.shape_cast %354 : vector<1x32x64xbf16> to vector<32x64xbf16>
    %cst_285 = arith.constant dense<0.000000e+00> : vector<2x64xf32>
    %356 = tpu.matmul %353, %355, %cst_285 {dimension_numbers = #tpu.dot_dimension_numbers<[1], [0], [0], [1], [0, 0, 1, 1], [], []>} : vector<2x32xbf16>, vector<32x64xbf16>, vector<2x64xf32> -> vector<2x64xf32>
    %357 = arith.addf %349, %356 : vector<2x64xf32>
    %c4_286 = arith.constant 4 : index
    %c0_287 = arith.constant 0 : index
    %c0_288 = arith.constant 0 : index
    %358 = vector.load %arg17[%c4_286, %c0_287, %c0_288] : memref<9x2x2xbf16, #tpu.memory_space<vmem>>, vector<1x2x2xbf16>
    %359 = vector.shape_cast %358 : vector<1x2x2xbf16> to vector<2x2xbf16>
    %cst_289 = arith.constant dense<0.000000e+00> : vector<2x32xf32>
    %360 = tpu.matmul %359, %324, %cst_289 {dimension_numbers = #tpu.dot_dimension_numbers<[1], [0], [0], [1], [0, 0, 1, 1], [], []>} : vector<2x2xbf16>, vector<2x32xbf16>, vector<2x32xf32> -> vector<2x32xf32>
    %361 = arith.truncf %360 : vector<2x32xf32> to vector<2x32xbf16>
    %c4_290 = arith.constant 4 : index
    %c0_291 = arith.constant 0 : index
    %c0_292 = arith.constant 0 : index
    %362 = vector.load %arg18[%c4_290, %c0_291, %c0_292] : memref<9x32x64xbf16, #tpu.memory_space<vmem>>, vector<1x32x64xbf16>
    %363 = vector.shape_cast %362 : vector<1x32x64xbf16> to vector<32x64xbf16>
    %cst_293 = arith.constant dense<0.000000e+00> : vector<2x64xf32>
    %364 = tpu.matmul %361, %363, %cst_293 {dimension_numbers = #tpu.dot_dimension_numbers<[1], [0], [0], [1], [0, 0, 1, 1], [], []>} : vector<2x32xbf16>, vector<32x64xbf16>, vector<2x64xf32> -> vector<2x64xf32>
    %365 = arith.addf %357, %364 : vector<2x64xf32>
    %c5_294 = arith.constant 5 : index
    %c0_295 = arith.constant 0 : index
    %c0_296 = arith.constant 0 : index
    %366 = vector.load %arg17[%c5_294, %c0_295, %c0_296] : memref<9x2x2xbf16, #tpu.memory_space<vmem>>, vector<1x2x2xbf16>
    %367 = vector.shape_cast %366 : vector<1x2x2xbf16> to vector<2x2xbf16>
    %cst_297 = arith.constant dense<0.000000e+00> : vector<2x32xf32>
    %368 = tpu.matmul %367, %324, %cst_297 {dimension_numbers = #tpu.dot_dimension_numbers<[1], [0], [0], [1], [0, 0, 1, 1], [], []>} : vector<2x2xbf16>, vector<2x32xbf16>, vector<2x32xf32> -> vector<2x32xf32>
    %369 = arith.truncf %368 : vector<2x32xf32> to vector<2x32xbf16>
    %c5_298 = arith.constant 5 : index
    %c0_299 = arith.constant 0 : index
    %c0_300 = arith.constant 0 : index
    %370 = vector.load %arg18[%c5_298, %c0_299, %c0_300] : memref<9x32x64xbf16, #tpu.memory_space<vmem>>, vector<1x32x64xbf16>
    %371 = vector.shape_cast %370 : vector<1x32x64xbf16> to vector<32x64xbf16>
    %cst_301 = arith.constant dense<0.000000e+00> : vector<2x64xf32>
    %372 = tpu.matmul %369, %371, %cst_301 {dimension_numbers = #tpu.dot_dimension_numbers<[1], [0], [0], [1], [0, 0, 1, 1], [], []>} : vector<2x32xbf16>, vector<32x64xbf16>, vector<2x64xf32> -> vector<2x64xf32>
    %373 = arith.addf %365, %372 : vector<2x64xf32>
    %c6_302 = arith.constant 6 : index
    %c0_303 = arith.constant 0 : index
    %c0_304 = arith.constant 0 : index
    %374 = vector.load %arg17[%c6_302, %c0_303, %c0_304] : memref<9x2x2xbf16, #tpu.memory_space<vmem>>, vector<1x2x2xbf16>
    %375 = vector.shape_cast %374 : vector<1x2x2xbf16> to vector<2x2xbf16>
    %cst_305 = arith.constant dense<0.000000e+00> : vector<2x32xf32>
    %376 = tpu.matmul %375, %324, %cst_305 {dimension_numbers = #tpu.dot_dimension_numbers<[1], [0], [0], [1], [0, 0, 1, 1], [], []>} : vector<2x2xbf16>, vector<2x32xbf16>, vector<2x32xf32> -> vector<2x32xf32>
    %377 = arith.truncf %376 : vector<2x32xf32> to vector<2x32xbf16>
    %c6_306 = arith.constant 6 : index
    %c0_307 = arith.constant 0 : index
    %c0_308 = arith.constant 0 : index
    %378 = vector.load %arg18[%c6_306, %c0_307, %c0_308] : memref<9x32x64xbf16, #tpu.memory_space<vmem>>, vector<1x32x64xbf16>
    %379 = vector.shape_cast %378 : vector<1x32x64xbf16> to vector<32x64xbf16>
    %cst_309 = arith.constant dense<0.000000e+00> : vector<2x64xf32>
    %380 = tpu.matmul %377, %379, %cst_309 {dimension_numbers = #tpu.dot_dimension_numbers<[1], [0], [0], [1], [0, 0, 1, 1], [], []>} : vector<2x32xbf16>, vector<32x64xbf16>, vector<2x64xf32> -> vector<2x64xf32>
    %381 = arith.addf %373, %380 : vector<2x64xf32>
    %c7_310 = arith.constant 7 : index
    %c0_311 = arith.constant 0 : index
    %c0_312 = arith.constant 0 : index
    %382 = vector.load %arg17[%c7_310, %c0_311, %c0_312] : memref<9x2x2xbf16, #tpu.memory_space<vmem>>, vector<1x2x2xbf16>
    %383 = vector.shape_cast %382 : vector<1x2x2xbf16> to vector<2x2xbf16>
    %cst_313 = arith.constant dense<0.000000e+00> : vector<2x32xf32>
    %384 = tpu.matmul %383, %324, %cst_313 {dimension_numbers = #tpu.dot_dimension_numbers<[1], [0], [0], [1], [0, 0, 1, 1], [], []>} : vector<2x2xbf16>, vector<2x32xbf16>, vector<2x32xf32> -> vector<2x32xf32>
    %385 = arith.truncf %384 : vector<2x32xf32> to vector<2x32xbf16>
    %c7_314 = arith.constant 7 : index
    %c0_315 = arith.constant 0 : index
    %c0_316 = arith.constant 0 : index
    %386 = vector.load %arg18[%c7_314, %c0_315, %c0_316] : memref<9x32x64xbf16, #tpu.memory_space<vmem>>, vector<1x32x64xbf16>
    %387 = vector.shape_cast %386 : vector<1x32x64xbf16> to vector<32x64xbf16>
    %cst_317 = arith.constant dense<0.000000e+00> : vector<2x64xf32>
    %388 = tpu.matmul %385, %387, %cst_317 {dimension_numbers = #tpu.dot_dimension_numbers<[1], [0], [0], [1], [0, 0, 1, 1], [], []>} : vector<2x32xbf16>, vector<32x64xbf16>, vector<2x64xf32> -> vector<2x64xf32>
    %389 = arith.addf %381, %388 : vector<2x64xf32>
    %c8_318 = arith.constant 8 : index
    %c0_319 = arith.constant 0 : index
    %c0_320 = arith.constant 0 : index
    %390 = vector.load %arg17[%c8_318, %c0_319, %c0_320] : memref<9x2x2xbf16, #tpu.memory_space<vmem>>, vector<1x2x2xbf16>
    %391 = vector.shape_cast %390 : vector<1x2x2xbf16> to vector<2x2xbf16>
    %cst_321 = arith.constant dense<0.000000e+00> : vector<2x32xf32>
    %392 = tpu.matmul %391, %324, %cst_321 {dimension_numbers = #tpu.dot_dimension_numbers<[1], [0], [0], [1], [0, 0, 1, 1], [], []>} : vector<2x2xbf16>, vector<2x32xbf16>, vector<2x32xf32> -> vector<2x32xf32>
    %393 = arith.truncf %392 : vector<2x32xf32> to vector<2x32xbf16>
    %c8_322 = arith.constant 8 : index
    %c0_323 = arith.constant 0 : index
    %c0_324 = arith.constant 0 : index
    %394 = vector.load %arg18[%c8_322, %c0_323, %c0_324] : memref<9x32x64xbf16, #tpu.memory_space<vmem>>, vector<1x32x64xbf16>
    %395 = vector.shape_cast %394 : vector<1x32x64xbf16> to vector<32x64xbf16>
    %cst_325 = arith.constant dense<0.000000e+00> : vector<2x64xf32>
    %396 = tpu.matmul %393, %395, %cst_325 {dimension_numbers = #tpu.dot_dimension_numbers<[1], [0], [0], [1], [0, 0, 1, 1], [], []>} : vector<2x32xbf16>, vector<32x64xbf16>, vector<2x64xf32> -> vector<2x64xf32>
    %397 = arith.addf %389, %396 : vector<2x64xf32>
    %c0_326 = arith.constant 0 : index
    %c0_327 = arith.constant 0 : index
    %398 = vector.load %arg19[%c0_326, %c0_327] : memref<1x64xf32, #tpu.memory_space<vmem>>, vector<1x64xf32>
    %399 = vector.broadcast %398 : vector<1x64xf32> to vector<2x64xf32>
    %400 = arith.addf %397, %399 : vector<2x64xf32>
    %cst_328 = arith.constant dense<0.000000e+00> : vector<64xf32>
    %401 = vector.multi_reduction <add>, %400, %cst_328 [0] : vector<2x64xf32> to vector<64xf32>
    %402 = vector.shape_cast %401 : vector<64xf32> to vector<1x64xf32>
    %cst_329 = arith.constant 2.000000e+00 : f32
    %403 = vector.broadcast %cst_329 : f32 to vector<1x64xf32>
    %404 = arith.divf %402, %403 : vector<1x64xf32>
    %405 = arith.mulf %400, %400 : vector<2x64xf32>
    %cst_330 = arith.constant dense<0.000000e+00> : vector<64xf32>
    %406 = vector.multi_reduction <add>, %405, %cst_330 [0] : vector<2x64xf32> to vector<64xf32>
    %407 = vector.shape_cast %406 : vector<64xf32> to vector<1x64xf32>
    %cst_331 = arith.constant 2.000000e+00 : f32
    %408 = vector.broadcast %cst_331 : f32 to vector<1x64xf32>
    %409 = arith.divf %407, %408 : vector<1x64xf32>
    %410 = arith.mulf %404, %404 : vector<1x64xf32>
    %411 = arith.subf %409, %410 : vector<1x64xf32>
    %cst_332 = arith.constant 0.000000e+00 : f32
    %412 = vector.broadcast %cst_332 : f32 to vector<1x64xf32>
    %413 = arith.maximumf %411, %412 : vector<1x64xf32>
    %414 = vector.broadcast %404 : vector<1x64xf32> to vector<2x64xf32>
    %415 = arith.subf %400, %414 : vector<2x64xf32>
    %cst_333 = arith.constant 9.99999974E-6 : f32
    %416 = vector.broadcast %cst_333 : f32 to vector<1x64xf32>
    %417 = arith.addf %413, %416 : vector<1x64xf32>
    %418 = math.rsqrt %417 : vector<1x64xf32>
    %419 = vector.broadcast %418 : vector<1x64xf32> to vector<2x64xf32>
    %420 = arith.mulf %415, %419 : vector<2x64xf32>
    %c0_334 = arith.constant 0 : index
    %c0_335 = arith.constant 0 : index
    %421 = vector.load %arg20[%c0_334, %c0_335] : memref<1x64xf32, #tpu.memory_space<vmem>>, vector<1x64xf32>
    %422 = vector.broadcast %421 : vector<1x64xf32> to vector<2x64xf32>
    %423 = arith.mulf %420, %422 : vector<2x64xf32>
    %c0_336 = arith.constant 0 : index
    %c0_337 = arith.constant 0 : index
    %424 = vector.load %arg21[%c0_336, %c0_337] : memref<1x64xf32, #tpu.memory_space<vmem>>, vector<1x64xf32>
    %425 = vector.broadcast %424 : vector<1x64xf32> to vector<2x64xf32>
    %426 = arith.addf %423, %425 : vector<2x64xf32>
    %cst_338 = arith.constant 0.000000e+00 : f32
    %427 = vector.broadcast %cst_338 : f32 to vector<2x64xf32>
    %428 = arith.cmpf oge, %426, %427 : vector<2x64xf32>
    %cst_339 = arith.constant 0.00999999977 : f32
    %429 = vector.broadcast %cst_339 : f32 to vector<2x64xf32>
    %430 = arith.mulf %429, %426 : vector<2x64xf32>
    %431 = arith.select %428, %426, %430 : vector<2x64xi1>, vector<2x64xf32>
    %c0_340 = arith.constant 0 : index
    %c0_341 = arith.constant 0 : index
    %432 = vector.load %arg22[%c0_340, %c0_341] : memref<2x64xf32, #tpu.memory_space<vmem>>, vector<2x64xf32>
    tpu.vector_store %arg22[%c0_340, %c0_341], %431 {strides = array<i32>} : memref<2x64xf32, #tpu.memory_space<vmem>>, vector<2x64xf32>,
    return
  }
  func.func @transform_0(%arg0: i32) -> (i32, i32) {
    %c0_i32 = arith.constant 0 : i32
    %c0_i32_0 = arith.constant 0 : i32
    %c0_i32_1 = arith.constant 0 : i32
    return %c0_i32, %c0_i32_0 : i32, i32
  }
  func.func @transform_1(%arg0: i32) -> (i32, i32, i32) {
    %c0_i32 = arith.constant 0 : i32
    %c0_i32_0 = arith.constant 0 : i32
    %c0_i32_1 = arith.constant 0 : i32
    %c0_i32_2 = arith.constant 0 : i32
    return %c0_i32, %c0_i32_0, %c0_i32_1 : i32, i32, i32
  }
  func.func @transform_2(%arg0: i32) -> (i32, i32, i32) {
    %c0_i32 = arith.constant 0 : i32
    %c0_i32_0 = arith.constant 0 : i32
    %c0_i32_1 = arith.constant 0 : i32
    %c0_i32_2 = arith.constant 0 : i32
    return %c0_i32, %c0_i32_0, %c0_i32_1 : i32, i32, i32
  }
  func.func @transform_3(%arg0: i32) -> (i32, i32) {
    %c0_i32 = arith.constant 0 : i32
    %c0_i32_0 = arith.constant 0 : i32
    %c0_i32_1 = arith.constant 0 : i32
    return %c0_i32, %c0_i32_0 : i32, i32
  }
  func.func @transform_4(%arg0: i32) -> (i32, i32) {
    %c0_i32 = arith.constant 0 : i32
    %c0_i32_0 = arith.constant 0 : i32
    %c0_i32_1 = arith.constant 0 : i32
    return %c0_i32, %c0_i32_0 : i32, i32
  }
  func.func @transform_5(%arg0: i32) -> (i32, i32) {
    %c0_i32 = arith.constant 0 : i32
    %c0_i32_0 = arith.constant 0 : i32
    %c0_i32_1 = arith.constant 0 : i32
    return %c0_i32, %c0_i32_0 : i32, i32
  }
  func.func @transform_6(%arg0: i32) -> (i32, i32, i32) {
    %c0_i32 = arith.constant 0 : i32
    %c0_i32_0 = arith.constant 0 : i32
    %c0_i32_1 = arith.constant 0 : i32
    %c0_i32_2 = arith.constant 0 : i32
    return %c0_i32, %c0_i32_0, %c0_i32_1 : i32, i32, i32
  }
  func.func @transform_7(%arg0: i32) -> (i32, i32, i32) {
    %c0_i32 = arith.constant 0 : i32
    %c0_i32_0 = arith.constant 0 : i32
    %c0_i32_1 = arith.constant 0 : i32
    %c0_i32_2 = arith.constant 0 : i32
    return %c0_i32, %c0_i32_0, %c0_i32_1 : i32, i32, i32
  }
  func.func @transform_8(%arg0: i32) -> (i32, i32) {
    %c0_i32 = arith.constant 0 : i32
    %c0_i32_0 = arith.constant 0 : i32
    %c0_i32_1 = arith.constant 0 : i32
    return %c0_i32, %c0_i32_0 : i32, i32
  }
  func.func @transform_9(%arg0: i32) -> (i32, i32) {
    %c0_i32 = arith.constant 0 : i32
    %c0_i32_0 = arith.constant 0 : i32
    %c0_i32_1 = arith.constant 0 : i32
    return %c0_i32, %c0_i32_0 : i32, i32
  }
  func.func @transform_10(%arg0: i32) -> (i32, i32) {
    %c0_i32 = arith.constant 0 : i32
    %c0_i32_0 = arith.constant 0 : i32
    %c0_i32_1 = arith.constant 0 : i32
    return %c0_i32, %c0_i32_0 : i32, i32
  }
  func.func @transform_11(%arg0: i32) -> (i32, i32, i32) {
    %c0_i32 = arith.constant 0 : i32
    %c0_i32_0 = arith.constant 0 : i32
    %c0_i32_1 = arith.constant 0 : i32
    %c0_i32_2 = arith.constant 0 : i32
    return %c0_i32, %c0_i32_0, %c0_i32_1 : i32, i32, i32
  }
  func.func @transform_12(%arg0: i32) -> (i32, i32, i32) {
    %c0_i32 = arith.constant 0 : i32
    %c0_i32_0 = arith.constant 0 : i32
    %c0_i32_1 = arith.constant 0 : i32
    %c0_i32_2 = arith.constant 0 : i32
    return %c0_i32, %c0_i32_0, %c0_i32_1 : i32, i32, i32
  }
  func.func @transform_13(%arg0: i32) -> (i32, i32) {
    %c0_i32 = arith.constant 0 : i32
    %c0_i32_0 = arith.constant 0 : i32
    %c0_i32_1 = arith.constant 0 : i32
    return %c0_i32, %c0_i32_0 : i32, i32
  }
  func.func @transform_14(%arg0: i32) -> (i32, i32) {
    %c0_i32 = arith.constant 0 : i32
    %c0_i32_0 = arith.constant 0 : i32
    %c0_i32_1 = arith.constant 0 : i32
    return %c0_i32, %c0_i32_0 : i32, i32
  }
  func.func @transform_15(%arg0: i32) -> (i32, i32) {
    %c0_i32 = arith.constant 0 : i32
    %c0_i32_0 = arith.constant 0 : i32
    %c0_i32_1 = arith.constant 0 : i32
    return %c0_i32, %c0_i32_0 : i32, i32
  }
  func.func @transform_16(%arg0: i32) -> (i32, i32, i32) {
    %c0_i32 = arith.constant 0 : i32
    %c0_i32_0 = arith.constant 0 : i32
    %c0_i32_1 = arith.constant 0 : i32
    %c0_i32_2 = arith.constant 0 : i32
    return %c0_i32, %c0_i32_0, %c0_i32_1 : i32, i32, i32
  }
  func.func @transform_17(%arg0: i32) -> (i32, i32, i32) {
    %c0_i32 = arith.constant 0 : i32
    %c0_i32_0 = arith.constant 0 : i32
    %c0_i32_1 = arith.constant 0 : i32
    %c0_i32_2 = arith.constant 0 : i32
    return %c0_i32, %c0_i32_0, %c0_i32_1 : i32, i32, i32
  }
  func.func @transform_18(%arg0: i32) -> (i32, i32) {
    %c0_i32 = arith.constant 0 : i32
    %c0_i32_0 = arith.constant 0 : i32
    %c0_i32_1 = arith.constant 0 : i32
    return %c0_i32, %c0_i32_0 : i32, i32
  }
  func.func @transform_19(%arg0: i32) -> (i32, i32) {
    %c0_i32 = arith.constant 0 : i32
    %c0_i32_0 = arith.constant 0 : i32
    %c0_i32_1 = arith.constant 0 : i32
    return %c0_i32, %c0_i32_0 : i32, i32
  }
  func.func @transform_20(%arg0: i32) -> (i32, i32) {
    %c0_i32 = arith.constant 0 : i32
    %c0_i32_0 = arith.constant 0 : i32
    %c0_i32_1 = arith.constant 0 : i32
    return %c0_i32, %c0_i32_0 : i32, i32
  }
  func.func @transform_21(%arg0: i32) -> (i32, i32) {
    %c0_i32 = arith.constant 0 : i32
    %c0_i32_0 = arith.constant 0 : i32
    %c0_i32_1 = arith.constant 0 : i32
    return %c0_i32, %c0_i32_0 : i32, i32
  }
}

</mosaic_0001>

<llo_original>
// kernel: tpu_custom_call.1
$region0: #{tpu_custom_call.1}
  #allocation0 [shape = 'u32[]', space=smem, size = 0x4, offset = 0x4, fixed_abs, tag = 'smem constant byte address 0x4 - core index']
  #allocation1 [shape = 'u32[144,128]{1,0:T(1,128)}', space=vmem, size = 0x12000, scoped, tag = 'internal scratch']
  %s0 = inlined_call_operand.vmem [shape: bf16[512,4], index: 0, kind: input, shape index: {}]
  %s1 = inlined_call_operand.hbm [shape: bf16[9,128,512], index: 1, kind: input, shape index: {}]
  %s2 = inlined_call_operand.vmem [shape: bf16[9,4,8], index: 2, kind: input, shape index: {}]
  %s3 = inlined_call_operand.hbm [shape: f32[1,8], index: 3, kind: input, shape index: {}]
  %s4 = inlined_call_operand.hbm [shape: f32[1,8], index: 4, kind: input, shape index: {}]
  %s5 = inlined_call_operand.hbm [shape: f32[1,8], index: 5, kind: input, shape index: {}]
  %s6 = inlined_call_operand.hbm [shape: bf16[9,32,128], index: 6, kind: input, shape index: {}]
  %s7 = inlined_call_operand.hbm [shape: bf16[9,8,16], index: 7, kind: input, shape index: {}]
  %s8 = inlined_call_operand.hbm [shape: f32[1,16], index: 8, kind: input, shape index: {}]
  %s9 = inlined_call_operand.hbm [shape: f32[1,16], index: 9, kind: input, shape index: {}]
  %s10 = inlined_call_operand.hbm [shape: f32[1,16], index: 10, kind: input, shape index: {}]
  %s11 = inlined_call_operand.hbm [shape: bf16[9,2,32], index: 11, kind: input, shape index: {}]
  %s12 = inlined_call_operand.hbm [shape: bf16[9,16,32], index: 12, kind: input, shape index: {}]
  %s13 = inlined_call_operand.hbm [shape: f32[1,32], index: 13, kind: input, shape index: {}]
  %s14 = inlined_call_operand.hbm [shape: f32[1,32], index: 14, kind: input, shape index: {}]
  %s15 = inlined_call_operand.hbm [shape: f32[1,32], index: 15, kind: input, shape index: {}]
  %s16 = inlined_call_operand.vmem [shape: bf16[9,2,2], index: 16, kind: input, shape index: {}]
  %s17 = inlined_call_operand.hbm [shape: bf16[9,32,64], index: 17, kind: input, shape index: {}]
  %s18 = inlined_call_operand.hbm [shape: f32[1,64], index: 18, kind: input, shape index: {}]
  %s19 = inlined_call_operand.hbm [shape: f32[1,64], index: 19, kind: input, shape index: {}]
  %s20 = inlined_call_operand.hbm [shape: f32[1,64], index: 20, kind: input, shape index: {}]
  %s21 = inlined_call_operand.hbm [shape: f32[2,64], index: 21, kind: output, shape index: {}]
  %s22 = sld [smem:[#allocation0]]
  $region166: #{tpu_custom_call.1} parent=0
    _
  %s24 = ssub.s32 1, %s22
  %s25 = scalar_select 0, %s24, %s22
  $region1: #{tpu_custom_call.1} parent=0
    #allocation2 [shape = 'u8[1179648]{0}', space=vmem, size = 0x120000, scoped, tag = 'input window, operand 1, single buffered']
    #allocation3 [shape = 's32[1]{0}', space=sflag, size = 0x4, scoped, tag = 'scoped memory for tpu_custom_call.1']
    #allocation4 [shape = 's32[1]{0}', space=sflag, size = 0x4, scoped, tag = 'scoped memory for tpu_custom_call.1']
    #allocation5 [shape = 'u8[512]{0}', space=vmem, size = 0x400, scoped, tag = 'input window, operand 3, single buffered']
    #allocation6 [shape = 's32[1]{0}', space=sflag, size = 0x4, scoped, tag = 'scoped memory for tpu_custom_call.1']
    #allocation7 [shape = 'u8[512]{0}', space=vmem, size = 0x400, scoped, tag = 'input window, operand 4, single buffered']
    #allocation8 [shape = 'u8[512]{0}', space=vmem, size = 0x400, scoped, tag = 'input window, operand 5, single buffered']
    #allocation9 [shape = 's32[1]{0}', space=sflag, size = 0x4, scoped, tag = 'scoped memory for tpu_custom_call.1']
    #allocation10 [shape = 'u8[73728]{0}', space=vmem, size = 0x12000, scoped, tag = 'input window, operand 6, single buffered']
    #allocation11 [shape = 'u8[18432]{0}', space=vmem, size = 0x4800, scoped, tag = 'input window, operand 7, single buffered']
    #allocation12 [shape = 's32[1]{0}', space=sflag, size = 0x4, scoped, tag = 'scoped memory for tpu_custom_call.1']
    #allocation13 [shape = 'u8[512]{0}', space=vmem, size = 0x400, scoped, tag = 'input window, operand 8, single buffered']
    #allocation14 [shape = 'u8[512]{0}', space=vmem, size = 0x400, scoped, tag = 'input window, operand 9, single buffered']
    #allocation15 [shape = 's32[1]{0}', space=sflag, size = 0x4, scoped, tag = 'scoped memory for tpu_custom_call.1']
    #allocation16 [shape = 'u8[512]{0}', space=vmem, size = 0x400, scoped, tag = 'input window, operand 10, single buffered']
    #allocation17 [shape = 'u8[4608]{0}', space=vmem, size = 0x1400, scoped, tag = 'input window, operand 11, single buffered']
    #allocation18 [shape = 's32[1]{0}', space=sflag, size = 0x4, scoped, tag = 'scoped memory for tpu_custom_call.1']
    #allocation19 [shape = 'u8[36864]{0}', space=vmem, size = 0x9000, scoped, tag = 'input window, operand 12, single buffered']
    #allocation20 [shape = 'u8[512]{0}', space=vmem, size = 0x400, scoped, tag = 'input window, operand 13, single buffered']
    #allocation21 [shape = 's32[1]{0}', space=sflag, size = 0x4, scoped, tag = 'scoped memory for tpu_custom_call.1']
    #allocation22 [shape = 'u8[512]{0}', space=vmem, size = 0x400, scoped, tag = 'input window, operand 14, single buffered']
    #allocation23 [shape = 'u8[512]{0}', space=vmem, size = 0x400, scoped, tag = 'input window, operand 15, single buffered']
    #allocation24 [shape = 's32[1]{0}', space=sflag, size = 0x4, scoped, tag = 'scoped memory for tpu_custom_call.1']
    #allocation25 [shape = 'u8[73728]{0}', space=vmem, size = 0x12000, scoped, tag = 'input window, operand 17, single buffered']
    #allocation26 [shape = 'u8[512]{0}', space=vmem, size = 0x400, scoped, tag = 'input window, operand 18, single buffered']
    #allocation27 [shape = 's32[1]{0}', space=sflag, size = 0x4, scoped, tag = 'scoped memory for tpu_custom_call.1']
    #allocation28 [shape = 'u8[512]{0}', space=vmem, size = 0x400, scoped, tag = 'input window, operand 19, single buffered']
    #allocation29 [shape = 'u8[512]{0}', space=vmem, size = 0x400, scoped, tag = 'input window, operand 20, single buffered']
    #allocation30 [shape = 's32[1]{0}', space=sflag, size = 0x4, scoped, tag = 'scoped memory for tpu_custom_call.1']
    #allocation31 [shape = 'u8[1024]{0}', space=vmem, size = 0x400, scoped, tag = 'output window, operand 0, single buffered']
    %26 = vsyncpa [#allocation3], 0
    %27 = vsyncpa [#allocation6], 0
    %28 = vsyncpa [#allocation9], 0
    %29 = vsyncpa [#allocation12], 0
    %30 = vsyncpa [#allocation15], 0
    %31 = vsyncpa [#allocation18], 0
    %32 = vsyncpa [#allocation21], 0
    %33 = vsyncpa [#allocation24], 0
    %34 = vsyncpa [#allocation27], 0
    %35 = vsyncpa [#allocation30], 0
    %36 = vsyncpa [#allocation4], 0
    // Predicated region
    $region2: #{tpu_custom_call.1} parent=1 // pred_check
      _
    $region3: #{tpu_custom_call.1} parent=1 // pred_check_branch
      %38 = sbr.rel (0) target = $region5
    $region4: #{tpu_custom_call.1} parent=1 // pred_region
      _
    $region5: #{tpu_custom_call.1} parent=1 // pred_fallthru
      _
    // Predicated region
    $region6: #{tpu_custom_call.1} parent=1 // pred_check
      _
    $region7: #{tpu_custom_call.1} parent=1 // pred_check_branch
      %40 = sbr.rel (0) target = $region9
    $region8: #{tpu_custom_call.1} parent=1 // pred_region
      %s42 = ssub.s32 36864, 36864
      %43 = vsyncadd [#allocation3], %s42
      %s44 = sshll.u32 [#allocation2], 4
      %s45 = int_to_ptr.vmem [resolvable:$true] %s44
      %50 = dma.hbm_to_vmem [thread:$0]  %s1, 36864, %s45, [#allocation3], 256, 256, 16
    $region9: #{tpu_custom_call.1} parent=1 // pred_fallthru
      _
    // Predicated region
    $region10: #{tpu_custom_call.1} parent=1 // pred_check
      _
    $region11: #{tpu_custom_call.1} parent=1 // pred_check_branch
      %52 = sbr.rel (0) target = $region13
    $region12: #{tpu_custom_call.1} parent=1 // pred_region
      _
    $region13: #{tpu_custom_call.1} parent=1 // pred_fallthru
      _
    // Predicated region
    $region14: #{tpu_custom_call.1} parent=1 // pred_check
      _
    $region15: #{tpu_custom_call.1} parent=1 // pred_check_branch
      %54 = sbr.rel (0) target = $region17
    $region16: #{tpu_custom_call.1} parent=1 // pred_region
      %s56 = ssub.s32 16, 16
      %57 = vsyncadd [#allocation6], %s56
      %s59 = sshll.u32 [#allocation5], 4
      %s60 = int_to_ptr.vmem [resolvable:$true] %s59
      %62 = dma.hbm_to_vmem [thread:$0]  %s3, 16, %s60, [#allocation6]
    $region17: #{tpu_custom_call.1} parent=1 // pred_fallthru
      _
    // Predicated region
    $region18: #{tpu_custom_call.1} parent=1 // pred_check
      _
    $region19: #{tpu_custom_call.1} parent=1 // pred_check_branch
      %64 = sbr.rel (0) target = $region21
    $region20: #{tpu_custom_call.1} parent=1 // pred_region
      %s66 = ssub.s32 16, 16
      %67 = vsyncadd [#allocation6], %s66
      %s69 = sshll.u32 [#allocation7], 4
      %s70 = int_to_ptr.vmem [resolvable:$true] %s69
      %72 = dma.hbm_to_vmem [thread:$0]  %s4, 16, %s70, [#allocation6]
    $region21: #{tpu_custom_call.1} parent=1 // pred_fallthru
      _
    // Predicated region
    $region22: #{tpu_custom_call.1} parent=1 // pred_check
      _
    $region23: #{tpu_custom_call.1} parent=1 // pred_check_branch
      %74 = sbr.rel (0) target = $region25
    $region24: #{tpu_custom_call.1} parent=1 // pred_region
      %s76 = ssub.s32 16, 16
      %77 = vsyncadd [#allocation9], %s76
      %s79 = sshll.u32 [#allocation8], 4
      %s80 = int_to_ptr.vmem [resolvable:$true] %s79
      %82 = dma.hbm_to_vmem [thread:$0]  %s5, 16, %s80, [#allocation9]
    $region25: #{tpu_custom_call.1} parent=1 // pred_fallthru
      _
    // Predicated region
    $region26: #{tpu_custom_call.1} parent=1 // pred_check
      _
    $region27: #{tpu_custom_call.1} parent=1 // pred_check_branch
      %84 = sbr.rel (0) target = $region29
    $region28: #{tpu_custom_call.1} parent=1 // pred_region
      %s86 = ssub.s32 2304, 2304
      %87 = vsyncadd [#allocation9], %s86
      %s88 = sshll.u32 [#allocation10], 4
      %s89 = int_to_ptr.vmem [resolvable:$true] %s88
      %94 = dma.hbm_to_vmem [thread:$0]  %s6, 2304, %s89, [#allocation9], 64, 64, 4
    $region29: #{tpu_custom_call.1} parent=1 // pred_fallthru
      _
    // Predicated region
    $region30: #{tpu_custom_call.1} parent=1 // pred_check
      _
    $region31: #{tpu_custom_call.1} parent=1 // pred_check_branch
      %96 = sbr.rel (0) target = $region33
    $region32: #{tpu_custom_call.1} parent=1 // pred_region
      %s98 = ssub.s32 576, 576
      %99 = vsyncadd [#allocation12], %s98
      %s100 = sshll.u32 [#allocation11], 4
      %s101 = int_to_ptr.vmem [resolvable:$true] %s100
      %106 = dma.hbm_to_vmem [thread:$0]  %s7, 576, %s101, [#allocation12], 64, 64, 4
    $region33: #{tpu_custom_call.1} parent=1 // pred_fallthru
      _
    // Predicated region
    $region34: #{tpu_custom_call.1} parent=1 // pred_check
      _
    $region35: #{tpu_custom_call.1} parent=1 // pred_check_branch
      %108 = sbr.rel (0) target = $region37
    $region36: #{tpu_custom_call.1} parent=1 // pred_region
      %s110 = ssub.s32 16, 16
      %111 = vsyncadd [#allocation12], %s110
      %s113 = sshll.u32 [#allocation13], 4
      %s114 = int_to_ptr.vmem [resolvable:$true] %s113
      %116 = dma.hbm_to_vmem [thread:$0]  %s8, 16, %s114, [#allocation12]
    $region37: #{tpu_custom_call.1} parent=1 // pred_fallthru
      _
    // Predicated region
    $region38: #{tpu_custom_call.1} parent=1 // pred_check
      _
    $region39: #{tpu_custom_call.1} parent=1 // pred_check_branch
      %118 = sbr.rel (0) target = $region41
    $region40: #{tpu_custom_call.1} parent=1 // pred_region
      %s120 = ssub.s32 16, 16
      %121 = vsyncadd [#allocation15], %s120
      %s123 = sshll.u32 [#allocation14], 4
      %s124 = int_to_ptr.vmem [resolvable:$true] %s123
      %126 = dma.hbm_to_vmem [thread:$0]  %s9, 16, %s124, [#allocation15]
    $region41: #{tpu_custom_call.1} parent=1 // pred_fallthru
      _
    // Predicated region
    $region42: #{tpu_custom_call.1} parent=1 // pred_check
      _
    $region43: #{tpu_custom_call.1} parent=1 // pred_check_branch
      %128 = sbr.rel (0) target = $region45
    $region44: #{tpu_custom_call.1} parent=1 // pred_region
      %s130 = ssub.s32 16, 16
      %131 = vsyncadd [#allocation15], %s130
      %s133 = sshll.u32 [#allocation16], 4
      %s134 = int_to_ptr.vmem [resolvable:$true] %s133
      %136 = dma.hbm_to_vmem [thread:$0]  %s10, 16, %s134, [#allocation15]
    $region45: #{tpu_custom_call.1} parent=1 // pred_fallthru
      _
    // Predicated region
    $region46: #{tpu_custom_call.1} parent=1 // pred_check
      _
    $region47: #{tpu_custom_call.1} parent=1 // pred_check_branch
      %138 = sbr.rel (0) target = $region49
    $region48: #{tpu_custom_call.1} parent=1 // pred_region
      %s140 = ssub.s32 144, 144
      %141 = vsyncadd [#allocation18], %s140
      %s142 = sshll.u32 [#allocation17], 4
      %s143 = int_to_ptr.vmem [resolvable:$true] %s142
      %148 = dma.hbm_to_vmem [thread:$0]  %s11, 144, %s143, [#allocation18], 16, 16, 1
    $region49: #{tpu_custom_call.1} parent=1 // pred_fallthru
      _
    // Predicated region
    $region50: #{tpu_custom_call.1} parent=1 // pred_check
      _
    $region51: #{tpu_custom_call.1} parent=1 // pred_check_branch
      %150 = sbr.rel (0) target = $region53
    $region52: #{tpu_custom_call.1} parent=1 // pred_region
      %s152 = ssub.s32 1152, 1152
      %153 = vsyncadd [#allocation18], %s152
      %s154 = sshll.u32 [#allocation19], 4
      %s155 = int_to_ptr.vmem [resolvable:$true] %s154
      %160 = dma.hbm_to_vmem [thread:$0]  %s12, 1152, %s155, [#allocation18], 64, 64, 4
    $region53: #{tpu_custom_call.1} parent=1 // pred_fallthru
      _
    // Predicated region
    $region54: #{tpu_custom_call.1} parent=1 // pred_check
      _
    $region55: #{tpu_custom_call.1} parent=1 // pred_check_branch
      %162 = sbr.rel (0) target = $region57
    $region56: #{tpu_custom_call.1} parent=1 // pred_region
      %s164 = ssub.s32 16, 16
      %165 = vsyncadd [#allocation21], %s164
      %s167 = sshll.u32 [#allocation20], 4
      %s168 = int_to_ptr.vmem [resolvable:$true] %s167
      %170 = dma.hbm_to_vmem [thread:$0]  %s13, 16, %s168, [#allocation21]
    $region57: #{tpu_custom_call.1} parent=1 // pred_fallthru
      _
    // Predicated region
    $region58: #{tpu_custom_call.1} parent=1 // pred_check
      _
    $region59: #{tpu_custom_call.1} parent=1 // pred_check_branch
      %172 = sbr.rel (0) target = $region61
    $region60: #{tpu_custom_call.1} parent=1 // pred_region
      %s174 = ssub.s32 16, 16
      %175 = vsyncadd [#allocation21], %s174
      %s177 = sshll.u32 [#allocation22], 4
      %s178 = int_to_ptr.vmem [resolvable:$true] %s177
      %180 = dma.hbm_to_vmem [thread:$0]  %s14, 16, %s178, [#allocation21]
    $region61: #{tpu_custom_call.1} parent=1 // pred_fallthru
      _
    // Predicated region
    $region62: #{tpu_custom_call.1} parent=1 // pred_check
      _
    $region63: #{tpu_custom_call.1} parent=1 // pred_check_branch
      %182 = sbr.rel (0) target = $region65
    $region64: #{tpu_custom_call.1} parent=1 // pred_region
      %s184 = ssub.s32 16, 16
      %185 = vsyncadd [#allocation24], %s184
      %s187 = sshll.u32 [#allocation23], 4
      %s188 = int_to_ptr.vmem [resolvable:$true] %s187
      %190 = dma.hbm_to_vmem [thread:$0]  %s15, 16, %s188, [#allocation24]
    $region65: #{tpu_custom_call.1} parent=1 // pred_fallthru
      _
    // Predicated region
    $region66: #{tpu_custom_call.1} parent=1 // pred_check
      _
    $region67: #{tpu_custom_call.1} parent=1 // pred_check_branch
      %192 = sbr.rel (0) target = $region69
    $region68: #{tpu_custom_call.1} parent=1 // pred_region
      _
    $region69: #{tpu_custom_call.1} parent=1 // pred_fallthru
      _
    // Predicated region
    $region70: #{tpu_custom_call.1} parent=1 // pred_check
      _
    $region71: #{tpu_custom_call.1} parent=1 // pred_check_branch
      %194 = sbr.rel (0) target = $region73
    $region72: #{tpu_custom_call.1} parent=1 // pred_region
      %s196 = ssub.s32 2304, 2304
      %197 = vsyncadd [#allocation24], %s196
      %s198 = sshll.u32 [#allocation25], 4
      %s199 = int_to_ptr.vmem [resolvable:$true] %s198
      %204 = dma.hbm_to_vmem [thread:$0]  %s17, 2304, %s199, [#allocation24], 64, 64, 4
    $region73: #{tpu_custom_call.1} parent=1 // pred_fallthru
      _
    // Predicated region
    $region74: #{tpu_custom_call.1} parent=1 // pred_check
      _
    $region75: #{tpu_custom_call.1} parent=1 // pred_check_branch
      %206 = sbr.rel (0) target = $region77
    $region76: #{tpu_custom_call.1} parent=1 // pred_region
      %s208 = ssub.s32 16, 16
      %209 = vsyncadd [#allocation27], %s208
      %s211 = sshll.u32 [#allocation26], 4
      %s212 = int_to_ptr.vmem [resolvable:$true] %s211
      %214 = dma.hbm_to_vmem [thread:$0]  %s18, 16, %s212, [#allocation27]
    $region77: #{tpu_custom_call.1} parent=1 // pred_fallthru
      _
    // Predicated region
    $region78: #{tpu_custom_call.1} parent=1 // pred_check
      _
    $region79: #{tpu_custom_call.1} parent=1 // pred_check_branch
      %216 = sbr.rel (0) target = $region81
    $region80: #{tpu_custom_call.1} parent=1 // pred_region
      %s218 = ssub.s32 16, 16
      %219 = vsyncadd [#allocation27], %s218
      %s221 = sshll.u32 [#allocation28], 4
      %s222 = int_to_ptr.vmem [resolvable:$true] %s221
      %224 = dma.hbm_to_vmem [thread:$0]  %s19, 16, %s222, [#allocation27]
    $region81: #{tpu_custom_call.1} parent=1 // pred_fallthru
      _
    // Predicated region
    $region82: #{tpu_custom_call.1} parent=1 // pred_check
      _
    $region83: #{tpu_custom_call.1} parent=1 // pred_check_branch
      %226 = sbr.rel (0) target = $region85
    $region84: #{tpu_custom_call.1} parent=1 // pred_region
      %s228 = ssub.s32 16, 16
      %229 = vsyncadd [#allocation30], %s228
      %s231 = sshll.u32 [#allocation29], 4
      %s232 = int_to_ptr.vmem [resolvable:$true] %s231
      %234 = dma.hbm_to_vmem [thread:$0]  %s20, 16, %s232, [#allocation30]
    $region85: #{tpu_custom_call.1} parent=1 // pred_fallthru
      _
    // Predicated region
    $region86: #{tpu_custom_call.1} parent=1 // pred_check
      _
    $region87: #{tpu_custom_call.1} parent=1 // pred_check_branch
      %236 = sbr.rel (0) target = $region89
    $region88: #{tpu_custom_call.1} parent=1 // pred_region
      %237 = dma.done [#allocation3], 36864
    $region89: #{tpu_custom_call.1} parent=1 // pred_fallthru
      _
    // Predicated region
    $region90: #{tpu_custom_call.1} parent=1 // pred_check
      _
    $region91: #{tpu_custom_call.1} parent=1 // pred_check_branch
      %239 = sbr.rel (0) target = $region93
    $region92: #{tpu_custom_call.1} parent=1 // pred_region
      %240 = dma.done [#allocation6], 16
    $region93: #{tpu_custom_call.1} parent=1 // pred_fallthru
      _
    // Predicated region
    $region94: #{tpu_custom_call.1} parent=1 // pred_check
      _
    $region95: #{tpu_custom_call.1} parent=1 // pred_check_branch
      %242 = sbr.rel (0) target = $region97
    $region96: #{tpu_custom_call.1} parent=1 // pred_region
      %243 = dma.done [#allocation6], 16
    $region97: #{tpu_custom_call.1} parent=1 // pred_fallthru
      _
    // Predicated region
    $region98: #{tpu_custom_call.1} parent=1 // pred_check
      _
    $region99: #{tpu_custom_call.1} parent=1 // pred_check_branch
      %245 = sbr.rel (0) target = $region101
    $region100: #{tpu_custom_call.1} parent=1 // pred_region
      %246 = dma.done [#allocation9], 16
    $region101: #{tpu_custom_call.1} parent=1 // pred_fallthru
      _
    // Predicated region
    $region102: #{tpu_custom_call.1} parent=1 // pred_check
      _
    $region103: #{tpu_custom_call.1} parent=1 // pred_check_branch
      %248 = sbr.rel (0) target = $region105
    $region104: #{tpu_custom_call.1} parent=1 // pred_region
      %249 = dma.done [#allocation9], 2304
    $region105: #{tpu_custom_call.1} parent=1 // pred_fallthru
      _
    // Predicated region
    $region106: #{tpu_custom_call.1} parent=1 // pred_check
      _
    $region107: #{tpu_custom_call.1} parent=1 // pred_check_branch
      %251 = sbr.rel (0) target = $region109
    $region108: #{tpu_custom_call.1} parent=1 // pred_region
      %252 = dma.done [#allocation12], 576
    $region109: #{tpu_custom_call.1} parent=1 // pred_fallthru
      _
    // Predicated region
    $region110: #{tpu_custom_call.1} parent=1 // pred_check
      _
    $region111: #{tpu_custom_call.1} parent=1 // pred_check_branch
      %254 = sbr.rel (0) target = $region113
    $region112: #{tpu_custom_call.1} parent=1 // pred_region
      %255 = dma.done [#allocation12], 16
    $region113: #{tpu_custom_call.1} parent=1 // pred_fallthru
      _
    // Predicated region
    $region114: #{tpu_custom_call.1} parent=1 // pred_check
      _
    $region115: #{tpu_custom_call.1} parent=1 // pred_check_branch
      %257 = sbr.rel (0) target = $region117
    $region116: #{tpu_custom_call.1} parent=1 // pred_region
      %258 = dma.done [#allocation15], 16
    $region117: #{tpu_custom_call.1} parent=1 // pred_fallthru
      _
    // Predicated region
    $region118: #{tpu_custom_call.1} parent=1 // pred_check
      _
    $region119: #{tpu_custom_call.1} parent=1 // pred_check_branch
      %260 = sbr.rel (0) target = $region121
    $region120: #{tpu_custom_call.1} parent=1 // pred_region
      %261 = dma.done [#allocation15], 16
    $region121: #{tpu_custom_call.1} parent=1 // pred_fallthru
      _
    // Predicated region
    $region122: #{tpu_custom_call.1} parent=1 // pred_check
      _
    $region123: #{tpu_custom_call.1} parent=1 // pred_check_branch
      %263 = sbr.rel (0) target = $region125
    $region124: #{tpu_custom_call.1} parent=1 // pred_region
      %264 = dma.done [#allocation18], 144
    $region125: #{tpu_custom_call.1} parent=1 // pred_fallthru
      _
    // Predicated region
    $region126: #{tpu_custom_call.1} parent=1 // pred_check
      _
    $region127: #{tpu_custom_call.1} parent=1 // pred_check_branch
      %266 = sbr.rel (0) target = $region129
    $region128: #{tpu_custom_call.1} parent=1 // pred_region
      %267 = dma.done [#allocation18], 1152
    $region129: #{tpu_custom_call.1} parent=1 // pred_fallthru
      _
    // Predicated region
    $region130: #{tpu_custom_call.1} parent=1 // pred_check
      _
    $region131: #{tpu_custom_call.1} parent=1 // pred_check_branch
      %269 = sbr.rel (0) target = $region133
    $region132: #{tpu_custom_call.1} parent=1 // pred_region
      %270 = dma.done [#allocation21], 16
    $region133: #{tpu_custom_call.1} parent=1 // pred_fallthru
      _
    // Predicated region
    $region134: #{tpu_custom_call.1} parent=1 // pred_check
      _
    $region135: #{tpu_custom_call.1} parent=1 // pred_check_branch
      %272 = sbr.rel (0) target = $region137
    $region136: #{tpu_custom_call.1} parent=1 // pred_region
      %273 = dma.done [#allocation21], 16
    $region137: #{tpu_custom_call.1} parent=1 // pred_fallthru
      _
    // Predicated region
    $region138: #{tpu_custom_call.1} parent=1 // pred_check
      _
    $region139: #{tpu_custom_call.1} parent=1 // pred_check_branch
      %275 = sbr.rel (0) target = $region141
    $region140: #{tpu_custom_call.1} parent=1 // pred_region
      %276 = dma.done [#allocation24], 16
    $region141: #{tpu_custom_call.1} parent=1 // pred_fallthru
      _
    // Predicated region
    $region142: #{tpu_custom_call.1} parent=1 // pred_check
      _
    $region143: #{tpu_custom_call.1} parent=1 // pred_check_branch
      %278 = sbr.rel (0) target = $region145
    $region144: #{tpu_custom_call.1} parent=1 // pred_region
      %279 = dma.done [#allocation24], 2304
    $region145: #{tpu_custom_call.1} parent=1 // pred_fallthru
      _
    // Predicated region
    $region146: #{tpu_custom_call.1} parent=1 // pred_check
      _
    $region147: #{tpu_custom_call.1} parent=1 // pred_check_branch
      %281 = sbr.rel (0) target = $region149
    $region148: #{tpu_custom_call.1} parent=1 // pred_region
      %282 = dma.done [#allocation27], 16
    $region149: #{tpu_custom_call.1} parent=1 // pred_fallthru
      _
    // Predicated region
    $region150: #{tpu_custom_call.1} parent=1 // pred_check
      _
    $region151: #{tpu_custom_call.1} parent=1 // pred_check_branch
      %284 = sbr.rel (0) target = $region153
    $region152: #{tpu_custom_call.1} parent=1 // pred_region
      %285 = dma.done [#allocation27], 16
    $region153: #{tpu_custom_call.1} parent=1 // pred_fallthru
      _
    // Predicated region
    $region154: #{tpu_custom_call.1} parent=1 // pred_check
      _
    $region155: #{tpu_custom_call.1} parent=1 // pred_check_branch
      %287 = sbr.rel (0) target = $region157
    $region156: #{tpu_custom_call.1} parent=1 // pred_region
      %288 = dma.done [#allocation30], 16
    $region157: #{tpu_custom_call.1} parent=1 // pred_fallthru
      _
    %v290 = vld [vmem:[%s0] sm:$0xf]
    %v291 = vld [vmem:[%s0 + $0x4] sm:$0xf]
    %v292 = vld [vmem:[%s0 + $0x8] sm:$0xf]
    %v293 = vld [vmem:[%s0 + $0xc] sm:$0xf]
    %v294 = vld [vmem:[%s0 + $0x10] sm:$0xf]
    %v295 = vld [vmem:[%s0 + $0x14] sm:$0xf]
    %v296 = vld [vmem:[%s0 + $0x18] sm:$0xf]
    %v297 = vld [vmem:[%s0 + $0x1c] sm:$0xf]
    %v298 = vld [vmem:[%s0 + $0x20] sm:$0xf]
    %v299 = vld [vmem:[%s0 + $0x24] sm:$0xf]
    %v300 = vld [vmem:[%s0 + $0x28] sm:$0xf]
    %v301 = vld [vmem:[%s0 + $0x2c] sm:$0xf]
    %v302 = vld [vmem:[%s0 + $0x30] sm:$0xf]
    %v303 = vld [vmem:[%s0 + $0x34] sm:$0xf]
    %v304 = vld [vmem:[%s0 + $0x38] sm:$0xf]
    %v305 = vld [vmem:[%s0 + $0x3c] sm:$0xf]
    %v306 = vld [vmem:[%s0 + $0x40] sm:$0xf]
    %v307 = vld [vmem:[%s0 + $0x44] sm:$0xf]
    %v308 = vld [vmem:[%s0 + $0x48] sm:$0xf]
    %v309 = vld [vmem:[%s0 + $0x4c] sm:$0xf]
    %v310 = vld [vmem:[%s0 + $0x50] sm:$0xf]
    %v311 = vld [vmem:[%s0 + $0x54] sm:$0xf]
    %v312 = vld [vmem:[%s0 + $0x58] sm:$0xf]
    %v313 = vld [vmem:[%s0 + $0x5c] sm:$0xf]
    %v314 = vld [vmem:[%s0 + $0x60] sm:$0xf]
    %v315 = vld [vmem:[%s0 + $0x64] sm:$0xf]
    %v316 = vld [vmem:[%s0 + $0x68] sm:$0xf]
    %v317 = vld [vmem:[%s0 + $0x6c] sm:$0xf]
    %v318 = vld [vmem:[%s0 + $0x70] sm:$0xf]
    %v319 = vld [vmem:[%s0 + $0x74] sm:$0xf]
    %v320 = vld [vmem:[%s0 + $0x78] sm:$0xf]
    %v321 = vld [vmem:[%s0 + $0x7c] sm:$0xf]
    %v322 = vld [vmem:[%s0 + $0x80] sm:$0xf]
    %v323 = vld [vmem:[%s0 + $0x84] sm:$0xf]
    %v324 = vld [vmem:[%s0 + $0x88] sm:$0xf]
    %v325 = vld [vmem:[%s0 + $0x8c] sm:$0xf]
    %v326 = vld [vmem:[%s0 + $0x90] sm:$0xf]
    %v327 = vld [vmem:[%s0 + $0x94] sm:$0xf]
    %v328 = vld [vmem:[%s0 + $0x98] sm:$0xf]
    %v329 = vld [vmem:[%s0 + $0x9c] sm:$0xf]
    %v330 = vld [vmem:[%s0 + $0xa0] sm:$0xf]
    %v331 = vld [vmem:[%s0 + $0xa4] sm:$0xf]
    %v332 = vld [vmem:[%s0 + $0xa8] sm:$0xf]
    %v333 = vld [vmem:[%s0 + $0xac] sm:$0xf]
    %v334 = vld [vmem:[%s0 + $0xb0] sm:$0xf]
    %v335 = vld [vmem:[%s0 + $0xb4] sm:$0xf]
    %v336 = vld [vmem:[%s0 + $0xb8] sm:$0xf]
    %v337 = vld [vmem:[%s0 + $0xbc] sm:$0xf]
    %v338 = vld [vmem:[%s0 + $0xc0] sm:$0xf]
    %v339 = vld [vmem:[%s0 + $0xc4] sm:$0xf]
    %v340 = vld [vmem:[%s0 + $0xc8] sm:$0xf]
    %v341 = vld [vmem:[%s0 + $0xcc] sm:$0xf]
    %v342 = vld [vmem:[%s0 + $0xd0] sm:$0xf]
    %v343 = vld [vmem:[%s0 + $0xd4] sm:$0xf]
    %v344 = vld [vmem:[%s0 + $0xd8] sm:$0xf]
    %v345 = vld [vmem:[%s0 + $0xdc] sm:$0xf]
    %v346 = vld [vmem:[%s0 + $0xe0] sm:$0xf]
    %v347 = vld [vmem:[%s0 + $0xe4] sm:$0xf]
    %v348 = vld [vmem:[%s0 + $0xe8] sm:$0xf]
    %v349 = vld [vmem:[%s0 + $0xec] sm:$0xf]
    %v350 = vld [vmem:[%s0 + $0xf0] sm:$0xf]
    %v351 = vld [vmem:[%s0 + $0xf4] sm:$0xf]
    %v352 = vld [vmem:[%s0 + $0xf8] sm:$0xf]
    %v353 = vld [vmem:[%s0 + $0xfc] sm:$0xf]
    %v354 = vld [vmem:[#allocation2] sm:$0xff]
    %v355 = vld [vmem:[#allocation2 + $0x8] sm:$0xff]
    %v356 = vld [vmem:[#allocation2 + $0x10] sm:$0xff]
    %v357 = vld [vmem:[#allocation2 + $0x18] sm:$0xff]
    %v358 = vld [vmem:[#allocation2 + $0x20] sm:$0xff]
    %v359 = vld [vmem:[#allocation2 + $0x28] sm:$0xff]
    %v360 = vld [vmem:[#allocation2 + $0x30] sm:$0xff]
    %v361 = vld [vmem:[#allocation2 + $0x38] sm:$0xff]
    %v362 = vld [vmem:[#allocation2 + $0x40] sm:$0xff]
    %v363 = vld [vmem:[#allocation2 + $0x48] sm:$0xff]
    %v364 = vld [vmem:[#allocation2 + $0x50] sm:$0xff]
    %v365 = vld [vmem:[#allocation2 + $0x58] sm:$0xff]
    %v366 = vld [vmem:[#allocation2 + $0x60] sm:$0xff]
    %v367 = vld [vmem:[#allocation2 + $0x68] sm:$0xff]
    %v368 = vld [vmem:[#allocation2 + $0x70] sm:$0xff]
    %v369 = vld [vmem:[#allocation2 + $0x78] sm:$0xff]
    %v370 = vld [vmem:[#allocation2 + $0x80] sm:$0xff]
    %v371 = vld [vmem:[#allocation2 + $0x88] sm:$0xff]
    %v372 = vld [vmem:[#allocation2 + $0x90] sm:$0xff]
    %v373 = vld [vmem:[#allocation2 + $0x98] sm:$0xff]
    %v374 = vld [vmem:[#allocation2 + $0xa0] sm:$0xff]
    %v375 = vld [vmem:[#allocation2 + $0xa8] sm:$0xff]
    %v376 = vld [vmem:[#allocation2 + $0xb0] sm:$0xff]
    %v377 = vld [vmem:[#allocation2 + $0xb8] sm:$0xff]
    %v378 = vld [vmem:[#allocation2 + $0xc0] sm:$0xff]
    %v379 = vld [vmem:[#allocation2 + $0xc8] sm:$0xff]
    %v380 = vld [vmem:[#allocation2 + $0xd0] sm:$0xff]
    %v381 = vld [vmem:[#allocation2 + $0xd8] sm:$0xff]
    %v382 = vld [vmem:[#allocation2 + $0xe0] sm:$0xff]
    %v383 = vld [vmem:[#allocation2 + $0xe8] sm:$0xff]
    %v384 = vld [vmem:[#allocation2 + $0xf0] sm:$0xff]
    %v385 = vld [vmem:[#allocation2 + $0xf8] sm:$0xff]
    %v418 = vunpack.c.l.b16 %v354
    %v419 = vunpack.c.h.b16 %v354
    %v420 = vunpack.c.l.b16 %v355
    %v421 = vunpack.c.h.b16 %v355
    %v422 = vunpack.c.l.b16 %v356
    %v423 = vunpack.c.h.b16 %v356
    %v424 = vunpack.c.l.b16 %v357
    %v425 = vunpack.c.h.b16 %v357
    %v426 = vunpack.c.l.b16 %v358
    %v427 = vunpack.c.h.b16 %v358
    %v428 = vunpack.c.l.b16 %v359
    %v429 = vunpack.c.h.b16 %v359
    %v430 = vunpack.c.l.b16 %v360
    %v431 = vunpack.c.h.b16 %v360
    %v432 = vunpack.c.l.b16 %v361
    %v433 = vunpack.c.h.b16 %v361
    %v434 = vunpack.c.l.b16 %v362
    %v435 = vunpack.c.h.b16 %v362
    %v436 = vunpack.c.l.b16 %v363
    %v437 = vunpack.c.h.b16 %v363
    %v438 = vunpack.c.l.b16 %v364
    %v439 = vunpack.c.h.b16 %v364
    %v440 = vunpack.c.l.b16 %v365
    %v441 = vunpack.c.h.b16 %v365
    %v442 = vunpack.c.l.b16 %v366
    %v443 = vunpack.c.h.b16 %v366
    %v444 = vunpack.c.l.b16 %v367
    %v445 = vunpack.c.h.b16 %v367
    %v446 = vunpack.c.l.b16 %v368
    %v447 = vunpack.c.h.b16 %v368
    %v448 = vunpack.c.l.b16 %v369
    %v449 = vunpack.c.h.b16 %v369
    %v450 = vunpack.c.l.b16 %v370
    %v451 = vunpack.c.h.b16 %v370
    %v452 = vunpack.c.l.b16 %v371
    %v453 = vunpack.c.h.b16 %v371
    %v454 = vunpack.c.l.b16 %v372
    %v455 = vunpack.c.h.b16 %v372
    %v456 = vunpack.c.l.b16 %v373
    %v457 = vunpack.c.h.b16 %v373
    %v458 = vunpack.c.l.b16 %v374
    %v459 = vunpack.c.h.b16 %v374
    %v460 = vunpack.c.l.b16 %v375
    %v461 = vunpack.c.h.b16 %v375
    %v462 = vunpack.c.l.b16 %v376
    %v463 = vunpack.c.h.b16 %v376
    %v464 = vunpack.c.l.b16 %v377
    %v465 = vunpack.c.h.b16 %v377
    %v466 = vunpack.c.l.b16 %v378
    %v467 = vunpack.c.h.b16 %v378
    %v468 = vunpack.c.l.b16 %v379
    %v469 = vunpack.c.h.b16 %v379
    %v470 = vunpack.c.l.b16 %v380
    %v471 = vunpack.c.h.b16 %v380
    %v472 = vunpack.c.l.b16 %v381
    %v473 = vunpack.c.h.b16 %v381
    %v474 = vunpack.c.l.b16 %v382
    %v475 = vunpack.c.h.b16 %v382
    %v476 = vunpack.c.l.b16 %v383
    %v477 = vunpack.c.h.b16 %v383
    %v478 = vunpack.c.l.b16 %v384
    %v479 = vunpack.c.h.b16 %v384
    %v480 = vunpack.c.l.b16 %v385
    %v481 = vunpack.c.h.b16 %v385
    %v482 = vpack.c.b16 %v422, %v418
    %v483 = vpack.c.b16 %v423, %v419
    %v484 = vpack.c.b16 %v424, %v420
    %v485 = vpack.c.b16 %v425, %v421
    %v486 = vpack.c.b16 %v430, %v426
    %v487 = vpack.c.b16 %v431, %v427
    %v488 = vpack.c.b16 %v432, %v428
    %v489 = vpack.c.b16 %v433, %v429
    %v490 = vpack.c.b16 %v438, %v434
    %v491 = vpack.c.b16 %v439, %v435
    %v492 = vpack.c.b16 %v440, %v436
    %v493 = vpack.c.b16 %v441, %v437
    %v494 = vpack.c.b16 %v446, %v442
    %v495 = vpack.c.b16 %v447, %v443
    %v496 = vpack.c.b16 %v448, %v444
    %v497 = vpack.c.b16 %v449, %v445
    %v498 = vpack.c.b16 %v454, %v450
    %v499 = vpack.c.b16 %v455, %v451
    %v500 = vpack.c.b16 %v456, %v452
    %v501 = vpack.c.b16 %v457, %v453
    %v502 = vpack.c.b16 %v462, %v458
    %v503 = vpack.c.b16 %v463, %v459
    %v504 = vpack.c.b16 %v464, %v460
    %v505 = vpack.c.b16 %v465, %v461
    %v506 = vpack.c.b16 %v470, %v466
    %v507 = vpack.c.b16 %v471, %v467
    %v508 = vpack.c.b16 %v472, %v468
    %v509 = vpack.c.b16 %v473, %v469
    %v510 = vpack.c.b16 %v478, %v474
    %v511 = vpack.c.b16 %v479, %v475
    %v512 = vpack.c.b16 %v480, %v476
    %v513 = vpack.c.b16 %v481, %v477
    %v610 = vunpack.c.l.b16 %v290
    %v611 = vunpack.c.l.b16 %v291
    %v612 = vunpack.c.l.b16 %v292
    %v613 = vunpack.c.l.b16 %v293
    %v614 = vunpack.c.l.b16 %v294
    %v615 = vunpack.c.l.b16 %v295
    %v616 = vunpack.c.l.b16 %v296
    %v617 = vunpack.c.l.b16 %v297
    %v618 = vunpack.c.l.b16 %v298
    %v619 = vunpack.c.l.b16 %v299
    %v620 = vunpack.c.l.b16 %v300
    %v621 = vunpack.c.l.b16 %v301
    %v622 = vunpack.c.l.b16 %v302
    %v623 = vunpack.c.l.b16 %v303
    %v624 = vunpack.c.l.b16 %v304
    %v625 = vunpack.c.l.b16 %v305
    %v626 = vunpack.c.l.b16 %v306
    %v627 = vunpack.c.l.b16 %v307
    %v628 = vunpack.c.l.b16 %v308
    %v629 = vunpack.c.l.b16 %v309
    %v630 = vunpack.c.l.b16 %v310
    %v631 = vunpack.c.l.b16 %v311
    %v632 = vunpack.c.l.b16 %v312
    %v633 = vunpack.c.l.b16 %v313
    %v634 = vunpack.c.l.b16 %v314
    %v635 = vunpack.c.l.b16 %v315
    %v636 = vunpack.c.l.b16 %v316
    %v637 = vunpack.c.l.b16 %v317
    %v638 = vunpack.c.l.b16 %v318
    %v639 = vunpack.c.l.b16 %v319
    %v640 = vunpack.c.l.b16 %v320
    %v641 = vunpack.c.l.b16 %v321
    %v642 = vunpack.c.l.b16 %v322
    %v643 = vunpack.c.l.b16 %v323
    %v644 = vunpack.c.l.b16 %v324
    %v645 = vunpack.c.l.b16 %v325
    %v646 = vunpack.c.l.b16 %v326
    %v647 = vunpack.c.l.b16 %v327
    %v648 = vunpack.c.l.b16 %v328
    %v649 = vunpack.c.l.b16 %v329
    %v650 = vunpack.c.l.b16 %v330
    %v651 = vunpack.c.l.b16 %v331
    %v652 = vunpack.c.l.b16 %v332
    %v653 = vunpack.c.l.b16 %v333
    %v654 = vunpack.c.l.b16 %v334
    %v655 = vunpack.c.l.b16 %v335
    %v656 = vunpack.c.l.b16 %v336
    %v657 = vunpack.c.l.b16 %v337
    %v658 = vunpack.c.l.b16 %v338
    %v659 = vunpack.c.l.b16 %v339
    %v660 = vunpack.c.l.b16 %v340
    %v661 = vunpack.c.l.b16 %v341
    %v662 = vunpack.c.l.b16 %v342
    %v663 = vunpack.c.l.b16 %v343
    %v664 = vunpack.c.l.b16 %v344
    %v665 = vunpack.c.l.b16 %v345
    %v666 = vunpack.c.l.b16 %v346
    %v667 = vunpack.c.l.b16 %v347
    %v668 = vunpack.c.l.b16 %v348
    %v669 = vunpack.c.l.b16 %v349
    %v670 = vunpack.c.l.b16 %v350
    %v671 = vunpack.c.l.b16 %v351
    %v672 = vunpack.c.l.b16 %v352
    %v673 = vunpack.c.l.b16 %v353
    %v674 = vpack.c.b16 %v611, %v610
    %v675 = vpack.c.b16 %v613, %v612
    %v676 = vpack.c.b16 %v615, %v614
    %v677 = vpack.c.b16 %v617, %v616
    %v678 = vpack.c.b16 %v619, %v618
    %v679 = vpack.c.b16 %v621, %v620
    %v680 = vpack.c.b16 %v623, %v622
    %v681 = vpack.c.b16 %v625, %v624
    %v682 = vpack.c.b16 %v627, %v626
    %v683 = vpack.c.b16 %v629, %v628
    %v684 = vpack.c.b16 %v631, %v630
    %v685 = vpack.c.b16 %v633, %v632
    %v686 = vpack.c.b16 %v635, %v634
    %v687 = vpack.c.b16 %v637, %v636
    %v688 = vpack.c.b16 %v639, %v638
    %v689 = vpack.c.b16 %v641, %v640
    %v690 = vpack.c.b16 %v643, %v642
    %v691 = vpack.c.b16 %v645, %v644
    %v692 = vpack.c.b16 %v647, %v646
    %v693 = vpack.c.b16 %v649, %v648
    %v694 = vpack.c.b16 %v651, %v650
    %v695 = vpack.c.b16 %v653, %v652
    %v696 = vpack.c.b16 %v655, %v654
    %v697 = vpack.c.b16 %v657, %v656
    %v698 = vpack.c.b16 %v659, %v658
    %v699 = vpack.c.b16 %v661, %v660
    %v700 = vpack.c.b16 %v663, %v662
    %v701 = vpack.c.b16 %v665, %v664
    %v702 = vpack.c.b16 %v667, %v666
    %v703 = vpack.c.b16 %v669, %v668
    %v704 = vpack.c.b16 %v671, %v670
    %v705 = vpack.c.b16 %v673, %v672
    %738 = vmatprep.subr.bf16.mxu0 0
    %739 = vmatpush1.bf16.msra.mxu0 %v674
    %740 = vmatprep.subr.bf16.mxu0 0
    %741 = vmatpush1.bf16.msra.mxu0 %v675
    %742 = vmatprep.subr.bf16.mxu0 0
    %743 = vmatpush1.bf16.msra.mxu0 %v676
    %744 = vmatprep.subr.bf16.mxu0 0
    %745 = vmatpush1.bf16.msra.mxu0 %v677
    %746 = vmatprep.subr.bf16.mxu0 0
    %747 = vmatpush1.bf16.msra.mxu0 %v678
    %748 = vmatprep.subr.bf16.mxu0 0
    %749 = vmatpush1.bf16.msra.mxu0 %v679
    %750 = vmatprep.subr.bf16.mxu0 0
    %751 = vmatpush1.bf16.msra.mxu0 %v680
    %752 = vmatprep.subr.bf16.mxu0 0
    %753 = vmatpush1.bf16.msra.mxu0 %v681
    %754 = vmatprep.subr.bf16.mxu0 0
    %755 = vmatpush1.bf16.msra.mxu0 %v682
    %756 = vmatprep.subr.bf16.mxu0 0
    %757 = vmatpush1.bf16.msra.mxu0 %v683
    %758 = vmatprep.subr.bf16.mxu0 0
    %759 = vmatpush1.bf16.msra.mxu0 %v684
    %760 = vmatprep.subr.bf16.mxu0 0
    %761 = vmatpush1.bf16.msra.mxu0 %v685
    %762 = vmatprep.subr.bf16.mxu0 0
    %763 = vmatpush1.bf16.msra.mxu0 %v686
    %764 = vmatprep.subr.bf16.mxu0 0
    %765 = vmatpush1.bf16.msra.mxu0 %v687
    %766 = vmatprep.subr.bf16.mxu0 0
    %767 = vmatpush1.bf16.msra.mxu0 %v688
    %768 = vmatprep.subr.bf16.mxu0 0
    %769 = vmatpush1.bf16.msra.mxu0 %v689
    %770 = vmatprep.mubr.bf16.mxu0 %v483
    %771 = vmatmul.mubr.bf16.gmra.mrb[0].mxu0 %v482
    %v772 = vpop.f32.mrb[0].mxu0
    %v773 = vadd.f32 0.0, %v772
    %v774 = vpop.f32.mrb[0].mxu0
    %v775 = vpop.f32.mrb[0].mxu0
    %v776 = vadd.f32 0.0, %v775
    %v777 = vpop.f32.mrb[0].mxu0
    %778 = vmatprep.mubr.bf16.mxu0 %v487
    %779 = vmatmul.mubr.bf16.gmra.mrb[0].mxu0 %v486
    %v780 = vpop.f32.mrb[0].mxu0
    %v781 = vadd.f32 0.0, %v780
    %v782 = vpop.f32.mrb[0].mxu0
    %v783 = vpop.f32.mrb[0].mxu0
    %v784 = vadd.f32 0.0, %v783
    %v785 = vpop.f32.mrb[0].mxu0
    %786 = vmatprep.mubr.bf16.mxu0 %v491
    %787 = vmatmul.mubr.bf16.gmra.mrb[0].mxu0 %v490
    %v788 = vpop.f32.mrb[0].mxu0
    %v789 = vadd.f32 0.0, %v788
    %v790 = vpop.f32.mrb[0].mxu0
    %v791 = vpop.f32.mrb[0].mxu0
    %v792 = vadd.f32 0.0, %v791
    %v793 = vpop.f32.mrb[0].mxu0
    %794 = vmatprep.mubr.bf16.mxu0 %v495
    %795 = vmatmul.mubr.bf16.gmra.mrb[0].mxu0 %v494
    %v796 = vpop.f32.mrb[0].mxu0
    %v797 = vadd.f32 0.0, %v796
    %v798 = vpop.f32.mrb[0].mxu0
    %v799 = vpop.f32.mrb[0].mxu0
    %v800 = vadd.f32 0.0, %v799
    %v801 = vpop.f32.mrb[0].mxu0
    %802 = vmatprep.mubr.bf16.mxu0 %v499
    %803 = vmatmul.mubr.bf16.gmra.mrb[0].mxu0 %v498
    %v804 = vpop.f32.mrb[0].mxu0
    %v805 = vadd.f32 0.0, %v804
    %v806 = vpop.f32.mrb[0].mxu0
    %v807 = vpop.f32.mrb[0].mxu0
    %v808 = vadd.f32 0.0, %v807
    %v809 = vpop.f32.mrb[0].mxu0
    %810 = vmatprep.mubr.bf16.mxu0 %v503
    %811 = vmatmul.mubr.bf16.gmra.mrb[0].mxu0 %v502
    %v812 = vpop.f32.mrb[0].mxu0
    %v813 = vadd.f32 0.0, %v812
    %v814 = vpop.f32.mrb[0].mxu0
    %v815 = vpop.f32.mrb[0].mxu0
    %v816 = vadd.f32 0.0, %v815
    %v817 = vpop.f32.mrb[0].mxu0
    %818 = vmatprep.mubr.bf16.mxu0 %v507
    %819 = vmatmul.mubr.bf16.gmra.mrb[0].mxu0 %v506
    %v820 = vpop.f32.mrb[0].mxu0
    %v821 = vadd.f32 0.0, %v820
    %v822 = vpop.f32.mrb[0].mxu0
    %v823 = vpop.f32.mrb[0].mxu0
    %v824 = vadd.f32 0.0, %v823
    %v825 = vpop.f32.mrb[0].mxu0
    %826 = vmatprep.mubr.bf16.mxu0 %v511
    %827 = vmatmul.mubr.bf16.gmra.mrb[0].mxu0 %v510
    %v828 = vpop.f32.mrb[0].mxu0
    %v829 = vadd.f32 0.0, %v828
    %v830 = vpop.f32.mrb[0].mxu0
    %v831 = vpop.f32.mrb[0].mxu0
    %v832 = vadd.f32 0.0, %v831
    %v833 = vpop.f32.mrb[0].mxu0
    %834 = vdwg.mxu0
    %835 = vmatprep.subr.bf16.mxu0 0
    %836 = vmatpush1.bf16.msra.mxu0 %v690
    %837 = vmatprep.subr.bf16.mxu0 0
    %838 = vmatpush1.bf16.msra.mxu0 %v691
    %839 = vmatprep.subr.bf16.mxu0 0
    %840 = vmatpush1.bf16.msra.mxu0 %v692
    %841 = vmatprep.subr.bf16.mxu0 0
    %842 = vmatpush1.bf16.msra.mxu0 %v693
    %843 = vmatprep.subr.bf16.mxu0 0
    %844 = vmatpush1.bf16.msra.mxu0 %v694
    %845 = vmatprep.subr.bf16.mxu0 0
    %846 = vmatpush1.bf16.msra.mxu0 %v695
    %847 = vmatprep.subr.bf16.mxu0 0
    %848 = vmatpush1.bf16.msra.mxu0 %v696
    %849 = vmatprep.subr.bf16.mxu0 0
    %850 = vmatpush1.bf16.msra.mxu0 %v697
    %851 = vmatprep.subr.bf16.mxu0 0
    %852 = vmatpush1.bf16.msra.mxu0 %v698
    %853 = vmatprep.subr.bf16.mxu0 0
    %854 = vmatpush1.bf16.msra.mxu0 %v699
    %855 = vmatprep.subr.bf16.mxu0 0
    %856 = vmatpush1.bf16.msra.mxu0 %v700
    %857 = vmatprep.subr.bf16.mxu0 0
    %858 = vmatpush1.bf16.msra.mxu0 %v701
    %859 = vmatprep.subr.bf16.mxu0 0
    %860 = vmatpush1.bf16.msra.mxu0 %v702
    %861 = vmatprep.subr.bf16.mxu0 0
    %862 = vmatpush1.bf16.msra.mxu0 %v703
    %863 = vmatprep.subr.bf16.mxu0 0
    %864 = vmatpush1.bf16.msra.mxu0 %v704
    %865 = vmatprep.subr.bf16.mxu0 0
    %866 = vmatpush1.bf16.msra.mxu0 %v705
    %867 = vmatprep.mubr.bf16.mxu0 %v485
    %868 = vmatmul.mubr.bf16.gmra.mrb[0].mxu0 %v484
    %v869 = vpop.f32.mrb[0].mxu0
    %v870 = vadd.f32 %v773, %v869
    %v871 = vpop.f32.mrb[0].mxu0
    %v872 = vpop.f32.mrb[0].mxu0
    %v873 = vadd.f32 %v776, %v872
    %v874 = vpop.f32.mrb[0].mxu0
    %875 = vmatprep.mubr.bf16.mxu0 %v489
    %876 = vmatmul.mubr.bf16.gmra.mrb[0].mxu0 %v488
    %v877 = vpop.f32.mrb[0].mxu0
    %v878 = vadd.f32 %v781, %v877
    %v879 = vpop.f32.mrb[0].mxu0
    %v880 = vpop.f32.mrb[0].mxu0
    %v881 = vadd.f32 %v784, %v880
    %v882 = vpop.f32.mrb[0].mxu0
    %883 = vmatprep.mubr.bf16.mxu0 %v493
    %884 = vmatmul.mubr.bf16.gmra.mrb[0].mxu0 %v492
    %v885 = vpop.f32.mrb[0].mxu0
    %v886 = vadd.f32 %v789, %v885
    %v887 = vpop.f32.mrb[0].mxu0
    %v888 = vpop.f32.mrb[0].mxu0
    %v889 = vadd.f32 %v792, %v888
    %v890 = vpop.f32.mrb[0].mxu0
    %891 = vmatprep.mubr.bf16.mxu0 %v497
    %892 = vmatmul.mubr.bf16.gmra.mrb[0].mxu0 %v496
    %v893 = vpop.f32.mrb[0].mxu0
    %v894 = vadd.f32 %v797, %v893
    %v895 = vpop.f32.mrb[0].mxu0
    %v896 = vpop.f32.mrb[0].mxu0
    %v897 = vadd.f32 %v800, %v896
    %v898 = vpop.f32.mrb[0].mxu0
    %899 = vmatprep.mubr.bf16.mxu0 %v501
    %900 = vmatmul.mubr.bf16.gmra.mrb[0].mxu0 %v500
    %v901 = vpop.f32.mrb[0].mxu0
    %v902 = vadd.f32 %v805, %v901
    %v903 = vpop.f32.mrb[0].mxu0
    %v904 = vpop.f32.mrb[0].mxu0
    %v905 = vadd.f32 %v808, %v904
    %v906 = vpop.f32.mrb[0].mxu0
    %907 = vmatprep.mubr.bf16.mxu0 %v505
    %908 = vmatmul.mubr.bf16.gmra.mrb[0].mxu0 %v504
    %v909 = vpop.f32.mrb[0].mxu0
    %v910 = vadd.f32 %v813, %v909
    %v911 = vpop.f32.mrb[0].mxu0
    %v912 = vpop.f32.mrb[0].mxu0
    %v913 = vadd.f32 %v816, %v912
    %v914 = vpop.f32.mrb[0].mxu0
    %915 = vmatprep.mubr.bf16.mxu0 %v509
    %916 = vmatmul.mubr.bf16.gmra.mrb[0].mxu0 %v508
    %v917 = vpop.f32.mrb[0].mxu0
    %v918 = vadd.f32 %v821, %v917
    %v919 = vpop.f32.mrb[0].mxu0
    %v920 = vpop.f32.mrb[0].mxu0
    %v921 = vadd.f32 %v824, %v920
    %v922 = vpop.f32.mrb[0].mxu0
    %923 = vmatprep.mubr.bf16.mxu0 %v513
    %924 = vmatmul.mubr.bf16.gmra.mrb[0].mxu0 %v512
    %v925 = vpop.f32.mrb[0].mxu0
    %v926 = vadd.f32 %v829, %v925
    %v927 = vpop.f32.mrb[0].mxu0
    %v928 = vpop.f32.mrb[0].mxu0
    %v929 = vadd.f32 %v832, %v928
    %v930 = vpop.f32.mrb[0].mxu0
    %931 = vdwg.mxu0
    %v932 = vpack.c.bf16 %v873, %v870
    %v933 = vpack.c.bf16 %v881, %v878
    %v934 = vpack.c.bf16 %v889, %v886
    %v935 = vpack.c.bf16 %v897, %v894
    %v936 = vpack.c.bf16 %v905, %v902
    %v937 = vpack.c.bf16 %v913, %v910
    %v938 = vpack.c.bf16 %v921, %v918
    %v939 = vpack.c.bf16 %v929, %v926
    %v940 = vld [vmem:[%s2] sm:$0x3]
    %s941 = scalar_lea.vmem [#allocation2], 256
    %v942 = vld [vmem:[%s941] sm:$0xff]
    %v943 = vld [vmem:[%s941 + $0x8] sm:$0xff]
    %v944 = vld [vmem:[%s941 + $0x10] sm:$0xff]
    %v945 = vld [vmem:[%s941 + $0x18] sm:$0xff]
    %v946 = vld [vmem:[%s941 + $0x20] sm:$0xff]
    %v947 = vld [vmem:[%s941 + $0x28] sm:$0xff]
    %v948 = vld [vmem:[%s941 + $0x30] sm:$0xff]
    %v949 = vld [vmem:[%s941 + $0x38] sm:$0xff]
    %v950 = vld [vmem:[%s941 + $0x40] sm:$0xff]
    %v951 = vld [vmem:[%s941 + $0x48] sm:$0xff]
    %v952 = vld [vmem:[%s941 + $0x50] sm:$0xff]
    %v953 = vld [vmem:[%s941 + $0x58] sm:$0xff]
    %v954 = vld [vmem:[%s941 + $0x60] sm:$0xff]
    %v955 = vld [vmem:[%s941 + $0x68] sm:$0xff]
    %v956 = vld [vmem:[%s941 + $0x70] sm:$0xff]
    %v957 = vld [vmem:[%s941 + $0x78] sm:$0xff]
    %v958 = vld [vmem:[%s941 + $0x80] sm:$0xff]
    %v959 = vld [vmem:[%s941 + $0x88] sm:$0xff]
    %v960 = vld [vmem:[%s941 + $0x90] sm:$0xff]
    %v961 = vld [vmem:[%s941 + $0x98] sm:$0xff]
    %v962 = vld [vmem:[%s941 + $0xa0] sm:$0xff]
    %v963 = vld [vmem:[%s941 + $0xa8] sm:$0xff]
    %v964 = vld [vmem:[%s941 + $0xb0] sm:$0xff]
    %v965 = vld [vmem:[%s941 + $0xb8] sm:$0xff]
    %v966 = vld [vmem:[%s941 + $0xc0] sm:$0xff]
    %v967 = vld [vmem:[%s941 + $0xc8] sm:$0xff]
    %v968 = vld [vmem:[%s941 + $0xd0] sm:$0xff]
    %v969 = vld [vmem:[%s941 + $0xd8] sm:$0xff]
    %v970 = vld [vmem:[%s941 + $0xe0] sm:$0xff]
    %v971 = vld [vmem:[%s941 + $0xe8] sm:$0xff]
    %v972 = vld [vmem:[%s941 + $0xf0] sm:$0xff]
    %v973 = vld [vmem:[%s941 + $0xf8] sm:$0xff]
    %v1006 = vunpack.c.l.b16 %v942
    %v1007 = vunpack.c.h.b16 %v942
    %v1008 = vunpack.c.l.b16 %v943
    %v1009 = vunpack.c.h.b16 %v943
    %v1010 = vunpack.c.l.b16 %v944
    %v1011 = vunpack.c.h.b16 %v944
    %v1012 = vunpack.c.l.b16 %v945
    %v1013 = vunpack.c.h.b16 %v945
    %v1014 = vunpack.c.l.b16 %v946
    %v1015 = vunpack.c.h.b16 %v946
    %v1016 = vunpack.c.l.b16 %v947
    %v1017 = vunpack.c.h.b16 %v947
    %v1018 = vunpack.c.l.b16 %v948
    %v1019 = vunpack.c.h.b16 %v948
    %v1020 = vunpack.c.l.b16 %v949
    %v1021 = vunpack.c.h.b16 %v949
    %v1022 = vunpack.c.l.b16 %v950
    %v1023 = vunpack.c.h.b16 %v950
    %v1024 = vunpack.c.l.b16 %v951
    %v1025 = vunpack.c.h.b16 %v951
    %v1026 = vunpack.c.l.b16 %v952
    %v1027 = vunpack.c.h.b16 %v952
    %v1028 = vunpack.c.l.b16 %v953
    %v1029 = vunpack.c.h.b16 %v953
    %v1030 = vunpack.c.l.b16 %v954
    %v1031 = vunpack.c.h.b16 %v954
    %v1032 = vunpack.c.l.b16 %v955
    %v1033 = vunpack.c.h.b16 %v955
    %v1034 = vunpack.c.l.b16 %v956
    %v1035 = vunpack.c.h.b16 %v956
    %v1036 = vunpack.c.l.b16 %v957
    %v1037 = vunpack.c.h.b16 %v957
    %v1038 = vunpack.c.l.b16 %v958
    %v1039 = vunpack.c.h.b16 %v958
    %v1040 = vunpack.c.l.b16 %v959
    %v1041 = vunpack.c.h.b16 %v959
    %v1042 = vunpack.c.l.b16 %v960
    %v1043 = vunpack.c.h.b16 %v960
    %v1044 = vunpack.c.l.b16 %v961
    %v1045 = vunpack.c.h.b16 %v961
    %v1046 = vunpack.c.l.b16 %v962
    %v1047 = vunpack.c.h.b16 %v962
    %v1048 = vunpack.c.l.b16 %v963
    %v1049 = vunpack.c.h.b16 %v963
    %v1050 = vunpack.c.l.b16 %v964
    %v1051 = vunpack.c.h.b16 %v964
    %v1052 = vunpack.c.l.b16 %v965
    %v1053 = vunpack.c.h.b16 %v965
    %v1054 = vunpack.c.l.b16 %v966
    %v1055 = vunpack.c.h.b16 %v966
    %v1056 = vunpack.c.l.b16 %v967
    %v1057 = vunpack.c.h.b16 %v967
    %v1058 = vunpack.c.l.b16 %v968
    %v1059 = vunpack.c.h.b16 %v968
    %v1060 = vunpack.c.l.b16 %v969
    %v1061 = vunpack.c.h.b16 %v969
    %v1062 = vunpack.c.l.b16 %v970
    %v1063 = vunpack.c.h.b16 %v970
    %v1064 = vunpack.c.l.b16 %v971
    %v1065 = vunpack.c.h.b16 %v971
    %v1066 = vunpack.c.l.b16 %v972
    %v1067 = vunpack.c.h.b16 %v972
    %v1068 = vunpack.c.l.b16 %v973
    %v1069 = vunpack.c.h.b16 %v973
    %v1070 = vpack.c.b16 %v1010, %v1006
    %v1071 = vpack.c.b16 %v1011, %v1007
    %v1072 = vpack.c.b16 %v1012, %v1008
    %v1073 = vpack.c.b16 %v1013, %v1009
    %v1074 = vpack.c.b16 %v1018, %v1014
    %v1075 = vpack.c.b16 %v1019, %v1015
    %v1076 = vpack.c.b16 %v1020, %v1016
    %v1077 = vpack.c.b16 %v1021, %v1017
    %v1078 = vpack.c.b16 %v1026, %v1022
    %v1079 = vpack.c.b16 %v1027, %v1023
    %v1080 = vpack.c.b16 %v1028, %v1024
    %v1081 = vpack.c.b16 %v1029, %v1025
    %v1082 = vpack.c.b16 %v1034, %v1030
    %v1083 = vpack.c.b16 %v1035, %v1031
    %v1084 = vpack.c.b16 %v1036, %v1032
    %v1085 = vpack.c.b16 %v1037, %v1033
    %v1086 = vpack.c.b16 %v1042, %v1038
    %v1087 = vpack.c.b16 %v1043, %v1039
    %v1088 = vpack.c.b16 %v1044, %v1040
    %v1089 = vpack.c.b16 %v1045, %v1041
    %v1090 = vpack.c.b16 %v1050, %v1046
    %v1091 = vpack.c.b16 %v1051, %v1047
    %v1092 = vpack.c.b16 %v1052, %v1048
    %v1093 = vpack.c.b16 %v1053, %v1049
    %v1094 = vpack.c.b16 %v1058, %v1054
    %v1095 = vpack.c.b16 %v1059, %v1055
    %v1096 = vpack.c.b16 %v1060, %v1056
    %v1097 = vpack.c.b16 %v1061, %v1057
    %v1098 = vpack.c.b16 %v1066, %v1062
    %v1099 = vpack.c.b16 %v1067, %v1063
    %v1100 = vpack.c.b16 %v1068, %v1064
    %v1101 = vpack.c.b16 %v1069, %v1065
    %1134 = vmatprep.subr.bf16.mxu0 0
    %1135 = vmatpush1.bf16.msra.mxu0 %v674
    %1136 = vmatprep.subr.bf16.mxu0 0
    %1137 = vmatpush1.bf16.msra.mxu0 %v675
    %1138 = vmatprep.subr.bf16.mxu0 0
    %1139 = vmatpush1.bf16.msra.mxu0 %v676
    %1140 = vmatprep.subr.bf16.mxu0 0
    %1141 = vmatpush1.bf16.msra.mxu0 %v677
    %1142 = vmatprep.subr.bf16.mxu0 0
    %1143 = vmatpush1.bf16.msra.mxu0 %v678
    %1144 = vmatprep.subr.bf16.mxu0 0
    %1145 = vmatpush1.bf16.msra.mxu0 %v679
    %1146 = vmatprep.subr.bf16.mxu0 0
    %1147 = vmatpush1.bf16.msra.mxu0 %v680
    %1148 = vmatprep.subr.bf16.mxu0 0
    %1149 = vmatpush1.bf16.msra.mxu0 %v681
    %1150 = vmatprep.subr.bf16.mxu0 0
    %1151 = vmatpush1.bf16.msra.mxu0 %v682
    %1152 = vmatprep.subr.bf16.mxu0 0
    %1153 = vmatpush1.bf16.msra.mxu0 %v683
    %1154 = vmatprep.subr.bf16.mxu0 0
    %1155 = vmatpush1.bf16.msra.mxu0 %v684
    %1156 = vmatprep.subr.bf16.mxu0 0
    %1157 = vmatpush1.bf16.msra.mxu0 %v685
    %1158 = vmatprep.subr.bf16.mxu0 0
    %1159 = vmatpush1.bf16.msra.mxu0 %v686
    %1160 = vmatprep.subr.bf16.mxu0 0
    %1161 = vmatpush1.bf16.msra.mxu0 %v687
    %1162 = vmatprep.subr.bf16.mxu0 0
    %1163 = vmatpush1.bf16.msra.mxu0 %v688
    %1164 = vmatprep.subr.bf16.mxu0 0
    %1165 = vmatpush1.bf16.msra.mxu0 %v689
    %1166 = vmatprep.mubr.bf16.mxu0 %v1071
    %1167 = vmatmul.mubr.bf16.gmra.mrb[0].mxu0 %v1070
    %v1168 = vpop.f32.mrb[0].mxu0
    %v1169 = vadd.f32 0.0, %v1168
    %v1170 = vpop.f32.mrb[0].mxu0
    %v1171 = vpop.f32.mrb[0].mxu0
    %v1172 = vadd.f32 0.0, %v1171
    %v1173 = vpop.f32.mrb[0].mxu0
    %1174 = vmatprep.mubr.bf16.mxu0 %v1075
    %1175 = vmatmul.mubr.bf16.gmra.mrb[0].mxu0 %v1074
    %v1176 = vpop.f32.mrb[0].mxu0
    %v1177 = vadd.f32 0.0, %v1176
    %v1178 = vpop.f32.mrb[0].mxu0
    %v1179 = vpop.f32.mrb[0].mxu0
    %v1180 = vadd.f32 0.0, %v1179
    %v1181 = vpop.f32.mrb[0].mxu0
    %1182 = vmatprep.mubr.bf16.mxu0 %v1079
    %1183 = vmatmul.mubr.bf16.gmra.mrb[0].mxu0 %v1078
    %v1184 = vpop.f32.mrb[0].mxu0
    %v1185 = vadd.f32 0.0, %v1184
    %v1186 = vpop.f32.mrb[0].mxu0
    %v1187 = vpop.f32.mrb[0].mxu0
    %v1188 = vadd.f32 0.0, %v1187
    %v1189 = vpop.f32.mrb[0].mxu0
    %1190 = vmatprep.mubr.bf16.mxu0 %v1083
    %1191 = vmatmul.mubr.bf16.gmra.mrb[0].mxu0 %v1082
    %v1192 = vpop.f32.mrb[0].mxu0
    %v1193 = vadd.f32 0.0, %v1192
    %v1194 = vpop.f32.mrb[0].mxu0
    %v1195 = vpop.f32.mrb[0].mxu0
    %v1196 = vadd.f32 0.0, %v1195
    %v1197 = vpop.f32.mrb[0].mxu0
    %1198 = vmatprep.mubr.bf16.mxu0 %v1087
    %1199 = vmatmul.mubr.bf16.gmra.mrb[0].mxu0 %v1086
    %v1200 = vpop.f32.mrb[0].mxu0
    %v1201 = vadd.f32 0.0, %v1200
    %v1202 = vpop.f32.mrb[0].mxu0
    %v1203 = vpop.f32.mrb[0].mxu0
    %v1204 = vadd.f32 0.0, %v1203
    %v1205 = vpop.f32.mrb[0].mxu0
    %1206 = vmatprep.mubr.bf16.mxu0 %v1091
    %1207 = vmatmul.mubr.bf16.gmra.mrb[0].mxu0 %v1090
    %v1208 = vpop.f32.mrb[0].mxu0
    %v1209 = vadd.f32 0.0, %v1208
    %v1210 = vpop.f32.mrb[0].mxu0
    %v1211 = vpop.f32.mrb[0].mxu0
    %v1212 = vadd.f32 0.0, %v1211
    %v1213 = vpop.f32.mrb[0].mxu0
    %1214 = vmatprep.mubr.bf16.mxu0 %v1095
    %1215 = vmatmul.mubr.bf16.gmra.mrb[0].mxu0 %v1094
    %v1216 = vpop.f32.mrb[0].mxu0
    %v1217 = vadd.f32 0.0, %v1216
    %v1218 = vpop.f32.mrb[0].mxu0
    %v1219 = vpop.f32.mrb[0].mxu0
    %v1220 = vadd.f32 0.0, %v1219
    %v1221 = vpop.f32.mrb[0].mxu0
    %1222 = vmatprep.mubr.bf16.mxu0 %v1099
    %1223 = vmatmul.mubr.bf16.gmra.mrb[0].mxu0 %v1098
    %v1224 = vpop.f32.mrb[0].mxu0
    %v1225 = vadd.f32 0.0, %v1224
    %v1226 = vpop.f32.mrb[0].mxu0
    %v1227 = vpop.f32.mrb[0].mxu0
    %v1228 = vadd.f32 0.0, %v1227
    %v1229 = vpop.f32.mrb[0].mxu0
    %1230 = vdwg.mxu0
    %1231 = vmatprep.subr.bf16.mxu0 0
    %1232 = vmatpush1.bf16.msra.mxu0 %v690
    %1233 = vmatprep.subr.bf16.mxu0 0
    %1234 = vmatpush1.bf16.msra.mxu0 %v691
    %1235 = vmatprep.subr.bf16.mxu0 0
    %1236 = vmatpush1.bf16.msra.mxu0 %v692
    %1237 = vmatprep.subr.bf16.mxu0 0
    %1238 = vmatpush1.bf16.msra.mxu0 %v693
    %1239 = vmatprep.subr.bf16.mxu0 0
    %1240 = vmatpush1.bf16.msra.mxu0 %v694
    %1241 = vmatprep.subr.bf16.mxu0 0
    %1242 = vmatpush1.bf16.msra.mxu0 %v695
    %1243 = vmatprep.subr.bf16.mxu0 0
    %1244 = vmatpush1.bf16.msra.mxu0 %v696
    %1245 = vmatprep.subr.bf16.mxu0 0
    %1246 = vmatpush1.bf16.msra.mxu0 %v697
    %1247 = vmatprep.subr.bf16.mxu0 0
    %1248 = vmatpush1.bf16.msra.mxu0 %v698
    %1249 = vmatprep.subr.bf16.mxu0 0
    %1250 = vmatpush1.bf16.msra.mxu0 %v699
    %1251 = vmatprep.subr.bf16.mxu0 0
    %1252 = vmatpush1.bf16.msra.mxu0 %v700
    %1253 = vmatprep.subr.bf16.mxu0 0
    %1254 = vmatpush1.bf16.msra.mxu0 %v701
    %1255 = vmatprep.subr.bf16.mxu0 0
    %1256 = vmatpush1.bf16.msra.mxu0 %v702
    %1257 = vmatprep.subr.bf16.mxu0 0
    %1258 = vmatpush1.bf16.msra.mxu0 %v703
    %1259 = vmatprep.subr.bf16.mxu0 0
    %1260 = vmatpush1.bf16.msra.mxu0 %v704
    %1261 = vmatprep.subr.bf16.mxu0 0
    %1262 = vmatpush1.bf16.msra.mxu0 %v705
    %1263 = vmatprep.mubr.bf16.mxu0 %v1073
    %1264 = vmatmul.mubr.bf16.gmra.mrb[0].mxu0 %v1072
    %v1265 = vpop.f32.mrb[0].mxu0
    %v1266 = vadd.f32 %v1169, %v1265
    %v1267 = vpop.f32.mrb[0].mxu0
    %v1268 = vpop.f32.mrb[0].mxu0
    %v1269 = vadd.f32 %v1172, %v1268
    %v1270 = vpop.f32.mrb[0].mxu0
    %1271 = vmatprep.mubr.bf16.mxu0 %v1077
    %1272 = vmatmul.mubr.bf16.gmra.mrb[0].mxu0 %v1076
    %v1273 = vpop.f32.mrb[0].mxu0
    %v1274 = vadd.f32 %v1177, %v1273
    %v1275 = vpop.f32.mrb[0].mxu0
    %v1276 = vpop.f32.mrb[0].mxu0
    %v1277 = vadd.f32 %v1180, %v1276
    %v1278 = vpop.f32.mrb[0].mxu0
    %1279 = vmatprep.mubr.bf16.mxu0 %v1081
    %1280 = vmatmul.mubr.bf16.gmra.mrb[0].mxu0 %v1080
    %v1281 = vpop.f32.mrb[0].mxu0
    %v1282 = vadd.f32 %v1185, %v1281
    %v1283 = vpop.f32.mrb[0].mxu0
    %v1284 = vpop.f32.mrb[0].mxu0
    %v1285 = vadd.f32 %v1188, %v1284
    %v1286 = vpop.f32.mrb[0].mxu0
    %1287 = vmatprep.mubr.bf16.mxu0 %v1085
    %1288 = vmatmul.mubr.bf16.gmra.mrb[0].mxu0 %v1084
    %v1289 = vpop.f32.mrb[0].mxu0
    %v1290 = vadd.f32 %v1193, %v1289
    %v1291 = vpop.f32.mrb[0].mxu0
    %v1292 = vpop.f32.mrb[0].mxu0
    %v1293 = vadd.f32 %v1196, %v1292
    %v1294 = vpop.f32.mrb[0].mxu0
    %1295 = vmatprep.mubr.bf16.mxu0 %v1089
    %1296 = vmatmul.mubr.bf16.gmra.mrb[0].mxu0 %v1088
    %v1297 = vpop.f32.mrb[0].mxu0
    %v1298 = vadd.f32 %v1201, %v1297
    %v1299 = vpop.f32.mrb[0].mxu0
    %v1300 = vpop.f32.mrb[0].mxu0
    %v1301 = vadd.f32 %v1204, %v1300
    %v1302 = vpop.f32.mrb[0].mxu0
    %1303 = vmatprep.mubr.bf16.mxu0 %v1093
    %1304 = vmatmul.mubr.bf16.gmra.mrb[0].mxu0 %v1092
    %v1305 = vpop.f32.mrb[0].mxu0
    %v1306 = vadd.f32 %v1209, %v1305
    %v1307 = vpop.f32.mrb[0].mxu0
    %v1308 = vpop.f32.mrb[0].mxu0
    %v1309 = vadd.f32 %v1212, %v1308
    %v1310 = vpop.f32.mrb[0].mxu0
    %1311 = vmatprep.mubr.bf16.mxu0 %v1097
    %1312 = vmatmul.mubr.bf16.gmra.mrb[0].mxu0 %v1096
    %v1313 = vpop.f32.mrb[0].mxu0
    %v1314 = vadd.f32 %v1217, %v1313
    %v1315 = vpop.f32.mrb[0].mxu0
    %v1316 = vpop.f32.mrb[0].mxu0
    %v1317 = vadd.f32 %v1220, %v1316
    %v1318 = vpop.f32.mrb[0].mxu0
    %1319 = vmatprep.mubr.bf16.mxu0 %v1101
    %1320 = vmatmul.mubr.bf16.gmra.mrb[0].mxu0 %v1100
    %v1321 = vpop.f32.mrb[0].mxu0
    %v1322 = vadd.f32 %v1225, %v1321
    %v1323 = vpop.f32.mrb[0].mxu0
    %v1324 = vpop.f32.mrb[0].mxu0
    %v1325 = vadd.f32 %v1228, %v1324
    %v1326 = vpop.f32.mrb[0].mxu0
    %1327 = vdwg.mxu0
    %v1328 = vpack.c.bf16 %v1269, %v1266
    %v1329 = vpack.c.bf16 %v1277, %v1274
    %v1330 = vpack.c.bf16 %v1285, %v1282
    %v1331 = vpack.c.bf16 %v1293, %v1290
    %v1332 = vpack.c.bf16 %v1301, %v1298
    %v1333 = vpack.c.bf16 %v1309, %v1306
    %v1334 = vpack.c.bf16 %v1317, %v1314
    %v1335 = vpack.c.bf16 %v1325, %v1322
    %s1336 = scalar_lea.vmem %s2, 2
    %v1337 = vld [vmem:[%s1336] sm:$0x3]
    %vm1338 = vcmask 31744
    %v1340 = vsel %vm1338, %v1328, 0
    %v1343 = vsel %vm1338, %v1329, 0
    %v1346 = vsel %vm1338, %v1330, 0
    %v1349 = vsel %vm1338, %v1331, 0
    %v1352 = vsel %vm1338, %v1332, 0
    %v1355 = vsel %vm1338, %v1333, 0
    %v1358 = vsel %vm1338, %v1334, 0
    %v1361 = vsel %vm1338, %v1335, 0
    %vm1363 = vcmask 1041408
    %v1365 = vsel %vm1363, %v1337, 0
    %1367 = vmatprep.subr.bf16.mxu0 0
    %1368 = vmatpush1.bf16.msra.mxu0 %v1365
    %1369 = vmatprep.subr.bf16.mxu0 0
    %1370 = vmatpush1.bf16.msra.mxu0 0
    %1371 = vmatprep.subr.bf16.mxu0 0
    %1372 = vmatpush1.bf16.msra.mxu0 0
    %1373 = vmatprep.subr.bf16.mxu0 0
    %1374 = vmatpush1.bf16.msra.mxu0 0
    %1375 = vmatprep.subr.bf16.mxu0 0
    %1376 = vmatpush1.bf16.msra.mxu0 0
    %1377 = vmatprep.subr.bf16.mxu0 0
    %1378 = vmatpush1.bf16.msra.mxu0 0
    %1379 = vmatprep.subr.bf16.mxu0 0
    %1380 = vmatpush1.bf16.msra.mxu0 0
    %1381 = vmatprep.subr.bf16.mxu0 0
    %1382 = vmatpush1.bf16.msra.mxu0 0
    %1383 = vmatprep.subr.bf16.mxu0 0
    %1384 = vmatpush1.bf16.msra.mxu0 0
    %1385 = vmatprep.subr.bf16.mxu0 0
    %1386 = vmatpush1.bf16.msra.mxu0 0
    %1387 = vmatprep.subr.bf16.mxu0 0
    %1388 = vmatpush1.bf16.msra.mxu0 0
    %1389 = vmatprep.subr.bf16.mxu0 0
    %1390 = vmatpush1.bf16.msra.mxu0 0
    %1391 = vmatprep.subr.bf16.mxu0 0
    %1392 = vmatpush1.bf16.msra.mxu0 0
    %1393 = vmatprep.subr.bf16.mxu0 0
    %1394 = vmatpush1.bf16.msra.mxu0 0
    %1395 = vmatprep.subr.bf16.mxu0 0
    %1396 = vmatpush1.bf16.msra.mxu0 0
    %1397 = vmatprep.subr.bf16.mxu0 0
    %1398 = vmatpush1.bf16.msra.mxu0 0
    %1399 = vmatprep.mubr.bf16.mxu0 0
    %1400 = vmatmul.mubr.bf16.gmra.mrb[0].mxu0 %v1340
    %v1401 = vpop.f32.mrb[0].mxu0
    %v1402 = vadd.f32 0.0, %v1401
    %v1403 = vpop.f32.mrb[0].mxu0
    %v1404 = vpop.f32.mrb[0].mxu0
    %v1405 = vadd.f32 0.0, %v1404
    %v1406 = vpop.f32.mrb[0].mxu0
    %1407 = vmatprep.mubr.bf16.mxu0 0
    %1408 = vmatmul.mubr.bf16.gmra.mrb[0].mxu0 %v1343
    %v1409 = vpop.f32.mrb[0].mxu0
    %v1410 = vadd.f32 0.0, %v1409
    %v1411 = vpop.f32.mrb[0].mxu0
    %v1412 = vpop.f32.mrb[0].mxu0
    %v1413 = vadd.f32 0.0, %v1412
    %v1414 = vpop.f32.mrb[0].mxu0
    %1415 = vmatprep.mubr.bf16.mxu0 0
    %1416 = vmatmul.mubr.bf16.gmra.mrb[0].mxu0 %v1346
    %v1417 = vpop.f32.mrb[0].mxu0
    %v1418 = vadd.f32 0.0, %v1417
    %v1419 = vpop.f32.mrb[0].mxu0
    %v1420 = vpop.f32.mrb[0].mxu0
    %v1421 = vadd.f32 0.0, %v1420
    %v1422 = vpop.f32.mrb[0].mxu0
    %1423 = vmatprep.mubr.bf16.mxu0 0
    %1424 = vmatmul.mubr.bf16.gmra.mrb[0].mxu0 %v1349
    %v1425 = vpop.f32.mrb[0].mxu0
    %v1426 = vadd.f32 0.0, %v1425
    %v1427 = vpop.f32.mrb[0].mxu0
    %v1428 = vpop.f32.mrb[0].mxu0
    %v1429 = vadd.f32 0.0, %v1428
    %v1430 = vpop.f32.mrb[0].mxu0
    %1431 = vmatprep.mubr.bf16.mxu0 0
    %1432 = vmatmul.mubr.bf16.gmra.mrb[0].mxu0 %v1352
    %v1433 = vpop.f32.mrb[0].mxu0
    %v1434 = vadd.f32 0.0, %v1433
    %v1435 = vpop.f32.mrb[0].mxu0
    %v1436 = vpop.f32.mrb[0].mxu0
    %v1437 = vadd.f32 0.0, %v1436
    %v1438 = vpop.f32.mrb[0].mxu0
    %1439 = vmatprep.mubr.bf16.mxu0 0
    %1440 = vmatmul.mubr.bf16.gmra.mrb[0].mxu0 %v1355
    %v1441 = vpop.f32.mrb[0].mxu0
    %v1442 = vadd.f32 0.0, %v1441
    %v1443 = vpop.f32.mrb[0].mxu0
    %v1444 = vpop.f32.mrb[0].mxu0
    %v1445 = vadd.f32 0.0, %v1444
    %v1446 = vpop.f32.mrb[0].mxu0
    %1447 = vmatprep.mubr.bf16.mxu0 0
    %1448 = vmatmul.mubr.bf16.gmra.mrb[0].mxu0 %v1358
    %v1449 = vpop.f32.mrb[0].mxu0
    %v1450 = vadd.f32 0.0, %v1449
    %v1451 = vpop.f32.mrb[0].mxu0
    %v1452 = vpop.f32.mrb[0].mxu0
    %v1453 = vadd.f32 0.0, %v1452
    %v1454 = vpop.f32.mrb[0].mxu0
    %1455 = vmatprep.mubr.bf16.mxu0 0
    %1456 = vmatmul.mubr.bf16.gmra.mrb[0].mxu0 %v1361
    %v1457 = vpop.f32.mrb[0].mxu0
    %v1458 = vadd.f32 0.0, %v1457
    %v1459 = vpop.f32.mrb[0].mxu0
    %v1460 = vpop.f32.mrb[0].mxu0
    %v1461 = vadd.f32 0.0, %v1460
    %v1462 = vpop.f32.mrb[0].mxu0
    %1463 = vdwg.mxu0
    %v1465 = vsel %vm1338, %v932, 0
    %v1468 = vsel %vm1338, %v933, 0
    %v1471 = vsel %vm1338, %v934, 0
    %v1474 = vsel %vm1338, %v935, 0
    %v1477 = vsel %vm1338, %v936, 0
    %v1480 = vsel %vm1338, %v937, 0
    %v1483 = vsel %vm1338, %v938, 0
    %v1486 = vsel %vm1338, %v939, 0
    %v1489 = vsel %vm1363, %v940, 0
    %1491 = vmatprep.subr.bf16.mxu0 0
    %1492 = vmatpush1.bf16.msra.mxu0 %v1489
    %1493 = vmatprep.subr.bf16.mxu0 0
    %1494 = vmatpush1.bf16.msra.mxu0 0
    %1495 = vmatprep.subr.bf16.mxu0 0
    %1496 = vmatpush1.bf16.msra.mxu0 0
    %1497 = vmatprep.subr.bf16.mxu0 0
    %1498 = vmatpush1.bf16.msra.mxu0 0
    %1499 = vmatprep.subr.bf16.mxu0 0
    %1500 = vmatpush1.bf16.msra.mxu0 0
    %1501 = vmatprep.subr.bf16.mxu0 0
    %1502 = vmatpush1.bf16.msra.mxu0 0
    %1503 = vmatprep.subr.bf16.mxu0 0
    %1504 = vmatpush1.bf16.msra.mxu0 0
    %1505 = vmatprep.subr.bf16.mxu0 0
    %1506 = vmatpush1.bf16.msra.mxu0 0
    %1507 = vmatprep.subr.bf16.mxu0 0
    %1508 = vmatpush1.bf16.msra.mxu0 0
    %1509 = vmatprep.subr.bf16.mxu0 0
    %1510 = vmatpush1.bf16.msra.mxu0 0
    %1511 = vmatprep.subr.bf16.mxu0 0
    %1512 = vmatpush1.bf16.msra.mxu0 0
    %1513 = vmatprep.subr.bf16.mxu0 0
    %1514 = vmatpush1.bf16.msra.mxu0 0
    %1515 = vmatprep.subr.bf16.mxu0 0
    %1516 = vmatpush1.bf16.msra.mxu0 0
    %1517 = vmatprep.subr.bf16.mxu0 0
    %1518 = vmatpush1.bf16.msra.mxu0 0
    %1519 = vmatprep.subr.bf16.mxu0 0
    %1520 = vmatpush1.bf16.msra.mxu0 0
    %1521 = vmatprep.subr.bf16.mxu0 0
    %1522 = vmatpush1.bf16.msra.mxu0 0
    %1523 = vmatprep.mubr.bf16.mxu0 0
    %1524 = vmatmul.mubr.bf16.gmra.mrb[0].mxu0 %v1465
    %v1525 = vpop.f32.mrb[0].mxu0
    %v1526 = vadd.f32 %v1402, %v1525
    %v1527 = vpop.f32.mrb[0].mxu0
    %v1528 = vpop.f32.mrb[0].mxu0
    %v1529 = vadd.f32 %v1405, %v1528
    %v1530 = vpop.f32.mrb[0].mxu0
    %1531 = vmatprep.mubr.bf16.mxu0 0
    %1532 = vmatmul.mubr.bf16.gmra.mrb[0].mxu0 %v1468
    %v1533 = vpop.f32.mrb[0].mxu0
    %v1534 = vadd.f32 %v1410, %v1533
    %v1535 = vpop.f32.mrb[0].mxu0
    %v1536 = vpop.f32.mrb[0].mxu0
    %v1537 = vadd.f32 %v1413, %v1536
    %v1538 = vpop.f32.mrb[0].mxu0
    %1539 = vmatprep.mubr.bf16.mxu0 0
    %1540 = vmatmul.mubr.bf16.gmra.mrb[0].mxu0 %v1471
    %v1541 = vpop.f32.mrb[0].mxu0
    %v1542 = vadd.f32 %v1418, %v1541
    %v1543 = vpop.f32.mrb[0].mxu0
    %v1544 = vpop.f32.mrb[0].mxu0
    %v1545 = vadd.f32 %v1421, %v1544
    %v1546 = vpop.f32.mrb[0].mxu0
    %1547 = vmatprep.mubr.bf16.mxu0 0
    %1548 = vmatmul.mubr.bf16.gmra.mrb[0].mxu0 %v1474
    %v1549 = vpop.f32.mrb[0].mxu0
    %v1550 = vadd.f32 %v1426, %v1549
    %v1551 = vpop.f32.mrb[0].mxu0
    %v1552 = vpop.f32.mrb[0].mxu0
    %v1553 = vadd.f32 %v1429, %v1552
    %v1554 = vpop.f32.mrb[0].mxu0
    %1555 = vmatprep.mubr.bf16.mxu0 0
    %1556 = vmatmul.mubr.bf16.gmra.mrb[0].mxu0 %v1477
    %v1557 = vpop.f32.mrb[0].mxu0
    %v1558 = vadd.f32 %v1434, %v1557
    %v1559 = vpop.f32.mrb[0].mxu0
    %v1560 = vpop.f32.mrb[0].mxu0
    %v1561 = vadd.f32 %v1437, %v1560
    %v1562 = vpop.f32.mrb[0].mxu0
    %1563 = vmatprep.mubr.bf16.mxu0 0
    %1564 = vmatmul.mubr.bf16.gmra.mrb[0].mxu0 %v1480
    %v1565 = vpop.f32.mrb[0].mxu0
    %v1566 = vadd.f32 %v1442, %v1565
    %v1567 = vpop.f32.mrb[0].mxu0
    %v1568 = vpop.f32.mrb[0].mxu0
    %v1569 = vadd.f32 %v1445, %v1568
    %v1570 = vpop.f32.mrb[0].mxu0
    %1571 = vmatprep.mubr.bf16.mxu0 0
    %1572 = vmatmul.mubr.bf16.gmra.mrb[0].mxu0 %v1483
    %v1573 = vpop.f32.mrb[0].mxu0
    %v1574 = vadd.f32 %v1450, %v1573
    %v1575 = vpop.f32.mrb[0].mxu0
    %v1576 = vpop.f32.mrb[0].mxu0
    %v1577 = vadd.f32 %v1453, %v1576
    %v1578 = vpop.f32.mrb[0].mxu0
    %1579 = vmatprep.mubr.bf16.mxu0 0
    %1580 = vmatmul.mubr.bf16.gmra.mrb[0].mxu0 %v1486
    %v1581 = vpop.f32.mrb[0].mxu0
    %v1582 = vadd.f32 %v1458, %v1581
    %v1583 = vpop.f32.mrb[0].mxu0
    %v1584 = vpop.f32.mrb[0].mxu0
    %v1585 = vadd.f32 %v1461, %v1584
    %v1586 = vpop.f32.mrb[0].mxu0
    %1587 = vdwg.mxu0
    %s1588 = scalar_lea.vmem [#allocation2], 512
    %v1589 = vld [vmem:[%s1588] sm:$0xff]
    %v1590 = vld [vmem:[%s1588 + $0x8] sm:$0xff]
    %v1591 = vld [vmem:[%s1588 + $0x10] sm:$0xff]
    %v1592 = vld [vmem:[%s1588 + $0x18] sm:$0xff]
    %v1593 = vld [vmem:[%s1588 + $0x20] sm:$0xff]
    %v1594 = vld [vmem:[%s1588 + $0x28] sm:$0xff]
    %v1595 = vld [vmem:[%s1588 + $0x30] sm:$0xff]
    %v1596 = vld [vmem:[%s1588 + $0x38] sm:$0xff]
    %v1597 = vld [vmem:[%s1588 + $0x40] sm:$0xff]
    %v1598 = vld [vmem:[%s1588 + $0x48] sm:$0xff]
    %v1599 = vld [vmem:[%s1588 + $0x50] sm:$0xff]
    %v1600 = vld [vmem:[%s1588 + $0x58] sm:$0xff]
    %v1601 = vld [vmem:[%s1588 + $0x60] sm:$0xff]
    %v1602 = vld [vmem:[%s1588 + $0x68] sm:$0xff]
    %v1603 = vld [vmem:[%s1588 + $0x70] sm:$0xff]
    %v1604 = vld [vmem:[%s1588 + $0x78] sm:$0xff]
    %v1605 = vld [vmem:[%s1588 + $0x80] sm:$0xff]
    %v1606 = vld [vmem:[%s1588 + $0x88] sm:$0xff]
    %v1607 = vld [vmem:[%s1588 + $0x90] sm:$0xff]
    %v1608 = vld [vmem:[%s1588 + $0x98] sm:$0xff]
    %v1609 = vld [vmem:[%s1588 + $0xa0] sm:$0xff]
    %v1610 = vld [vmem:[%s1588 + $0xa8] sm:$0xff]
    %v1611 = vld [vmem:[%s1588 + $0xb0] sm:$0xff]
    %v1612 = vld [vmem:[%s1588 + $0xb8] sm:$0xff]
    %v1613 = vld [vmem:[%s1588 + $0xc0] sm:$0xff]
    %v1614 = vld [vmem:[%s1588 + $0xc8] sm:$0xff]
    %v1615 = vld [vmem:[%s1588 + $0xd0] sm:$0xff]
    %v1616 = vld [vmem:[%s1588 + $0xd8] sm:$0xff]
    %v1617 = vld [vmem:[%s1588 + $0xe0] sm:$0xff]
    %v1618 = vld [vmem:[%s1588 + $0xe8] sm:$0xff]
    %v1619 = vld [vmem:[%s1588 + $0xf0] sm:$0xff]
    %v1620 = vld [vmem:[%s1588 + $0xf8] sm:$0xff]
    %v1653 = vunpack.c.l.b16 %v1589
    %v1654 = vunpack.c.h.b16 %v1589
    %v1655 = vunpack.c.l.b16 %v1590
    %v1656 = vunpack.c.h.b16 %v1590
    %v1657 = vunpack.c.l.b16 %v1591
    %v1658 = vunpack.c.h.b16 %v1591
    %v1659 = vunpack.c.l.b16 %v1592
    %v1660 = vunpack.c.h.b16 %v1592
    %v1661 = vunpack.c.l.b16 %v1593
    %v1662 = vunpack.c.h.b16 %v1593
    %v1663 = vunpack.c.l.b16 %v1594
    %v1664 = vunpack.c.h.b16 %v1594
    %v1665 = vunpack.c.l.b16 %v1595
    %v1666 = vunpack.c.h.b16 %v1595
    %v1667 = vunpack.c.l.b16 %v1596
    %v1668 = vunpack.c.h.b16 %v1596
    %v1669 = vunpack.c.l.b16 %v1597
    %v1670 = vunpack.c.h.b16 %v1597
    %v1671 = vunpack.c.l.b16 %v1598
    %v1672 = vunpack.c.h.b16 %v1598
    %v1673 = vunpack.c.l.b16 %v1599
    %v1674 = vunpack.c.h.b16 %v1599
    %v1675 = vunpack.c.l.b16 %v1600
    %v1676 = vunpack.c.h.b16 %v1600
    %v1677 = vunpack.c.l.b16 %v1601
    %v1678 = vunpack.c.h.b16 %v1601
    %v1679 = vunpack.c.l.b16 %v1602
    %v1680 = vunpack.c.h.b16 %v1602
    %v1681 = vunpack.c.l.b16 %v1603
    %v1682 = vunpack.c.h.b16 %v1603
    %v1683 = vunpack.c.l.b16 %v1604
    %v1684 = vunpack.c.h.b16 %v1604
    %v1685 = vunpack.c.l.b16 %v1605
    %v1686 = vunpack.c.h.b16 %v1605
    %v1687 = vunpack.c.l.b16 %v1606
    %v1688 = vunpack.c.h.b16 %v1606
    %v1689 = vunpack.c.l.b16 %v1607
    %v1690 = vunpack.c.h.b16 %v1607
    %v1691 = vunpack.c.l.b16 %v1608
    %v1692 = vunpack.c.h.b16 %v1608
    %v1693 = vunpack.c.l.b16 %v1609
    %v1694 = vunpack.c.h.b16 %v1609
    %v1695 = vunpack.c.l.b16 %v1610
    %v1696 = vunpack.c.h.b16 %v1610
    %v1697 = vunpack.c.l.b16 %v1611
    %v1698 = vunpack.c.h.b16 %v1611
    %v1699 = vunpack.c.l.b16 %v1612
    %v1700 = vunpack.c.h.b16 %v1612
    %v1701 = vunpack.c.l.b16 %v1613
    %v1702 = vunpack.c.h.b16 %v1613
    %v1703 = vunpack.c.l.b16 %v1614
    %v1704 = vunpack.c.h.b16 %v1614
    %v1705 = vunpack.c.l.b16 %v1615
    %v1706 = vunpack.c.h.b16 %v1615
    %v1707 = vunpack.c.l.b16 %v1616
    %v1708 = vunpack.c.h.b16 %v1616
    %v1709 = vunpack.c.l.b16 %v1617
    %v1710 = vunpack.c.h.b16 %v1617
    %v1711 = vunpack.c.l.b16 %v1618
    %v1712 = vunpack.c.h.b16 %v1618
    %v1713 = vunpack.c.l.b16 %v1619
    %v1714 = vunpack.c.h.b16 %v1619
    %v1715 = vunpack.c.l.b16 %v1620
    %v1716 = vunpack.c.h.b16 %v1620
    %v1717 = vpack.c.b16 %v1657, %v1653
    %v1718 = vpack.c.b16 %v1658, %v1654
    %v1719 = vpack.c.b16 %v1659, %v1655
    %v1720 = vpack.c.b16 %v1660, %v1656
    %v1721 = vpack.c.b16 %v1665, %v1661
    %v1722 = vpack.c.b16 %v1666, %v1662
    %v1723 = vpack.c.b16 %v1667, %v1663
    %v1724 = vpack.c.b16 %v1668, %v1664
    %v1725 = vpack.c.b16 %v1673, %v1669
    %v1726 = vpack.c.b16 %v1674, %v1670
    %v1727 = vpack.c.b16 %v1675, %v1671
    %v1728 = vpack.c.b16 %v1676, %v1672
    %v1729 = vpack.c.b16 %v1681, %v1677
    %v1730 = vpack.c.b16 %v1682, %v1678
    %v1731 = vpack.c.b16 %v1683, %v1679
    %v1732 = vpack.c.b16 %v1684, %v1680
    %v1733 = vpack.c.b16 %v1689, %v1685
    %v1734 = vpack.c.b16 %v1690, %v1686
    %v1735 = vpack.c.b16 %v1691, %v1687
    %v1736 = vpack.c.b16 %v1692, %v1688
    %v1737 = vpack.c.b16 %v1697, %v1693
    %v1738 = vpack.c.b16 %v1698, %v1694
    %v1739 = vpack.c.b16 %v1699, %v1695
    %v1740 = vpack.c.b16 %v1700, %v1696
    %v1741 = vpack.c.b16 %v1705, %v1701
    %v1742 = vpack.c.b16 %v1706, %v1702
    %v1743 = vpack.c.b16 %v1707, %v1703
    %v1744 = vpack.c.b16 %v1708, %v1704
    %v1745 = vpack.c.b16 %v1713, %v1709
    %v1746 = vpack.c.b16 %v1714, %v1710
    %v1747 = vpack.c.b16 %v1715, %v1711
    %v1748 = vpack.c.b16 %v1716, %v1712
    %1781 = vmatprep.subr.bf16.mxu0 0
    %1782 = vmatpush1.bf16.msra.mxu0 %v674
    %1783 = vmatprep.subr.bf16.mxu0 0
    %1784 = vmatpush1.bf16.msra.mxu0 %v675
    %1785 = vmatprep.subr.bf16.mxu0 0
    %1786 = vmatpush1.bf16.msra.mxu0 %v676
    %1787 = vmatprep.subr.bf16.mxu0 0
    %1788 = vmatpush1.bf16.msra.mxu0 %v677
    %1789 = vmatprep.subr.bf16.mxu0 0
    %1790 = vmatpush1.bf16.msra.mxu0 %v678
    %1791 = vmatprep.subr.bf16.mxu0 0
    %1792 = vmatpush1.bf16.msra.mxu0 %v679
    %1793 = vmatprep.subr.bf16.mxu0 0
    %1794 = vmatpush1.bf16.msra.mxu0 %v680
    %1795 = vmatprep.subr.bf16.mxu0 0
    %1796 = vmatpush1.bf16.msra.mxu0 %v681
    %1797 = vmatprep.subr.bf16.mxu0 0
    %1798 = vmatpush1.bf16.msra.mxu0 %v682
    %1799 = vmatprep.subr.bf16.mxu0 0
    %1800 = vmatpush1.bf16.msra.mxu0 %v683
    %1801 = vmatprep.subr.bf16.mxu0 0
    %1802 = vmatpush1.bf16.msra.mxu0 %v684
    %1803 = vmatprep.subr.bf16.mxu0 0
    %1804 = vmatpush1.bf16.msra.mxu0 %v685
    %1805 = vmatprep.subr.bf16.mxu0 0
    %1806 = vmatpush1.bf16.msra.mxu0 %v686
    %1807 = vmatprep.subr.bf16.mxu0 0
    %1808 = vmatpush1.bf16.msra.mxu0 %v687
    %1809 = vmatprep.subr.bf16.mxu0 0
    %1810 = vmatpush1.bf16.msra.mxu0 %v688
    %1811 = vmatprep.subr.bf16.mxu0 0
    %1812 = vmatpush1.bf16.msra.mxu0 %v689
    %1813 = vmatprep.mubr.bf16.mxu0 %v1718
    %1814 = vmatmul.mubr.bf16.gmra.mrb[0].mxu0 %v1717
    %v1815 = vpop.f32.mrb[0].mxu0
    %v1816 = vadd.f32 0.0, %v1815
    %v1817 = vpop.f32.mrb[0].mxu0
    %v1818 = vpop.f32.mrb[0].mxu0
    %v1819 = vadd.f32 0.0, %v1818
    %v1820 = vpop.f32.mrb[0].mxu0
    %1821 = vmatprep.mubr.bf16.mxu0 %v1722
    %1822 = vmatmul.mubr.bf16.gmra.mrb[0].mxu0 %v1721
    %v1823 = vpop.f32.mrb[0].mxu0
    %v1824 = vadd.f32 0.0, %v1823
    %v1825 = vpop.f32.mrb[0].mxu0
    %v1826 = vpop.f32.mrb[0].mxu0
    %v1827 = vadd.f32 0.0, %v1826
    %v1828 = vpop.f32.mrb[0].mxu0
    %1829 = vmatprep.mubr.bf16.mxu0 %v1726
    %1830 = vmatmul.mubr.bf16.gmra.mrb[0].mxu0 %v1725
    %v1831 = vpop.f32.mrb[0].mxu0
    %v1832 = vadd.f32 0.0, %v1831
    %v1833 = vpop.f32.mrb[0].mxu0
    %v1834 = vpop.f32.mrb[0].mxu0
    %v1835 = vadd.f32 0.0, %v1834
    %v1836 = vpop.f32.mrb[0].mxu0
    %1837 = vmatprep.mubr.bf16.mxu0 %v1730
    %1838 = vmatmul.mubr.bf16.gmra.mrb[0].mxu0 %v1729
    %v1839 = vpop.f32.mrb[0].mxu0
    %v1840 = vadd.f32 0.0, %v1839
    %v1841 = vpop.f32.mrb[0].mxu0
    %v1842 = vpop.f32.mrb[0].mxu0
    %v1843 = vadd.f32 0.0, %v1842
    %v1844 = vpop.f32.mrb[0].mxu0
    %1845 = vmatprep.mubr.bf16.mxu0 %v1734
    %1846 = vmatmul.mubr.bf16.gmra.mrb[0].mxu0 %v1733
    %v1847 = vpop.f32.mrb[0].mxu0
    %v1848 = vadd.f32 0.0, %v1847
    %v1849 = vpop.f32.mrb[0].mxu0
    %v1850 = vpop.f32.mrb[0].mxu0
    %v1851 = vadd.f32 0.0, %v1850
    %v1852 = vpop.f32.mrb[0].mxu0
    %1853 = vmatprep.mubr.bf16.mxu0 %v1738
    %1854 = vmatmul.mubr.bf16.gmra.mrb[0].mxu0 %v1737
    %v1855 = vpop.f32.mrb[0].mxu0
    %v1856 = vadd.f32 0.0, %v1855
    %v1857 = vpop.f32.mrb[0].mxu0
    %v1858 = vpop.f32.mrb[0].mxu0
    %v1859 = vadd.f32 0.0, %v1858
    %v1860 = vpop.f32.mrb[0].mxu0
    %1861 = vmatprep.mubr.bf16.mxu0 %v1742
    %1862 = vmatmul.mubr.bf16.gmra.mrb[0].mxu0 %v1741
    %v1863 = vpop.f32.mrb[0].mxu0
    %v1864 = vadd.f32 0.0, %v1863
    %v1865 = vpop.f32.mrb[0].mxu0
    %v1866 = vpop.f32.mrb[0].mxu0
    %v1867 = vadd.f32 0.0, %v1866
    %v1868 = vpop.f32.mrb[0].mxu0
    %1869 = vmatprep.mubr.bf16.mxu0 %v1746
    %1870 = vmatmul.mubr.bf16.gmra.mrb[0].mxu0 %v1745
    %v1871 = vpop.f32.mrb[0].mxu0
    %v1872 = vadd.f32 0.0, %v1871
    %v1873 = vpop.f32.mrb[0].mxu0
    %v1874 = vpop.f32.mrb[0].mxu0
    %v1875 = vadd.f32 0.0, %v1874
    %v1876 = vpop.f32.mrb[0].mxu0
    %1877 = vdwg.mxu0
    %1878 = vmatprep.subr.bf16.mxu0 0
    %1879 = vmatpush1.bf16.msra.mxu0 %v690
    %1880 = vmatprep.subr.bf16.mxu0 0
    %1881 = vmatpush1.bf16.msra.mxu0 %v691
    %1882 = vmatprep.subr.bf16.mxu0 0
    %1883 = vmatpush1.bf16.msra.mxu0 %v692
    %1884 = vmatprep.subr.bf16.mxu0 0
    %1885 = vmatpush1.bf16.msra.mxu0 %v693
    %1886 = vmatprep.subr.bf16.mxu0 0
    %1887 = vmatpush1.bf16.msra.mxu0 %v694
    %1888 = vmatprep.subr.bf16.mxu0 0
    %1889 = vmatpush1.bf16.msra.mxu0 %v695
    %1890 = vmatprep.subr.bf16.mxu0 0
    %1891 = vmatpush1.bf16.msra.mxu0 %v696
    %1892 = vmatprep.subr.bf16.mxu0 0
    %1893 = vmatpush1.bf16.msra.mxu0 %v697
    %1894 = vmatprep.subr.bf16.mxu0 0
    %1895 = vmatpush1.bf16.msra.mxu0 %v698
    %1896 = vmatprep.subr.bf16.mxu0 0
    %1897 = vmatpush1.bf16.msra.mxu0 %v699
    %1898 = vmatprep.subr.bf16.mxu0 0
    %1899 = vmatpush1.bf16.msra.mxu0 %v700
    %1900 = vmatprep.subr.bf16.mxu0 0
    %1901 = vmatpush1.bf16.msra.mxu0 %v701
    %1902 = vmatprep.subr.bf16.mxu0 0
    %1903 = vmatpush1.bf16.msra.mxu0 %v702
    %1904 = vmatprep.subr.bf16.mxu0 0
    %1905 = vmatpush1.bf16.msra.mxu0 %v703
    %1906 = vmatprep.subr.bf16.mxu0 0
    %1907 = vmatpush1.bf16.msra.mxu0 %v704
    %1908 = vmatprep.subr.bf16.mxu0 0
    %1909 = vmatpush1.bf16.msra.mxu0 %v705
    %1910 = vmatprep.mubr.bf16.mxu0 %v1720
    %1911 = vmatmul.mubr.bf16.gmra.mrb[0].mxu0 %v1719
    %v1912 = vpop.f32.mrb[0].mxu0
    %v1913 = vadd.f32 %v1816, %v1912
    %v1914 = vpop.f32.mrb[0].mxu0
    %v1915 = vpop.f32.mrb[0].mxu0
    %v1916 = vadd.f32 %v1819, %v1915
    %v1917 = vpop.f32.mrb[0].mxu0
    %1918 = vmatprep.mubr.bf16.mxu0 %v1724
    %1919 = vmatmul.mubr.bf16.gmra.mrb[0].mxu0 %v1723
    %v1920 = vpop.f32.mrb[0].mxu0
    %v1921 = vadd.f32 %v1824, %v1920
    %v1922 = vpop.f32.mrb[0].mxu0
    %v1923 = vpop.f32.mrb[0].mxu0
    %v1924 = vadd.f32 %v1827, %v1923
    %v1925 = vpop.f32.mrb[0].mxu0
    %1926 = vmatprep.mubr.bf16.mxu0 %v1728
    %1927 = vmatmul.mubr.bf16.gmra.mrb[0].mxu0 %v1727
    %v1928 = vpop.f32.mrb[0].mxu0
    %v1929 = vadd.f32 %v1832, %v1928
    %v1930 = vpop.f32.mrb[0].mxu0
    %v1931 = vpop.f32.mrb[0].mxu0
    %v1932 = vadd.f32 %v1835, %v1931
    %v1933 = vpop.f32.mrb[0].mxu0
    %1934 = vmatprep.mubr.bf16.mxu0 %v1732
    %1935 = vmatmul.mubr.bf16.gmra.mrb[0].mxu0 %v1731
    %v1936 = vpop.f32.mrb[0].mxu0
    %v1937 = vadd.f32 %v1840, %v1936
    %v1938 = vpop.f32.mrb[0].mxu0
    %v1939 = vpop.f32.mrb[0].mxu0
    %v1940 = vadd.f32 %v1843, %v1939
    %v1941 = vpop.f32.mrb[0].mxu0
    %1942 = vmatprep.mubr.bf16.mxu0 %v1736
    %1943 = vmatmul.mubr.bf16.gmra.mrb[0].mxu0 %v1735
    %v1944 = vpop.f32.mrb[0].mxu0
    %v1945 = vadd.f32 %v1848, %v1944
    %v1946 = vpop.f32.mrb[0].mxu0
    %v1947 = vpop.f32.mrb[0].mxu0
    %v1948 = vadd.f32 %v1851, %v1947
    %v1949 = vpop.f32.mrb[0].mxu0
    %1950 = vmatprep.mubr.bf16.mxu0 %v1740
    %1951 = vmatmul.mubr.bf16.gmra.mrb[0].mxu0 %v1739
    %v1952 = vpop.f32.mrb[0].mxu0
    %v1953 = vadd.f32 %v1856, %v1952
    %v1954 = vpop.f32.mrb[0].mxu0
    %v1955 = vpop.f32.mrb[0].mxu0
    %v1956 = vadd.f32 %v1859, %v1955
    %v1957 = vpop.f32.mrb[0].mxu0
    %1958 = vmatprep.mubr.bf16.mxu0 %v1744
    %1959 = vmatmul.mubr.bf16.gmra.mrb[0].mxu0 %v1743
    %v1960 = vpop.f32.mrb[0].mxu0
    %v1961 = vadd.f32 %v1864, %v1960
    %v1962 = vpop.f32.mrb[0].mxu0
    %v1963 = vpop.f32.mrb[0].mxu0
    %v1964 = vadd.f32 %v1867, %v1963
    %v1965 = vpop.f32.mrb[0].mxu0
    %1966 = vmatprep.mubr.bf16.mxu0 %v1748
    %1967 = vmatmul.mubr.bf16.gmra.mrb[0].mxu0 %v1747
    %v1968 = vpop.f32.mrb[0].mxu0
    %v1969 = vadd.f32 %v1872, %v1968
    %v1970 = vpop.f32.mrb[0].mxu0
    %v1971 = vpop.f32.mrb[0].mxu0
    %v1972 = vadd.f32 %v1875, %v1971
    %v1973 = vpop.f32.mrb[0].mxu0
    %1974 = vdwg.mxu0
    %v1975 = vpack.c.bf16 %v1916, %v1913
    %v1976 = vpack.c.bf16 %v1924, %v1921
    %v1977 = vpack.c.bf16 %v1932, %v1929
    %v1978 = vpack.c.bf16 %v1940, %v1937
    %v1979 = vpack.c.bf16 %v1948, %v1945
    %v1980 = vpack.c.bf16 %v1956, %v1953
    %v1981 = vpack.c.bf16 %v1964, %v1961
    %v1982 = vpack.c.bf16 %v1972, %v1969
    %s1983 = scalar_lea.vmem %s2, 4
    %v1984 = vld [vmem:[%s1983] sm:$0x3]
    %v1986 = vsel %vm1338, %v1975, 0
    %v1989 = vsel %vm1338, %v1976, 0
    %v1992 = vsel %vm1338, %v1977, 0
    %v1995 = vsel %vm1338, %v1978, 0
    %v1998 = vsel %vm1338, %v1979, 0
    %v2001 = vsel %vm1338, %v1980, 0
    %v2004 = vsel %vm1338, %v1981, 0
    %v2007 = vsel %vm1338, %v1982, 0
    %v2010 = vsel %vm1363, %v1984, 0
    %2012 = vmatprep.subr.bf16.mxu0 0
    %2013 = vmatpush1.bf16.msra.mxu0 %v2010
    %2014 = vmatprep.subr.bf16.mxu0 0
    %2015 = vmatpush1.bf16.msra.mxu0 0
    %2016 = vmatprep.subr.bf16.mxu0 0
    %2017 = vmatpush1.bf16.msra.mxu0 0
    %2018 = vmatprep.subr.bf16.mxu0 0
    %2019 = vmatpush1.bf16.msra.mxu0 0
    %2020 = vmatprep.subr.bf16.mxu0 0
    %2021 = vmatpush1.bf16.msra.mxu0 0
    %2022 = vmatprep.subr.bf16.mxu0 0
    %2023 = vmatpush1.bf16.msra.mxu0 0
    %2024 = vmatprep.subr.bf16.mxu0 0
    %2025 = vmatpush1.bf16.msra.mxu0 0
    %2026 = vmatprep.subr.bf16.mxu0 0
    %2027 = vmatpush1.bf16.msra.mxu0 0
    %2028 = vmatprep.subr.bf16.mxu0 0
    %2029 = vmatpush1.bf16.msra.mxu0 0
    %2030 = vmatprep.subr.bf16.mxu0 0
    %2031 = vmatpush1.bf16.msra.mxu0 0
    %2032 = vmatprep.subr.bf16.mxu0 0
    %2033 = vmatpush1.bf16.msra.mxu0 0
    %2034 = vmatprep.subr.bf16.mxu0 0
    %2035 = vmatpush1.bf16.msra.mxu0 0
    %2036 = vmatprep.subr.bf16.mxu0 0
    %2037 = vmatpush1.bf16.msra.mxu0 0
    %2038 = vmatprep.subr.bf16.mxu0 0
    %2039 = vmatpush1.bf16.msra.mxu0 0
    %2040 = vmatprep.subr.bf16.mxu0 0
    %2041 = vmatpush1.bf16.msra.mxu0 0
    %2042 = vmatprep.subr.bf16.mxu0 0
    %2043 = vmatpush1.bf16.msra.mxu0 0
    %2044 = vmatprep.mubr.bf16.mxu0 0
    %2045 = vmatmul.mubr.bf16.gmra.mrb[0].mxu0 %v1986
    %v2046 = vpop.f32.mrb[0].mxu0
    %v2047 = vadd.f32 0.0, %v2046
    %v2048 = vpop.f32.mrb[0].mxu0
    %v2049 = vpop.f32.mrb[0].mxu0
    %v2050 = vadd.f32 0.0, %v2049
    %v2051 = vpop.f32.mrb[0].mxu0
    %2052 = vmatprep.mubr.bf16.mxu0 0
    %2053 = vmatmul.mubr.bf16.gmra.mrb[0].mxu0 %v1989
    %v2054 = vpop.f32.mrb[0].mxu0
    %v2055 = vadd.f32 0.0, %v2054
    %v2056 = vpop.f32.mrb[0].mxu0
    %v2057 = vpop.f32.mrb[0].mxu0
    %v2058 = vadd.f32 0.0, %v2057
    %v2059 = vpop.f32.mrb[0].mxu0
    %2060 = vmatprep.mubr.bf16.mxu0 0
    %2061 = vmatmul.mubr.bf16.gmra.mrb[0].mxu0 %v1992
    %v2062 = vpop.f32.mrb[0].mxu0
    %v2063 = vadd.f32 0.0, %v2062
    %v2064 = vpop.f32.mrb[0].mxu0
    %v2065 = vpop.f32.mrb[0].mxu0
    %v2066 = vadd.f32 0.0, %v2065
    %v2067 = vpop.f32.mrb[0].mxu0
    %2068 = vmatprep.mubr.bf16.mxu0 0
    %2069 = vmatmul.mubr.bf16.gmra.mrb[0].mxu0 %v1995
    %v2070 = vpop.f32.mrb[0].mxu0
    %v2071 = vadd.f32 0.0, %v2070
    %v2072 = vpop.f32.mrb[0].mxu0
    %v2073 = vpop.f32.mrb[0].mxu0
    %v2074 = vadd.f32 0.0, %v2073
    %v2075 = vpop.f32.mrb[0].mxu0
    %2076 = vmatprep.mubr.bf16.mxu0 0
    %2077 = vmatmul.mubr.bf16.gmra.mrb[0].mxu0 %v1998
    %v2078 = vpop.f32.mrb[0].mxu0
    %v2079 = vadd.f32 0.0, %v2078
    %v2080 = vpop.f32.mrb[0].mxu0
    %v2081 = vpop.f32.mrb[0].mxu0
    %v2082 = vadd.f32 0.0, %v2081
    %v2083 = vpop.f32.mrb[0].mxu0
    %2084 = vmatprep.mubr.bf16.mxu0 0
    %2085 = vmatmul.mubr.bf16.gmra.mrb[0].mxu0 %v2001
    %v2086 = vpop.f32.mrb[0].mxu0
    %v2087 = vadd.f32 0.0, %v2086
    %v2088 = vpop.f32.mrb[0].mxu0
    %v2089 = vpop.f32.mrb[0].mxu0
    %v2090 = vadd.f32 0.0, %v2089
    %v2091 = vpop.f32.mrb[0].mxu0
    %2092 = vmatprep.mubr.bf16.mxu0 0
    %2093 = vmatmul.mubr.bf16.gmra.mrb[0].mxu0 %v2004
    %v2094 = vpop.f32.mrb[0].mxu0
    %v2095 = vadd.f32 0.0, %v2094
    %v2096 = vpop.f32.mrb[0].mxu0
    %v2097 = vpop.f32.mrb[0].mxu0
    %v2098 = vadd.f32 0.0, %v2097
    %v2099 = vpop.f32.mrb[0].mxu0
    %2100 = vmatprep.mubr.bf16.mxu0 0
    %2101 = vmatmul.mubr.bf16.gmra.mrb[0].mxu0 %v2007
    %v2102 = vpop.f32.mrb[0].mxu0
    %v2103 = vadd.f32 0.0, %v2102
    %v2104 = vpop.f32.mrb[0].mxu0
    %v2105 = vpop.f32.mrb[0].mxu0
    %v2106 = vadd.f32 0.0, %v2105
    %v2107 = vpop.f32.mrb[0].mxu0
    %2108 = vdwg.mxu0
    %v2109 = vadd.f32 %v1526, %v2047
    %v2110 = vadd.f32 %v1529, %v2050
    %v2111 = vadd.f32 %v1534, %v2055
    %v2112 = vadd.f32 %v1537, %v2058
    %v2113 = vadd.f32 %v1542, %v2063
    %v2114 = vadd.f32 %v1545, %v2066
    %v2115 = vadd.f32 %v1550, %v2071
    %v2116 = vadd.f32 %v1553, %v2074
    %v2117 = vadd.f32 %v1558, %v2079
    %v2118 = vadd.f32 %v1561, %v2082
    %v2119 = vadd.f32 %v1566, %v2087
    %v2120 = vadd.f32 %v1569, %v2090
    %v2121 = vadd.f32 %v1574, %v2095
    %v2122 = vadd.f32 %v1577, %v2098
    %v2123 = vadd.f32 %v1582, %v2103
    %v2124 = vadd.f32 %v1585, %v2106
    %s2125 = scalar_lea.vmem [#allocation2], 768
    %v2126 = vld [vmem:[%s2125] sm:$0xff]
    %v2127 = vld [vmem:[%s2125 + $0x8] sm:$0xff]
    %v2128 = vld [vmem:[%s2125 + $0x10] sm:$0xff]
    %v2129 = vld [vmem:[%s2125 + $0x18] sm:$0xff]
    %v2130 = vld [vmem:[%s2125 + $0x20] sm:$0xff]
    %v2131 = vld [vmem:[%s2125 + $0x28] sm:$0xff]
    %v2132 = vld [vmem:[%s2125 + $0x30] sm:$0xff]
    %v2133 = vld [vmem:[%s2125 + $0x38] sm:$0xff]
    %v2134 = vld [vmem:[%s2125 + $0x40] sm:$0xff]
    %v2135 = vld [vmem:[%s2125 + $0x48] sm:$0xff]
    %v2136 = vld [vmem:[%s2125 + $0x50] sm:$0xff]
    %v2137 = vld [vmem:[%s2125 + $0x58] sm:$0xff]
    %v2138 = vld [vmem:[%s2125 + $0x60] sm:$0xff]
    %v2139 = vld [vmem:[%s2125 + $0x68] sm:$0xff]
    %v2140 = vld [vmem:[%s2125 + $0x70] sm:$0xff]
    %v2141 = vld [vmem:[%s2125 + $0x78] sm:$0xff]
    %v2142 = vld [vmem:[%s2125 + $0x80] sm:$0xff]
    %v2143 = vld [vmem:[%s2125 + $0x88] sm:$0xff]
    %v2144 = vld [vmem:[%s2125 + $0x90] sm:$0xff]
    %v2145 = vld [vmem:[%s2125 + $0x98] sm:$0xff]
    %v2146 = vld [vmem:[%s2125 + $0xa0] sm:$0xff]
    %v2147 = vld [vmem:[%s2125 + $0xa8] sm:$0xff]
    %v2148 = vld [vmem:[%s2125 + $0xb0] sm:$0xff]
    %v2149 = vld [vmem:[%s2125 + $0xb8] sm:$0xff]
    %v2150 = vld [vmem:[%s2125 + $0xc0] sm:$0xff]
    %v2151 = vld [vmem:[%s2125 + $0xc8] sm:$0xff]
    %v2152 = vld [vmem:[%s2125 + $0xd0] sm:$0xff]
    %v2153 = vld [vmem:[%s2125 + $0xd8] sm:$0xff]
    %v2154 = vld [vmem:[%s2125 + $0xe0] sm:$0xff]
    %v2155 = vld [vmem:[%s2125 + $0xe8] sm:$0xff]
    %v2156 = vld [vmem:[%s2125 + $0xf0] sm:$0xff]
    %v2157 = vld [vmem:[%s2125 + $0xf8] sm:$0xff]
    %v2190 = vunpack.c.l.b16 %v2126
    %v2191 = vunpack.c.h.b16 %v2126
    %v2192 = vunpack.c.l.b16 %v2127
    %v2193 = vunpack.c.h.b16 %v2127
    %v2194 = vunpack.c.l.b16 %v2128
    %v2195 = vunpack.c.h.b16 %v2128
    %v2196 = vunpack.c.l.b16 %v2129
    %v2197 = vunpack.c.h.b16 %v2129
    %v2198 = vunpack.c.l.b16 %v2130
    %v2199 = vunpack.c.h.b16 %v2130
    %v2200 = vunpack.c.l.b16 %v2131
    %v2201 = vunpack.c.h.b16 %v2131
    %v2202 = vunpack.c.l.b16 %v2132
    %v2203 = vunpack.c.h.b16 %v2132
    %v2204 = vunpack.c.l.b16 %v2133
    %v2205 = vunpack.c.h.b16 %v2133
    %v2206 = vunpack.c.l.b16 %v2134
    %v2207 = vunpack.c.h.b16 %v2134
    %v2208 = vunpack.c.l.b16 %v2135
    %v2209 = vunpack.c.h.b16 %v2135
    %v2210 = vunpack.c.l.b16 %v2136
    %v2211 = vunpack.c.h.b16 %v2136
    %v2212 = vunpack.c.l.b16 %v2137
    %v2213 = vunpack.c.h.b16 %v2137
    %v2214 = vunpack.c.l.b16 %v2138
    %v2215 = vunpack.c.h.b16 %v2138
    %v2216 = vunpack.c.l.b16 %v2139
    %v2217 = vunpack.c.h.b16 %v2139
    %v2218 = vunpack.c.l.b16 %v2140
    %v2219 = vunpack.c.h.b16 %v2140
    %v2220 = vunpack.c.l.b16 %v2141
    %v2221 = vunpack.c.h.b16 %v2141
    %v2222 = vunpack.c.l.b16 %v2142
    %v2223 = vunpack.c.h.b16 %v2142
    %v2224 = vunpack.c.l.b16 %v2143
    %v2225 = vunpack.c.h.b16 %v2143
    %v2226 = vunpack.c.l.b16 %v2144
    %v2227 = vunpack.c.h.b16 %v2144
    %v2228 = vunpack.c.l.b16 %v2145
    %v2229 = vunpack.c.h.b16 %v2145
    %v2230 = vunpack.c.l.b16 %v2146
    %v2231 = vunpack.c.h.b16 %v2146
    %v2232 = vunpack.c.l.b16 %v2147
    %v2233 = vunpack.c.h.b16 %v2147
    %v2234 = vunpack.c.l.b16 %v2148
    %v2235 = vunpack.c.h.b16 %v2148
    %v2236 = vunpack.c.l.b16 %v2149
    %v2237 = vunpack.c.h.b16 %v2149
    %v2238 = vunpack.c.l.b16 %v2150
    %v2239 = vunpack.c.h.b16 %v2150
    %v2240 = vunpack.c.l.b16 %v2151
    %v2241 = vunpack.c.h.b16 %v2151
    %v2242 = vunpack.c.l.b16 %v2152
    %v2243 = vunpack.c.h.b16 %v2152
    %v2244 = vunpack.c.l.b16 %v2153
    %v2245 = vunpack.c.h.b16 %v2153
    %v2246 = vunpack.c.l.b16 %v2154
    %v2247 = vunpack.c.h.b16 %v2154
    %v2248 = vunpack.c.l.b16 %v2155
    %v2249 = vunpack.c.h.b16 %v2155
    %v2250 = vunpack.c.l.b16 %v2156
    %v2251 = vunpack.c.h.b16 %v2156
    %v2252 = vunpack.c.l.b16 %v2157
    %v2253 = vunpack.c.h.b16 %v2157
    %v2254 = vpack.c.b16 %v2194, %v2190
    %v2255 = vpack.c.b16 %v2195, %v2191
    %v2256 = vpack.c.b16 %v2196, %v2192
    %v2257 = vpack.c.b16 %v2197, %v2193
    %v2258 = vpack.c.b16 %v2202, %v2198
    %v2259 = vpack.c.b16 %v2203, %v2199
    %v2260 = vpack.c.b16 %v2204, %v2200
    %v2261 = vpack.c.b16 %v2205, %v2201
    %v2262 = vpack.c.b16 %v2210, %v2206
    %v2263 = vpack.c.b16 %v2211, %v2207
    %v2264 = vpack.c.b16 %v2212, %v2208
    %v2265 = vpack.c.b16 %v2213, %v2209
    %v2266 = vpack.c.b16 %v2218, %v2214
    %v2267 = vpack.c.b16 %v2219, %v2215
    %v2268 = vpack.c.b16 %v2220, %v2216
    %v2269 = vpack.c.b16 %v2221, %v2217
    %v2270 = vpack.c.b16 %v2226, %v2222
    %v2271 = vpack.c.b16 %v2227, %v2223
    %v2272 = vpack.c.b16 %v2228, %v2224
    %v2273 = vpack.c.b16 %v2229, %v2225
    %v2274 = vpack.c.b16 %v2234, %v2230
    %v2275 = vpack.c.b16 %v2235, %v2231
    %v2276 = vpack.c.b16 %v2236, %v2232
    %v2277 = vpack.c.b16 %v2237, %v2233
    %v2278 = vpack.c.b16 %v2242, %v2238
    %v2279 = vpack.c.b16 %v2243, %v2239
    %v2280 = vpack.c.b16 %v2244, %v2240
    %v2281 = vpack.c.b16 %v2245, %v2241
    %v2282 = vpack.c.b16 %v2250, %v2246
    %v2283 = vpack.c.b16 %v2251, %v2247
    %v2284 = vpack.c.b16 %v2252, %v2248
    %v2285 = vpack.c.b16 %v2253, %v2249
    %2318 = vmatprep.subr.bf16.mxu0 0
    %2319 = vmatpush1.bf16.msra.mxu0 %v674
    %2320 = vmatprep.subr.bf16.mxu0 0
    %2321 = vmatpush1.bf16.msra.mxu0 %v675
    %2322 = vmatprep.subr.bf16.mxu0 0
    %2323 = vmatpush1.bf16.msra.mxu0 %v676
    %2324 = vmatprep.subr.bf16.mxu0 0
    %2325 = vmatpush1.bf16.msra.mxu0 %v677
    %2326 = vmatprep.subr.bf16.mxu0 0
    %2327 = vmatpush1.bf16.msra.mxu0 %v678
    %2328 = vmatprep.subr.bf16.mxu0 0
    %2329 = vmatpush1.bf16.msra.mxu0 %v679
    %2330 = vmatprep.subr.bf16.mxu0 0
    %2331 = vmatpush1.bf16.msra.mxu0 %v680
    %2332 = vmatprep.subr.bf16.mxu0 0
    %2333 = vmatpush1.bf16.msra.mxu0 %v681
    %2334 = vmatprep.subr.bf16.mxu0 0
    %2335 = vmatpush1.bf16.msra.mxu0 %v682
    %2336 = vmatprep.subr.bf16.mxu0 0
    %2337 = vmatpush1.bf16.msra.mxu0 %v683
    %2338 = vmatprep.subr.bf16.mxu0 0
    %2339 = vmatpush1.bf16.msra.mxu0 %v684
    %2340 = vmatprep.subr.bf16.mxu0 0
    %2341 = vmatpush1.bf16.msra.mxu0 %v685
    %2342 = vmatprep.subr.bf16.mxu0 0
    %2343 = vmatpush1.bf16.msra.mxu0 %v686
    %2344 = vmatprep.subr.bf16.mxu0 0
    %2345 = vmatpush1.bf16.msra.mxu0 %v687
    %2346 = vmatprep.subr.bf16.mxu0 0
    %2347 = vmatpush1.bf16.msra.mxu0 %v688
    %2348 = vmatprep.subr.bf16.mxu0 0
    %2349 = vmatpush1.bf16.msra.mxu0 %v689
    %2350 = vmatprep.mubr.bf16.mxu0 %v2255
    %2351 = vmatmul.mubr.bf16.gmra.mrb[0].mxu0 %v2254
    %v2352 = vpop.f32.mrb[0].mxu0
    %v2353 = vadd.f32 0.0, %v2352
    %v2354 = vpop.f32.mrb[0].mxu0
    %v2355 = vpop.f32.mrb[0].mxu0
    %v2356 = vadd.f32 0.0, %v2355
    %v2357 = vpop.f32.mrb[0].mxu0
    %2358 = vmatprep.mubr.bf16.mxu0 %v2259
    %2359 = vmatmul.mubr.bf16.gmra.mrb[0].mxu0 %v2258
    %v2360 = vpop.f32.mrb[0].mxu0
    %v2361 = vadd.f32 0.0, %v2360
    %v2362 = vpop.f32.mrb[0].mxu0
    %v2363 = vpop.f32.mrb[0].mxu0
    %v2364 = vadd.f32 0.0, %v2363
    %v2365 = vpop.f32.mrb[0].mxu0
    %2366 = vmatprep.mubr.bf16.mxu0 %v2263
    %2367 = vmatmul.mubr.bf16.gmra.mrb[0].mxu0 %v2262
    %v2368 = vpop.f32.mrb[0].mxu0
    %v2369 = vadd.f32 0.0, %v2368
    %v2370 = vpop.f32.mrb[0].mxu0
    %v2371 = vpop.f32.mrb[0].mxu0
    %v2372 = vadd.f32 0.0, %v2371
    %v2373 = vpop.f32.mrb[0].mxu0
    %2374 = vmatprep.mubr.bf16.mxu0 %v2267
    %2375 = vmatmul.mubr.bf16.gmra.mrb[0].mxu0 %v2266
    %v2376 = vpop.f32.mrb[0].mxu0
    %v2377 = vadd.f32 0.0, %v2376
    %v2378 = vpop.f32.mrb[0].mxu0
    %v2379 = vpop.f32.mrb[0].mxu0
    %v2380 = vadd.f32 0.0, %v2379
    %v2381 = vpop.f32.mrb[0].mxu0
    %2382 = vmatprep.mubr.bf16.mxu0 %v2271
    %2383 = vmatmul.mubr.bf16.gmra.mrb[0].mxu0 %v2270
    %v2384 = vpop.f32.mrb[0].mxu0
    %v2385 = vadd.f32 0.0, %v2384
    %v2386 = vpop.f32.mrb[0].mxu0
    %v2387 = vpop.f32.mrb[0].mxu0
    %v2388 = vadd.f32 0.0, %v2387
    %v2389 = vpop.f32.mrb[0].mxu0
    %2390 = vmatprep.mubr.bf16.mxu0 %v2275
    %2391 = vmatmul.mubr.bf16.gmra.mrb[0].mxu0 %v2274
    %v2392 = vpop.f32.mrb[0].mxu0
    %v2393 = vadd.f32 0.0, %v2392
    %v2394 = vpop.f32.mrb[0].mxu0
    %v2395 = vpop.f32.mrb[0].mxu0
    %v2396 = vadd.f32 0.0, %v2395
    %v2397 = vpop.f32.mrb[0].mxu0
    %2398 = vmatprep.mubr.bf16.mxu0 %v2279
    %2399 = vmatmul.mubr.bf16.gmra.mrb[0].mxu0 %v2278
    %v2400 = vpop.f32.mrb[0].mxu0
    %v2401 = vadd.f32 0.0, %v2400
    %v2402 = vpop.f32.mrb[0].mxu0
    %v2403 = vpop.f32.mrb[0].mxu0
    %v2404 = vadd.f32 0.0, %v2403
    %v2405 = vpop.f32.mrb[0].mxu0
    %2406 = vmatprep.mubr.bf16.mxu0 %v2283
    %2407 = vmatmul.mubr.bf16.gmra.mrb[0].mxu0 %v2282
    %v2408 = vpop.f32.mrb[0].mxu0
    %v2409 = vadd.f32 0.0, %v2408
    %v2410 = vpop.f32.mrb[0].mxu0
    %v2411 = vpop.f32.mrb[0].mxu0
    %v2412 = vadd.f32 0.0, %v2411
    %v2413 = vpop.f32.mrb[0].mxu0
    %2414 = vdwg.mxu0
    %2415 = vmatprep.subr.bf16.mxu0 0
    %2416 = vmatpush1.bf16.msra.mxu0 %v690
    %2417 = vmatprep.subr.bf16.mxu0 0
    %2418 = vmatpush1.bf16.msra.mxu0 %v691
    %2419 = vmatprep.subr.bf16.mxu0 0
    %2420 = vmatpush1.bf16.msra.mxu0 %v692
    %2421 = vmatprep.subr.bf16.mxu0 0
    %2422 = vmatpush1.bf16.msra.mxu0 %v693
    %2423 = vmatprep.subr.bf16.mxu0 0
    %2424 = vmatpush1.bf16.msra.mxu0 %v694
    %2425 = vmatprep.subr.bf16.mxu0 0
    %2426 = vmatpush1.bf16.msra.mxu0 %v695
    %2427 = vmatprep.subr.bf16.mxu0 0
    %2428 = vmatpush1.bf16.msra.mxu0 %v696
    %2429 = vmatprep.subr.bf16.mxu0 0
    %2430 = vmatpush1.bf16.msra.mxu0 %v697
    %2431 = vmatprep.subr.bf16.mxu0 0
    %2432 = vmatpush1.bf16.msra.mxu0 %v698
    %2433 = vmatprep.subr.bf16.mxu0 0
    %2434 = vmatpush1.bf16.msra.mxu0 %v699
    %2435 = vmatprep.subr.bf16.mxu0 0
    %2436 = vmatpush1.bf16.msra.mxu0 %v700
    %2437 = vmatprep.subr.bf16.mxu0 0
    %2438 = vmatpush1.bf16.msra.mxu0 %v701
    %2439 = vmatprep.subr.bf16.mxu0 0
    %2440 = vmatpush1.bf16.msra.mxu0 %v702
    %2441 = vmatprep.subr.bf16.mxu0 0
    %2442 = vmatpush1.bf16.msra.mxu0 %v703
    %2443 = vmatprep.subr.bf16.mxu0 0
    %2444 = vmatpush1.bf16.msra.mxu0 %v704
    %2445 = vmatprep.subr.bf16.mxu0 0
    %2446 = vmatpush1.bf16.msra.mxu0 %v705
    %2447 = vmatprep.mubr.bf16.mxu0 %v2257
    %2448 = vmatmul.mubr.bf16.gmra.mrb[0].mxu0 %v2256
    %v2449 = vpop.f32.mrb[0].mxu0
    %v2450 = vadd.f32 %v2353, %v2449
    %v2451 = vpop.f32.mrb[0].mxu0
    %v2452 = vpop.f32.mrb[0].mxu0
    %v2453 = vadd.f32 %v2356, %v2452
    %v2454 = vpop.f32.mrb[0].mxu0
    %2455 = vmatprep.mubr.bf16.mxu0 %v2261
    %2456 = vmatmul.mubr.bf16.gmra.mrb[0].mxu0 %v2260
    %v2457 = vpop.f32.mrb[0].mxu0
    %v2458 = vadd.f32 %v2361, %v2457
    %v2459 = vpop.f32.mrb[0].mxu0
    %v2460 = vpop.f32.mrb[0].mxu0
    %v2461 = vadd.f32 %v2364, %v2460
    %v2462 = vpop.f32.mrb[0].mxu0
    %2463 = vmatprep.mubr.bf16.mxu0 %v2265
    %2464 = vmatmul.mubr.bf16.gmra.mrb[0].mxu0 %v2264
    %v2465 = vpop.f32.mrb[0].mxu0
    %v2466 = vadd.f32 %v2369, %v2465
    %v2467 = vpop.f32.mrb[0].mxu0
    %v2468 = vpop.f32.mrb[0].mxu0
    %v2469 = vadd.f32 %v2372, %v2468
    %v2470 = vpop.f32.mrb[0].mxu0
    %2471 = vmatprep.mubr.bf16.mxu0 %v2269
    %2472 = vmatmul.mubr.bf16.gmra.mrb[0].mxu0 %v2268
    %v2473 = vpop.f32.mrb[0].mxu0
    %v2474 = vadd.f32 %v2377, %v2473
    %v2475 = vpop.f32.mrb[0].mxu0
    %v2476 = vpop.f32.mrb[0].mxu0
    %v2477 = vadd.f32 %v2380, %v2476
    %v2478 = vpop.f32.mrb[0].mxu0
    %2479 = vmatprep.mubr.bf16.mxu0 %v2273
    %2480 = vmatmul.mubr.bf16.gmra.mrb[0].mxu0 %v2272
    %v2481 = vpop.f32.mrb[0].mxu0
    %v2482 = vadd.f32 %v2385, %v2481
    %v2483 = vpop.f32.mrb[0].mxu0
    %v2484 = vpop.f32.mrb[0].mxu0
    %v2485 = vadd.f32 %v2388, %v2484
    %v2486 = vpop.f32.mrb[0].mxu0
    %2487 = vmatprep.mubr.bf16.mxu0 %v2277
    %2488 = vmatmul.mubr.bf16.gmra.mrb[0].mxu0 %v2276
    %v2489 = vpop.f32.mrb[0].mxu0
    %v2490 = vadd.f32 %v2393, %v2489
    %v2491 = vpop.f32.mrb[0].mxu0
    %v2492 = vpop.f32.mrb[0].mxu0
    %v2493 = vadd.f32 %v2396, %v2492
    %v2494 = vpop.f32.mrb[0].mxu0
    %2495 = vmatprep.mubr.bf16.mxu0 %v2281
    %2496 = vmatmul.mubr.bf16.gmra.mrb[0].mxu0 %v2280
    %v2497 = vpop.f32.mrb[0].mxu0
    %v2498 = vadd.f32 %v2401, %v2497
    %v2499 = vpop.f32.mrb[0].mxu0
    %v2500 = vpop.f32.mrb[0].mxu0
    %v2501 = vadd.f32 %v2404, %v2500
    %v2502 = vpop.f32.mrb[0].mxu0
    %2503 = vmatprep.mubr.bf16.mxu0 %v2285
    %2504 = vmatmul.mubr.bf16.gmra.mrb[0].mxu0 %v2284
    %v2505 = vpop.f32.mrb[0].mxu0
    %v2506 = vadd.f32 %v2409, %v2505
    %v2507 = vpop.f32.mrb[0].mxu0
    %v2508 = vpop.f32.mrb[0].mxu0
    %v2509 = vadd.f32 %v2412, %v2508
    %v2510 = vpop.f32.mrb[0].mxu0
    %2511 = vdwg.mxu0
    %v2512 = vpack.c.bf16 %v2453, %v2450
    %v2513 = vpack.c.bf16 %v2461, %v2458
    %v2514 = vpack.c.bf16 %v2469, %v2466
    %v2515 = vpack.c.bf16 %v2477, %v2474
    %v2516 = vpack.c.bf16 %v2485, %v2482
    %v2517 = vpack.c.bf16 %v2493, %v2490
    %v2518 = vpack.c.bf16 %v2501, %v2498
    %v2519 = vpack.c.bf16 %v2509, %v2506
    %s2520 = scalar_lea.vmem %s2, 6
    %v2521 = vld [vmem:[%s2520] sm:$0x3]
    %v2523 = vsel %vm1338, %v2512, 0
    %v2526 = vsel %vm1338, %v2513, 0
    %v2529 = vsel %vm1338, %v2514, 0
    %v2532 = vsel %vm1338, %v2515, 0
    %v2535 = vsel %vm1338, %v2516, 0
    %v2538 = vsel %vm1338, %v2517, 0
    %v2541 = vsel %vm1338, %v2518, 0
    %v2544 = vsel %vm1338, %v2519, 0
    %v2547 = vsel %vm1363, %v2521, 0
    %2549 = vmatprep.subr.bf16.mxu0 0
    %2550 = vmatpush1.bf16.msra.mxu0 %v2547
    %2551 = vmatprep.subr.bf16.mxu0 0
    %2552 = vmatpush1.bf16.msra.mxu0 0
    %2553 = vmatprep.subr.bf16.mxu0 0
    %2554 = vmatpush1.bf16.msra.mxu0 0
    %2555 = vmatprep.subr.bf16.mxu0 0
    %2556 = vmatpush1.bf16.msra.mxu0 0
    %2557 = vmatprep.subr.bf16.mxu0 0
    %2558 = vmatpush1.bf16.msra.mxu0 0
    %2559 = vmatprep.subr.bf16.mxu0 0
    %2560 = vmatpush1.bf16.msra.mxu0 0
    %2561 = vmatprep.subr.bf16.mxu0 0
    %2562 = vmatpush1.bf16.msra.mxu0 0
    %2563 = vmatprep.subr.bf16.mxu0 0
    %2564 = vmatpush1.bf16.msra.mxu0 0
    %2565 = vmatprep.subr.bf16.mxu0 0
    %2566 = vmatpush1.bf16.msra.mxu0 0
    %2567 = vmatprep.subr.bf16.mxu0 0
    %2568 = vmatpush1.bf16.msra.mxu0 0
    %2569 = vmatprep.subr.bf16.mxu0 0
    %2570 = vmatpush1.bf16.msra.mxu0 0
    %2571 = vmatprep.subr.bf16.mxu0 0
    %2572 = vmatpush1.bf16.msra.mxu0 0
    %2573 = vmatprep.subr.bf16.mxu0 0
    %2574 = vmatpush1.bf16.msra.mxu0 0
    %2575 = vmatprep.subr.bf16.mxu0 0
    %2576 = vmatpush1.bf16.msra.mxu0 0
    %2577 = vmatprep.subr.bf16.mxu0 0
    %2578 = vmatpush1.bf16.msra.mxu0 0
    %2579 = vmatprep.subr.bf16.mxu0 0
    %2580 = vmatpush1.bf16.msra.mxu0 0
    %2581 = vmatprep.mubr.bf16.mxu0 0
    %2582 = vmatmul.mubr.bf16.gmra.mrb[0].mxu0 %v2523
    %v2583 = vpop.f32.mrb[0].mxu0
    %v2584 = vadd.f32 0.0, %v2583
    %v2585 = vpop.f32.mrb[0].mxu0
    %v2586 = vpop.f32.mrb[0].mxu0
    %v2587 = vadd.f32 0.0, %v2586
    %v2588 = vpop.f32.mrb[0].mxu0
    %2589 = vmatprep.mubr.bf16.mxu0 0
    %2590 = vmatmul.mubr.bf16.gmra.mrb[0].mxu0 %v2526
    %v2591 = vpop.f32.mrb[0].mxu0
    %v2592 = vadd.f32 0.0, %v2591
    %v2593 = vpop.f32.mrb[0].mxu0
    %v2594 = vpop.f32.mrb[0].mxu0
    %v2595 = vadd.f32 0.0, %v2594
    %v2596 = vpop.f32.mrb[0].mxu0
    %2597 = vmatprep.mubr.bf16.mxu0 0
    %2598 = vmatmul.mubr.bf16.gmra.mrb[0].mxu0 %v2529
    %v2599 = vpop.f32.mrb[0].mxu0
    %v2600 = vadd.f32 0.0, %v2599
    %v2601 = vpop.f32.mrb[0].mxu0
    %v2602 = vpop.f32.mrb[0].mxu0
    %v2603 = vadd.f32 0.0, %v2602
    %v2604 = vpop.f32.mrb[0].mxu0
    %2605 = vmatprep.mubr.bf16.mxu0 0
    %2606 = vmatmul.mubr.bf16.gmra.mrb[0].mxu0 %v2532
    %v2607 = vpop.f32.mrb[0].mxu0
    %v2608 = vadd.f32 0.0, %v2607
    %v2609 = vpop.f32.mrb[0].mxu0
    %v2610 = vpop.f32.mrb[0].mxu0
    %v2611 = vadd.f32 0.0, %v2610
    %v2612 = vpop.f32.mrb[0].mxu0
    %2613 = vmatprep.mubr.bf16.mxu0 0
    %2614 = vmatmul.mubr.bf16.gmra.mrb[0].mxu0 %v2535
    %v2615 = vpop.f32.mrb[0].mxu0
    %v2616 = vadd.f32 0.0, %v2615
    %v2617 = vpop.f32.mrb[0].mxu0
    %v2618 = vpop.f32.mrb[0].mxu0
    %v2619 = vadd.f32 0.0, %v2618
    %v2620 = vpop.f32.mrb[0].mxu0
    %2621 = vmatprep.mubr.bf16.mxu0 0
    %2622 = vmatmul.mubr.bf16.gmra.mrb[0].mxu0 %v2538
    %v2623 = vpop.f32.mrb[0].mxu0
    %v2624 = vadd.f32 0.0, %v2623
    %v2625 = vpop.f32.mrb[0].mxu0
    %v2626 = vpop.f32.mrb[0].mxu0
    %v2627 = vadd.f32 0.0, %v2626
    %v2628 = vpop.f32.mrb[0].mxu0
    %2629 = vmatprep.mubr.bf16.mxu0 0
    %2630 = vmatmul.mubr.bf16.gmra.mrb[0].mxu0 %v2541
    %v2631 = vpop.f32.mrb[0].mxu0
    %v2632 = vadd.f32 0.0, %v2631
    %v2633 = vpop.f32.mrb[0].mxu0
    %v2634 = vpop.f32.mrb[0].mxu0
    %v2635 = vadd.f32 0.0, %v2634
    %v2636 = vpop.f32.mrb[0].mxu0
    %2637 = vmatprep.mubr.bf16.mxu0 0
    %2638 = vmatmul.mubr.bf16.gmra.mrb[0].mxu0 %v2544
    %v2639 = vpop.f32.mrb[0].mxu0
    %v2640 = vadd.f32 0.0, %v2639
    %v2641 = vpop.f32.mrb[0].mxu0
    %v2642 = vpop.f32.mrb[0].mxu0
    %v2643 = vadd.f32 0.0, %v2642
    %v2644 = vpop.f32.mrb[0].mxu0
    %2645 = vdwg.mxu0
    %v2646 = vadd.f32 %v2109, %v2584
    %v2647 = vadd.f32 %v2110, %v2587
    %v2648 = vadd.f32 %v2111, %v2592
    %v2649 = vadd.f32 %v2112, %v2595
    %v2650 = vadd.f32 %v2113, %v2600
    %v2651 = vadd.f32 %v2114, %v2603
    %v2652 = vadd.f32 %v2115, %v2608
    %v2653 = vadd.f32 %v2116, %v2611
    %v2654 = vadd.f32 %v2117, %v2616
    %v2655 = vadd.f32 %v2118, %v2619
    %v2656 = vadd.f32 %v2119, %v2624
    %v2657 = vadd.f32 %v2120, %v2627
    %v2658 = vadd.f32 %v2121, %v2632
    %v2659 = vadd.f32 %v2122, %v2635
    %v2660 = vadd.f32 %v2123, %v2640
    %v2661 = vadd.f32 %v2124, %v2643
    %s2662 = scalar_lea.vmem [#allocation2], 1024
    %v2663 = vld [vmem:[%s2662] sm:$0xff]
    %v2664 = vld [vmem:[%s2662 + $0x8] sm:$0xff]
    %v2665 = vld [vmem:[%s2662 + $0x10] sm:$0xff]
    %v2666 = vld [vmem:[%s2662 + $0x18] sm:$0xff]
    %v2667 = vld [vmem:[%s2662 + $0x20] sm:$0xff]
    %v2668 = vld [vmem:[%s2662 + $0x28] sm:$0xff]
    %v2669 = vld [vmem:[%s2662 + $0x30] sm:$0xff]
    %v2670 = vld [vmem:[%s2662 + $0x38] sm:$0xff]
    %v2671 = vld [vmem:[%s2662 + $0x40] sm:$0xff]
    %v2672 = vld [vmem:[%s2662 + $0x48] sm:$0xff]
    %v2673 = vld [vmem:[%s2662 + $0x50] sm:$0xff]
    %v2674 = vld [vmem:[%s2662 + $0x58] sm:$0xff]
    %v2675 = vld [vmem:[%s2662 + $0x60] sm:$0xff]
    %v2676 = vld [vmem:[%s2662 + $0x68] sm:$0xff]
    %v2677 = vld [vmem:[%s2662 + $0x70] sm:$0xff]
    %v2678 = vld [vmem:[%s2662 + $0x78] sm:$0xff]
    %v2679 = vld [vmem:[%s2662 + $0x80] sm:$0xff]
    %v2680 = vld [vmem:[%s2662 + $0x88] sm:$0xff]
    %v2681 = vld [vmem:[%s2662 + $0x90] sm:$0xff]
    %v2682 = vld [vmem:[%s2662 + $0x98] sm:$0xff]
    %v2683 = vld [vmem:[%s2662 + $0xa0] sm:$0xff]
    %v2684 = vld [vmem:[%s2662 + $0xa8] sm:$0xff]
    %v2685 = vld [vmem:[%s2662 + $0xb0] sm:$0xff]
    %v2686 = vld [vmem:[%s2662 + $0xb8] sm:$0xff]
    %v2687 = vld [vmem:[%s2662 + $0xc0] sm:$0xff]
    %v2688 = vld [vmem:[%s2662 + $0xc8] sm:$0xff]
    %v2689 = vld [vmem:[%s2662 + $0xd0] sm:$0xff]
    %v2690 = vld [vmem:[%s2662 + $0xd8] sm:$0xff]
    %v2691 = vld [vmem:[%s2662 + $0xe0] sm:$0xff]
    %v2692 = vld [vmem:[%s2662 + $0xe8] sm:$0xff]
    %v2693 = vld [vmem:[%s2662 + $0xf0] sm:$0xff]
    %v2694 = vld [vmem:[%s2662 + $0xf8] sm:$0xff]
    %v2727 = vunpack.c.l.b16 %v2663
    %v2728 = vunpack.c.h.b16 %v2663
    %v2729 = vunpack.c.l.b16 %v2664
    %v2730 = vunpack.c.h.b16 %v2664
    %v2731 = vunpack.c.l.b16 %v2665
    %v2732 = vunpack.c.h.b16 %v2665
    %v2733 = vunpack.c.l.b16 %v2666
    %v2734 = vunpack.c.h.b16 %v2666
    %v2735 = vunpack.c.l.b16 %v2667
    %v2736 = vunpack.c.h.b16 %v2667
    %v2737 = vunpack.c.l.b16 %v2668
    %v2738 = vunpack.c.h.b16 %v2668
    %v2739 = vunpack.c.l.b16 %v2669
    %v2740 = vunpack.c.h.b16 %v2669
    %v2741 = vunpack.c.l.b16 %v2670
    %v2742 = vunpack.c.h.b16 %v2670
    %v2743 = vunpack.c.l.b16 %v2671
    %v2744 = vunpack.c.h.b16 %v2671
    %v2745 = vunpack.c.l.b16 %v2672
    %v2746 = vunpack.c.h.b16 %v2672
    %v2747 = vunpack.c.l.b16 %v2673
    %v2748 = vunpack.c.h.b16 %v2673
    %v2749 = vunpack.c.l.b16 %v2674
    %v2750 = vunpack.c.h.b16 %v2674
    %v2751 = vunpack.c.l.b16 %v2675
    %v2752 = vunpack.c.h.b16 %v2675
    %v2753 = vunpack.c.l.b16 %v2676
    %v2754 = vunpack.c.h.b16 %v2676
    %v2755 = vunpack.c.l.b16 %v2677
    %v2756 = vunpack.c.h.b16 %v2677
    %v2757 = vunpack.c.l.b16 %v2678
    %v2758 = vunpack.c.h.b16 %v2678
    %v2759 = vunpack.c.l.b16 %v2679
    %v2760 = vunpack.c.h.b16 %v2679
    %v2761 = vunpack.c.l.b16 %v2680
    %v2762 = vunpack.c.h.b16 %v2680
    %v2763 = vunpack.c.l.b16 %v2681
    %v2764 = vunpack.c.h.b16 %v2681
    %v2765 = vunpack.c.l.b16 %v2682
    %v2766 = vunpack.c.h.b16 %v2682
    %v2767 = vunpack.c.l.b16 %v2683
    %v2768 = vunpack.c.h.b16 %v2683
    %v2769 = vunpack.c.l.b16 %v2684
    %v2770 = vunpack.c.h.b16 %v2684
    %v2771 = vunpack.c.l.b16 %v2685
    %v2772 = vunpack.c.h.b16 %v2685
    %v2773 = vunpack.c.l.b16 %v2686
    %v2774 = vunpack.c.h.b16 %v2686
    %v2775 = vunpack.c.l.b16 %v2687
    %v2776 = vunpack.c.h.b16 %v2687
    %v2777 = vunpack.c.l.b16 %v2688
    %v2778 = vunpack.c.h.b16 %v2688
    %v2779 = vunpack.c.l.b16 %v2689
    %v2780 = vunpack.c.h.b16 %v2689
    %v2781 = vunpack.c.l.b16 %v2690
    %v2782 = vunpack.c.h.b16 %v2690
    %v2783 = vunpack.c.l.b16 %v2691
    %v2784 = vunpack.c.h.b16 %v2691
    %v2785 = vunpack.c.l.b16 %v2692
    %v2786 = vunpack.c.h.b16 %v2692
    %v2787 = vunpack.c.l.b16 %v2693
    %v2788 = vunpack.c.h.b16 %v2693
    %v2789 = vunpack.c.l.b16 %v2694
    %v2790 = vunpack.c.h.b16 %v2694
    %v2791 = vpack.c.b16 %v2731, %v2727
    %v2792 = vpack.c.b16 %v2732, %v2728
    %v2793 = vpack.c.b16 %v2733, %v2729
    %v2794 = vpack.c.b16 %v2734, %v2730
    %v2795 = vpack.c.b16 %v2739, %v2735
    %v2796 = vpack.c.b16 %v2740, %v2736
    %v2797 = vpack.c.b16 %v2741, %v2737
    %v2798 = vpack.c.b16 %v2742, %v2738
    %v2799 = vpack.c.b16 %v2747, %v2743
    %v2800 = vpack.c.b16 %v2748, %v2744
    %v2801 = vpack.c.b16 %v2749, %v2745
    %v2802 = vpack.c.b16 %v2750, %v2746
    %v2803 = vpack.c.b16 %v2755, %v2751
    %v2804 = vpack.c.b16 %v2756, %v2752
    %v2805 = vpack.c.b16 %v2757, %v2753
    %v2806 = vpack.c.b16 %v2758, %v2754
    %v2807 = vpack.c.b16 %v2763, %v2759
    %v2808 = vpack.c.b16 %v2764, %v2760
    %v2809 = vpack.c.b16 %v2765, %v2761
    %v2810 = vpack.c.b16 %v2766, %v2762
    %v2811 = vpack.c.b16 %v2771, %v2767
    %v2812 = vpack.c.b16 %v2772, %v2768
    %v2813 = vpack.c.b16 %v2773, %v2769
    %v2814 = vpack.c.b16 %v2774, %v2770
    %v2815 = vpack.c.b16 %v2779, %v2775
    %v2816 = vpack.c.b16 %v2780, %v2776
    %v2817 = vpack.c.b16 %v2781, %v2777
    %v2818 = vpack.c.b16 %v2782, %v2778
    %v2819 = vpack.c.b16 %v2787, %v2783
    %v2820 = vpack.c.b16 %v2788, %v2784
    %v2821 = vpack.c.b16 %v2789, %v2785
    %v2822 = vpack.c.b16 %v2790, %v2786
    %2855 = vmatprep.subr.bf16.mxu0 0
    %2856 = vmatpush1.bf16.msra.mxu0 %v674
    %2857 = vmatprep.subr.bf16.mxu0 0
    %2858 = vmatpush1.bf16.msra.mxu0 %v675
    %2859 = vmatprep.subr.bf16.mxu0 0
    %2860 = vmatpush1.bf16.msra.mxu0 %v676
    %2861 = vmatprep.subr.bf16.mxu0 0
    %2862 = vmatpush1.bf16.msra.mxu0 %v677
    %2863 = vmatprep.subr.bf16.mxu0 0
    %2864 = vmatpush1.bf16.msra.mxu0 %v678
    %2865 = vmatprep.subr.bf16.mxu0 0
    %2866 = vmatpush1.bf16.msra.mxu0 %v679
    %2867 = vmatprep.subr.bf16.mxu0 0
    %2868 = vmatpush1.bf16.msra.mxu0 %v680
    %2869 = vmatprep.subr.bf16.mxu0 0
    %2870 = vmatpush1.bf16.msra.mxu0 %v681
    %2871 = vmatprep.subr.bf16.mxu0 0
    %2872 = vmatpush1.bf16.msra.mxu0 %v682
    %2873 = vmatprep.subr.bf16.mxu0 0
    %2874 = vmatpush1.bf16.msra.mxu0 %v683
    %2875 = vmatprep.subr.bf16.mxu0 0
    %2876 = vmatpush1.bf16.msra.mxu0 %v684
    %2877 = vmatprep.subr.bf16.mxu0 0
    %2878 = vmatpush1.bf16.msra.mxu0 %v685
    %2879 = vmatprep.subr.bf16.mxu0 0
    %2880 = vmatpush1.bf16.msra.mxu0 %v686
    %2881 = vmatprep.subr.bf16.mxu0 0
    %2882 = vmatpush1.bf16.msra.mxu0 %v687
    %2883 = vmatprep.subr.bf16.mxu0 0
    %2884 = vmatpush1.bf16.msra.mxu0 %v688
    %2885 = vmatprep.subr.bf16.mxu0 0
    %2886 = vmatpush1.bf16.msra.mxu0 %v689
    %2887 = vmatprep.mubr.bf16.mxu0 %v2792
    %2888 = vmatmul.mubr.bf16.gmra.mrb[0].mxu0 %v2791
    %v2889 = vpop.f32.mrb[0].mxu0
    %v2890 = vadd.f32 0.0, %v2889
    %v2891 = vpop.f32.mrb[0].mxu0
    %v2892 = vpop.f32.mrb[0].mxu0
    %v2893 = vadd.f32 0.0, %v2892
    %v2894 = vpop.f32.mrb[0].mxu0
    %2895 = vmatprep.mubr.bf16.mxu0 %v2796
    %2896 = vmatmul.mubr.bf16.gmra.mrb[0].mxu0 %v2795
    %v2897 = vpop.f32.mrb[0].mxu0
    %v2898 = vadd.f32 0.0, %v2897
    %v2899 = vpop.f32.mrb[0].mxu0
    %v2900 = vpop.f32.mrb[0].mxu0
    %v2901 = vadd.f32 0.0, %v2900
    %v2902 = vpop.f32.mrb[0].mxu0
    %2903 = vmatprep.mubr.bf16.mxu0 %v2800
    %2904 = vmatmul.mubr.bf16.gmra.mrb[0].mxu0 %v2799
    %v2905 = vpop.f32.mrb[0].mxu0
    %v2906 = vadd.f32 0.0, %v2905
    %v2907 = vpop.f32.mrb[0].mxu0
    %v2908 = vpop.f32.mrb[0].mxu0
    %v2909 = vadd.f32 0.0, %v2908
    %v2910 = vpop.f32.mrb[0].mxu0
    %2911 = vmatprep.mubr.bf16.mxu0 %v2804
    %2912 = vmatmul.mubr.bf16.gmra.mrb[0].mxu0 %v2803
    %v2913 = vpop.f32.mrb[0].mxu0
    %v2914 = vadd.f32 0.0, %v2913
    %v2915 = vpop.f32.mrb[0].mxu0
    %v2916 = vpop.f32.mrb[0].mxu0
    %v2917 = vadd.f32 0.0, %v2916
    %v2918 = vpop.f32.mrb[0].mxu0
    %2919 = vmatprep.mubr.bf16.mxu0 %v2808
    %2920 = vmatmul.mubr.bf16.gmra.mrb[0].mxu0 %v2807
    %v2921 = vpop.f32.mrb[0].mxu0
    %v2922 = vadd.f32 0.0, %v2921
    %v2923 = vpop.f32.mrb[0].mxu0
    %v2924 = vpop.f32.mrb[0].mxu0
    %v2925 = vadd.f32 0.0, %v2924
    %v2926 = vpop.f32.mrb[0].mxu0
    %2927 = vmatprep.mubr.bf16.mxu0 %v2812
    %2928 = vmatmul.mubr.bf16.gmra.mrb[0].mxu0 %v2811
    %v2929 = vpop.f32.mrb[0].mxu0
    %v2930 = vadd.f32 0.0, %v2929
    %v2931 = vpop.f32.mrb[0].mxu0
    %v2932 = vpop.f32.mrb[0].mxu0
    %v2933 = vadd.f32 0.0, %v2932
    %v2934 = vpop.f32.mrb[0].mxu0
    %2935 = vmatprep.mubr.bf16.mxu0 %v2816
    %2936 = vmatmul.mubr.bf16.gmra.mrb[0].mxu0 %v2815
    %v2937 = vpop.f32.mrb[0].mxu0
    %v2938 = vadd.f32 0.0, %v2937
    %v2939 = vpop.f32.mrb[0].mxu0
    %v2940 = vpop.f32.mrb[0].mxu0
    %v2941 = vadd.f32 0.0, %v2940
    %v2942 = vpop.f32.mrb[0].mxu0
    %2943 = vmatprep.mubr.bf16.mxu0 %v2820
    %2944 = vmatmul.mubr.bf16.gmra.mrb[0].mxu0 %v2819
    %v2945 = vpop.f32.mrb[0].mxu0
    %v2946 = vadd.f32 0.0, %v2945
    %v2947 = vpop.f32.mrb[0].mxu0
    %v2948 = vpop.f32.mrb[0].mxu0
    %v2949 = vadd.f32 0.0, %v2948
    %v2950 = vpop.f32.mrb[0].mxu0
    %2951 = vdwg.mxu0
    %2952 = vmatprep.subr.bf16.mxu0 0
    %2953 = vmatpush1.bf16.msra.mxu0 %v690
    %2954 = vmatprep.subr.bf16.mxu0 0
    %2955 = vmatpush1.bf16.msra.mxu0 %v691
    %2956 = vmatprep.subr.bf16.mxu0 0
    %2957 = vmatpush1.bf16.msra.mxu0 %v692
    %2958 = vmatprep.subr.bf16.mxu0 0
    %2959 = vmatpush1.bf16.msra.mxu0 %v693
    %2960 = vmatprep.subr.bf16.mxu0 0
    %2961 = vmatpush1.bf16.msra.mxu0 %v694
    %2962 = vmatprep.subr.bf16.mxu0 0
    %2963 = vmatpush1.bf16.msra.mxu0 %v695
    %2964 = vmatprep.subr.bf16.mxu0 0
    %2965 = vmatpush1.bf16.msra.mxu0 %v696
    %2966 = vmatprep.subr.bf16.mxu0 0
    %2967 = vmatpush1.bf16.msra.mxu0 %v697
    %2968 = vmatprep.subr.bf16.mxu0 0
    %2969 = vmatpush1.bf16.msra.mxu0 %v698
    %2970 = vmatprep.subr.bf16.mxu0 0
    %2971 = vmatpush1.bf16.msra.mxu0 %v699
    %2972 = vmatprep.subr.bf16.mxu0 0
    %2973 = vmatpush1.bf16.msra.mxu0 %v700
    %2974 = vmatprep.subr.bf16.mxu0 0
    %2975 = vmatpush1.bf16.msra.mxu0 %v701
    %2976 = vmatprep.subr.bf16.mxu0 0
    %2977 = vmatpush1.bf16.msra.mxu0 %v702
    %2978 = vmatprep.subr.bf16.mxu0 0
    %2979 = vmatpush1.bf16.msra.mxu0 %v703
    %2980 = vmatprep.subr.bf16.mxu0 0
    %2981 = vmatpush1.bf16.msra.mxu0 %v704
    %2982 = vmatprep.subr.bf16.mxu0 0
    %2983 = vmatpush1.bf16.msra.mxu0 %v705
    %2984 = vmatprep.mubr.bf16.mxu0 %v2794
    %2985 = vmatmul.mubr.bf16.gmra.mrb[0].mxu0 %v2793
    %v2986 = vpop.f32.mrb[0].mxu0
    %v2987 = vadd.f32 %v2890, %v2986
    %v2988 = vpop.f32.mrb[0].mxu0
    %v2989 = vpop.f32.mrb[0].mxu0
    %v2990 = vadd.f32 %v2893, %v2989
    %v2991 = vpop.f32.mrb[0].mxu0
    %2992 = vmatprep.mubr.bf16.mxu0 %v2798
    %2993 = vmatmul.mubr.bf16.gmra.mrb[0].mxu0 %v2797
    %v2994 = vpop.f32.mrb[0].mxu0
    %v2995 = vadd.f32 %v2898, %v2994
    %v2996 = vpop.f32.mrb[0].mxu0
    %v2997 = vpop.f32.mrb[0].mxu0
    %v2998 = vadd.f32 %v2901, %v2997
    %v2999 = vpop.f32.mrb[0].mxu0
    %3000 = vmatprep.mubr.bf16.mxu0 %v2802
    %3001 = vmatmul.mubr.bf16.gmra.mrb[0].mxu0 %v2801
    %v3002 = vpop.f32.mrb[0].mxu0
    %v3003 = vadd.f32 %v2906, %v3002
    %v3004 = vpop.f32.mrb[0].mxu0
    %v3005 = vpop.f32.mrb[0].mxu0
    %v3006 = vadd.f32 %v2909, %v3005
    %v3007 = vpop.f32.mrb[0].mxu0
    %3008 = vmatprep.mubr.bf16.mxu0 %v2806
    %3009 = vmatmul.mubr.bf16.gmra.mrb[0].mxu0 %v2805
    %v3010 = vpop.f32.mrb[0].mxu0
    %v3011 = vadd.f32 %v2914, %v3010
    %v3012 = vpop.f32.mrb[0].mxu0
    %v3013 = vpop.f32.mrb[0].mxu0
    %v3014 = vadd.f32 %v2917, %v3013
    %v3015 = vpop.f32.mrb[0].mxu0
    %3016 = vmatprep.mubr.bf16.mxu0 %v2810
    %3017 = vmatmul.mubr.bf16.gmra.mrb[0].mxu0 %v2809
    %v3018 = vpop.f32.mrb[0].mxu0
    %v3019 = vadd.f32 %v2922, %v3018
    %v3020 = vpop.f32.mrb[0].mxu0
    %v3021 = vpop.f32.mrb[0].mxu0
    %v3022 = vadd.f32 %v2925, %v3021
    %v3023 = vpop.f32.mrb[0].mxu0
    %3024 = vmatprep.mubr.bf16.mxu0 %v2814
    %3025 = vmatmul.mubr.bf16.gmra.mrb[0].mxu0 %v2813
    %v3026 = vpop.f32.mrb[0].mxu0
    %v3027 = vadd.f32 %v2930, %v3026
    %v3028 = vpop.f32.mrb[0].mxu0
    %v3029 = vpop.f32.mrb[0].mxu0
    %v3030 = vadd.f32 %v2933, %v3029
    %v3031 = vpop.f32.mrb[0].mxu0
    %3032 = vmatprep.mubr.bf16.mxu0 %v2818
    %3033 = vmatmul.mubr.bf16.gmra.mrb[0].mxu0 %v2817
    %v3034 = vpop.f32.mrb[0].mxu0
    %v3035 = vadd.f32 %v2938, %v3034
    %v3036 = vpop.f32.mrb[0].mxu0
    %v3037 = vpop.f32.mrb[0].mxu0
    %v3038 = vadd.f32 %v2941, %v3037
    %v3039 = vpop.f32.mrb[0].mxu0
    %3040 = vmatprep.mubr.bf16.mxu0 %v2822
    %3041 = vmatmul.mubr.bf16.gmra.mrb[0].mxu0 %v2821
    %v3042 = vpop.f32.mrb[0].mxu0
    %v3043 = vadd.f32 %v2946, %v3042
    %v3044 = vpop.f32.mrb[0].mxu0
    %v3045 = vpop.f32.mrb[0].mxu0
    %v3046 = vadd.f32 %v2949, %v3045
    %v3047 = vpop.f32.mrb[0].mxu0
    %3048 = vdwg.mxu0
    %v3049 = vpack.c.bf16 %v2990, %v2987
    %v3050 = vpack.c.bf16 %v2998, %v2995
    %v3051 = vpack.c.bf16 %v3006, %v3003
    %v3052 = vpack.c.bf16 %v3014, %v3011
    %v3053 = vpack.c.bf16 %v3022, %v3019
    %v3054 = vpack.c.bf16 %v3030, %v3027
    %v3055 = vpack.c.bf16 %v3038, %v3035
    %v3056 = vpack.c.bf16 %v3046, %v3043
    %s3057 = scalar_lea.vmem %s2, 8
    %v3058 = vld [vmem:[%s3057] sm:$0x3]
    %v3060 = vsel %vm1338, %v3049, 0
    %v3063 = vsel %vm1338, %v3050, 0
    %v3066 = vsel %vm1338, %v3051, 0
    %v3069 = vsel %vm1338, %v3052, 0
    %v3072 = vsel %vm1338, %v3053, 0
    %v3075 = vsel %vm1338, %v3054, 0
    %v3078 = vsel %vm1338, %v3055, 0
    %v3081 = vsel %vm1338, %v3056, 0
    %v3084 = vsel %vm1363, %v3058, 0
    %3086 = vmatprep.subr.bf16.mxu0 0
    %3087 = vmatpush1.bf16.msra.mxu0 %v3084
    %3088 = vmatprep.subr.bf16.mxu0 0
    %3089 = vmatpush1.bf16.msra.mxu0 0
    %3090 = vmatprep.subr.bf16.mxu0 0
    %3091 = vmatpush1.bf16.msra.mxu0 0
    %3092 = vmatprep.subr.bf16.mxu0 0
    %3093 = vmatpush1.bf16.msra.mxu0 0
    %3094 = vmatprep.subr.bf16.mxu0 0
    %3095 = vmatpush1.bf16.msra.mxu0 0
    %3096 = vmatprep.subr.bf16.mxu0 0
    %3097 = vmatpush1.bf16.msra.mxu0 0
    %3098 = vmatprep.subr.bf16.mxu0 0
    %3099 = vmatpush1.bf16.msra.mxu0 0
    %3100 = vmatprep.subr.bf16.mxu0 0
    %3101 = vmatpush1.bf16.msra.mxu0 0
    %3102 = vmatprep.subr.bf16.mxu0 0
    %3103 = vmatpush1.bf16.msra.mxu0 0
    %3104 = vmatprep.subr.bf16.mxu0 0
    %3105 = vmatpush1.bf16.msra.mxu0 0
    %3106 = vmatprep.subr.bf16.mxu0 0
    %3107 = vmatpush1.bf16.msra.mxu0 0
    %3108 = vmatprep.subr.bf16.mxu0 0
    %3109 = vmatpush1.bf16.msra.mxu0 0
    %3110 = vmatprep.subr.bf16.mxu0 0
    %3111 = vmatpush1.bf16.msra.mxu0 0
    %3112 = vmatprep.subr.bf16.mxu0 0
    %3113 = vmatpush1.bf16.msra.mxu0 0
    %3114 = vmatprep.subr.bf16.mxu0 0
    %3115 = vmatpush1.bf16.msra.mxu0 0
    %3116 = vmatprep.subr.bf16.mxu0 0
    %3117 = vmatpush1.bf16.msra.mxu0 0
    %3118 = vmatprep.mubr.bf16.mxu0 0
    %3119 = vmatmul.mubr.bf16.gmra.mrb[0].mxu0 %v3060
    %v3120 = vpop.f32.mrb[0].mxu0
    %v3121 = vadd.f32 0.0, %v3120
    %v3122 = vpop.f32.mrb[0].mxu0
    %v3123 = vpop.f32.mrb[0].mxu0
    %v3124 = vadd.f32 0.0, %v3123
    %v3125 = vpop.f32.mrb[0].mxu0
    %3126 = vmatprep.mubr.bf16.mxu0 0
    %3127 = vmatmul.mubr.bf16.gmra.mrb[0].mxu0 %v3063
    %v3128 = vpop.f32.mrb[0].mxu0
    %v3129 = vadd.f32 0.0, %v3128
    %v3130 = vpop.f32.mrb[0].mxu0
    %v3131 = vpop.f32.mrb[0].mxu0
    %v3132 = vadd.f32 0.0, %v3131
    %v3133 = vpop.f32.mrb[0].mxu0
    %3134 = vmatprep.mubr.bf16.mxu0 0
    %3135 = vmatmul.mubr.bf16.gmra.mrb[0].mxu0 %v3066
    %v3136 = vpop.f32.mrb[0].mxu0
    %v3137 = vadd.f32 0.0, %v3136
    %v3138 = vpop.f32.mrb[0].mxu0
    %v3139 = vpop.f32.mrb[0].mxu0
    %v3140 = vadd.f32 0.0, %v3139
    %v3141 = vpop.f32.mrb[0].mxu0
    %3142 = vmatprep.mubr.bf16.mxu0 0
    %3143 = vmatmul.mubr.bf16.gmra.mrb[0].mxu0 %v3069
    %v3144 = vpop.f32.mrb[0].mxu0
    %v3145 = vadd.f32 0.0, %v3144
    %v3146 = vpop.f32.mrb[0].mxu0
    %v3147 = vpop.f32.mrb[0].mxu0
    %v3148 = vadd.f32 0.0, %v3147
    %v3149 = vpop.f32.mrb[0].mxu0
    %3150 = vmatprep.mubr.bf16.mxu0 0
    %3151 = vmatmul.mubr.bf16.gmra.mrb[0].mxu0 %v3072
    %v3152 = vpop.f32.mrb[0].mxu0
    %v3153 = vadd.f32 0.0, %v3152
    %v3154 = vpop.f32.mrb[0].mxu0
    %v3155 = vpop.f32.mrb[0].mxu0
    %v3156 = vadd.f32 0.0, %v3155
    %v3157 = vpop.f32.mrb[0].mxu0
    %3158 = vmatprep.mubr.bf16.mxu0 0
    %3159 = vmatmul.mubr.bf16.gmra.mrb[0].mxu0 %v3075
    %v3160 = vpop.f32.mrb[0].mxu0
    %v3161 = vadd.f32 0.0, %v3160
    %v3162 = vpop.f32.mrb[0].mxu0
    %v3163 = vpop.f32.mrb[0].mxu0
    %v3164 = vadd.f32 0.0, %v3163
    %v3165 = vpop.f32.mrb[0].mxu0
    %3166 = vmatprep.mubr.bf16.mxu0 0
    %3167 = vmatmul.mubr.bf16.gmra.mrb[0].mxu0 %v3078
    %v3168 = vpop.f32.mrb[0].mxu0
    %v3169 = vadd.f32 0.0, %v3168
    %v3170 = vpop.f32.mrb[0].mxu0
    %v3171 = vpop.f32.mrb[0].mxu0
    %v3172 = vadd.f32 0.0, %v3171
    %v3173 = vpop.f32.mrb[0].mxu0
    %3174 = vmatprep.mubr.bf16.mxu0 0
    %3175 = vmatmul.mubr.bf16.gmra.mrb[0].mxu0 %v3081
    %v3176 = vpop.f32.mrb[0].mxu0
    %v3177 = vadd.f32 0.0, %v3176
    %v3178 = vpop.f32.mrb[0].mxu0
    %v3179 = vpop.f32.mrb[0].mxu0
    %v3180 = vadd.f32 0.0, %v3179
    %v3181 = vpop.f32.mrb[0].mxu0
    %3182 = vdwg.mxu0
    %v3183 = vadd.f32 %v2646, %v3121
    %v3184 = vadd.f32 %v2647, %v3124
    %v3185 = vadd.f32 %v2648, %v3129
    %v3186 = vadd.f32 %v2649, %v3132
    %v3187 = vadd.f32 %v2650, %v3137
    %v3188 = vadd.f32 %v2651, %v3140
    %v3189 = vadd.f32 %v2652, %v3145
    %v3190 = vadd.f32 %v2653, %v3148
    %v3191 = vadd.f32 %v2654, %v3153
    %v3192 = vadd.f32 %v2655, %v3156
    %v3193 = vadd.f32 %v2656, %v3161
    %v3194 = vadd.f32 %v2657, %v3164
    %v3195 = vadd.f32 %v2658, %v3169
    %v3196 = vadd.f32 %v2659, %v3172
    %v3197 = vadd.f32 %v2660, %v3177
    %v3198 = vadd.f32 %v2661, %v3180
    %s3199 = scalar_lea.vmem [#allocation2], 1280
    %v3200 = vld [vmem:[%s3199] sm:$0xff]
    %v3201 = vld [vmem:[%s3199 + $0x8] sm:$0xff]
    %v3202 = vld [vmem:[%s3199 + $0x10] sm:$0xff]
    %v3203 = vld [vmem:[%s3199 + $0x18] sm:$0xff]
    %v3204 = vld [vmem:[%s3199 + $0x20] sm:$0xff]
    %v3205 = vld [vmem:[%s3199 + $0x28] sm:$0xff]
    %v3206 = vld [vmem:[%s3199 + $0x30] sm:$0xff]
    %v3207 = vld [vmem:[%s3199 + $0x38] sm:$0xff]
    %v3208 = vld [vmem:[%s3199 + $0x40] sm:$0xff]
    %v3209 = vld [vmem:[%s3199 + $0x48] sm:$0xff]
    %v3210 = vld [vmem:[%s3199 + $0x50] sm:$0xff]
    %v3211 = vld [vmem:[%s3199 + $0x58] sm:$0xff]
    %v3212 = vld [vmem:[%s3199 + $0x60] sm:$0xff]
    %v3213 = vld [vmem:[%s3199 + $0x68] sm:$0xff]
    %v3214 = vld [vmem:[%s3199 + $0x70] sm:$0xff]
    %v3215 = vld [vmem:[%s3199 + $0x78] sm:$0xff]
    %v3216 = vld [vmem:[%s3199 + $0x80] sm:$0xff]
    %v3217 = vld [vmem:[%s3199 + $0x88] sm:$0xff]
    %v3218 = vld [vmem:[%s3199 + $0x90] sm:$0xff]
    %v3219 = vld [vmem:[%s3199 + $0x98] sm:$0xff]
    %v3220 = vld [vmem:[%s3199 + $0xa0] sm:$0xff]
    %v3221 = vld [vmem:[%s3199 + $0xa8] sm:$0xff]
    %v3222 = vld [vmem:[%s3199 + $0xb0] sm:$0xff]
    %v3223 = vld [vmem:[%s3199 + $0xb8] sm:$0xff]
    %v3224 = vld [vmem:[%s3199 + $0xc0] sm:$0xff]
    %v3225 = vld [vmem:[%s3199 + $0xc8] sm:$0xff]
    %v3226 = vld [vmem:[%s3199 + $0xd0] sm:$0xff]
    %v3227 = vld [vmem:[%s3199 + $0xd8] sm:$0xff]
    %v3228 = vld [vmem:[%s3199 + $0xe0] sm:$0xff]
    %v3229 = vld [vmem:[%s3199 + $0xe8] sm:$0xff]
    %v3230 = vld [vmem:[%s3199 + $0xf0] sm:$0xff]
    %v3231 = vld [vmem:[%s3199 + $0xf8] sm:$0xff]
    %v3264 = vunpack.c.l.b16 %v3200
    %v3265 = vunpack.c.h.b16 %v3200
    %v3266 = vunpack.c.l.b16 %v3201
    %v3267 = vunpack.c.h.b16 %v3201
    %v3268 = vunpack.c.l.b16 %v3202
    %v3269 = vunpack.c.h.b16 %v3202
    %v3270 = vunpack.c.l.b16 %v3203
    %v3271 = vunpack.c.h.b16 %v3203
    %v3272 = vunpack.c.l.b16 %v3204
    %v3273 = vunpack.c.h.b16 %v3204
    %v3274 = vunpack.c.l.b16 %v3205
    %v3275 = vunpack.c.h.b16 %v3205
    %v3276 = vunpack.c.l.b16 %v3206
    %v3277 = vunpack.c.h.b16 %v3206
    %v3278 = vunpack.c.l.b16 %v3207
    %v3279 = vunpack.c.h.b16 %v3207
    %v3280 = vunpack.c.l.b16 %v3208
    %v3281 = vunpack.c.h.b16 %v3208
    %v3282 = vunpack.c.l.b16 %v3209
    %v3283 = vunpack.c.h.b16 %v3209
    %v3284 = vunpack.c.l.b16 %v3210
    %v3285 = vunpack.c.h.b16 %v3210
    %v3286 = vunpack.c.l.b16 %v3211
    %v3287 = vunpack.c.h.b16 %v3211
    %v3288 = vunpack.c.l.b16 %v3212
    %v3289 = vunpack.c.h.b16 %v3212
    %v3290 = vunpack.c.l.b16 %v3213
    %v3291 = vunpack.c.h.b16 %v3213
    %v3292 = vunpack.c.l.b16 %v3214
    %v3293 = vunpack.c.h.b16 %v3214
    %v3294 = vunpack.c.l.b16 %v3215
    %v3295 = vunpack.c.h.b16 %v3215
    %v3296 = vunpack.c.l.b16 %v3216
    %v3297 = vunpack.c.h.b16 %v3216
    %v3298 = vunpack.c.l.b16 %v3217
    %v3299 = vunpack.c.h.b16 %v3217
    %v3300 = vunpack.c.l.b16 %v3218
    %v3301 = vunpack.c.h.b16 %v3218
    %v3302 = vunpack.c.l.b16 %v3219
    %v3303 = vunpack.c.h.b16 %v3219
    %v3304 = vunpack.c.l.b16 %v3220
    %v3305 = vunpack.c.h.b16 %v3220
    %v3306 = vunpack.c.l.b16 %v3221
    %v3307 = vunpack.c.h.b16 %v3221
    %v3308 = vunpack.c.l.b16 %v3222
    %v3309 = vunpack.c.h.b16 %v3222
    %v3310 = vunpack.c.l.b16 %v3223
    %v3311 = vunpack.c.h.b16 %v3223
    %v3312 = vunpack.c.l.b16 %v3224
    %v3313 = vunpack.c.h.b16 %v3224
    %v3314 = vunpack.c.l.b16 %v3225
    %v3315 = vunpack.c.h.b16 %v3225
    %v3316 = vunpack.c.l.b16 %v3226
    %v3317 = vunpack.c.h.b16 %v3226
    %v3318 = vunpack.c.l.b16 %v3227
    %v3319 = vunpack.c.h.b16 %v3227
    %v3320 = vunpack.c.l.b16 %v3228
    %v3321 = vunpack.c.h.b16 %v3228
    %v3322 = vunpack.c.l.b16 %v3229
    %v3323 = vunpack.c.h.b16 %v3229
    %v3324 = vunpack.c.l.b16 %v3230
    %v3325 = vunpack.c.h.b16 %v3230
    %v3326 = vunpack.c.l.b16 %v3231
    %v3327 = vunpack.c.h.b16 %v3231
    %v3328 = vpack.c.b16 %v3268, %v3264
    %v3329 = vpack.c.b16 %v3269, %v3265
    %v3330 = vpack.c.b16 %v3270, %v3266
    %v3331 = vpack.c.b16 %v3271, %v3267
    %v3332 = vpack.c.b16 %v3276, %v3272
    %v3333 = vpack.c.b16 %v3277, %v3273
    %v3334 = vpack.c.b16 %v3278, %v3274
    %v3335 = vpack.c.b16 %v3279, %v3275
    %v3336 = vpack.c.b16 %v3284, %v3280
    %v3337 = vpack.c.b16 %v3285, %v3281
    %v3338 = vpack.c.b16 %v3286, %v3282
    %v3339 = vpack.c.b16 %v3287, %v3283
    %v3340 = vpack.c.b16 %v3292, %v3288
    %v3341 = vpack.c.b16 %v3293, %v3289
    %v3342 = vpack.c.b16 %v3294, %v3290
    %v3343 = vpack.c.b16 %v3295, %v3291
    %v3344 = vpack.c.b16 %v3300, %v3296
    %v3345 = vpack.c.b16 %v3301, %v3297
    %v3346 = vpack.c.b16 %v3302, %v3298
    %v3347 = vpack.c.b16 %v3303, %v3299
    %v3348 = vpack.c.b16 %v3308, %v3304
    %v3349 = vpack.c.b16 %v3309, %v3305
    %v3350 = vpack.c.b16 %v3310, %v3306
    %v3351 = vpack.c.b16 %v3311, %v3307
    %v3352 = vpack.c.b16 %v3316, %v3312
    %v3353 = vpack.c.b16 %v3317, %v3313
    %v3354 = vpack.c.b16 %v3318, %v3314
    %v3355 = vpack.c.b16 %v3319, %v3315
    %v3356 = vpack.c.b16 %v3324, %v3320
    %v3357 = vpack.c.b16 %v3325, %v3321
    %v3358 = vpack.c.b16 %v3326, %v3322
    %v3359 = vpack.c.b16 %v3327, %v3323
    %3392 = vmatprep.subr.bf16.mxu0 0
    %3393 = vmatpush1.bf16.msra.mxu0 %v674
    %3394 = vmatprep.subr.bf16.mxu0 0
    %3395 = vmatpush1.bf16.msra.mxu0 %v675
    %3396 = vmatprep.subr.bf16.mxu0 0
    %3397 = vmatpush1.bf16.msra.mxu0 %v676
    %3398 = vmatprep.subr.bf16.mxu0 0
    %3399 = vmatpush1.bf16.msra.mxu0 %v677
    %3400 = vmatprep.subr.bf16.mxu0 0
    %3401 = vmatpush1.bf16.msra.mxu0 %v678
    %3402 = vmatprep.subr.bf16.mxu0 0
    %3403 = vmatpush1.bf16.msra.mxu0 %v679
    %3404 = vmatprep.subr.bf16.mxu0 0
    %3405 = vmatpush1.bf16.msra.mxu0 %v680
    %3406 = vmatprep.subr.bf16.mxu0 0
    %3407 = vmatpush1.bf16.msra.mxu0 %v681
    %3408 = vmatprep.subr.bf16.mxu0 0
    %3409 = vmatpush1.bf16.msra.mxu0 %v682
    %3410 = vmatprep.subr.bf16.mxu0 0
    %3411 = vmatpush1.bf16.msra.mxu0 %v683
    %3412 = vmatprep.subr.bf16.mxu0 0
    %3413 = vmatpush1.bf16.msra.mxu0 %v684
    %3414 = vmatprep.subr.bf16.mxu0 0
    %3415 = vmatpush1.bf16.msra.mxu0 %v685
    %3416 = vmatprep.subr.bf16.mxu0 0
    %3417 = vmatpush1.bf16.msra.mxu0 %v686
    %3418 = vmatprep.subr.bf16.mxu0 0
    %3419 = vmatpush1.bf16.msra.mxu0 %v687
    %3420 = vmatprep.subr.bf16.mxu0 0
    %3421 = vmatpush1.bf16.msra.mxu0 %v688
    %3422 = vmatprep.subr.bf16.mxu0 0
    %3423 = vmatpush1.bf16.msra.mxu0 %v689
    %3424 = vmatprep.mubr.bf16.mxu0 %v3329
    %3425 = vmatmul.mubr.bf16.gmra.mrb[0].mxu0 %v3328
    %v3426 = vpop.f32.mrb[0].mxu0
    %v3427 = vadd.f32 0.0, %v3426
    %v3428 = vpop.f32.mrb[0].mxu0
    %v3429 = vpop.f32.mrb[0].mxu0
    %v3430 = vadd.f32 0.0, %v3429
    %v3431 = vpop.f32.mrb[0].mxu0
    %3432 = vmatprep.mubr.bf16.mxu0 %v3333
    %3433 = vmatmul.mubr.bf16.gmra.mrb[0].mxu0 %v3332
    %v3434 = vpop.f32.mrb[0].mxu0
    %v3435 = vadd.f32 0.0, %v3434
    %v3436 = vpop.f32.mrb[0].mxu0
    %v3437 = vpop.f32.mrb[0].mxu0
    %v3438 = vadd.f32 0.0, %v3437
    %v3439 = vpop.f32.mrb[0].mxu0
    %3440 = vmatprep.mubr.bf16.mxu0 %v3337
    %3441 = vmatmul.mubr.bf16.gmra.mrb[0].mxu0 %v3336
    %v3442 = vpop.f32.mrb[0].mxu0
    %v3443 = vadd.f32 0.0, %v3442
    %v3444 = vpop.f32.mrb[0].mxu0
    %v3445 = vpop.f32.mrb[0].mxu0
    %v3446 = vadd.f32 0.0, %v3445
    %v3447 = vpop.f32.mrb[0].mxu0
    %3448 = vmatprep.mubr.bf16.mxu0 %v3341
    %3449 = vmatmul.mubr.bf16.gmra.mrb[0].mxu0 %v3340
    %v3450 = vpop.f32.mrb[0].mxu0
    %v3451 = vadd.f32 0.0, %v3450
    %v3452 = vpop.f32.mrb[0].mxu0
    %v3453 = vpop.f32.mrb[0].mxu0
    %v3454 = vadd.f32 0.0, %v3453
    %v3455 = vpop.f32.mrb[0].mxu0
    %3456 = vmatprep.mubr.bf16.mxu0 %v3345
    %3457 = vmatmul.mubr.bf16.gmra.mrb[0].mxu0 %v3344
    %v3458 = vpop.f32.mrb[0].mxu0
    %v3459 = vadd.f32 0.0, %v3458
    %v3460 = vpop.f32.mrb[0].mxu0
    %v3461 = vpop.f32.mrb[0].mxu0
    %v3462 = vadd.f32 0.0, %v3461
    %v3463 = vpop.f32.mrb[0].mxu0
    %3464 = vmatprep.mubr.bf16.mxu0 %v3349
    %3465 = vmatmul.mubr.bf16.gmra.mrb[0].mxu0 %v3348
    %v3466 = vpop.f32.mrb[0].mxu0
    %v3467 = vadd.f32 0.0, %v3466
    %v3468 = vpop.f32.mrb[0].mxu0
    %v3469 = vpop.f32.mrb[0].mxu0
    %v3470 = vadd.f32 0.0, %v3469
    %v3471 = vpop.f32.mrb[0].mxu0
    %3472 = vmatprep.mubr.bf16.mxu0 %v3353
    %3473 = vmatmul.mubr.bf16.gmra.mrb[0].mxu0 %v3352
    %v3474 = vpop.f32.mrb[0].mxu0
    %v3475 = vadd.f32 0.0, %v3474
    %v3476 = vpop.f32.mrb[0].mxu0
    %v3477 = vpop.f32.mrb[0].mxu0
    %v3478 = vadd.f32 0.0, %v3477
    %v3479 = vpop.f32.mrb[0].mxu0
    %3480 = vmatprep.mubr.bf16.mxu0 %v3357
    %3481 = vmatmul.mubr.bf16.gmra.mrb[0].mxu0 %v3356
    %v3482 = vpop.f32.mrb[0].mxu0
    %v3483 = vadd.f32 0.0, %v3482
    %v3484 = vpop.f32.mrb[0].mxu0
    %v3485 = vpop.f32.mrb[0].mxu0
    %v3486 = vadd.f32 0.0, %v3485
    %v3487 = vpop.f32.mrb[0].mxu0
    %3488 = vdwg.mxu0
    %3489 = vmatprep.subr.bf16.mxu0 0
    %3490 = vmatpush1.bf16.msra.mxu0 %v690
    %3491 = vmatprep.subr.bf16.mxu0 0
    %3492 = vmatpush1.bf16.msra.mxu0 %v691
    %3493 = vmatprep.subr.bf16.mxu0 0
    %3494 = vmatpush1.bf16.msra.mxu0 %v692
    %3495 = vmatprep.subr.bf16.mxu0 0
    %3496 = vmatpush1.bf16.msra.mxu0 %v693
    %3497 = vmatprep.subr.bf16.mxu0 0
    %3498 = vmatpush1.bf16.msra.mxu0 %v694
    %3499 = vmatprep.subr.bf16.mxu0 0
    %3500 = vmatpush1.bf16.msra.mxu0 %v695
    %3501 = vmatprep.subr.bf16.mxu0 0
    %3502 = vmatpush1.bf16.msra.mxu0 %v696
    %3503 = vmatprep.subr.bf16.mxu0 0
    %3504 = vmatpush1.bf16.msra.mxu0 %v697
    %3505 = vmatprep.subr.bf16.mxu0 0
    %3506 = vmatpush1.bf16.msra.mxu0 %v698
    %3507 = vmatprep.subr.bf16.mxu0 0
    %3508 = vmatpush1.bf16.msra.mxu0 %v699
    %3509 = vmatprep.subr.bf16.mxu0 0
    %3510 = vmatpush1.bf16.msra.mxu0 %v700
    %3511 = vmatprep.subr.bf16.mxu0 0
    %3512 = vmatpush1.bf16.msra.mxu0 %v701
    %3513 = vmatprep.subr.bf16.mxu0 0
    %3514 = vmatpush1.bf16.msra.mxu0 %v702
    %3515 = vmatprep.subr.bf16.mxu0 0
    %3516 = vmatpush1.bf16.msra.mxu0 %v703
    %3517 = vmatprep.subr.bf16.mxu0 0
    %3518 = vmatpush1.bf16.msra.mxu0 %v704
    %3519 = vmatprep.subr.bf16.mxu0 0
    %3520 = vmatpush1.bf16.msra.mxu0 %v705
    %3521 = vmatprep.mubr.bf16.mxu0 %v3331
    %3522 = vmatmul.mubr.bf16.gmra.mrb[0].mxu0 %v3330
    %v3523 = vpop.f32.mrb[0].mxu0
    %v3524 = vadd.f32 %v3427, %v3523
    %v3525 = vpop.f32.mrb[0].mxu0
    %v3526 = vpop.f32.mrb[0].mxu0
    %v3527 = vadd.f32 %v3430, %v3526
    %v3528 = vpop.f32.mrb[0].mxu0
    %3529 = vmatprep.mubr.bf16.mxu0 %v3335
    %3530 = vmatmul.mubr.bf16.gmra.mrb[0].mxu0 %v3334
    %v3531 = vpop.f32.mrb[0].mxu0
    %v3532 = vadd.f32 %v3435, %v3531
    %v3533 = vpop.f32.mrb[0].mxu0
    %v3534 = vpop.f32.mrb[0].mxu0
    %v3535 = vadd.f32 %v3438, %v3534
    %v3536 = vpop.f32.mrb[0].mxu0
    %3537 = vmatprep.mubr.bf16.mxu0 %v3339
    %3538 = vmatmul.mubr.bf16.gmra.mrb[0].mxu0 %v3338
    %v3539 = vpop.f32.mrb[0].mxu0
    %v3540 = vadd.f32 %v3443, %v3539
    %v3541 = vpop.f32.mrb[0].mxu0
    %v3542 = vpop.f32.mrb[0].mxu0
    %v3543 = vadd.f32 %v3446, %v3542
    %v3544 = vpop.f32.mrb[0].mxu0
    %3545 = vmatprep.mubr.bf16.mxu0 %v3343
    %3546 = vmatmul.mubr.bf16.gmra.mrb[0].mxu0 %v3342
    %v3547 = vpop.f32.mrb[0].mxu0
    %v3548 = vadd.f32 %v3451, %v3547
    %v3549 = vpop.f32.mrb[0].mxu0
    %v3550 = vpop.f32.mrb[0].mxu0
    %v3551 = vadd.f32 %v3454, %v3550
    %v3552 = vpop.f32.mrb[0].mxu0
    %3553 = vmatprep.mubr.bf16.mxu0 %v3347
    %3554 = vmatmul.mubr.bf16.gmra.mrb[0].mxu0 %v3346
    %v3555 = vpop.f32.mrb[0].mxu0
    %v3556 = vadd.f32 %v3459, %v3555
    %v3557 = vpop.f32.mrb[0].mxu0
    %v3558 = vpop.f32.mrb[0].mxu0
    %v3559 = vadd.f32 %v3462, %v3558
    %v3560 = vpop.f32.mrb[0].mxu0
    %3561 = vmatprep.mubr.bf16.mxu0 %v3351
    %3562 = vmatmul.mubr.bf16.gmra.mrb[0].mxu0 %v3350
    %v3563 = vpop.f32.mrb[0].mxu0
    %v3564 = vadd.f32 %v3467, %v3563
    %v3565 = vpop.f32.mrb[0].mxu0
    %v3566 = vpop.f32.mrb[0].mxu0
    %v3567 = vadd.f32 %v3470, %v3566
    %v3568 = vpop.f32.mrb[0].mxu0
    %3569 = vmatprep.mubr.bf16.mxu0 %v3355
    %3570 = vmatmul.mubr.bf16.gmra.mrb[0].mxu0 %v3354
    %v3571 = vpop.f32.mrb[0].mxu0
    %v3572 = vadd.f32 %v3475, %v3571
    %v3573 = vpop.f32.mrb[0].mxu0
    %v3574 = vpop.f32.mrb[0].mxu0
    %v3575 = vadd.f32 %v3478, %v3574
    %v3576 = vpop.f32.mrb[0].mxu0
    %3577 = vmatprep.mubr.bf16.mxu0 %v3359
    %3578 = vmatmul.mubr.bf16.gmra.mrb[0].mxu0 %v3358
    %v3579 = vpop.f32.mrb[0].mxu0
    %v3580 = vadd.f32 %v3483, %v3579
    %v3581 = vpop.f32.mrb[0].mxu0
    %v3582 = vpop.f32.mrb[0].mxu0
    %v3583 = vadd.f32 %v3486, %v3582
    %v3584 = vpop.f32.mrb[0].mxu0
    %3585 = vdwg.mxu0
    %v3586 = vpack.c.bf16 %v3527, %v3524
    %v3587 = vpack.c.bf16 %v3535, %v3532
    %v3588 = vpack.c.bf16 %v3543, %v3540
    %v3589 = vpack.c.bf16 %v3551, %v3548
    %v3590 = vpack.c.bf16 %v3559, %v3556
    %v3591 = vpack.c.bf16 %v3567, %v3564
    %v3592 = vpack.c.bf16 %v3575, %v3572
    %v3593 = vpack.c.bf16 %v3583, %v3580
    %s3594 = scalar_lea.vmem %s2, 10
    %v3595 = vld [vmem:[%s3594] sm:$0x3]
    %v3597 = vsel %vm1338, %v3586, 0
    %v3600 = vsel %vm1338, %v3587, 0
    %v3603 = vsel %vm1338, %v3588, 0
    %v3606 = vsel %vm1338, %v3589, 0
    %v3609 = vsel %vm1338, %v3590, 0
    %v3612 = vsel %vm1338, %v3591, 0
    %v3615 = vsel %vm1338, %v3592, 0
    %v3618 = vsel %vm1338, %v3593, 0
    %v3621 = vsel %vm1363, %v3595, 0
    %3623 = vmatprep.subr.bf16.mxu0 0
    %3624 = vmatpush1.bf16.msra.mxu0 %v3621
    %3625 = vmatprep.subr.bf16.mxu0 0
    %3626 = vmatpush1.bf16.msra.mxu0 0
    %3627 = vmatprep.subr.bf16.mxu0 0
    %3628 = vmatpush1.bf16.msra.mxu0 0
    %3629 = vmatprep.subr.bf16.mxu0 0
    %3630 = vmatpush1.bf16.msra.mxu0 0
    %3631 = vmatprep.subr.bf16.mxu0 0
    %3632 = vmatpush1.bf16.msra.mxu0 0
    %3633 = vmatprep.subr.bf16.mxu0 0
    %3634 = vmatpush1.bf16.msra.mxu0 0
    %3635 = vmatprep.subr.bf16.mxu0 0
    %3636 = vmatpush1.bf16.msra.mxu0 0
    %3637 = vmatprep.subr.bf16.mxu0 0
    %3638 = vmatpush1.bf16.msra.mxu0 0
    %3639 = vmatprep.subr.bf16.mxu0 0
    %3640 = vmatpush1.bf16.msra.mxu0 0
    %3641 = vmatprep.subr.bf16.mxu0 0
    %3642 = vmatpush1.bf16.msra.mxu0 0
    %3643 = vmatprep.subr.bf16.mxu0 0
    %3644 = vmatpush1.bf16.msra.mxu0 0
    %3645 = vmatprep.subr.bf16.mxu0 0
    %3646 = vmatpush1.bf16.msra.mxu0 0
    %3647 = vmatprep.subr.bf16.mxu0 0
    %3648 = vmatpush1.bf16.msra.mxu0 0
    %3649 = vmatprep.subr.bf16.mxu0 0
    %3650 = vmatpush1.bf16.msra.mxu0 0
    %3651 = vmatprep.subr.bf16.mxu0 0
    %3652 = vmatpush1.bf16.msra.mxu0 0
    %3653 = vmatprep.subr.bf16.mxu0 0
    %3654 = vmatpush1.bf16.msra.mxu0 0
    %3655 = vmatprep.mubr.bf16.mxu0 0
    %3656 = vmatmul.mubr.bf16.gmra.mrb[0].mxu0 %v3597
    %v3657 = vpop.f32.mrb[0].mxu0
    %v3658 = vadd.f32 0.0, %v3657
    %v3659 = vpop.f32.mrb[0].mxu0
    %v3660 = vpop.f32.mrb[0].mxu0
    %v3661 = vadd.f32 0.0, %v3660
    %v3662 = vpop.f32.mrb[0].mxu0
    %3663 = vmatprep.mubr.bf16.mxu0 0
    %3664 = vmatmul.mubr.bf16.gmra.mrb[0].mxu0 %v3600
    %v3665 = vpop.f32.mrb[0].mxu0
    %v3666 = vadd.f32 0.0, %v3665
    %v3667 = vpop.f32.mrb[0].mxu0
    %v3668 = vpop.f32.mrb[0].mxu0
    %v3669 = vadd.f32 0.0, %v3668
    %v3670 = vpop.f32.mrb[0].mxu0
    %3671 = vmatprep.mubr.bf16.mxu0 0
    %3672 = vmatmul.mubr.bf16.gmra.mrb[0].mxu0 %v3603
    %v3673 = vpop.f32.mrb[0].mxu0
    %v3674 = vadd.f32 0.0, %v3673
    %v3675 = vpop.f32.mrb[0].mxu0
    %v3676 = vpop.f32.mrb[0].mxu0
    %v3677 = vadd.f32 0.0, %v3676
    %v3678 = vpop.f32.mrb[0].mxu0
    %3679 = vmatprep.mubr.bf16.mxu0 0
    %3680 = vmatmul.mubr.bf16.gmra.mrb[0].mxu0 %v3606
    %v3681 = vpop.f32.mrb[0].mxu0
    %v3682 = vadd.f32 0.0, %v3681
    %v3683 = vpop.f32.mrb[0].mxu0
    %v3684 = vpop.f32.mrb[0].mxu0
    %v3685 = vadd.f32 0.0, %v3684
    %v3686 = vpop.f32.mrb[0].mxu0
    %3687 = vmatprep.mubr.bf16.mxu0 0
    %3688 = vmatmul.mubr.bf16.gmra.mrb[0].mxu0 %v3609
    %v3689 = vpop.f32.mrb[0].mxu0
    %v3690 = vadd.f32 0.0, %v3689
    %v3691 = vpop.f32.mrb[0].mxu0
    %v3692 = vpop.f32.mrb[0].mxu0
    %v3693 = vadd.f32 0.0, %v3692
    %v3694 = vpop.f32.mrb[0].mxu0
    %3695 = vmatprep.mubr.bf16.mxu0 0
    %3696 = vmatmul.mubr.bf16.gmra.mrb[0].mxu0 %v3612
    %v3697 = vpop.f32.mrb[0].mxu0
    %v3698 = vadd.f32 0.0, %v3697
    %v3699 = vpop.f32.mrb[0].mxu0
    %v3700 = vpop.f32.mrb[0].mxu0
    %v3701 = vadd.f32 0.0, %v3700
    %v3702 = vpop.f32.mrb[0].mxu0
    %3703 = vmatprep.mubr.bf16.mxu0 0
    %3704 = vmatmul.mubr.bf16.gmra.mrb[0].mxu0 %v3615
    %v3705 = vpop.f32.mrb[0].mxu0
    %v3706 = vadd.f32 0.0, %v3705
    %v3707 = vpop.f32.mrb[0].mxu0
    %v3708 = vpop.f32.mrb[0].mxu0
    %v3709 = vadd.f32 0.0, %v3708
    %v3710 = vpop.f32.mrb[0].mxu0
    %3711 = vmatprep.mubr.bf16.mxu0 0
    %3712 = vmatmul.mubr.bf16.gmra.mrb[0].mxu0 %v3618
    %v3713 = vpop.f32.mrb[0].mxu0
    %v3714 = vadd.f32 0.0, %v3713
    %v3715 = vpop.f32.mrb[0].mxu0
    %v3716 = vpop.f32.mrb[0].mxu0
    %v3717 = vadd.f32 0.0, %v3716
    %v3718 = vpop.f32.mrb[0].mxu0
    %3719 = vdwg.mxu0
    %v3720 = vadd.f32 %v3183, %v3658
    %v3721 = vadd.f32 %v3184, %v3661
    %v3722 = vadd.f32 %v3185, %v3666
    %v3723 = vadd.f32 %v3186, %v3669
    %v3724 = vadd.f32 %v3187, %v3674
    %v3725 = vadd.f32 %v3188, %v3677
    %v3726 = vadd.f32 %v3189, %v3682
    %v3727 = vadd.f32 %v3190, %v3685
    %v3728 = vadd.f32 %v3191, %v3690
    %v3729 = vadd.f32 %v3192, %v3693
    %v3730 = vadd.f32 %v3193, %v3698
    %v3731 = vadd.f32 %v3194, %v3701
    %v3732 = vadd.f32 %v3195, %v3706
    %v3733 = vadd.f32 %v3196, %v3709
    %v3734 = vadd.f32 %v3197, %v3714
    %v3735 = vadd.f32 %v3198, %v3717
    %s3736 = scalar_lea.vmem [#allocation2], 1536
    %v3737 = vld [vmem:[%s3736] sm:$0xff]
    %v3738 = vld [vmem:[%s3736 + $0x8] sm:$0xff]
    %v3739 = vld [vmem:[%s3736 + $0x10] sm:$0xff]
    %v3740 = vld [vmem:[%s3736 + $0x18] sm:$0xff]
    %v3741 = vld [vmem:[%s3736 + $0x20] sm:$0xff]
    %v3742 = vld [vmem:[%s3736 + $0x28] sm:$0xff]
    %v3743 = vld [vmem:[%s3736 + $0x30] sm:$0xff]
    %v3744 = vld [vmem:[%s3736 + $0x38] sm:$0xff]
    %v3745 = vld [vmem:[%s3736 + $0x40] sm:$0xff]
    %v3746 = vld [vmem:[%s3736 + $0x48] sm:$0xff]
    %v3747 = vld [vmem:[%s3736 + $0x50] sm:$0xff]
    %v3748 = vld [vmem:[%s3736 + $0x58] sm:$0xff]
    %v3749 = vld [vmem:[%s3736 + $0x60] sm:$0xff]
    %v3750 = vld [vmem:[%s3736 + $0x68] sm:$0xff]
    %v3751 = vld [vmem:[%s3736 + $0x70] sm:$0xff]
    %v3752 = vld [vmem:[%s3736 + $0x78] sm:$0xff]
    %v3753 = vld [vmem:[%s3736 + $0x80] sm:$0xff]
    %v3754 = vld [vmem:[%s3736 + $0x88] sm:$0xff]
    %v3755 = vld [vmem:[%s3736 + $0x90] sm:$0xff]
    %v3756 = vld [vmem:[%s3736 + $0x98] sm:$0xff]
    %v3757 = vld [vmem:[%s3736 + $0xa0] sm:$0xff]
    %v3758 = vld [vmem:[%s3736 + $0xa8] sm:$0xff]
    %v3759 = vld [vmem:[%s3736 + $0xb0] sm:$0xff]
    %v3760 = vld [vmem:[%s3736 + $0xb8] sm:$0xff]
    %v3761 = vld [vmem:[%s3736 + $0xc0] sm:$0xff]
    %v3762 = vld [vmem:[%s3736 + $0xc8] sm:$0xff]
    %v3763 = vld [vmem:[%s3736 + $0xd0] sm:$0xff]
    %v3764 = vld [vmem:[%s3736 + $0xd8] sm:$0xff]
    %v3765 = vld [vmem:[%s3736 + $0xe0] sm:$0xff]
    %v3766 = vld [vmem:[%s3736 + $0xe8] sm:$0xff]
    %v3767 = vld [vmem:[%s3736 + $0xf0] sm:$0xff]
    %v3768 = vld [vmem:[%s3736 + $0xf8] sm:$0xff]
    %v3801 = vunpack.c.l.b16 %v3737
    %v3802 = vunpack.c.h.b16 %v3737
    %v3803 = vunpack.c.l.b16 %v3738
    %v3804 = vunpack.c.h.b16 %v3738
    %v3805 = vunpack.c.l.b16 %v3739
    %v3806 = vunpack.c.h.b16 %v3739
    %v3807 = vunpack.c.l.b16 %v3740
    %v3808 = vunpack.c.h.b16 %v3740
    %v3809 = vunpack.c.l.b16 %v3741
    %v3810 = vunpack.c.h.b16 %v3741
    %v3811 = vunpack.c.l.b16 %v3742
    %v3812 = vunpack.c.h.b16 %v3742
    %v3813 = vunpack.c.l.b16 %v3743
    %v3814 = vunpack.c.h.b16 %v3743
    %v3815 = vunpack.c.l.b16 %v3744
    %v3816 = vunpack.c.h.b16 %v3744
    %v3817 = vunpack.c.l.b16 %v3745
    %v3818 = vunpack.c.h.b16 %v3745
    %v3819 = vunpack.c.l.b16 %v3746
    %v3820 = vunpack.c.h.b16 %v3746
    %v3821 = vunpack.c.l.b16 %v3747
    %v3822 = vunpack.c.h.b16 %v3747
    %v3823 = vunpack.c.l.b16 %v3748
    %v3824 = vunpack.c.h.b16 %v3748
    %v3825 = vunpack.c.l.b16 %v3749
    %v3826 = vunpack.c.h.b16 %v3749
    %v3827 = vunpack.c.l.b16 %v3750
    %v3828 = vunpack.c.h.b16 %v3750
    %v3829 = vunpack.c.l.b16 %v3751
    %v3830 = vunpack.c.h.b16 %v3751
    %v3831 = vunpack.c.l.b16 %v3752
    %v3832 = vunpack.c.h.b16 %v3752
    %v3833 = vunpack.c.l.b16 %v3753
    %v3834 = vunpack.c.h.b16 %v3753
    %v3835 = vunpack.c.l.b16 %v3754
    %v3836 = vunpack.c.h.b16 %v3754
    %v3837 = vunpack.c.l.b16 %v3755
    %v3838 = vunpack.c.h.b16 %v3755
    %v3839 = vunpack.c.l.b16 %v3756
    %v3840 = vunpack.c.h.b16 %v3756
    %v3841 = vunpack.c.l.b16 %v3757
    %v3842 = vunpack.c.h.b16 %v3757
    %v3843 = vunpack.c.l.b16 %v3758
    %v3844 = vunpack.c.h.b16 %v3758
    %v3845 = vunpack.c.l.b16 %v3759
    %v3846 = vunpack.c.h.b16 %v3759
    %v3847 = vunpack.c.l.b16 %v3760
    %v3848 = vunpack.c.h.b16 %v3760
    %v3849 = vunpack.c.l.b16 %v3761
    %v3850 = vunpack.c.h.b16 %v3761
    %v3851 = vunpack.c.l.b16 %v3762
    %v3852 = vunpack.c.h.b16 %v3762
    %v3853 = vunpack.c.l.b16 %v3763
    %v3854 = vunpack.c.h.b16 %v3763
    %v3855 = vunpack.c.l.b16 %v3764
    %v3856 = vunpack.c.h.b16 %v3764
    %v3857 = vunpack.c.l.b16 %v3765
    %v3858 = vunpack.c.h.b16 %v3765
    %v3859 = vunpack.c.l.b16 %v3766
    %v3860 = vunpack.c.h.b16 %v3766
    %v3861 = vunpack.c.l.b16 %v3767
    %v3862 = vunpack.c.h.b16 %v3767
    %v3863 = vunpack.c.l.b16 %v3768
    %v3864 = vunpack.c.h.b16 %v3768
    %v3865 = vpack.c.b16 %v3805, %v3801
    %v3866 = vpack.c.b16 %v3806, %v3802
    %v3867 = vpack.c.b16 %v3807, %v3803
    %v3868 = vpack.c.b16 %v3808, %v3804
    %v3869 = vpack.c.b16 %v3813, %v3809
    %v3870 = vpack.c.b16 %v3814, %v3810
    %v3871 = vpack.c.b16 %v3815, %v3811
    %v3872 = vpack.c.b16 %v3816, %v3812
    %v3873 = vpack.c.b16 %v3821, %v3817
    %v3874 = vpack.c.b16 %v3822, %v3818
    %v3875 = vpack.c.b16 %v3823, %v3819
    %v3876 = vpack.c.b16 %v3824, %v3820
    %v3877 = vpack.c.b16 %v3829, %v3825
    %v3878 = vpack.c.b16 %v3830, %v3826
    %v3879 = vpack.c.b16 %v3831, %v3827
    %v3880 = vpack.c.b16 %v3832, %v3828
    %v3881 = vpack.c.b16 %v3837, %v3833
    %v3882 = vpack.c.b16 %v3838, %v3834
    %v3883 = vpack.c.b16 %v3839, %v3835
    %v3884 = vpack.c.b16 %v3840, %v3836
    %v3885 = vpack.c.b16 %v3845, %v3841
    %v3886 = vpack.c.b16 %v3846, %v3842
    %v3887 = vpack.c.b16 %v3847, %v3843
    %v3888 = vpack.c.b16 %v3848, %v3844
    %v3889 = vpack.c.b16 %v3853, %v3849
    %v3890 = vpack.c.b16 %v3854, %v3850
    %v3891 = vpack.c.b16 %v3855, %v3851
    %v3892 = vpack.c.b16 %v3856, %v3852
    %v3893 = vpack.c.b16 %v3861, %v3857
    %v3894 = vpack.c.b16 %v3862, %v3858
    %v3895 = vpack.c.b16 %v3863, %v3859
    %v3896 = vpack.c.b16 %v3864, %v3860
    %3929 = vmatprep.subr.bf16.mxu0 0
    %3930 = vmatpush1.bf16.msra.mxu0 %v674
    %3931 = vmatprep.subr.bf16.mxu0 0
    %3932 = vmatpush1.bf16.msra.mxu0 %v675
    %3933 = vmatprep.subr.bf16.mxu0 0
    %3934 = vmatpush1.bf16.msra.mxu0 %v676
    %3935 = vmatprep.subr.bf16.mxu0 0
    %3936 = vmatpush1.bf16.msra.mxu0 %v677
    %3937 = vmatprep.subr.bf16.mxu0 0
    %3938 = vmatpush1.bf16.msra.mxu0 %v678
    %3939 = vmatprep.subr.bf16.mxu0 0
    %3940 = vmatpush1.bf16.msra.mxu0 %v679
    %3941 = vmatprep.subr.bf16.mxu0 0
    %3942 = vmatpush1.bf16.msra.mxu0 %v680
    %3943 = vmatprep.subr.bf16.mxu0 0
    %3944 = vmatpush1.bf16.msra.mxu0 %v681
    %3945 = vmatprep.subr.bf16.mxu0 0
    %3946 = vmatpush1.bf16.msra.mxu0 %v682
    %3947 = vmatprep.subr.bf16.mxu0 0
    %3948 = vmatpush1.bf16.msra.mxu0 %v683
    %3949 = vmatprep.subr.bf16.mxu0 0
    %3950 = vmatpush1.bf16.msra.mxu0 %v684
    %3951 = vmatprep.subr.bf16.mxu0 0
    %3952 = vmatpush1.bf16.msra.mxu0 %v685
    %3953 = vmatprep.subr.bf16.mxu0 0
    %3954 = vmatpush1.bf16.msra.mxu0 %v686
    %3955 = vmatprep.subr.bf16.mxu0 0
    %3956 = vmatpush1.bf16.msra.mxu0 %v687
    %3957 = vmatprep.subr.bf16.mxu0 0
    %3958 = vmatpush1.bf16.msra.mxu0 %v688
    %3959 = vmatprep.subr.bf16.mxu0 0
    %3960 = vmatpush1.bf16.msra.mxu0 %v689
    %3961 = vmatprep.mubr.bf16.mxu0 %v3866
    %3962 = vmatmul.mubr.bf16.gmra.mrb[0].mxu0 %v3865
    %v3963 = vpop.f32.mrb[0].mxu0
    %v3964 = vadd.f32 0.0, %v3963
    %v3965 = vpop.f32.mrb[0].mxu0
    %v3966 = vpop.f32.mrb[0].mxu0
    %v3967 = vadd.f32 0.0, %v3966
    %v3968 = vpop.f32.mrb[0].mxu0
    %3969 = vmatprep.mubr.bf16.mxu0 %v3870
    %3970 = vmatmul.mubr.bf16.gmra.mrb[0].mxu0 %v3869
    %v3971 = vpop.f32.mrb[0].mxu0
    %v3972 = vadd.f32 0.0, %v3971
    %v3973 = vpop.f32.mrb[0].mxu0
    %v3974 = vpop.f32.mrb[0].mxu0
    %v3975 = vadd.f32 0.0, %v3974
    %v3976 = vpop.f32.mrb[0].mxu0
    %3977 = vmatprep.mubr.bf16.mxu0 %v3874
    %3978 = vmatmul.mubr.bf16.gmra.mrb[0].mxu0 %v3873
    %v3979 = vpop.f32.mrb[0].mxu0
    %v3980 = vadd.f32 0.0, %v3979
    %v3981 = vpop.f32.mrb[0].mxu0
    %v3982 = vpop.f32.mrb[0].mxu0
    %v3983 = vadd.f32 0.0, %v3982
    %v3984 = vpop.f32.mrb[0].mxu0
    %3985 = vmatprep.mubr.bf16.mxu0 %v3878
    %3986 = vmatmul.mubr.bf16.gmra.mrb[0].mxu0 %v3877
    %v3987 = vpop.f32.mrb[0].mxu0
    %v3988 = vadd.f32 0.0, %v3987
    %v3989 = vpop.f32.mrb[0].mxu0
    %v3990 = vpop.f32.mrb[0].mxu0
    %v3991 = vadd.f32 0.0, %v3990
    %v3992 = vpop.f32.mrb[0].mxu0
    %3993 = vmatprep.mubr.bf16.mxu0 %v3882
    %3994 = vmatmul.mubr.bf16.gmra.mrb[0].mxu0 %v3881
    %v3995 = vpop.f32.mrb[0].mxu0
    %v3996 = vadd.f32 0.0, %v3995
    %v3997 = vpop.f32.mrb[0].mxu0
    %v3998 = vpop.f32.mrb[0].mxu0
    %v3999 = vadd.f32 0.0, %v3998
    %v4000 = vpop.f32.mrb[0].mxu0
    %4001 = vmatprep.mubr.bf16.mxu0 %v3886
    %4002 = vmatmul.mubr.bf16.gmra.mrb[0].mxu0 %v3885
    %v4003 = vpop.f32.mrb[0].mxu0
    %v4004 = vadd.f32 0.0, %v4003
    %v4005 = vpop.f32.mrb[0].mxu0
    %v4006 = vpop.f32.mrb[0].mxu0
    %v4007 = vadd.f32 0.0, %v4006
    %v4008 = vpop.f32.mrb[0].mxu0
    %4009 = vmatprep.mubr.bf16.mxu0 %v3890
    %4010 = vmatmul.mubr.bf16.gmra.mrb[0].mxu0 %v3889
    %v4011 = vpop.f32.mrb[0].mxu0
    %v4012 = vadd.f32 0.0, %v4011
    %v4013 = vpop.f32.mrb[0].mxu0
    %v4014 = vpop.f32.mrb[0].mxu0
    %v4015 = vadd.f32 0.0, %v4014
    %v4016 = vpop.f32.mrb[0].mxu0
    %4017 = vmatprep.mubr.bf16.mxu0 %v3894
    %4018 = vmatmul.mubr.bf16.gmra.mrb[0].mxu0 %v3893
    %v4019 = vpop.f32.mrb[0].mxu0
    %v4020 = vadd.f32 0.0, %v4019
    %v4021 = vpop.f32.mrb[0].mxu0
    %v4022 = vpop.f32.mrb[0].mxu0
    %v4023 = vadd.f32 0.0, %v4022
    %v4024 = vpop.f32.mrb[0].mxu0
    %4025 = vdwg.mxu0
    %4026 = vmatprep.subr.bf16.mxu0 0
    %4027 = vmatpush1.bf16.msra.mxu0 %v690
    %4028 = vmatprep.subr.bf16.mxu0 0
    %4029 = vmatpush1.bf16.msra.mxu0 %v691
    %4030 = vmatprep.subr.bf16.mxu0 0
    %4031 = vmatpush1.bf16.msra.mxu0 %v692
    %4032 = vmatprep.subr.bf16.mxu0 0
    %4033 = vmatpush1.bf16.msra.mxu0 %v693
    %4034 = vmatprep.subr.bf16.mxu0 0
    %4035 = vmatpush1.bf16.msra.mxu0 %v694
    %4036 = vmatprep.subr.bf16.mxu0 0
    %4037 = vmatpush1.bf16.msra.mxu0 %v695
    %4038 = vmatprep.subr.bf16.mxu0 0
    %4039 = vmatpush1.bf16.msra.mxu0 %v696
    %4040 = vmatprep.subr.bf16.mxu0 0
    %4041 = vmatpush1.bf16.msra.mxu0 %v697
    %4042 = vmatprep.subr.bf16.mxu0 0
    %4043 = vmatpush1.bf16.msra.mxu0 %v698
    %4044 = vmatprep.subr.bf16.mxu0 0
    %4045 = vmatpush1.bf16.msra.mxu0 %v699
    %4046 = vmatprep.subr.bf16.mxu0 0
    %4047 = vmatpush1.bf16.msra.mxu0 %v700
    %4048 = vmatprep.subr.bf16.mxu0 0
    %4049 = vmatpush1.bf16.msra.mxu0 %v701
    %4050 = vmatprep.subr.bf16.mxu0 0
    %4051 = vmatpush1.bf16.msra.mxu0 %v702
    %4052 = vmatprep.subr.bf16.mxu0 0
    %4053 = vmatpush1.bf16.msra.mxu0 %v703
    %4054 = vmatprep.subr.bf16.mxu0 0
    %4055 = vmatpush1.bf16.msra.mxu0 %v704
    %4056 = vmatprep.subr.bf16.mxu0 0
    %4057 = vmatpush1.bf16.msra.mxu0 %v705
    %4058 = vmatprep.mubr.bf16.mxu0 %v3868
    %4059 = vmatmul.mubr.bf16.gmra.mrb[0].mxu0 %v3867
    %v4060 = vpop.f32.mrb[0].mxu0
    %v4061 = vadd.f32 %v3964, %v4060
    %v4062 = vpop.f32.mrb[0].mxu0
    %v4063 = vpop.f32.mrb[0].mxu0
    %v4064 = vadd.f32 %v3967, %v4063
    %v4065 = vpop.f32.mrb[0].mxu0
    %4066 = vmatprep.mubr.bf16.mxu0 %v3872
    %4067 = vmatmul.mubr.bf16.gmra.mrb[0].mxu0 %v3871
    %v4068 = vpop.f32.mrb[0].mxu0
    %v4069 = vadd.f32 %v3972, %v4068
    %v4070 = vpop.f32.mrb[0].mxu0
    %v4071 = vpop.f32.mrb[0].mxu0
    %v4072 = vadd.f32 %v3975, %v4071
    %v4073 = vpop.f32.mrb[0].mxu0
    %4074 = vmatprep.mubr.bf16.mxu0 %v3876
    %4075 = vmatmul.mubr.bf16.gmra.mrb[0].mxu0 %v3875
    %v4076 = vpop.f32.mrb[0].mxu0
    %v4077 = vadd.f32 %v3980, %v4076
    %v4078 = vpop.f32.mrb[0].mxu0
    %v4079 = vpop.f32.mrb[0].mxu0
    %v4080 = vadd.f32 %v3983, %v4079
    %v4081 = vpop.f32.mrb[0].mxu0
    %4082 = vmatprep.mubr.bf16.mxu0 %v3880
    %4083 = vmatmul.mubr.bf16.gmra.mrb[0].mxu0 %v3879
    %v4084 = vpop.f32.mrb[0].mxu0
    %v4085 = vadd.f32 %v3988, %v4084
    %v4086 = vpop.f32.mrb[0].mxu0
    %v4087 = vpop.f32.mrb[0].mxu0
    %v4088 = vadd.f32 %v3991, %v4087
    %v4089 = vpop.f32.mrb[0].mxu0
    %4090 = vmatprep.mubr.bf16.mxu0 %v3884
    %4091 = vmatmul.mubr.bf16.gmra.mrb[0].mxu0 %v3883
    %v4092 = vpop.f32.mrb[0].mxu0
    %v4093 = vadd.f32 %v3996, %v4092
    %v4094 = vpop.f32.mrb[0].mxu0
    %v4095 = vpop.f32.mrb[0].mxu0
    %v4096 = vadd.f32 %v3999, %v4095
    %v4097 = vpop.f32.mrb[0].mxu0
    %4098 = vmatprep.mubr.bf16.mxu0 %v3888
    %4099 = vmatmul.mubr.bf16.gmra.mrb[0].mxu0 %v3887
    %v4100 = vpop.f32.mrb[0].mxu0
    %v4101 = vadd.f32 %v4004, %v4100
    %v4102 = vpop.f32.mrb[0].mxu0
    %v4103 = vpop.f32.mrb[0].mxu0
    %v4104 = vadd.f32 %v4007, %v4103
    %v4105 = vpop.f32.mrb[0].mxu0
    %4106 = vmatprep.mubr.bf16.mxu0 %v3892
    %4107 = vmatmul.mubr.bf16.gmra.mrb[0].mxu0 %v3891
    %v4108 = vpop.f32.mrb[0].mxu0
    %v4109 = vadd.f32 %v4012, %v4108
    %v4110 = vpop.f32.mrb[0].mxu0
    %v4111 = vpop.f32.mrb[0].mxu0
    %v4112 = vadd.f32 %v4015, %v4111
    %v4113 = vpop.f32.mrb[0].mxu0
    %4114 = vmatprep.mubr.bf16.mxu0 %v3896
    %4115 = vmatmul.mubr.bf16.gmra.mrb[0].mxu0 %v3895
    %v4116 = vpop.f32.mrb[0].mxu0
    %v4117 = vadd.f32 %v4020, %v4116
    %v4118 = vpop.f32.mrb[0].mxu0
    %v4119 = vpop.f32.mrb[0].mxu0
    %v4120 = vadd.f32 %v4023, %v4119
    %v4121 = vpop.f32.mrb[0].mxu0
    %4122 = vdwg.mxu0
    %v4123 = vpack.c.bf16 %v4064, %v4061
    %v4124 = vpack.c.bf16 %v4072, %v4069
    %v4125 = vpack.c.bf16 %v4080, %v4077
    %v4126 = vpack.c.bf16 %v4088, %v4085
    %v4127 = vpack.c.bf16 %v4096, %v4093
    %v4128 = vpack.c.bf16 %v4104, %v4101
    %v4129 = vpack.c.bf16 %v4112, %v4109
    %v4130 = vpack.c.bf16 %v4120, %v4117
    %s4131 = scalar_lea.vmem %s2, 12
    %v4132 = vld [vmem:[%s4131] sm:$0x3]
    %v4134 = vsel %vm1338, %v4123, 0
    %v4137 = vsel %vm1338, %v4124, 0
    %v4140 = vsel %vm1338, %v4125, 0
    %v4143 = vsel %vm1338, %v4126, 0
    %v4146 = vsel %vm1338, %v4127, 0
    %v4149 = vsel %vm1338, %v4128, 0
    %v4152 = vsel %vm1338, %v4129, 0
    %v4155 = vsel %vm1338, %v4130, 0
    %v4158 = vsel %vm1363, %v4132, 0
    %4160 = vmatprep.subr.bf16.mxu0 0
    %4161 = vmatpush1.bf16.msra.mxu0 %v4158
    %4162 = vmatprep.subr.bf16.mxu0 0
    %4163 = vmatpush1.bf16.msra.mxu0 0
    %4164 = vmatprep.subr.bf16.mxu0 0
    %4165 = vmatpush1.bf16.msra.mxu0 0
    %4166 = vmatprep.subr.bf16.mxu0 0
    %4167 = vmatpush1.bf16.msra.mxu0 0
    %4168 = vmatprep.subr.bf16.mxu0 0
    %4169 = vmatpush1.bf16.msra.mxu0 0
    %4170 = vmatprep.subr.bf16.mxu0 0
    %4171 = vmatpush1.bf16.msra.mxu0 0
    %4172 = vmatprep.subr.bf16.mxu0 0
    %4173 = vmatpush1.bf16.msra.mxu0 0
    %4174 = vmatprep.subr.bf16.mxu0 0
    %4175 = vmatpush1.bf16.msra.mxu0 0
    %4176 = vmatprep.subr.bf16.mxu0 0
    %4177 = vmatpush1.bf16.msra.mxu0 0
    %4178 = vmatprep.subr.bf16.mxu0 0
    %4179 = vmatpush1.bf16.msra.mxu0 0
    %4180 = vmatprep.subr.bf16.mxu0 0
    %4181 = vmatpush1.bf16.msra.mxu0 0
    %4182 = vmatprep.subr.bf16.mxu0 0
    %4183 = vmatpush1.bf16.msra.mxu0 0
    %4184 = vmatprep.subr.bf16.mxu0 0
    %4185 = vmatpush1.bf16.msra.mxu0 0
    %4186 = vmatprep.subr.bf16.mxu0 0
    %4187 = vmatpush1.bf16.msra.mxu0 0
    %4188 = vmatprep.subr.bf16.mxu0 0
    %4189 = vmatpush1.bf16.msra.mxu0 0
    %4190 = vmatprep.subr.bf16.mxu0 0
    %4191 = vmatpush1.bf16.msra.mxu0 0
    %4192 = vmatprep.mubr.bf16.mxu0 0
    %4193 = vmatmul.mubr.bf16.gmra.mrb[0].mxu0 %v4134
    %v4194 = vpop.f32.mrb[0].mxu0
    %v4195 = vadd.f32 0.0, %v4194
    %v4196 = vpop.f32.mrb[0].mxu0
    %v4197 = vpop.f32.mrb[0].mxu0
    %v4198 = vadd.f32 0.0, %v4197
    %v4199 = vpop.f32.mrb[0].mxu0
    %4200 = vmatprep.mubr.bf16.mxu0 0
    %4201 = vmatmul.mubr.bf16.gmra.mrb[0].mxu0 %v4137
    %v4202 = vpop.f32.mrb[0].mxu0
    %v4203 = vadd.f32 0.0, %v4202
    %v4204 = vpop.f32.mrb[0].mxu0
    %v4205 = vpop.f32.mrb[0].mxu0
    %v4206 = vadd.f32 0.0, %v4205
    %v4207 = vpop.f32.mrb[0].mxu0
    %4208 = vmatprep.mubr.bf16.mxu0 0
    %4209 = vmatmul.mubr.bf16.gmra.mrb[0].mxu0 %v4140
    %v4210 = vpop.f32.mrb[0].mxu0
    %v4211 = vadd.f32 0.0, %v4210
    %v4212 = vpop.f32.mrb[0].mxu0
    %v4213 = vpop.f32.mrb[0].mxu0
    %v4214 = vadd.f32 0.0, %v4213
    %v4215 = vpop.f32.mrb[0].mxu0
    %4216 = vmatprep.mubr.bf16.mxu0 0
    %4217 = vmatmul.mubr.bf16.gmra.mrb[0].mxu0 %v4143
    %v4218 = vpop.f32.mrb[0].mxu0
    %v4219 = vadd.f32 0.0, %v4218
    %v4220 = vpop.f32.mrb[0].mxu0
    %v4221 = vpop.f32.mrb[0].mxu0
    %v4222 = vadd.f32 0.0, %v4221
    %v4223 = vpop.f32.mrb[0].mxu0
    %4224 = vmatprep.mubr.bf16.mxu0 0
    %4225 = vmatmul.mubr.bf16.gmra.mrb[0].mxu0 %v4146
    %v4226 = vpop.f32.mrb[0].mxu0
    %v4227 = vadd.f32 0.0, %v4226
    %v4228 = vpop.f32.mrb[0].mxu0
    %v4229 = vpop.f32.mrb[0].mxu0
    %v4230 = vadd.f32 0.0, %v4229
    %v4231 = vpop.f32.mrb[0].mxu0
    %4232 = vmatprep.mubr.bf16.mxu0 0
    %4233 = vmatmul.mubr.bf16.gmra.mrb[0].mxu0 %v4149
    %v4234 = vpop.f32.mrb[0].mxu0
    %v4235 = vadd.f32 0.0, %v4234
    %v4236 = vpop.f32.mrb[0].mxu0
    %v4237 = vpop.f32.mrb[0].mxu0
    %v4238 = vadd.f32 0.0, %v4237
    %v4239 = vpop.f32.mrb[0].mxu0
    %4240 = vmatprep.mubr.bf16.mxu0 0
    %4241 = vmatmul.mubr.bf16.gmra.mrb[0].mxu0 %v4152
    %v4242 = vpop.f32.mrb[0].mxu0
    %v4243 = vadd.f32 0.0, %v4242
    %v4244 = vpop.f32.mrb[0].mxu0
    %v4245 = vpop.f32.mrb[0].mxu0
    %v4246 = vadd.f32 0.0, %v4245
    %v4247 = vpop.f32.mrb[0].mxu0
    %4248 = vmatprep.mubr.bf16.mxu0 0
    %4249 = vmatmul.mubr.bf16.gmra.mrb[0].mxu0 %v4155
    %v4250 = vpop.f32.mrb[0].mxu0
    %v4251 = vadd.f32 0.0, %v4250
    %v4252 = vpop.f32.mrb[0].mxu0
    %v4253 = vpop.f32.mrb[0].mxu0
    %v4254 = vadd.f32 0.0, %v4253
    %v4255 = vpop.f32.mrb[0].mxu0
    %4256 = vdwg.mxu0
    %v4257 = vadd.f32 %v3720, %v4195
    %v4258 = vadd.f32 %v3721, %v4198
    %v4259 = vadd.f32 %v3722, %v4203
    %v4260 = vadd.f32 %v3723, %v4206
    %v4261 = vadd.f32 %v3724, %v4211
    %v4262 = vadd.f32 %v3725, %v4214
    %v4263 = vadd.f32 %v3726, %v4219
    %v4264 = vadd.f32 %v3727, %v4222
    %v4265 = vadd.f32 %v3728, %v4227
    %v4266 = vadd.f32 %v3729, %v4230
    %v4267 = vadd.f32 %v3730, %v4235
    %v4268 = vadd.f32 %v3731, %v4238
    %v4269 = vadd.f32 %v3732, %v4243
    %v4270 = vadd.f32 %v3733, %v4246
    %v4271 = vadd.f32 %v3734, %v4251
    %v4272 = vadd.f32 %v3735, %v4254
    %s4273 = scalar_lea.vmem [#allocation2], 1792
    %v4274 = vld [vmem:[%s4273] sm:$0xff]
    %v4275 = vld [vmem:[%s4273 + $0x8] sm:$0xff]
    %v4276 = vld [vmem:[%s4273 + $0x10] sm:$0xff]
    %v4277 = vld [vmem:[%s4273 + $0x18] sm:$0xff]
    %v4278 = vld [vmem:[%s4273 + $0x20] sm:$0xff]
    %v4279 = vld [vmem:[%s4273 + $0x28] sm:$0xff]
    %v4280 = vld [vmem:[%s4273 + $0x30] sm:$0xff]
    %v4281 = vld [vmem:[%s4273 + $0x38] sm:$0xff]
    %v4282 = vld [vmem:[%s4273 + $0x40] sm:$0xff]
    %v4283 = vld [vmem:[%s4273 + $0x48] sm:$0xff]
    %v4284 = vld [vmem:[%s4273 + $0x50] sm:$0xff]
    %v4285 = vld [vmem:[%s4273 + $0x58] sm:$0xff]
    %v4286 = vld [vmem:[%s4273 + $0x60] sm:$0xff]
    %v4287 = vld [vmem:[%s4273 + $0x68] sm:$0xff]
    %v4288 = vld [vmem:[%s4273 + $0x70] sm:$0xff]
    %v4289 = vld [vmem:[%s4273 + $0x78] sm:$0xff]
    %v4290 = vld [vmem:[%s4273 + $0x80] sm:$0xff]
    %v4291 = vld [vmem:[%s4273 + $0x88] sm:$0xff]
    %v4292 = vld [vmem:[%s4273 + $0x90] sm:$0xff]
    %v4293 = vld [vmem:[%s4273 + $0x98] sm:$0xff]
    %v4294 = vld [vmem:[%s4273 + $0xa0] sm:$0xff]
    %v4295 = vld [vmem:[%s4273 + $0xa8] sm:$0xff]
    %v4296 = vld [vmem:[%s4273 + $0xb0] sm:$0xff]
    %v4297 = vld [vmem:[%s4273 + $0xb8] sm:$0xff]
    %v4298 = vld [vmem:[%s4273 + $0xc0] sm:$0xff]
    %v4299 = vld [vmem:[%s4273 + $0xc8] sm:$0xff]
    %v4300 = vld [vmem:[%s4273 + $0xd0] sm:$0xff]
    %v4301 = vld [vmem:[%s4273 + $0xd8] sm:$0xff]
    %v4302 = vld [vmem:[%s4273 + $0xe0] sm:$0xff]
    %v4303 = vld [vmem:[%s4273 + $0xe8] sm:$0xff]
    %v4304 = vld [vmem:[%s4273 + $0xf0] sm:$0xff]
    %v4305 = vld [vmem:[%s4273 + $0xf8] sm:$0xff]
    %v4338 = vunpack.c.l.b16 %v4274
    %v4339 = vunpack.c.h.b16 %v4274
    %v4340 = vunpack.c.l.b16 %v4275
    %v4341 = vunpack.c.h.b16 %v4275
    %v4342 = vunpack.c.l.b16 %v4276
    %v4343 = vunpack.c.h.b16 %v4276
    %v4344 = vunpack.c.l.b16 %v4277
    %v4345 = vunpack.c.h.b16 %v4277
    %v4346 = vunpack.c.l.b16 %v4278
    %v4347 = vunpack.c.h.b16 %v4278
    %v4348 = vunpack.c.l.b16 %v4279
    %v4349 = vunpack.c.h.b16 %v4279
    %v4350 = vunpack.c.l.b16 %v4280
    %v4351 = vunpack.c.h.b16 %v4280
    %v4352 = vunpack.c.l.b16 %v4281
    %v4353 = vunpack.c.h.b16 %v4281
    %v4354 = vunpack.c.l.b16 %v4282
    %v4355 = vunpack.c.h.b16 %v4282
    %v4356 = vunpack.c.l.b16 %v4283
    %v4357 = vunpack.c.h.b16 %v4283
    %v4358 = vunpack.c.l.b16 %v4284
    %v4359 = vunpack.c.h.b16 %v4284
    %v4360 = vunpack.c.l.b16 %v4285
    %v4361 = vunpack.c.h.b16 %v4285
    %v4362 = vunpack.c.l.b16 %v4286
    %v4363 = vunpack.c.h.b16 %v4286
    %v4364 = vunpack.c.l.b16 %v4287
    %v4365 = vunpack.c.h.b16 %v4287
    %v4366 = vunpack.c.l.b16 %v4288
    %v4367 = vunpack.c.h.b16 %v4288
    %v4368 = vunpack.c.l.b16 %v4289
    %v4369 = vunpack.c.h.b16 %v4289
    %v4370 = vunpack.c.l.b16 %v4290
    %v4371 = vunpack.c.h.b16 %v4290
    %v4372 = vunpack.c.l.b16 %v4291
    %v4373 = vunpack.c.h.b16 %v4291
    %v4374 = vunpack.c.l.b16 %v4292
    %v4375 = vunpack.c.h.b16 %v4292
    %v4376 = vunpack.c.l.b16 %v4293
    %v4377 = vunpack.c.h.b16 %v4293
    %v4378 = vunpack.c.l.b16 %v4294
    %v4379 = vunpack.c.h.b16 %v4294
    %v4380 = vunpack.c.l.b16 %v4295
    %v4381 = vunpack.c.h.b16 %v4295
    %v4382 = vunpack.c.l.b16 %v4296
    %v4383 = vunpack.c.h.b16 %v4296
    %v4384 = vunpack.c.l.b16 %v4297
    %v4385 = vunpack.c.h.b16 %v4297
    %v4386 = vunpack.c.l.b16 %v4298
    %v4387 = vunpack.c.h.b16 %v4298
    %v4388 = vunpack.c.l.b16 %v4299
    %v4389 = vunpack.c.h.b16 %v4299
    %v4390 = vunpack.c.l.b16 %v4300
    %v4391 = vunpack.c.h.b16 %v4300
    %v4392 = vunpack.c.l.b16 %v4301
    %v4393 = vunpack.c.h.b16 %v4301
    %v4394 = vunpack.c.l.b16 %v4302
    %v4395 = vunpack.c.h.b16 %v4302
    %v4396 = vunpack.c.l.b16 %v4303
    %v4397 = vunpack.c.h.b16 %v4303
    %v4398 = vunpack.c.l.b16 %v4304
    %v4399 = vunpack.c.h.b16 %v4304
    %v4400 = vunpack.c.l.b16 %v4305
    %v4401 = vunpack.c.h.b16 %v4305
    %v4402 = vpack.c.b16 %v4342, %v4338
    %v4403 = vpack.c.b16 %v4343, %v4339
    %v4404 = vpack.c.b16 %v4344, %v4340
    %v4405 = vpack.c.b16 %v4345, %v4341
    %v4406 = vpack.c.b16 %v4350, %v4346
    %v4407 = vpack.c.b16 %v4351, %v4347
    %v4408 = vpack.c.b16 %v4352, %v4348
    %v4409 = vpack.c.b16 %v4353, %v4349
    %v4410 = vpack.c.b16 %v4358, %v4354
    %v4411 = vpack.c.b16 %v4359, %v4355
    %v4412 = vpack.c.b16 %v4360, %v4356
    %v4413 = vpack.c.b16 %v4361, %v4357
    %v4414 = vpack.c.b16 %v4366, %v4362
    %v4415 = vpack.c.b16 %v4367, %v4363
    %v4416 = vpack.c.b16 %v4368, %v4364
    %v4417 = vpack.c.b16 %v4369, %v4365
    %v4418 = vpack.c.b16 %v4374, %v4370
    %v4419 = vpack.c.b16 %v4375, %v4371
    %v4420 = vpack.c.b16 %v4376, %v4372
    %v4421 = vpack.c.b16 %v4377, %v4373
    %v4422 = vpack.c.b16 %v4382, %v4378
    %v4423 = vpack.c.b16 %v4383, %v4379
    %v4424 = vpack.c.b16 %v4384, %v4380
    %v4425 = vpack.c.b16 %v4385, %v4381
    %v4426 = vpack.c.b16 %v4390, %v4386
    %v4427 = vpack.c.b16 %v4391, %v4387
    %v4428 = vpack.c.b16 %v4392, %v4388
    %v4429 = vpack.c.b16 %v4393, %v4389
    %v4430 = vpack.c.b16 %v4398, %v4394
    %v4431 = vpack.c.b16 %v4399, %v4395
    %v4432 = vpack.c.b16 %v4400, %v4396
    %v4433 = vpack.c.b16 %v4401, %v4397
    %4466 = vmatprep.subr.bf16.mxu0 0
    %4467 = vmatpush1.bf16.msra.mxu0 %v674
    %4468 = vmatprep.subr.bf16.mxu0 0
    %4469 = vmatpush1.bf16.msra.mxu0 %v675
    %4470 = vmatprep.subr.bf16.mxu0 0
    %4471 = vmatpush1.bf16.msra.mxu0 %v676
    %4472 = vmatprep.subr.bf16.mxu0 0
    %4473 = vmatpush1.bf16.msra.mxu0 %v677
    %4474 = vmatprep.subr.bf16.mxu0 0
    %4475 = vmatpush1.bf16.msra.mxu0 %v678
    %4476 = vmatprep.subr.bf16.mxu0 0
    %4477 = vmatpush1.bf16.msra.mxu0 %v679
    %4478 = vmatprep.subr.bf16.mxu0 0
    %4479 = vmatpush1.bf16.msra.mxu0 %v680
    %4480 = vmatprep.subr.bf16.mxu0 0
    %4481 = vmatpush1.bf16.msra.mxu0 %v681
    %4482 = vmatprep.subr.bf16.mxu0 0
    %4483 = vmatpush1.bf16.msra.mxu0 %v682
    %4484 = vmatprep.subr.bf16.mxu0 0
    %4485 = vmatpush1.bf16.msra.mxu0 %v683
    %4486 = vmatprep.subr.bf16.mxu0 0
    %4487 = vmatpush1.bf16.msra.mxu0 %v684
    %4488 = vmatprep.subr.bf16.mxu0 0
    %4489 = vmatpush1.bf16.msra.mxu0 %v685
    %4490 = vmatprep.subr.bf16.mxu0 0
    %4491 = vmatpush1.bf16.msra.mxu0 %v686
    %4492 = vmatprep.subr.bf16.mxu0 0
    %4493 = vmatpush1.bf16.msra.mxu0 %v687
    %4494 = vmatprep.subr.bf16.mxu0 0
    %4495 = vmatpush1.bf16.msra.mxu0 %v688
    %4496 = vmatprep.subr.bf16.mxu0 0
    %4497 = vmatpush1.bf16.msra.mxu0 %v689
    %4498 = vmatprep.mubr.bf16.mxu0 %v4403
    %4499 = vmatmul.mubr.bf16.gmra.mrb[0].mxu0 %v4402
    %v4500 = vpop.f32.mrb[0].mxu0
    %v4501 = vadd.f32 0.0, %v4500
    %v4502 = vpop.f32.mrb[0].mxu0
    %v4503 = vpop.f32.mrb[0].mxu0
    %v4504 = vadd.f32 0.0, %v4503
    %v4505 = vpop.f32.mrb[0].mxu0
    %4506 = vmatprep.mubr.bf16.mxu0 %v4407
    %4507 = vmatmul.mubr.bf16.gmra.mrb[0].mxu0 %v4406
    %v4508 = vpop.f32.mrb[0].mxu0
    %v4509 = vadd.f32 0.0, %v4508
    %v4510 = vpop.f32.mrb[0].mxu0
    %v4511 = vpop.f32.mrb[0].mxu0
    %v4512 = vadd.f32 0.0, %v4511
    %v4513 = vpop.f32.mrb[0].mxu0
    %4514 = vmatprep.mubr.bf16.mxu0 %v4411
    %4515 = vmatmul.mubr.bf16.gmra.mrb[0].mxu0 %v4410
    %v4516 = vpop.f32.mrb[0].mxu0
    %v4517 = vadd.f32 0.0, %v4516
    %v4518 = vpop.f32.mrb[0].mxu0
    %v4519 = vpop.f32.mrb[0].mxu0
    %v4520 = vadd.f32 0.0, %v4519
    %v4521 = vpop.f32.mrb[0].mxu0
    %4522 = vmatprep.mubr.bf16.mxu0 %v4415
    %4523 = vmatmul.mubr.bf16.gmra.mrb[0].mxu0 %v4414
    %v4524 = vpop.f32.mrb[0].mxu0
    %v4525 = vadd.f32 0.0, %v4524
    %v4526 = vpop.f32.mrb[0].mxu0
    %v4527 = vpop.f32.mrb[0].mxu0
    %v4528 = vadd.f32 0.0, %v4527
    %v4529 = vpop.f32.mrb[0].mxu0
    %4530 = vmatprep.mubr.bf16.mxu0 %v4419
    %4531 = vmatmul.mubr.bf16.gmra.mrb[0].mxu0 %v4418
    %v4532 = vpop.f32.mrb[0].mxu0
    %v4533 = vadd.f32 0.0, %v4532
    %v4534 = vpop.f32.mrb[0].mxu0
    %v4535 = vpop.f32.mrb[0].mxu0
    %v4536 = vadd.f32 0.0, %v4535
    %v4537 = vpop.f32.mrb[0].mxu0
    %4538 = vmatprep.mubr.bf16.mxu0 %v4423
    %4539 = vmatmul.mubr.bf16.gmra.mrb[0].mxu0 %v4422
    %v4540 = vpop.f32.mrb[0].mxu0
    %v4541 = vadd.f32 0.0, %v4540
    %v4542 = vpop.f32.mrb[0].mxu0
    %v4543 = vpop.f32.mrb[0].mxu0
    %v4544 = vadd.f32 0.0, %v4543
    %v4545 = vpop.f32.mrb[0].mxu0
    %4546 = vmatprep.mubr.bf16.mxu0 %v4427
    %4547 = vmatmul.mubr.bf16.gmra.mrb[0].mxu0 %v4426
    %v4548 = vpop.f32.mrb[0].mxu0
    %v4549 = vadd.f32 0.0, %v4548
    %v4550 = vpop.f32.mrb[0].mxu0
    %v4551 = vpop.f32.mrb[0].mxu0
    %v4552 = vadd.f32 0.0, %v4551
    %v4553 = vpop.f32.mrb[0].mxu0
    %4554 = vmatprep.mubr.bf16.mxu0 %v4431
    %4555 = vmatmul.mubr.bf16.gmra.mrb[0].mxu0 %v4430
    %v4556 = vpop.f32.mrb[0].mxu0
    %v4557 = vadd.f32 0.0, %v4556
    %v4558 = vpop.f32.mrb[0].mxu0
    %v4559 = vpop.f32.mrb[0].mxu0
    %v4560 = vadd.f32 0.0, %v4559
    %v4561 = vpop.f32.mrb[0].mxu0
    %4562 = vdwg.mxu0
    %4563 = vmatprep.subr.bf16.mxu0 0
    %4564 = vmatpush1.bf16.msra.mxu0 %v690
    %4565 = vmatprep.subr.bf16.mxu0 0
    %4566 = vmatpush1.bf16.msra.mxu0 %v691
    %4567 = vmatprep.subr.bf16.mxu0 0
    %4568 = vmatpush1.bf16.msra.mxu0 %v692
    %4569 = vmatprep.subr.bf16.mxu0 0
    %4570 = vmatpush1.bf16.msra.mxu0 %v693
    %4571 = vmatprep.subr.bf16.mxu0 0
    %4572 = vmatpush1.bf16.msra.mxu0 %v694
    %4573 = vmatprep.subr.bf16.mxu0 0
    %4574 = vmatpush1.bf16.msra.mxu0 %v695
    %4575 = vmatprep.subr.bf16.mxu0 0
    %4576 = vmatpush1.bf16.msra.mxu0 %v696
    %4577 = vmatprep.subr.bf16.mxu0 0
    %4578 = vmatpush1.bf16.msra.mxu0 %v697
    %4579 = vmatprep.subr.bf16.mxu0 0
    %4580 = vmatpush1.bf16.msra.mxu0 %v698
    %4581 = vmatprep.subr.bf16.mxu0 0
    %4582 = vmatpush1.bf16.msra.mxu0 %v699
    %4583 = vmatprep.subr.bf16.mxu0 0
    %4584 = vmatpush1.bf16.msra.mxu0 %v700
    %4585 = vmatprep.subr.bf16.mxu0 0
    %4586 = vmatpush1.bf16.msra.mxu0 %v701
    %4587 = vmatprep.subr.bf16.mxu0 0
    %4588 = vmatpush1.bf16.msra.mxu0 %v702
    %4589 = vmatprep.subr.bf16.mxu0 0
    %4590 = vmatpush1.bf16.msra.mxu0 %v703
    %4591 = vmatprep.subr.bf16.mxu0 0
    %4592 = vmatpush1.bf16.msra.mxu0 %v704
    %4593 = vmatprep.subr.bf16.mxu0 0
    %4594 = vmatpush1.bf16.msra.mxu0 %v705
    %4595 = vmatprep.mubr.bf16.mxu0 %v4405
    %4596 = vmatmul.mubr.bf16.gmra.mrb[0].mxu0 %v4404
    %v4597 = vpop.f32.mrb[0].mxu0
    %v4598 = vadd.f32 %v4501, %v4597
    %v4599 = vpop.f32.mrb[0].mxu0
    %v4600 = vpop.f32.mrb[0].mxu0
    %v4601 = vadd.f32 %v4504, %v4600
    %v4602 = vpop.f32.mrb[0].mxu0
    %4603 = vmatprep.mubr.bf16.mxu0 %v4409
    %4604 = vmatmul.mubr.bf16.gmra.mrb[0].mxu0 %v4408
    %v4605 = vpop.f32.mrb[0].mxu0
    %v4606 = vadd.f32 %v4509, %v4605
    %v4607 = vpop.f32.mrb[0].mxu0
    %v4608 = vpop.f32.mrb[0].mxu0
    %v4609 = vadd.f32 %v4512, %v4608
    %v4610 = vpop.f32.mrb[0].mxu0
    %4611 = vmatprep.mubr.bf16.mxu0 %v4413
    %4612 = vmatmul.mubr.bf16.gmra.mrb[0].mxu0 %v4412
    %v4613 = vpop.f32.mrb[0].mxu0
    %v4614 = vadd.f32 %v4517, %v4613
    %v4615 = vpop.f32.mrb[0].mxu0
    %v4616 = vpop.f32.mrb[0].mxu0
    %v4617 = vadd.f32 %v4520, %v4616
    %v4618 = vpop.f32.mrb[0].mxu0
    %4619 = vmatprep.mubr.bf16.mxu0 %v4417
    %4620 = vmatmul.mubr.bf16.gmra.mrb[0].mxu0 %v4416
    %v4621 = vpop.f32.mrb[0].mxu0
    %v4622 = vadd.f32 %v4525, %v4621
    %v4623 = vpop.f32.mrb[0].mxu0
    %v4624 = vpop.f32.mrb[0].mxu0
    %v4625 = vadd.f32 %v4528, %v4624
    %v4626 = vpop.f32.mrb[0].mxu0
    %4627 = vmatprep.mubr.bf16.mxu0 %v4421
    %4628 = vmatmul.mubr.bf16.gmra.mrb[0].mxu0 %v4420
    %v4629 = vpop.f32.mrb[0].mxu0
    %v4630 = vadd.f32 %v4533, %v4629
    %v4631 = vpop.f32.mrb[0].mxu0
    %v4632 = vpop.f32.mrb[0].mxu0
    %v4633 = vadd.f32 %v4536, %v4632
    %v4634 = vpop.f32.mrb[0].mxu0
    %4635 = vmatprep.mubr.bf16.mxu0 %v4425
    %4636 = vmatmul.mubr.bf16.gmra.mrb[0].mxu0 %v4424
    %v4637 = vpop.f32.mrb[0].mxu0
    %v4638 = vadd.f32 %v4541, %v4637
    %v4639 = vpop.f32.mrb[0].mxu0
    %v4640 = vpop.f32.mrb[0].mxu0
    %v4641 = vadd.f32 %v4544, %v4640
    %v4642 = vpop.f32.mrb[0].mxu0
    %4643 = vmatprep.mubr.bf16.mxu0 %v4429
    %4644 = vmatmul.mubr.bf16.gmra.mrb[0].mxu0 %v4428
    %v4645 = vpop.f32.mrb[0].mxu0
    %v4646 = vadd.f32 %v4549, %v4645
    %v4647 = vpop.f32.mrb[0].mxu0
    %v4648 = vpop.f32.mrb[0].mxu0
    %v4649 = vadd.f32 %v4552, %v4648
    %v4650 = vpop.f32.mrb[0].mxu0
    %4651 = vmatprep.mubr.bf16.mxu0 %v4433
    %4652 = vmatmul.mubr.bf16.gmra.mrb[0].mxu0 %v4432
    %v4653 = vpop.f32.mrb[0].mxu0
    %v4654 = vadd.f32 %v4557, %v4653
    %v4655 = vpop.f32.mrb[0].mxu0
    %v4656 = vpop.f32.mrb[0].mxu0
    %v4657 = vadd.f32 %v4560, %v4656
    %v4658 = vpop.f32.mrb[0].mxu0
    %4659 = vdwg.mxu0
    %v4660 = vpack.c.bf16 %v4601, %v4598
    %v4661 = vpack.c.bf16 %v4609, %v4606
    %v4662 = vpack.c.bf16 %v4617, %v4614
    %v4663 = vpack.c.bf16 %v4625, %v4622
    %v4664 = vpack.c.bf16 %v4633, %v4630
    %v4665 = vpack.c.bf16 %v4641, %v4638
    %v4666 = vpack.c.bf16 %v4649, %v4646
    %v4667 = vpack.c.bf16 %v4657, %v4654
    %s4668 = scalar_lea.vmem %s2, 14
    %v4669 = vld [vmem:[%s4668] sm:$0x3]
    %v4671 = vsel %vm1338, %v4660, 0
    %v4674 = vsel %vm1338, %v4661, 0
    %v4677 = vsel %vm1338, %v4662, 0
    %v4680 = vsel %vm1338, %v4663, 0
    %v4683 = vsel %vm1338, %v4664, 0
    %v4686 = vsel %vm1338, %v4665, 0
    %v4689 = vsel %vm1338, %v4666, 0
    %v4692 = vsel %vm1338, %v4667, 0
    %v4695 = vsel %vm1363, %v4669, 0
    %4697 = vmatprep.subr.bf16.mxu0 0
    %4698 = vmatpush1.bf16.msra.mxu0 %v4695
    %4699 = vmatprep.subr.bf16.mxu0 0
    %4700 = vmatpush1.bf16.msra.mxu0 0
    %4701 = vmatprep.subr.bf16.mxu0 0
    %4702 = vmatpush1.bf16.msra.mxu0 0
    %4703 = vmatprep.subr.bf16.mxu0 0
    %4704 = vmatpush1.bf16.msra.mxu0 0
    %4705 = vmatprep.subr.bf16.mxu0 0
    %4706 = vmatpush1.bf16.msra.mxu0 0
    %4707 = vmatprep.subr.bf16.mxu0 0
    %4708 = vmatpush1.bf16.msra.mxu0 0
    %4709 = vmatprep.subr.bf16.mxu0 0
    %4710 = vmatpush1.bf16.msra.mxu0 0
    %4711 = vmatprep.subr.bf16.mxu0 0
    %4712 = vmatpush1.bf16.msra.mxu0 0
    %4713 = vmatprep.subr.bf16.mxu0 0
    %4714 = vmatpush1.bf16.msra.mxu0 0
    %4715 = vmatprep.subr.bf16.mxu0 0
    %4716 = vmatpush1.bf16.msra.mxu0 0
    %4717 = vmatprep.subr.bf16.mxu0 0
    %4718 = vmatpush1.bf16.msra.mxu0 0
    %4719 = vmatprep.subr.bf16.mxu0 0
    %4720 = vmatpush1.bf16.msra.mxu0 0
    %4721 = vmatprep.subr.bf16.mxu0 0
    %4722 = vmatpush1.bf16.msra.mxu0 0
    %4723 = vmatprep.subr.bf16.mxu0 0
    %4724 = vmatpush1.bf16.msra.mxu0 0
    %4725 = vmatprep.subr.bf16.mxu0 0
    %4726 = vmatpush1.bf16.msra.mxu0 0
    %4727 = vmatprep.subr.bf16.mxu0 0
    %4728 = vmatpush1.bf16.msra.mxu0 0
    %4729 = vmatprep.mubr.bf16.mxu0 0
    %4730 = vmatmul.mubr.bf16.gmra.mrb[0].mxu0 %v4671
    %v4731 = vpop.f32.mrb[0].mxu0
    %v4732 = vadd.f32 0.0, %v4731
    %v4733 = vpop.f32.mrb[0].mxu0
    %v4734 = vpop.f32.mrb[0].mxu0
    %v4735 = vadd.f32 0.0, %v4734
    %v4736 = vpop.f32.mrb[0].mxu0
    %4737 = vmatprep.mubr.bf16.mxu0 0
    %4738 = vmatmul.mubr.bf16.gmra.mrb[0].mxu0 %v4674
    %v4739 = vpop.f32.mrb[0].mxu0
    %v4740 = vadd.f32 0.0, %v4739
    %v4741 = vpop.f32.mrb[0].mxu0
    %v4742 = vpop.f32.mrb[0].mxu0
    %v4743 = vadd.f32 0.0, %v4742
    %v4744 = vpop.f32.mrb[0].mxu0
    %4745 = vmatprep.mubr.bf16.mxu0 0
    %4746 = vmatmul.mubr.bf16.gmra.mrb[0].mxu0 %v4677
    %v4747 = vpop.f32.mrb[0].mxu0
    %v4748 = vadd.f32 0.0, %v4747
    %v4749 = vpop.f32.mrb[0].mxu0
    %v4750 = vpop.f32.mrb[0].mxu0
    %v4751 = vadd.f32 0.0, %v4750
    %v4752 = vpop.f32.mrb[0].mxu0
    %4753 = vmatprep.mubr.bf16.mxu0 0
    %4754 = vmatmul.mubr.bf16.gmra.mrb[0].mxu0 %v4680
    %v4755 = vpop.f32.mrb[0].mxu0
    %v4756 = vadd.f32 0.0, %v4755
    %v4757 = vpop.f32.mrb[0].mxu0
    %v4758 = vpop.f32.mrb[0].mxu0
    %v4759 = vadd.f32 0.0, %v4758
    %v4760 = vpop.f32.mrb[0].mxu0
    %4761 = vmatprep.mubr.bf16.mxu0 0
    %4762 = vmatmul.mubr.bf16.gmra.mrb[0].mxu0 %v4683
    %v4763 = vpop.f32.mrb[0].mxu0
    %v4764 = vadd.f32 0.0, %v4763
    %v4765 = vpop.f32.mrb[0].mxu0
    %v4766 = vpop.f32.mrb[0].mxu0
    %v4767 = vadd.f32 0.0, %v4766
    %v4768 = vpop.f32.mrb[0].mxu0
    %4769 = vmatprep.mubr.bf16.mxu0 0
    %4770 = vmatmul.mubr.bf16.gmra.mrb[0].mxu0 %v4686
    %v4771 = vpop.f32.mrb[0].mxu0
    %v4772 = vadd.f32 0.0, %v4771
    %v4773 = vpop.f32.mrb[0].mxu0
    %v4774 = vpop.f32.mrb[0].mxu0
    %v4775 = vadd.f32 0.0, %v4774
    %v4776 = vpop.f32.mrb[0].mxu0
    %4777 = vmatprep.mubr.bf16.mxu0 0
    %4778 = vmatmul.mubr.bf16.gmra.mrb[0].mxu0 %v4689
    %v4779 = vpop.f32.mrb[0].mxu0
    %v4780 = vadd.f32 0.0, %v4779
    %v4781 = vpop.f32.mrb[0].mxu0
    %v4782 = vpop.f32.mrb[0].mxu0
    %v4783 = vadd.f32 0.0, %v4782
    %v4784 = vpop.f32.mrb[0].mxu0
    %4785 = vmatprep.mubr.bf16.mxu0 0
    %4786 = vmatmul.mubr.bf16.gmra.mrb[0].mxu0 %v4692
    %v4787 = vpop.f32.mrb[0].mxu0
    %v4788 = vadd.f32 0.0, %v4787
    %v4789 = vpop.f32.mrb[0].mxu0
    %v4790 = vpop.f32.mrb[0].mxu0
    %v4791 = vadd.f32 0.0, %v4790
    %v4792 = vpop.f32.mrb[0].mxu0
    %4793 = vdwg.mxu0
    %v4794 = vadd.f32 %v4257, %v4732
    %v4795 = vadd.f32 %v4258, %v4735
    %v4796 = vadd.f32 %v4259, %v4740
    %v4797 = vadd.f32 %v4260, %v4743
    %v4798 = vadd.f32 %v4261, %v4748
    %v4799 = vadd.f32 %v4262, %v4751
    %v4800 = vadd.f32 %v4263, %v4756
    %v4801 = vadd.f32 %v4264, %v4759
    %v4802 = vadd.f32 %v4265, %v4764
    %v4803 = vadd.f32 %v4266, %v4767
    %v4804 = vadd.f32 %v4267, %v4772
    %v4805 = vadd.f32 %v4268, %v4775
    %v4806 = vadd.f32 %v4269, %v4780
    %v4807 = vadd.f32 %v4270, %v4783
    %v4808 = vadd.f32 %v4271, %v4788
    %v4809 = vadd.f32 %v4272, %v4791
    %s4810 = scalar_lea.vmem [#allocation2], 2048
    %v4811 = vld [vmem:[%s4810] sm:$0xff]
    %v4812 = vld [vmem:[%s4810 + $0x8] sm:$0xff]
    %v4813 = vld [vmem:[%s4810 + $0x10] sm:$0xff]
    %v4814 = vld [vmem:[%s4810 + $0x18] sm:$0xff]
    %v4815 = vld [vmem:[%s4810 + $0x20] sm:$0xff]
    %v4816 = vld [vmem:[%s4810 + $0x28] sm:$0xff]
    %v4817 = vld [vmem:[%s4810 + $0x30] sm:$0xff]
    %v4818 = vld [vmem:[%s4810 + $0x38] sm:$0xff]
    %v4819 = vld [vmem:[%s4810 + $0x40] sm:$0xff]
    %v4820 = vld [vmem:[%s4810 + $0x48] sm:$0xff]
    %v4821 = vld [vmem:[%s4810 + $0x50] sm:$0xff]
    %v4822 = vld [vmem:[%s4810 + $0x58] sm:$0xff]
    %v4823 = vld [vmem:[%s4810 + $0x60] sm:$0xff]
    %v4824 = vld [vmem:[%s4810 + $0x68] sm:$0xff]
    %v4825 = vld [vmem:[%s4810 + $0x70] sm:$0xff]
    %v4826 = vld [vmem:[%s4810 + $0x78] sm:$0xff]
    %v4827 = vld [vmem:[%s4810 + $0x80] sm:$0xff]
    %v4828 = vld [vmem:[%s4810 + $0x88] sm:$0xff]
    %v4829 = vld [vmem:[%s4810 + $0x90] sm:$0xff]
    %v4830 = vld [vmem:[%s4810 + $0x98] sm:$0xff]
    %v4831 = vld [vmem:[%s4810 + $0xa0] sm:$0xff]
    %v4832 = vld [vmem:[%s4810 + $0xa8] sm:$0xff]
    %v4833 = vld [vmem:[%s4810 + $0xb0] sm:$0xff]
    %v4834 = vld [vmem:[%s4810 + $0xb8] sm:$0xff]
    %v4835 = vld [vmem:[%s4810 + $0xc0] sm:$0xff]
    %v4836 = vld [vmem:[%s4810 + $0xc8] sm:$0xff]
    %v4837 = vld [vmem:[%s4810 + $0xd0] sm:$0xff]
    %v4838 = vld [vmem:[%s4810 + $0xd8] sm:$0xff]
    %v4839 = vld [vmem:[%s4810 + $0xe0] sm:$0xff]
    %v4840 = vld [vmem:[%s4810 + $0xe8] sm:$0xff]
    %v4841 = vld [vmem:[%s4810 + $0xf0] sm:$0xff]
    %v4842 = vld [vmem:[%s4810 + $0xf8] sm:$0xff]
    %v4875 = vunpack.c.l.b16 %v4811
    %v4876 = vunpack.c.h.b16 %v4811
    %v4877 = vunpack.c.l.b16 %v4812
    %v4878 = vunpack.c.h.b16 %v4812
    %v4879 = vunpack.c.l.b16 %v4813
    %v4880 = vunpack.c.h.b16 %v4813
    %v4881 = vunpack.c.l.b16 %v4814
    %v4882 = vunpack.c.h.b16 %v4814
    %v4883 = vunpack.c.l.b16 %v4815
    %v4884 = vunpack.c.h.b16 %v4815
    %v4885 = vunpack.c.l.b16 %v4816
    %v4886 = vunpack.c.h.b16 %v4816
    %v4887 = vunpack.c.l.b16 %v4817
    %v4888 = vunpack.c.h.b16 %v4817
    %v4889 = vunpack.c.l.b16 %v4818
    %v4890 = vunpack.c.h.b16 %v4818
    %v4891 = vunpack.c.l.b16 %v4819
    %v4892 = vunpack.c.h.b16 %v4819
    %v4893 = vunpack.c.l.b16 %v4820
    %v4894 = vunpack.c.h.b16 %v4820
    %v4895 = vunpack.c.l.b16 %v4821
    %v4896 = vunpack.c.h.b16 %v4821
    %v4897 = vunpack.c.l.b16 %v4822
    %v4898 = vunpack.c.h.b16 %v4822
    %v4899 = vunpack.c.l.b16 %v4823
    %v4900 = vunpack.c.h.b16 %v4823
    %v4901 = vunpack.c.l.b16 %v4824
    %v4902 = vunpack.c.h.b16 %v4824
    %v4903 = vunpack.c.l.b16 %v4825
    %v4904 = vunpack.c.h.b16 %v4825
    %v4905 = vunpack.c.l.b16 %v4826
    %v4906 = vunpack.c.h.b16 %v4826
    %v4907 = vunpack.c.l.b16 %v4827
    %v4908 = vunpack.c.h.b16 %v4827
    %v4909 = vunpack.c.l.b16 %v4828
    %v4910 = vunpack.c.h.b16 %v4828
    %v4911 = vunpack.c.l.b16 %v4829
    %v4912 = vunpack.c.h.b16 %v4829
    %v4913 = vunpack.c.l.b16 %v4830
    %v4914 = vunpack.c.h.b16 %v4830
    %v4915 = vunpack.c.l.b16 %v4831
    %v4916 = vunpack.c.h.b16 %v4831
    %v4917 = vunpack.c.l.b16 %v4832
    %v4918 = vunpack.c.h.b16 %v4832
    %v4919 = vunpack.c.l.b16 %v4833
    %v4920 = vunpack.c.h.b16 %v4833
    %v4921 = vunpack.c.l.b16 %v4834
    %v4922 = vunpack.c.h.b16 %v4834
    %v4923 = vunpack.c.l.b16 %v4835
    %v4924 = vunpack.c.h.b16 %v4835
    %v4925 = vunpack.c.l.b16 %v4836
    %v4926 = vunpack.c.h.b16 %v4836
    %v4927 = vunpack.c.l.b16 %v4837
    %v4928 = vunpack.c.h.b16 %v4837
    %v4929 = vunpack.c.l.b16 %v4838
    %v4930 = vunpack.c.h.b16 %v4838
    %v4931 = vunpack.c.l.b16 %v4839
    %v4932 = vunpack.c.h.b16 %v4839
    %v4933 = vunpack.c.l.b16 %v4840
    %v4934 = vunpack.c.h.b16 %v4840
    %v4935 = vunpack.c.l.b16 %v4841
    %v4936 = vunpack.c.h.b16 %v4841
    %v4937 = vunpack.c.l.b16 %v4842
    %v4938 = vunpack.c.h.b16 %v4842
    %v4939 = vpack.c.b16 %v4879, %v4875
    %v4940 = vpack.c.b16 %v4880, %v4876
    %v4941 = vpack.c.b16 %v4881, %v4877
    %v4942 = vpack.c.b16 %v4882, %v4878
    %v4943 = vpack.c.b16 %v4887, %v4883
    %v4944 = vpack.c.b16 %v4888, %v4884
    %v4945 = vpack.c.b16 %v4889, %v4885
    %v4946 = vpack.c.b16 %v4890, %v4886
    %v4947 = vpack.c.b16 %v4895, %v4891
    %v4948 = vpack.c.b16 %v4896, %v4892
    %v4949 = vpack.c.b16 %v4897, %v4893
    %v4950 = vpack.c.b16 %v4898, %v4894
    %v4951 = vpack.c.b16 %v4903, %v4899
    %v4952 = vpack.c.b16 %v4904, %v4900
    %v4953 = vpack.c.b16 %v4905, %v4901
    %v4954 = vpack.c.b16 %v4906, %v4902
    %v4955 = vpack.c.b16 %v4911, %v4907
    %v4956 = vpack.c.b16 %v4912, %v4908
    %v4957 = vpack.c.b16 %v4913, %v4909
    %v4958 = vpack.c.b16 %v4914, %v4910
    %v4959 = vpack.c.b16 %v4919, %v4915
    %v4960 = vpack.c.b16 %v4920, %v4916
    %v4961 = vpack.c.b16 %v4921, %v4917
    %v4962 = vpack.c.b16 %v4922, %v4918
    %v4963 = vpack.c.b16 %v4927, %v4923
    %v4964 = vpack.c.b16 %v4928, %v4924
    %v4965 = vpack.c.b16 %v4929, %v4925
    %v4966 = vpack.c.b16 %v4930, %v4926
    %v4967 = vpack.c.b16 %v4935, %v4931
    %v4968 = vpack.c.b16 %v4936, %v4932
    %v4969 = vpack.c.b16 %v4937, %v4933
    %v4970 = vpack.c.b16 %v4938, %v4934
    %5003 = vmatprep.subr.bf16.mxu0 0
    %5004 = vmatpush1.bf16.msra.mxu0 %v674
    %5005 = vmatprep.subr.bf16.mxu0 0
    %5006 = vmatpush1.bf16.msra.mxu0 %v675
    %5007 = vmatprep.subr.bf16.mxu0 0
    %5008 = vmatpush1.bf16.msra.mxu0 %v676
    %5009 = vmatprep.subr.bf16.mxu0 0
    %5010 = vmatpush1.bf16.msra.mxu0 %v677
    %5011 = vmatprep.subr.bf16.mxu0 0
    %5012 = vmatpush1.bf16.msra.mxu0 %v678
    %5013 = vmatprep.subr.bf16.mxu0 0
    %5014 = vmatpush1.bf16.msra.mxu0 %v679
    %5015 = vmatprep.subr.bf16.mxu0 0
    %5016 = vmatpush1.bf16.msra.mxu0 %v680
    %5017 = vmatprep.subr.bf16.mxu0 0
    %5018 = vmatpush1.bf16.msra.mxu0 %v681
    %5019 = vmatprep.subr.bf16.mxu0 0
    %5020 = vmatpush1.bf16.msra.mxu0 %v682
    %5021 = vmatprep.subr.bf16.mxu0 0
    %5022 = vmatpush1.bf16.msra.mxu0 %v683
    %5023 = vmatprep.subr.bf16.mxu0 0
    %5024 = vmatpush1.bf16.msra.mxu0 %v684
    %5025 = vmatprep.subr.bf16.mxu0 0
    %5026 = vmatpush1.bf16.msra.mxu0 %v685
    %5027 = vmatprep.subr.bf16.mxu0 0
    %5028 = vmatpush1.bf16.msra.mxu0 %v686
    %5029 = vmatprep.subr.bf16.mxu0 0
    %5030 = vmatpush1.bf16.msra.mxu0 %v687
    %5031 = vmatprep.subr.bf16.mxu0 0
    %5032 = vmatpush1.bf16.msra.mxu0 %v688
    %5033 = vmatprep.subr.bf16.mxu0 0
    %5034 = vmatpush1.bf16.msra.mxu0 %v689
    %5035 = vmatprep.mubr.bf16.mxu0 %v4940
    %5036 = vmatmul.mubr.bf16.gmra.mrb[0].mxu0 %v4939
    %v5037 = vpop.f32.mrb[0].mxu0
    %v5038 = vadd.f32 0.0, %v5037
    %v5039 = vpop.f32.mrb[0].mxu0
    %v5040 = vpop.f32.mrb[0].mxu0
    %v5041 = vadd.f32 0.0, %v5040
    %v5042 = vpop.f32.mrb[0].mxu0
    %5043 = vmatprep.mubr.bf16.mxu0 %v4944
    %5044 = vmatmul.mubr.bf16.gmra.mrb[0].mxu0 %v4943
    %v5045 = vpop.f32.mrb[0].mxu0
    %v5046 = vadd.f32 0.0, %v5045
    %v5047 = vpop.f32.mrb[0].mxu0
    %v5048 = vpop.f32.mrb[0].mxu0
    %v5049 = vadd.f32 0.0, %v5048
    %v5050 = vpop.f32.mrb[0].mxu0
    %5051 = vmatprep.mubr.bf16.mxu0 %v4948
    %5052 = vmatmul.mubr.bf16.gmra.mrb[0].mxu0 %v4947
    %v5053 = vpop.f32.mrb[0].mxu0
    %v5054 = vadd.f32 0.0, %v5053
    %v5055 = vpop.f32.mrb[0].mxu0
    %v5056 = vpop.f32.mrb[0].mxu0
    %v5057 = vadd.f32 0.0, %v5056
    %v5058 = vpop.f32.mrb[0].mxu0
    %5059 = vmatprep.mubr.bf16.mxu0 %v4952
    %5060 = vmatmul.mubr.bf16.gmra.mrb[0].mxu0 %v4951
    %v5061 = vpop.f32.mrb[0].mxu0
    %v5062 = vadd.f32 0.0, %v5061
    %v5063 = vpop.f32.mrb[0].mxu0
    %v5064 = vpop.f32.mrb[0].mxu0
    %v5065 = vadd.f32 0.0, %v5064
    %v5066 = vpop.f32.mrb[0].mxu0
    %5067 = vmatprep.mubr.bf16.mxu0 %v4956
    %5068 = vmatmul.mubr.bf16.gmra.mrb[0].mxu0 %v4955
    %v5069 = vpop.f32.mrb[0].mxu0
    %v5070 = vadd.f32 0.0, %v5069
    %v5071 = vpop.f32.mrb[0].mxu0
    %v5072 = vpop.f32.mrb[0].mxu0
    %v5073 = vadd.f32 0.0, %v5072
    %v5074 = vpop.f32.mrb[0].mxu0
    %5075 = vmatprep.mubr.bf16.mxu0 %v4960
    %5076 = vmatmul.mubr.bf16.gmra.mrb[0].mxu0 %v4959
    %v5077 = vpop.f32.mrb[0].mxu0
    %v5078 = vadd.f32 0.0, %v5077
    %v5079 = vpop.f32.mrb[0].mxu0
    %v5080 = vpop.f32.mrb[0].mxu0
    %v5081 = vadd.f32 0.0, %v5080
    %v5082 = vpop.f32.mrb[0].mxu0
    %5083 = vmatprep.mubr.bf16.mxu0 %v4964
    %5084 = vmatmul.mubr.bf16.gmra.mrb[0].mxu0 %v4963
    %v5085 = vpop.f32.mrb[0].mxu0
    %v5086 = vadd.f32 0.0, %v5085
    %v5087 = vpop.f32.mrb[0].mxu0
    %v5088 = vpop.f32.mrb[0].mxu0
    %v5089 = vadd.f32 0.0, %v5088
    %v5090 = vpop.f32.mrb[0].mxu0
    %5091 = vmatprep.mubr.bf16.mxu0 %v4968
    %5092 = vmatmul.mubr.bf16.gmra.mrb[0].mxu0 %v4967
    %v5093 = vpop.f32.mrb[0].mxu0
    %v5094 = vadd.f32 0.0, %v5093
    %v5095 = vpop.f32.mrb[0].mxu0
    %v5096 = vpop.f32.mrb[0].mxu0
    %v5097 = vadd.f32 0.0, %v5096
    %v5098 = vpop.f32.mrb[0].mxu0
    %5099 = vdwg.mxu0
    %5100 = vmatprep.subr.bf16.mxu0 0
    %5101 = vmatpush1.bf16.msra.mxu0 %v690
    %5102 = vmatprep.subr.bf16.mxu0 0
    %5103 = vmatpush1.bf16.msra.mxu0 %v691
    %5104 = vmatprep.subr.bf16.mxu0 0
    %5105 = vmatpush1.bf16.msra.mxu0 %v692
    %5106 = vmatprep.subr.bf16.mxu0 0
    %5107 = vmatpush1.bf16.msra.mxu0 %v693
    %5108 = vmatprep.subr.bf16.mxu0 0
    %5109 = vmatpush1.bf16.msra.mxu0 %v694
    %5110 = vmatprep.subr.bf16.mxu0 0
    %5111 = vmatpush1.bf16.msra.mxu0 %v695
    %5112 = vmatprep.subr.bf16.mxu0 0
    %5113 = vmatpush1.bf16.msra.mxu0 %v696
    %5114 = vmatprep.subr.bf16.mxu0 0
    %5115 = vmatpush1.bf16.msra.mxu0 %v697
    %5116 = vmatprep.subr.bf16.mxu0 0
    %5117 = vmatpush1.bf16.msra.mxu0 %v698
    %5118 = vmatprep.subr.bf16.mxu0 0
    %5119 = vmatpush1.bf16.msra.mxu0 %v699
    %5120 = vmatprep.subr.bf16.mxu0 0
    %5121 = vmatpush1.bf16.msra.mxu0 %v700
    %5122 = vmatprep.subr.bf16.mxu0 0
    %5123 = vmatpush1.bf16.msra.mxu0 %v701
    %5124 = vmatprep.subr.bf16.mxu0 0
    %5125 = vmatpush1.bf16.msra.mxu0 %v702
    %5126 = vmatprep.subr.bf16.mxu0 0
    %5127 = vmatpush1.bf16.msra.mxu0 %v703
    %5128 = vmatprep.subr.bf16.mxu0 0
    %5129 = vmatpush1.bf16.msra.mxu0 %v704
    %5130 = vmatprep.subr.bf16.mxu0 0
    %5131 = vmatpush1.bf16.msra.mxu0 %v705
    %5132 = vmatprep.mubr.bf16.mxu0 %v4942
    %5133 = vmatmul.mubr.bf16.gmra.mrb[0].mxu0 %v4941
    %v5134 = vpop.f32.mrb[0].mxu0
    %v5135 = vadd.f32 %v5038, %v5134
    %v5136 = vpop.f32.mrb[0].mxu0
    %v5137 = vpop.f32.mrb[0].mxu0
    %v5138 = vadd.f32 %v5041, %v5137
    %v5139 = vpop.f32.mrb[0].mxu0
    %5140 = vmatprep.mubr.bf16.mxu0 %v4946
    %5141 = vmatmul.mubr.bf16.gmra.mrb[0].mxu0 %v4945
    %v5142 = vpop.f32.mrb[0].mxu0
    %v5143 = vadd.f32 %v5046, %v5142
    %v5144 = vpop.f32.mrb[0].mxu0
    %v5145 = vpop.f32.mrb[0].mxu0
    %v5146 = vadd.f32 %v5049, %v5145
    %v5147 = vpop.f32.mrb[0].mxu0
    %5148 = vmatprep.mubr.bf16.mxu0 %v4950
    %5149 = vmatmul.mubr.bf16.gmra.mrb[0].mxu0 %v4949
    %v5150 = vpop.f32.mrb[0].mxu0
    %v5151 = vadd.f32 %v5054, %v5150
    %v5152 = vpop.f32.mrb[0].mxu0
    %v5153 = vpop.f32.mrb[0].mxu0
    %v5154 = vadd.f32 %v5057, %v5153
    %v5155 = vpop.f32.mrb[0].mxu0
    %5156 = vmatprep.mubr.bf16.mxu0 %v4954
    %5157 = vmatmul.mubr.bf16.gmra.mrb[0].mxu0 %v4953
    %v5158 = vpop.f32.mrb[0].mxu0
    %v5159 = vadd.f32 %v5062, %v5158
    %v5160 = vpop.f32.mrb[0].mxu0
    %v5161 = vpop.f32.mrb[0].mxu0
    %v5162 = vadd.f32 %v5065, %v5161
    %v5163 = vpop.f32.mrb[0].mxu0
    %5164 = vmatprep.mubr.bf16.mxu0 %v4958
    %5165 = vmatmul.mubr.bf16.gmra.mrb[0].mxu0 %v4957
    %v5166 = vpop.f32.mrb[0].mxu0
    %v5167 = vadd.f32 %v5070, %v5166
    %v5168 = vpop.f32.mrb[0].mxu0
    %v5169 = vpop.f32.mrb[0].mxu0
    %v5170 = vadd.f32 %v5073, %v5169
    %v5171 = vpop.f32.mrb[0].mxu0
    %5172 = vmatprep.mubr.bf16.mxu0 %v4962
    %5173 = vmatmul.mubr.bf16.gmra.mrb[0].mxu0 %v4961
    %v5174 = vpop.f32.mrb[0].mxu0
    %v5175 = vadd.f32 %v5078, %v5174
    %v5176 = vpop.f32.mrb[0].mxu0
    %v5177 = vpop.f32.mrb[0].mxu0
    %v5178 = vadd.f32 %v5081, %v5177
    %v5179 = vpop.f32.mrb[0].mxu0
    %5180 = vmatprep.mubr.bf16.mxu0 %v4966
    %5181 = vmatmul.mubr.bf16.gmra.mrb[0].mxu0 %v4965
    %v5182 = vpop.f32.mrb[0].mxu0
    %v5183 = vadd.f32 %v5086, %v5182
    %v5184 = vpop.f32.mrb[0].mxu0
    %v5185 = vpop.f32.mrb[0].mxu0
    %v5186 = vadd.f32 %v5089, %v5185
    %v5187 = vpop.f32.mrb[0].mxu0
    %5188 = vmatprep.mubr.bf16.mxu0 %v4970
    %5189 = vmatmul.mubr.bf16.gmra.mrb[0].mxu0 %v4969
    %v5190 = vpop.f32.mrb[0].mxu0
    %v5191 = vadd.f32 %v5094, %v5190
    %v5192 = vpop.f32.mrb[0].mxu0
    %v5193 = vpop.f32.mrb[0].mxu0
    %v5194 = vadd.f32 %v5097, %v5193
    %v5195 = vpop.f32.mrb[0].mxu0
    %5196 = vdwg.mxu0
    %v5197 = vpack.c.bf16 %v5138, %v5135
    %v5198 = vpack.c.bf16 %v5146, %v5143
    %v5199 = vpack.c.bf16 %v5154, %v5151
    %v5200 = vpack.c.bf16 %v5162, %v5159
    %v5201 = vpack.c.bf16 %v5170, %v5167
    %v5202 = vpack.c.bf16 %v5178, %v5175
    %v5203 = vpack.c.bf16 %v5186, %v5183
    %v5204 = vpack.c.bf16 %v5194, %v5191
    %s5205 = scalar_lea.vmem %s2, 16
    %v5206 = vld [vmem:[%s5205] sm:$0x3]
    %v5208 = vsel %vm1338, %v5197, 0
    %v5211 = vsel %vm1338, %v5198, 0
    %v5214 = vsel %vm1338, %v5199, 0
    %v5217 = vsel %vm1338, %v5200, 0
    %v5220 = vsel %vm1338, %v5201, 0
    %v5223 = vsel %vm1338, %v5202, 0
    %v5226 = vsel %vm1338, %v5203, 0
    %v5229 = vsel %vm1338, %v5204, 0
    %v5232 = vsel %vm1363, %v5206, 0
    %5234 = vmatprep.subr.bf16.mxu0 0
    %5235 = vmatpush1.bf16.msra.mxu0 %v5232
    %5236 = vmatprep.subr.bf16.mxu0 0
    %5237 = vmatpush1.bf16.msra.mxu0 0
    %5238 = vmatprep.subr.bf16.mxu0 0
    %5239 = vmatpush1.bf16.msra.mxu0 0
    %5240 = vmatprep.subr.bf16.mxu0 0
    %5241 = vmatpush1.bf16.msra.mxu0 0
    %5242 = vmatprep.subr.bf16.mxu0 0
    %5243 = vmatpush1.bf16.msra.mxu0 0
    %5244 = vmatprep.subr.bf16.mxu0 0
    %5245 = vmatpush1.bf16.msra.mxu0 0
    %5246 = vmatprep.subr.bf16.mxu0 0
    %5247 = vmatpush1.bf16.msra.mxu0 0
    %5248 = vmatprep.subr.bf16.mxu0 0
    %5249 = vmatpush1.bf16.msra.mxu0 0
    %5250 = vmatprep.subr.bf16.mxu0 0
    %5251 = vmatpush1.bf16.msra.mxu0 0
    %5252 = vmatprep.subr.bf16.mxu0 0
    %5253 = vmatpush1.bf16.msra.mxu0 0
    %5254 = vmatprep.subr.bf16.mxu0 0
    %5255 = vmatpush1.bf16.msra.mxu0 0
    %5256 = vmatprep.subr.bf16.mxu0 0
    %5257 = vmatpush1.bf16.msra.mxu0 0
    %5258 = vmatprep.subr.bf16.mxu0 0
    %5259 = vmatpush1.bf16.msra.mxu0 0
    %5260 = vmatprep.subr.bf16.mxu0 0
    %5261 = vmatpush1.bf16.msra.mxu0 0
    %5262 = vmatprep.subr.bf16.mxu0 0
    %5263 = vmatpush1.bf16.msra.mxu0 0
    %5264 = vmatprep.subr.bf16.mxu0 0
    %5265 = vmatpush1.bf16.msra.mxu0 0
    %5266 = vmatprep.mubr.bf16.mxu0 0
    %5267 = vmatmul.mubr.bf16.gmra.mrb[0].mxu0 %v5208
    %v5268 = vpop.f32.mrb[0].mxu0
    %v5269 = vadd.f32 0.0, %v5268
    %v5270 = vpop.f32.mrb[0].mxu0
    %v5271 = vpop.f32.mrb[0].mxu0
    %v5272 = vadd.f32 0.0, %v5271
    %v5273 = vpop.f32.mrb[0].mxu0
    %5274 = vmatprep.mubr.bf16.mxu0 0
    %5275 = vmatmul.mubr.bf16.gmra.mrb[0].mxu0 %v5211
    %v5276 = vpop.f32.mrb[0].mxu0
    %v5277 = vadd.f32 0.0, %v5276
    %v5278 = vpop.f32.mrb[0].mxu0
    %v5279 = vpop.f32.mrb[0].mxu0
    %v5280 = vadd.f32 0.0, %v5279
    %v5281 = vpop.f32.mrb[0].mxu0
    %5282 = vmatprep.mubr.bf16.mxu0 0
    %5283 = vmatmul.mubr.bf16.gmra.mrb[0].mxu0 %v5214
    %v5284 = vpop.f32.mrb[0].mxu0
    %v5285 = vadd.f32 0.0, %v5284
    %v5286 = vpop.f32.mrb[0].mxu0
    %v5287 = vpop.f32.mrb[0].mxu0
    %v5288 = vadd.f32 0.0, %v5287
    %v5289 = vpop.f32.mrb[0].mxu0
    %5290 = vmatprep.mubr.bf16.mxu0 0
    %5291 = vmatmul.mubr.bf16.gmra.mrb[0].mxu0 %v5217
    %v5292 = vpop.f32.mrb[0].mxu0
    %v5293 = vadd.f32 0.0, %v5292
    %v5294 = vpop.f32.mrb[0].mxu0
    %v5295 = vpop.f32.mrb[0].mxu0
    %v5296 = vadd.f32 0.0, %v5295
    %v5297 = vpop.f32.mrb[0].mxu0
    %5298 = vmatprep.mubr.bf16.mxu0 0
    %5299 = vmatmul.mubr.bf16.gmra.mrb[0].mxu0 %v5220
    %v5300 = vpop.f32.mrb[0].mxu0
    %v5301 = vadd.f32 0.0, %v5300
    %v5302 = vpop.f32.mrb[0].mxu0
    %v5303 = vpop.f32.mrb[0].mxu0
    %v5304 = vadd.f32 0.0, %v5303
    %v5305 = vpop.f32.mrb[0].mxu0
    %5306 = vmatprep.mubr.bf16.mxu0 0
    %5307 = vmatmul.mubr.bf16.gmra.mrb[0].mxu0 %v5223
    %v5308 = vpop.f32.mrb[0].mxu0
    %v5309 = vadd.f32 0.0, %v5308
    %v5310 = vpop.f32.mrb[0].mxu0
    %v5311 = vpop.f32.mrb[0].mxu0
    %v5312 = vadd.f32 0.0, %v5311
    %v5313 = vpop.f32.mrb[0].mxu0
    %5314 = vmatprep.mubr.bf16.mxu0 0
    %5315 = vmatmul.mubr.bf16.gmra.mrb[0].mxu0 %v5226
    %v5316 = vpop.f32.mrb[0].mxu0
    %v5317 = vadd.f32 0.0, %v5316
    %v5318 = vpop.f32.mrb[0].mxu0
    %v5319 = vpop.f32.mrb[0].mxu0
    %v5320 = vadd.f32 0.0, %v5319
    %v5321 = vpop.f32.mrb[0].mxu0
    %5322 = vmatprep.mubr.bf16.mxu0 0
    %5323 = vmatmul.mubr.bf16.gmra.mrb[0].mxu0 %v5229
    %v5324 = vpop.f32.mrb[0].mxu0
    %v5325 = vadd.f32 0.0, %v5324
    %v5326 = vpop.f32.mrb[0].mxu0
    %v5327 = vpop.f32.mrb[0].mxu0
    %v5328 = vadd.f32 0.0, %v5327
    %v5329 = vpop.f32.mrb[0].mxu0
    %5330 = vdwg.mxu0
    %v5331 = vadd.f32 %v4794, %v5269
    %v5332 = vadd.f32 %v4795, %v5272
    %v5333 = vadd.f32 %v4796, %v5277
    %v5334 = vadd.f32 %v4797, %v5280
    %v5335 = vadd.f32 %v4798, %v5285
    %v5336 = vadd.f32 %v4799, %v5288
    %v5337 = vadd.f32 %v4800, %v5293
    %v5338 = vadd.f32 %v4801, %v5296
    %v5339 = vadd.f32 %v4802, %v5301
    %v5340 = vadd.f32 %v4803, %v5304
    %v5341 = vadd.f32 %v4804, %v5309
    %v5342 = vadd.f32 %v4805, %v5312
    %v5343 = vadd.f32 %v4806, %v5317
    %v5344 = vadd.f32 %v4807, %v5320
    %v5345 = vadd.f32 %v4808, %v5325
    %v5346 = vadd.f32 %v4809, %v5328
    %v5347 = vld [vmem:[#allocation5] sm:$0x1]
    %v5349 = vlaneseq
    %v5350 = vshrl.u32 %v5349, 7
    %v5351 = vsub.s32 0, %v5350
    %v5352 = vrot.slane %v5347, %v5351
    %v5354 = vadd.f32 %v5331, %v5352
    %v5355 = vadd.f32 %v5332, %v5352
    %v5356 = vadd.f32 %v5333, %v5352
    %v5357 = vadd.f32 %v5334, %v5352
    %v5358 = vadd.f32 %v5335, %v5352
    %v5359 = vadd.f32 %v5336, %v5352
    %v5360 = vadd.f32 %v5337, %v5352
    %v5361 = vadd.f32 %v5338, %v5352
    %v5362 = vadd.f32 %v5339, %v5352
    %v5363 = vadd.f32 %v5340, %v5352
    %v5364 = vadd.f32 %v5341, %v5352
    %v5365 = vadd.f32 %v5342, %v5352
    %v5366 = vadd.f32 %v5343, %v5352
    %v5367 = vadd.f32 %v5344, %v5352
    %v5368 = vadd.f32 %v5345, %v5352
    %v5369 = vadd.f32 %v5346, %v5352
    %vm5370 = vcmask 64512
    %v5371 = vsel %vm5370, %v5354, 0.0
    %v5372 = vsel %vm5370, %v5355, 0.0
    %v5373 = vadd.f32 %v5371, %v5372
    %v5374 = vsel %vm5370, %v5356, 0.0
    %v5375 = vadd.f32 %v5373, %v5374
    %v5376 = vsel %vm5370, %v5357, 0.0
    %v5377 = vadd.f32 %v5375, %v5376
    %v5378 = vsel %vm5370, %v5358, 0.0
    %v5379 = vadd.f32 %v5377, %v5378
    %v5380 = vsel %vm5370, %v5359, 0.0
    %v5381 = vadd.f32 %v5379, %v5380
    %v5382 = vsel %vm5370, %v5360, 0.0
    %v5383 = vadd.f32 %v5381, %v5382
    %v5384 = vsel %vm5370, %v5361, 0.0
    %v5385 = vadd.f32 %v5383, %v5384
    %v5386 = vsel %vm5370, %v5362, 0.0
    %v5387 = vadd.f32 %v5385, %v5386
    %v5388 = vsel %vm5370, %v5363, 0.0
    %v5389 = vadd.f32 %v5387, %v5388
    %v5390 = vsel %vm5370, %v5364, 0.0
    %v5391 = vadd.f32 %v5389, %v5390
    %v5392 = vsel %vm5370, %v5365, 0.0
    %v5393 = vadd.f32 %v5391, %v5392
    %v5394 = vsel %vm5370, %v5366, 0.0
    %v5395 = vadd.f32 %v5393, %v5394
    %v5396 = vsel %vm5370, %v5367, 0.0
    %v5397 = vadd.f32 %v5395, %v5396
    %v5398 = vsel %vm5370, %v5368, 0.0
    %v5399 = vadd.f32 %v5397, %v5398
    %v5400 = vsel %vm5370, %v5369, 0.0
    %v5401 = vadd.f32 %v5399, %v5400
    %v5402 = vrot.slane %v5401, 4
    %v5403 = vadd.f32 %v5401, %v5402
    %v5404 = vrot.slane %v5403, 2
    %v5405 = vadd.f32 %v5403, %v5404
    %v5406 = vrot.slane %v5405, 1
    %v5407 = vadd.f32 %v5405, %v5406
    %v5408 = vrcp.pop 128.0
    %v5409 = vmul.f32 %v5407, %v5408
    %v5410 = vmul.f32 %v5354, %v5354
    %v5411 = vmul.f32 %v5355, %v5355
    %v5412 = vmul.f32 %v5356, %v5356
    %v5413 = vmul.f32 %v5357, %v5357
    %v5414 = vmul.f32 %v5358, %v5358
    %v5415 = vmul.f32 %v5359, %v5359
    %v5416 = vmul.f32 %v5360, %v5360
    %v5417 = vmul.f32 %v5361, %v5361
    %v5418 = vmul.f32 %v5362, %v5362
    %v5419 = vmul.f32 %v5363, %v5363
    %v5420 = vmul.f32 %v5364, %v5364
    %v5421 = vmul.f32 %v5365, %v5365
    %v5422 = vmul.f32 %v5366, %v5366
    %v5423 = vmul.f32 %v5367, %v5367
    %v5424 = vmul.f32 %v5368, %v5368
    %v5425 = vmul.f32 %v5369, %v5369
    %v5426 = vsel %vm5370, %v5410, 0.0
    %v5427 = vsel %vm5370, %v5411, 0.0
    %v5428 = vadd.f32 %v5426, %v5427
    %v5429 = vsel %vm5370, %v5412, 0.0
    %v5430 = vadd.f32 %v5428, %v5429
    %v5431 = vsel %vm5370, %v5413, 0.0
    %v5432 = vadd.f32 %v5430, %v5431
    %v5433 = vsel %vm5370, %v5414, 0.0
    %v5434 = vadd.f32 %v5432, %v5433
    %v5435 = vsel %vm5370, %v5415, 0.0
    %v5436 = vadd.f32 %v5434, %v5435
    %v5437 = vsel %vm5370, %v5416, 0.0
    %v5438 = vadd.f32 %v5436, %v5437
    %v5439 = vsel %vm5370, %v5417, 0.0
    %v5440 = vadd.f32 %v5438, %v5439
    %v5441 = vsel %vm5370, %v5418, 0.0
    %v5442 = vadd.f32 %v5440, %v5441
    %v5443 = vsel %vm5370, %v5419, 0.0
    %v5444 = vadd.f32 %v5442, %v5443
    %v5445 = vsel %vm5370, %v5420, 0.0
    %v5446 = vadd.f32 %v5444, %v5445
    %v5447 = vsel %vm5370, %v5421, 0.0
    %v5448 = vadd.f32 %v5446, %v5447
    %v5449 = vsel %vm5370, %v5422, 0.0
    %v5450 = vadd.f32 %v5448, %v5449
    %v5451 = vsel %vm5370, %v5423, 0.0
    %v5452 = vadd.f32 %v5450, %v5451
    %v5453 = vsel %vm5370, %v5424, 0.0
    %v5454 = vadd.f32 %v5452, %v5453
    %v5455 = vsel %vm5370, %v5425, 0.0
    %v5456 = vadd.f32 %v5454, %v5455
    %v5457 = vrot.slane %v5456, 4
    %v5458 = vadd.f32 %v5456, %v5457
    %v5459 = vrot.slane %v5458, 2
    %v5460 = vadd.f32 %v5458, %v5459
    %v5461 = vrot.slane %v5460, 1
    %v5462 = vadd.f32 %v5460, %v5461
    %v5463 = vmul.f32 %v5462, %v5408
    %v5464 = vmul.f32 %v5409, %v5409
    %v5465 = vsub.f32 %v5463, %v5464
    %v5466 = vmax.f32 %v5465, 0.0
    %v5467 = vsub.f32 %v5354, %v5409
    %v5468 = vsub.f32 %v5355, %v5409
    %v5469 = vsub.f32 %v5356, %v5409
    %v5470 = vsub.f32 %v5357, %v5409
    %v5471 = vsub.f32 %v5358, %v5409
    %v5472 = vsub.f32 %v5359, %v5409
    %v5473 = vsub.f32 %v5360, %v5409
    %v5474 = vsub.f32 %v5361, %v5409
    %v5475 = vsub.f32 %v5362, %v5409
    %v5476 = vsub.f32 %v5363, %v5409
    %v5477 = vsub.f32 %v5364, %v5409
    %v5478 = vsub.f32 %v5365, %v5409
    %v5479 = vsub.f32 %v5366, %v5409
    %v5480 = vsub.f32 %v5367, %v5409
    %v5481 = vsub.f32 %v5368, %v5409
    %v5482 = vsub.f32 %v5369, %v5409
    %v5483 = vadd.f32 %v5466, 1e-05
    %v5484 = vrsqrt.pop %v5483
    %v5485 = vmul.f32 %v5467, %v5484
    %v5486 = vmul.f32 %v5468, %v5484
    %v5487 = vmul.f32 %v5469, %v5484
    %v5488 = vmul.f32 %v5470, %v5484
    %v5489 = vmul.f32 %v5471, %v5484
    %v5490 = vmul.f32 %v5472, %v5484
    %v5491 = vmul.f32 %v5473, %v5484
    %v5492 = vmul.f32 %v5474, %v5484
    %v5493 = vmul.f32 %v5475, %v5484
    %v5494 = vmul.f32 %v5476, %v5484
    %v5495 = vmul.f32 %v5477, %v5484
    %v5496 = vmul.f32 %v5478, %v5484
    %v5497 = vmul.f32 %v5479, %v5484
    %v5498 = vmul.f32 %v5480, %v5484
    %v5499 = vmul.f32 %v5481, %v5484
    %v5500 = vmul.f32 %v5482, %v5484
    %v5501 = vld [vmem:[#allocation7] sm:$0x1]
    %v5503 = vlaneseq
    %v5504 = vshrl.u32 %v5503, 7
    %v5505 = vsub.s32 0, %v5504
    %v5506 = vrot.slane %v5501, %v5505
    %v5508 = vmul.f32 %v5485, %v5506
    %v5509 = vmul.f32 %v5486, %v5506
    %v5510 = vmul.f32 %v5487, %v5506
    %v5511 = vmul.f32 %v5488, %v5506
    %v5512 = vmul.f32 %v5489, %v5506
    %v5513 = vmul.f32 %v5490, %v5506
    %v5514 = vmul.f32 %v5491, %v5506
    %v5515 = vmul.f32 %v5492, %v5506
    %v5516 = vmul.f32 %v5493, %v5506
    %v5517 = vmul.f32 %v5494, %v5506
    %v5518 = vmul.f32 %v5495, %v5506
    %v5519 = vmul.f32 %v5496, %v5506
    %v5520 = vmul.f32 %v5497, %v5506
    %v5521 = vmul.f32 %v5498, %v5506
    %v5522 = vmul.f32 %v5499, %v5506
    %v5523 = vmul.f32 %v5500, %v5506
    %v5524 = vld [vmem:[#allocation8] sm:$0x1]
    %v5526 = vlaneseq
    %v5527 = vshrl.u32 %v5526, 7
    %v5528 = vsub.s32 0, %v5527
    %v5529 = vrot.slane %v5524, %v5528
    %v5531 = vadd.f32 %v5508, %v5529
    %v5532 = vadd.f32 %v5509, %v5529
    %v5533 = vadd.f32 %v5510, %v5529
    %v5534 = vadd.f32 %v5511, %v5529
    %v5535 = vadd.f32 %v5512, %v5529
    %v5536 = vadd.f32 %v5513, %v5529
    %v5537 = vadd.f32 %v5514, %v5529
    %v5538 = vadd.f32 %v5515, %v5529
    %v5539 = vadd.f32 %v5516, %v5529
    %v5540 = vadd.f32 %v5517, %v5529
    %v5541 = vadd.f32 %v5518, %v5529
    %v5542 = vadd.f32 %v5519, %v5529
    %v5543 = vadd.f32 %v5520, %v5529
    %v5544 = vadd.f32 %v5521, %v5529
    %v5545 = vadd.f32 %v5522, %v5529
    %v5546 = vadd.f32 %v5523, %v5529
    %vm5547 = vcmp.ge.f32.partialorder %v5531, 0.0
    %vm5548 = vcmp.ge.f32.partialorder %v5532, 0.0
    %vm5549 = vcmp.ge.f32.partialorder %v5533, 0.0
    %vm5550 = vcmp.ge.f32.partialorder %v5534, 0.0
    %vm5551 = vcmp.ge.f32.partialorder %v5535, 0.0
    %vm5552 = vcmp.ge.f32.partialorder %v5536, 0.0
    %vm5553 = vcmp.ge.f32.partialorder %v5537, 0.0
    %vm5554 = vcmp.ge.f32.partialorder %v5538, 0.0
    %vm5555 = vcmp.ge.f32.partialorder %v5539, 0.0
    %vm5556 = vcmp.ge.f32.partialorder %v5540, 0.0
    %vm5557 = vcmp.ge.f32.partialorder %v5541, 0.0
    %vm5558 = vcmp.ge.f32.partialorder %v5542, 0.0
    %vm5559 = vcmp.ge.f32.partialorder %v5543, 0.0
    %vm5560 = vcmp.ge.f32.partialorder %v5544, 0.0
    %vm5561 = vcmp.ge.f32.partialorder %v5545, 0.0
    %vm5562 = vcmp.ge.f32.partialorder %v5546, 0.0
    %v5563 = vmul.f32 %v5531, 0.01
    %v5564 = vmul.f32 %v5532, 0.01
    %v5565 = vmul.f32 %v5533, 0.01
    %v5566 = vmul.f32 %v5534, 0.01
    %v5567 = vmul.f32 %v5535, 0.01
    %v5568 = vmul.f32 %v5536, 0.01
    %v5569 = vmul.f32 %v5537, 0.01
    %v5570 = vmul.f32 %v5538, 0.01
    %v5571 = vmul.f32 %v5539, 0.01
    %v5572 = vmul.f32 %v5540, 0.01
    %v5573 = vmul.f32 %v5541, 0.01
    %v5574 = vmul.f32 %v5542, 0.01
    %v5575 = vmul.f32 %v5543, 0.01
    %v5576 = vmul.f32 %v5544, 0.01
    %v5577 = vmul.f32 %v5545, 0.01
    %v5578 = vmul.f32 %v5546, 0.01
    %v5579 = vsel %vm5547, %v5531, %v5563
    %v5580 = vsel %vm5548, %v5532, %v5564
    %v5581 = vsel %vm5549, %v5533, %v5565
    %v5582 = vsel %vm5550, %v5534, %v5566
    %v5583 = vsel %vm5551, %v5535, %v5567
    %v5584 = vsel %vm5552, %v5536, %v5568
    %v5585 = vsel %vm5553, %v5537, %v5569
    %v5586 = vsel %vm5554, %v5538, %v5570
    %v5587 = vsel %vm5555, %v5539, %v5571
    %v5588 = vsel %vm5556, %v5540, %v5572
    %v5589 = vsel %vm5557, %v5541, %v5573
    %v5590 = vsel %vm5558, %v5542, %v5574
    %v5591 = vsel %vm5559, %v5543, %v5575
    %v5592 = vsel %vm5560, %v5544, %v5576
    %v5593 = vsel %vm5561, %v5545, %v5577
    %v5594 = vsel %vm5562, %v5546, %v5578
    %v5595 = vpack.c.bf16 %v5580, %v5579
    %v5596 = vpack.c.bf16 %v5582, %v5581
    %v5597 = vpack.c.bf16 %v5584, %v5583
    %v5598 = vpack.c.bf16 %v5586, %v5585
    %v5599 = vpack.c.bf16 %v5588, %v5587
    %v5600 = vpack.c.bf16 %v5590, %v5589
    %v5601 = vpack.c.bf16 %v5592, %v5591
    %v5602 = vpack.c.bf16 %v5594, %v5593
    %v5603 = vld [vmem:[#allocation10] sm:$0xf]
    %v5604 = vld [vmem:[#allocation10 + $0x4] sm:$0xf]
    %v5605 = vld [vmem:[#allocation10 + $0x8] sm:$0xf]
    %v5606 = vld [vmem:[#allocation10 + $0xc] sm:$0xf]
    %v5611 = vunpack.c.l.b16 %v5603
    %v5612 = vunpack.c.l.b16 %v5604
    %v5613 = vunpack.c.l.b16 %v5605
    %v5614 = vunpack.c.l.b16 %v5606
    %v5615 = vpack.c.b16 %v5612, %v5611
    %v5616 = vpack.c.b16 %v5614, %v5613
    %5619 = vmatprep.subr.bf16.mxu0 0
    %5620 = vmatpush1.bf16.msra.mxu0 %v5595
    %5621 = vmatprep.subr.bf16.mxu0 0
    %5622 = vmatpush1.bf16.msra.mxu0 %v5596
    %5623 = vmatprep.subr.bf16.mxu0 0
    %5624 = vmatpush1.bf16.msra.mxu0 %v5597
    %5625 = vmatprep.subr.bf16.mxu0 0
    %5626 = vmatpush1.bf16.msra.mxu0 %v5598
    %5627 = vmatprep.subr.bf16.mxu0 0
    %5628 = vmatpush1.bf16.msra.mxu0 %v5599
    %5629 = vmatprep.subr.bf16.mxu0 0
    %5630 = vmatpush1.bf16.msra.mxu0 %v5600
    %5631 = vmatprep.subr.bf16.mxu0 0
    %5632 = vmatpush1.bf16.msra.mxu0 %v5601
    %5633 = vmatprep.subr.bf16.mxu0 0
    %5634 = vmatpush1.bf16.msra.mxu0 %v5602
    %5635 = vmatprep.subr.bf16.mxu0 0
    %5636 = vmatpush1.bf16.msra.mxu0 0
    %5637 = vmatprep.subr.bf16.mxu0 0
    %5638 = vmatpush1.bf16.msra.mxu0 0
    %5639 = vmatprep.subr.bf16.mxu0 0
    %5640 = vmatpush1.bf16.msra.mxu0 0
    %5641 = vmatprep.subr.bf16.mxu0 0
    %5642 = vmatpush1.bf16.msra.mxu0 0
    %5643 = vmatprep.subr.bf16.mxu0 0
    %5644 = vmatpush1.bf16.msra.mxu0 0
    %5645 = vmatprep.subr.bf16.mxu0 0
    %5646 = vmatpush1.bf16.msra.mxu0 0
    %5647 = vmatprep.subr.bf16.mxu0 0
    %5648 = vmatpush1.bf16.msra.mxu0 0
    %5649 = vmatprep.subr.bf16.mxu0 0
    %5650 = vmatpush1.bf16.msra.mxu0 0
    %5651 = vmatprep.mubr.bf16.mxu0 0
    %5652 = vmatmul.mubr.bf16.gmra.mrb[0].mxu0 %v5615
    %v5653 = vpop.f32.mrb[0].mxu0
    %v5654 = vadd.f32 0.0, %v5653
    %v5655 = vpop.f32.mrb[0].mxu0
    %v5656 = vpop.f32.mrb[0].mxu0
    %v5657 = vadd.f32 0.0, %v5656
    %v5658 = vpop.f32.mrb[0].mxu0
    %5659 = vmatprep.mubr.bf16.mxu0 0
    %5660 = vmatmul.mubr.bf16.gmra.mrb[0].mxu0 %v5616
    %v5661 = vpop.f32.mrb[0].mxu0
    %v5662 = vadd.f32 0.0, %v5661
    %v5663 = vpop.f32.mrb[0].mxu0
    %v5664 = vpop.f32.mrb[0].mxu0
    %v5665 = vadd.f32 0.0, %v5664
    %v5666 = vpop.f32.mrb[0].mxu0
    %5667 = vdwg.mxu0
    %v5668 = vpack.c.bf16 %v5657, %v5654
    %v5669 = vpack.c.bf16 %v5665, %v5662
    %v5670 = vld [vmem:[#allocation11] sm:$0xf]
    %s5671 = scalar_lea.vmem [#allocation10], 16
    %v5672 = vld [vmem:[%s5671] sm:$0xf]
    %v5673 = vld [vmem:[%s5671 + $0x4] sm:$0xf]
    %v5674 = vld [vmem:[%s5671 + $0x8] sm:$0xf]
    %v5675 = vld [vmem:[%s5671 + $0xc] sm:$0xf]
    %v5680 = vunpack.c.l.b16 %v5672
    %v5681 = vunpack.c.l.b16 %v5673
    %v5682 = vunpack.c.l.b16 %v5674
    %v5683 = vunpack.c.l.b16 %v5675
    %v5684 = vpack.c.b16 %v5681, %v5680
    %v5685 = vpack.c.b16 %v5683, %v5682
    %5688 = vmatprep.subr.bf16.mxu0 0
    %5689 = vmatpush1.bf16.msra.mxu0 %v5595
    %5690 = vmatprep.subr.bf16.mxu0 0
    %5691 = vmatpush1.bf16.msra.mxu0 %v5596
    %5692 = vmatprep.subr.bf16.mxu0 0
    %5693 = vmatpush1.bf16.msra.mxu0 %v5597
    %5694 = vmatprep.subr.bf16.mxu0 0
    %5695 = vmatpush1.bf16.msra.mxu0 %v5598
    %5696 = vmatprep.subr.bf16.mxu0 0
    %5697 = vmatpush1.bf16.msra.mxu0 %v5599
    %5698 = vmatprep.subr.bf16.mxu0 0
    %5699 = vmatpush1.bf16.msra.mxu0 %v5600
    %5700 = vmatprep.subr.bf16.mxu0 0
    %5701 = vmatpush1.bf16.msra.mxu0 %v5601
    %5702 = vmatprep.subr.bf16.mxu0 0
    %5703 = vmatpush1.bf16.msra.mxu0 %v5602
    %5704 = vmatprep.subr.bf16.mxu0 0
    %5705 = vmatpush1.bf16.msra.mxu0 0
    %5706 = vmatprep.subr.bf16.mxu0 0
    %5707 = vmatpush1.bf16.msra.mxu0 0
    %5708 = vmatprep.subr.bf16.mxu0 0
    %5709 = vmatpush1.bf16.msra.mxu0 0
    %5710 = vmatprep.subr.bf16.mxu0 0
    %5711 = vmatpush1.bf16.msra.mxu0 0
    %5712 = vmatprep.subr.bf16.mxu0 0
    %5713 = vmatpush1.bf16.msra.mxu0 0
    %5714 = vmatprep.subr.bf16.mxu0 0
    %5715 = vmatpush1.bf16.msra.mxu0 0
    %5716 = vmatprep.subr.bf16.mxu0 0
    %5717 = vmatpush1.bf16.msra.mxu0 0
    %5718 = vmatprep.subr.bf16.mxu0 0
    %5719 = vmatpush1.bf16.msra.mxu0 0
    %5720 = vmatprep.mubr.bf16.mxu0 0
    %5721 = vmatmul.mubr.bf16.gmra.mrb[0].mxu0 %v5684
    %v5722 = vpop.f32.mrb[0].mxu0
    %v5723 = vadd.f32 0.0, %v5722
    %v5724 = vpop.f32.mrb[0].mxu0
    %v5725 = vpop.f32.mrb[0].mxu0
    %v5726 = vadd.f32 0.0, %v5725
    %v5727 = vpop.f32.mrb[0].mxu0
    %5728 = vmatprep.mubr.bf16.mxu0 0
    %5729 = vmatmul.mubr.bf16.gmra.mrb[0].mxu0 %v5685
    %v5730 = vpop.f32.mrb[0].mxu0
    %v5731 = vadd.f32 0.0, %v5730
    %v5732 = vpop.f32.mrb[0].mxu0
    %v5733 = vpop.f32.mrb[0].mxu0
    %v5734 = vadd.f32 0.0, %v5733
    %v5735 = vpop.f32.mrb[0].mxu0
    %5736 = vdwg.mxu0
    %v5737 = vpack.c.bf16 %v5726, %v5723
    %v5738 = vpack.c.bf16 %v5734, %v5731
    %s5739 = scalar_lea.vmem [#allocation11], 4
    %v5740 = vld [vmem:[%s5739] sm:$0xf]
    %v5742 = vsel %vm5370, %v5737, 0
    %v5745 = vsel %vm5370, %v5738, 0
    %vm5747 = vcmask 1043456
    %v5749 = vsel %vm5747, %v5740, 0
    %5751 = vmatprep.subr.bf16.mxu0 0
    %5752 = vmatpush1.bf16.msra.mxu0 %v5749
    %5753 = vmatprep.subr.bf16.mxu0 0
    %5754 = vmatpush1.bf16.msra.mxu0 0
    %5755 = vmatprep.subr.bf16.mxu0 0
    %5756 = vmatpush1.bf16.msra.mxu0 0
    %5757 = vmatprep.subr.bf16.mxu0 0
    %5758 = vmatpush1.bf16.msra.mxu0 0
    %5759 = vmatprep.subr.bf16.mxu0 0
    %5760 = vmatpush1.bf16.msra.mxu0 0
    %5761 = vmatprep.subr.bf16.mxu0 0
    %5762 = vmatpush1.bf16.msra.mxu0 0
    %5763 = vmatprep.subr.bf16.mxu0 0
    %5764 = vmatpush1.bf16.msra.mxu0 0
    %5765 = vmatprep.subr.bf16.mxu0 0
    %5766 = vmatpush1.bf16.msra.mxu0 0
    %5767 = vmatprep.subr.bf16.mxu0 0
    %5768 = vmatpush1.bf16.msra.mxu0 0
    %5769 = vmatprep.subr.bf16.mxu0 0
    %5770 = vmatpush1.bf16.msra.mxu0 0
    %5771 = vmatprep.subr.bf16.mxu0 0
    %5772 = vmatpush1.bf16.msra.mxu0 0
    %5773 = vmatprep.subr.bf16.mxu0 0
    %5774 = vmatpush1.bf16.msra.mxu0 0
    %5775 = vmatprep.subr.bf16.mxu0 0
    %5776 = vmatpush1.bf16.msra.mxu0 0
    %5777 = vmatprep.subr.bf16.mxu0 0
    %5778 = vmatpush1.bf16.msra.mxu0 0
    %5779 = vmatprep.subr.bf16.mxu0 0
    %5780 = vmatpush1.bf16.msra.mxu0 0
    %5781 = vmatprep.subr.bf16.mxu0 0
    %5782 = vmatpush1.bf16.msra.mxu0 0
    %5783 = vmatprep.mubr.bf16.mxu0 0
    %5784 = vmatmul.mubr.bf16.gmra.mrb[0].mxu0 %v5742
    %v5785 = vpop.f32.mrb[0].mxu0
    %v5786 = vadd.f32 0.0, %v5785
    %v5787 = vpop.f32.mrb[0].mxu0
    %v5788 = vpop.f32.mrb[0].mxu0
    %v5789 = vadd.f32 0.0, %v5788
    %v5790 = vpop.f32.mrb[0].mxu0
    %5791 = vmatprep.mubr.bf16.mxu0 0
    %5792 = vmatmul.mubr.bf16.gmra.mrb[0].mxu0 %v5745
    %v5793 = vpop.f32.mrb[0].mxu0
    %v5794 = vadd.f32 0.0, %v5793
    %v5795 = vpop.f32.mrb[0].mxu0
    %v5796 = vpop.f32.mrb[0].mxu0
    %v5797 = vadd.f32 0.0, %v5796
    %v5798 = vpop.f32.mrb[0].mxu0
    %5799 = vdwg.mxu0
    %v5801 = vsel %vm5370, %v5668, 0
    %v5804 = vsel %vm5370, %v5669, 0
    %v5807 = vsel %vm5747, %v5670, 0
    %5809 = vmatprep.subr.bf16.mxu0 0
    %5810 = vmatpush1.bf16.msra.mxu0 %v5807
    %5811 = vmatprep.subr.bf16.mxu0 0
    %5812 = vmatpush1.bf16.msra.mxu0 0
    %5813 = vmatprep.subr.bf16.mxu0 0
    %5814 = vmatpush1.bf16.msra.mxu0 0
    %5815 = vmatprep.subr.bf16.mxu0 0
    %5816 = vmatpush1.bf16.msra.mxu0 0
    %5817 = vmatprep.subr.bf16.mxu0 0
    %5818 = vmatpush1.bf16.msra.mxu0 0
    %5819 = vmatprep.subr.bf16.mxu0 0
    %5820 = vmatpush1.bf16.msra.mxu0 0
    %5821 = vmatprep.subr.bf16.mxu0 0
    %5822 = vmatpush1.bf16.msra.mxu0 0
    %5823 = vmatprep.subr.bf16.mxu0 0
    %5824 = vmatpush1.bf16.msra.mxu0 0
    %5825 = vmatprep.subr.bf16.mxu0 0
    %5826 = vmatpush1.bf16.msra.mxu0 0
    %5827 = vmatprep.subr.bf16.mxu0 0
    %5828 = vmatpush1.bf16.msra.mxu0 0
    %5829 = vmatprep.subr.bf16.mxu0 0
    %5830 = vmatpush1.bf16.msra.mxu0 0
    %5831 = vmatprep.subr.bf16.mxu0 0
    %5832 = vmatpush1.bf16.msra.mxu0 0
    %5833 = vmatprep.subr.bf16.mxu0 0
    %5834 = vmatpush1.bf16.msra.mxu0 0
    %5835 = vmatprep.subr.bf16.mxu0 0
    %5836 = vmatpush1.bf16.msra.mxu0 0
    %5837 = vmatprep.subr.bf16.mxu0 0
    %5838 = vmatpush1.bf16.msra.mxu0 0
    %5839 = vmatprep.subr.bf16.mxu0 0
    %5840 = vmatpush1.bf16.msra.mxu0 0
    %5841 = vmatprep.mubr.bf16.mxu0 0
    %5842 = vmatmul.mubr.bf16.gmra.mrb[0].mxu0 %v5801
    %v5843 = vpop.f32.mrb[0].mxu0
    %v5844 = vadd.f32 %v5786, %v5843
    %v5845 = vpop.f32.mrb[0].mxu0
    %v5846 = vpop.f32.mrb[0].mxu0
    %v5847 = vadd.f32 %v5789, %v5846
    %v5848 = vpop.f32.mrb[0].mxu0
    %5849 = vmatprep.mubr.bf16.mxu0 0
    %5850 = vmatmul.mubr.bf16.gmra.mrb[0].mxu0 %v5804
    %v5851 = vpop.f32.mrb[0].mxu0
    %v5852 = vadd.f32 %v5794, %v5851
    %v5853 = vpop.f32.mrb[0].mxu0
    %v5854 = vpop.f32.mrb[0].mxu0
    %v5855 = vadd.f32 %v5797, %v5854
    %v5856 = vpop.f32.mrb[0].mxu0
    %5857 = vdwg.mxu0
    %s5858 = scalar_lea.vmem [#allocation10], 32
    %v5859 = vld [vmem:[%s5858] sm:$0xf]
    %v5860 = vld [vmem:[%s5858 + $0x4] sm:$0xf]
    %v5861 = vld [vmem:[%s5858 + $0x8] sm:$0xf]
    %v5862 = vld [vmem:[%s5858 + $0xc] sm:$0xf]
    %v5867 = vunpack.c.l.b16 %v5859
    %v5868 = vunpack.c.l.b16 %v5860
    %v5869 = vunpack.c.l.b16 %v5861
    %v5870 = vunpack.c.l.b16 %v5862
    %v5871 = vpack.c.b16 %v5868, %v5867
    %v5872 = vpack.c.b16 %v5870, %v5869
    %5875 = vmatprep.subr.bf16.mxu0 0
    %5876 = vmatpush1.bf16.msra.mxu0 %v5595
    %5877 = vmatprep.subr.bf16.mxu0 0
    %5878 = vmatpush1.bf16.msra.mxu0 %v5596
    %5879 = vmatprep.subr.bf16.mxu0 0
    %5880 = vmatpush1.bf16.msra.mxu0 %v5597
    %5881 = vmatprep.subr.bf16.mxu0 0
    %5882 = vmatpush1.bf16.msra.mxu0 %v5598
    %5883 = vmatprep.subr.bf16.mxu0 0
    %5884 = vmatpush1.bf16.msra.mxu0 %v5599
    %5885 = vmatprep.subr.bf16.mxu0 0
    %5886 = vmatpush1.bf16.msra.mxu0 %v5600
    %5887 = vmatprep.subr.bf16.mxu0 0
    %5888 = vmatpush1.bf16.msra.mxu0 %v5601
    %5889 = vmatprep.subr.bf16.mxu0 0
    %5890 = vmatpush1.bf16.msra.mxu0 %v5602
    %5891 = vmatprep.subr.bf16.mxu0 0
    %5892 = vmatpush1.bf16.msra.mxu0 0
    %5893 = vmatprep.subr.bf16.mxu0 0
    %5894 = vmatpush1.bf16.msra.mxu0 0
    %5895 = vmatprep.subr.bf16.mxu0 0
    %5896 = vmatpush1.bf16.msra.mxu0 0
    %5897 = vmatprep.subr.bf16.mxu0 0
    %5898 = vmatpush1.bf16.msra.mxu0 0
    %5899 = vmatprep.subr.bf16.mxu0 0
    %5900 = vmatpush1.bf16.msra.mxu0 0
    %5901 = vmatprep.subr.bf16.mxu0 0
    %5902 = vmatpush1.bf16.msra.mxu0 0
    %5903 = vmatprep.subr.bf16.mxu0 0
    %5904 = vmatpush1.bf16.msra.mxu0 0
    %5905 = vmatprep.subr.bf16.mxu0 0
    %5906 = vmatpush1.bf16.msra.mxu0 0
    %5907 = vmatprep.mubr.bf16.mxu0 0
    %5908 = vmatmul.mubr.bf16.gmra.mrb[0].mxu0 %v5871
    %v5909 = vpop.f32.mrb[0].mxu0
    %v5910 = vadd.f32 0.0, %v5909
    %v5911 = vpop.f32.mrb[0].mxu0
    %v5912 = vpop.f32.mrb[0].mxu0
    %v5913 = vadd.f32 0.0, %v5912
    %v5914 = vpop.f32.mrb[0].mxu0
    %5915 = vmatprep.mubr.bf16.mxu0 0
    %5916 = vmatmul.mubr.bf16.gmra.mrb[0].mxu0 %v5872
    %v5917 = vpop.f32.mrb[0].mxu0
    %v5918 = vadd.f32 0.0, %v5917
    %v5919 = vpop.f32.mrb[0].mxu0
    %v5920 = vpop.f32.mrb[0].mxu0
    %v5921 = vadd.f32 0.0, %v5920
    %v5922 = vpop.f32.mrb[0].mxu0
    %5923 = vdwg.mxu0
    %v5924 = vpack.c.bf16 %v5913, %v5910
    %v5925 = vpack.c.bf16 %v5921, %v5918
    %s5926 = scalar_lea.vmem [#allocation11], 8
    %v5927 = vld [vmem:[%s5926] sm:$0xf]
    %v5929 = vsel %vm5370, %v5924, 0
    %v5932 = vsel %vm5370, %v5925, 0
    %v5935 = vsel %vm5747, %v5927, 0
    %5937 = vmatprep.subr.bf16.mxu0 0
    %5938 = vmatpush1.bf16.msra.mxu0 %v5935
    %5939 = vmatprep.subr.bf16.mxu0 0
    %5940 = vmatpush1.bf16.msra.mxu0 0
    %5941 = vmatprep.subr.bf16.mxu0 0
    %5942 = vmatpush1.bf16.msra.mxu0 0
    %5943 = vmatprep.subr.bf16.mxu0 0
    %5944 = vmatpush1.bf16.msra.mxu0 0
    %5945 = vmatprep.subr.bf16.mxu0 0
    %5946 = vmatpush1.bf16.msra.mxu0 0
    %5947 = vmatprep.subr.bf16.mxu0 0
    %5948 = vmatpush1.bf16.msra.mxu0 0
    %5949 = vmatprep.subr.bf16.mxu0 0
    %5950 = vmatpush1.bf16.msra.mxu0 0
    %5951 = vmatprep.subr.bf16.mxu0 0
    %5952 = vmatpush1.bf16.msra.mxu0 0
    %5953 = vmatprep.subr.bf16.mxu0 0
    %5954 = vmatpush1.bf16.msra.mxu0 0
    %5955 = vmatprep.subr.bf16.mxu0 0
    %5956 = vmatpush1.bf16.msra.mxu0 0
    %5957 = vmatprep.subr.bf16.mxu0 0
    %5958 = vmatpush1.bf16.msra.mxu0 0
    %5959 = vmatprep.subr.bf16.mxu0 0
    %5960 = vmatpush1.bf16.msra.mxu0 0
    %5961 = vmatprep.subr.bf16.mxu0 0
    %5962 = vmatpush1.bf16.msra.mxu0 0
    %5963 = vmatprep.subr.bf16.mxu0 0
    %5964 = vmatpush1.bf16.msra.mxu0 0
    %5965 = vmatprep.subr.bf16.mxu0 0
    %5966 = vmatpush1.bf16.msra.mxu0 0
    %5967 = vmatprep.subr.bf16.mxu0 0
    %5968 = vmatpush1.bf16.msra.mxu0 0
    %5969 = vmatprep.mubr.bf16.mxu0 0
    %5970 = vmatmul.mubr.bf16.gmra.mrb[0].mxu0 %v5929
    %v5971 = vpop.f32.mrb[0].mxu0
    %v5972 = vadd.f32 0.0, %v5971
    %v5973 = vpop.f32.mrb[0].mxu0
    %v5974 = vpop.f32.mrb[0].mxu0
    %v5975 = vadd.f32 0.0, %v5974
    %v5976 = vpop.f32.mrb[0].mxu0
    %5977 = vmatprep.mubr.bf16.mxu0 0
    %5978 = vmatmul.mubr.bf16.gmra.mrb[0].mxu0 %v5932
    %v5979 = vpop.f32.mrb[0].mxu0
    %v5980 = vadd.f32 0.0, %v5979
    %v5981 = vpop.f32.mrb[0].mxu0
    %v5982 = vpop.f32.mrb[0].mxu0
    %v5983 = vadd.f32 0.0, %v5982
    %v5984 = vpop.f32.mrb[0].mxu0
    %5985 = vdwg.mxu0
    %v5986 = vadd.f32 %v5844, %v5972
    %v5987 = vadd.f32 %v5847, %v5975
    %v5988 = vadd.f32 %v5852, %v5980
    %v5989 = vadd.f32 %v5855, %v5983
    %s5990 = scalar_lea.vmem [#allocation10], 48
    %v5991 = vld [vmem:[%s5990] sm:$0xf]
    %v5992 = vld [vmem:[%s5990 + $0x4] sm:$0xf]
    %v5993 = vld [vmem:[%s5990 + $0x8] sm:$0xf]
    %v5994 = vld [vmem:[%s5990 + $0xc] sm:$0xf]
    %v5999 = vunpack.c.l.b16 %v5991
    %v6000 = vunpack.c.l.b16 %v5992
    %v6001 = vunpack.c.l.b16 %v5993
    %v6002 = vunpack.c.l.b16 %v5994
    %v6003 = vpack.c.b16 %v6000, %v5999
    %v6004 = vpack.c.b16 %v6002, %v6001
    %6007 = vmatprep.subr.bf16.mxu0 0
    %6008 = vmatpush1.bf16.msra.mxu0 %v5595
    %6009 = vmatprep.subr.bf16.mxu0 0
    %6010 = vmatpush1.bf16.msra.mxu0 %v5596
    %6011 = vmatprep.subr.bf16.mxu0 0
    %6012 = vmatpush1.bf16.msra.mxu0 %v5597
    %6013 = vmatprep.subr.bf16.mxu0 0
    %6014 = vmatpush1.bf16.msra.mxu0 %v5598
    %6015 = vmatprep.subr.bf16.mxu0 0
    %6016 = vmatpush1.bf16.msra.mxu0 %v5599
    %6017 = vmatprep.subr.bf16.mxu0 0
    %6018 = vmatpush1.bf16.msra.mxu0 %v5600
    %6019 = vmatprep.subr.bf16.mxu0 0
    %6020 = vmatpush1.bf16.msra.mxu0 %v5601
    %6021 = vmatprep.subr.bf16.mxu0 0
    %6022 = vmatpush1.bf16.msra.mxu0 %v5602
    %6023 = vmatprep.subr.bf16.mxu0 0
    %6024 = vmatpush1.bf16.msra.mxu0 0
    %6025 = vmatprep.subr.bf16.mxu0 0
    %6026 = vmatpush1.bf16.msra.mxu0 0
    %6027 = vmatprep.subr.bf16.mxu0 0
    %6028 = vmatpush1.bf16.msra.mxu0 0
    %6029 = vmatprep.subr.bf16.mxu0 0
    %6030 = vmatpush1.bf16.msra.mxu0 0
    %6031 = vmatprep.subr.bf16.mxu0 0
    %6032 = vmatpush1.bf16.msra.mxu0 0
    %6033 = vmatprep.subr.bf16.mxu0 0
    %6034 = vmatpush1.bf16.msra.mxu0 0
    %6035 = vmatprep.subr.bf16.mxu0 0
    %6036 = vmatpush1.bf16.msra.mxu0 0
    %6037 = vmatprep.subr.bf16.mxu0 0
    %6038 = vmatpush1.bf16.msra.mxu0 0
    %6039 = vmatprep.mubr.bf16.mxu0 0
    %6040 = vmatmul.mubr.bf16.gmra.mrb[0].mxu0 %v6003
    %v6041 = vpop.f32.mrb[0].mxu0
    %v6042 = vadd.f32 0.0, %v6041
    %v6043 = vpop.f32.mrb[0].mxu0
    %v6044 = vpop.f32.mrb[0].mxu0
    %v6045 = vadd.f32 0.0, %v6044
    %v6046 = vpop.f32.mrb[0].mxu0
    %6047 = vmatprep.mubr.bf16.mxu0 0
    %6048 = vmatmul.mubr.bf16.gmra.mrb[0].mxu0 %v6004
    %v6049 = vpop.f32.mrb[0].mxu0
    %v6050 = vadd.f32 0.0, %v6049
    %v6051 = vpop.f32.mrb[0].mxu0
    %v6052 = vpop.f32.mrb[0].mxu0
    %v6053 = vadd.f32 0.0, %v6052
    %v6054 = vpop.f32.mrb[0].mxu0
    %6055 = vdwg.mxu0
    %v6056 = vpack.c.bf16 %v6045, %v6042
    %v6057 = vpack.c.bf16 %v6053, %v6050
    %s6058 = scalar_lea.vmem [#allocation11], 12
    %v6059 = vld [vmem:[%s6058] sm:$0xf]
    %v6061 = vsel %vm5370, %v6056, 0
    %v6064 = vsel %vm5370, %v6057, 0
    %v6067 = vsel %vm5747, %v6059, 0
    %6069 = vmatprep.subr.bf16.mxu0 0
    %6070 = vmatpush1.bf16.msra.mxu0 %v6067
    %6071 = vmatprep.subr.bf16.mxu0 0
    %6072 = vmatpush1.bf16.msra.mxu0 0
    %6073 = vmatprep.subr.bf16.mxu0 0
    %6074 = vmatpush1.bf16.msra.mxu0 0
    %6075 = vmatprep.subr.bf16.mxu0 0
    %6076 = vmatpush1.bf16.msra.mxu0 0
    %6077 = vmatprep.subr.bf16.mxu0 0
    %6078 = vmatpush1.bf16.msra.mxu0 0
    %6079 = vmatprep.subr.bf16.mxu0 0
    %6080 = vmatpush1.bf16.msra.mxu0 0
    %6081 = vmatprep.subr.bf16.mxu0 0
    %6082 = vmatpush1.bf16.msra.mxu0 0
    %6083 = vmatprep.subr.bf16.mxu0 0
    %6084 = vmatpush1.bf16.msra.mxu0 0
    %6085 = vmatprep.subr.bf16.mxu0 0
    %6086 = vmatpush1.bf16.msra.mxu0 0
    %6087 = vmatprep.subr.bf16.mxu0 0
    %6088 = vmatpush1.bf16.msra.mxu0 0
    %6089 = vmatprep.subr.bf16.mxu0 0
    %6090 = vmatpush1.bf16.msra.mxu0 0
    %6091 = vmatprep.subr.bf16.mxu0 0
    %6092 = vmatpush1.bf16.msra.mxu0 0
    %6093 = vmatprep.subr.bf16.mxu0 0
    %6094 = vmatpush1.bf16.msra.mxu0 0
    %6095 = vmatprep.subr.bf16.mxu0 0
    %6096 = vmatpush1.bf16.msra.mxu0 0
    %6097 = vmatprep.subr.bf16.mxu0 0
    %6098 = vmatpush1.bf16.msra.mxu0 0
    %6099 = vmatprep.subr.bf16.mxu0 0
    %6100 = vmatpush1.bf16.msra.mxu0 0
    %6101 = vmatprep.mubr.bf16.mxu0 0
    %6102 = vmatmul.mubr.bf16.gmra.mrb[0].mxu0 %v6061
    %v6103 = vpop.f32.mrb[0].mxu0
    %v6104 = vadd.f32 0.0, %v6103
    %v6105 = vpop.f32.mrb[0].mxu0
    %v6106 = vpop.f32.mrb[0].mxu0
    %v6107 = vadd.f32 0.0, %v6106
    %v6108 = vpop.f32.mrb[0].mxu0
    %6109 = vmatprep.mubr.bf16.mxu0 0
    %6110 = vmatmul.mubr.bf16.gmra.mrb[0].mxu0 %v6064
    %v6111 = vpop.f32.mrb[0].mxu0
    %v6112 = vadd.f32 0.0, %v6111
    %v6113 = vpop.f32.mrb[0].mxu0
    %v6114 = vpop.f32.mrb[0].mxu0
    %v6115 = vadd.f32 0.0, %v6114
    %v6116 = vpop.f32.mrb[0].mxu0
    %6117 = vdwg.mxu0
    %v6118 = vadd.f32 %v5986, %v6104
    %v6119 = vadd.f32 %v5987, %v6107
    %v6120 = vadd.f32 %v5988, %v6112
    %v6121 = vadd.f32 %v5989, %v6115
    %s6122 = scalar_lea.vmem [#allocation10], 64
    %v6123 = vld [vmem:[%s6122] sm:$0xf]
    %v6124 = vld [vmem:[%s6122 + $0x4] sm:$0xf]
    %v6125 = vld [vmem:[%s6122 + $0x8] sm:$0xf]
    %v6126 = vld [vmem:[%s6122 + $0xc] sm:$0xf]
    %v6131 = vunpack.c.l.b16 %v6123
    %v6132 = vunpack.c.l.b16 %v6124
    %v6133 = vunpack.c.l.b16 %v6125
    %v6134 = vunpack.c.l.b16 %v6126
    %v6135 = vpack.c.b16 %v6132, %v6131
    %v6136 = vpack.c.b16 %v6134, %v6133
    %6139 = vmatprep.subr.bf16.mxu0 0
    %6140 = vmatpush1.bf16.msra.mxu0 %v5595
    %6141 = vmatprep.subr.bf16.mxu0 0
    %6142 = vmatpush1.bf16.msra.mxu0 %v5596
    %6143 = vmatprep.subr.bf16.mxu0 0
    %6144 = vmatpush1.bf16.msra.mxu0 %v5597
    %6145 = vmatprep.subr.bf16.mxu0 0
    %6146 = vmatpush1.bf16.msra.mxu0 %v5598
    %6147 = vmatprep.subr.bf16.mxu0 0
    %6148 = vmatpush1.bf16.msra.mxu0 %v5599
    %6149 = vmatprep.subr.bf16.mxu0 0
    %6150 = vmatpush1.bf16.msra.mxu0 %v5600
    %6151 = vmatprep.subr.bf16.mxu0 0
    %6152 = vmatpush1.bf16.msra.mxu0 %v5601
    %6153 = vmatprep.subr.bf16.mxu0 0
    %6154 = vmatpush1.bf16.msra.mxu0 %v5602
    %6155 = vmatprep.subr.bf16.mxu0 0
    %6156 = vmatpush1.bf16.msra.mxu0 0
    %6157 = vmatprep.subr.bf16.mxu0 0
    %6158 = vmatpush1.bf16.msra.mxu0 0
    %6159 = vmatprep.subr.bf16.mxu0 0
    %6160 = vmatpush1.bf16.msra.mxu0 0
    %6161 = vmatprep.subr.bf16.mxu0 0
    %6162 = vmatpush1.bf16.msra.mxu0 0
    %6163 = vmatprep.subr.bf16.mxu0 0
    %6164 = vmatpush1.bf16.msra.mxu0 0
    %6165 = vmatprep.subr.bf16.mxu0 0
    %6166 = vmatpush1.bf16.msra.mxu0 0
    %6167 = vmatprep.subr.bf16.mxu0 0
    %6168 = vmatpush1.bf16.msra.mxu0 0
    %6169 = vmatprep.subr.bf16.mxu0 0
    %6170 = vmatpush1.bf16.msra.mxu0 0
    %6171 = vmatprep.mubr.bf16.mxu0 0
    %6172 = vmatmul.mubr.bf16.gmra.mrb[0].mxu0 %v6135
    %v6173 = vpop.f32.mrb[0].mxu0
    %v6174 = vadd.f32 0.0, %v6173
    %v6175 = vpop.f32.mrb[0].mxu0
    %v6176 = vpop.f32.mrb[0].mxu0
    %v6177 = vadd.f32 0.0, %v6176
    %v6178 = vpop.f32.mrb[0].mxu0
    %6179 = vmatprep.mubr.bf16.mxu0 0
    %6180 = vmatmul.mubr.bf16.gmra.mrb[0].mxu0 %v6136
    %v6181 = vpop.f32.mrb[0].mxu0
    %v6182 = vadd.f32 0.0, %v6181
    %v6183 = vpop.f32.mrb[0].mxu0
    %v6184 = vpop.f32.mrb[0].mxu0
    %v6185 = vadd.f32 0.0, %v6184
    %v6186 = vpop.f32.mrb[0].mxu0
    %6187 = vdwg.mxu0
    %v6188 = vpack.c.bf16 %v6177, %v6174
    %v6189 = vpack.c.bf16 %v6185, %v6182
    %s6190 = scalar_lea.vmem [#allocation11], 16
    %v6191 = vld [vmem:[%s6190] sm:$0xf]
    %v6193 = vsel %vm5370, %v6188, 0
    %v6196 = vsel %vm5370, %v6189, 0
    %v6199 = vsel %vm5747, %v6191, 0
    %6201 = vmatprep.subr.bf16.mxu0 0
    %6202 = vmatpush1.bf16.msra.mxu0 %v6199
    %6203 = vmatprep.subr.bf16.mxu0 0
    %6204 = vmatpush1.bf16.msra.mxu0 0
    %6205 = vmatprep.subr.bf16.mxu0 0
    %6206 = vmatpush1.bf16.msra.mxu0 0
    %6207 = vmatprep.subr.bf16.mxu0 0
    %6208 = vmatpush1.bf16.msra.mxu0 0
    %6209 = vmatprep.subr.bf16.mxu0 0
    %6210 = vmatpush1.bf16.msra.mxu0 0
    %6211 = vmatprep.subr.bf16.mxu0 0
    %6212 = vmatpush1.bf16.msra.mxu0 0
    %6213 = vmatprep.subr.bf16.mxu0 0
    %6214 = vmatpush1.bf16.msra.mxu0 0
    %6215 = vmatprep.subr.bf16.mxu0 0
    %6216 = vmatpush1.bf16.msra.mxu0 0
    %6217 = vmatprep.subr.bf16.mxu0 0
    %6218 = vmatpush1.bf16.msra.mxu0 0
    %6219 = vmatprep.subr.bf16.mxu0 0
    %6220 = vmatpush1.bf16.msra.mxu0 0
    %6221 = vmatprep.subr.bf16.mxu0 0
    %6222 = vmatpush1.bf16.msra.mxu0 0
    %6223 = vmatprep.subr.bf16.mxu0 0
    %6224 = vmatpush1.bf16.msra.mxu0 0
    %6225 = vmatprep.subr.bf16.mxu0 0
    %6226 = vmatpush1.bf16.msra.mxu0 0
    %6227 = vmatprep.subr.bf16.mxu0 0
    %6228 = vmatpush1.bf16.msra.mxu0 0
    %6229 = vmatprep.subr.bf16.mxu0 0
    %6230 = vmatpush1.bf16.msra.mxu0 0
    %6231 = vmatprep.subr.bf16.mxu0 0
    %6232 = vmatpush1.bf16.msra.mxu0 0
    %6233 = vmatprep.mubr.bf16.mxu0 0
    %6234 = vmatmul.mubr.bf16.gmra.mrb[0].mxu0 %v6193
    %v6235 = vpop.f32.mrb[0].mxu0
    %v6236 = vadd.f32 0.0, %v6235
    %v6237 = vpop.f32.mrb[0].mxu0
    %v6238 = vpop.f32.mrb[0].mxu0
    %v6239 = vadd.f32 0.0, %v6238
    %v6240 = vpop.f32.mrb[0].mxu0
    %6241 = vmatprep.mubr.bf16.mxu0 0
    %6242 = vmatmul.mubr.bf16.gmra.mrb[0].mxu0 %v6196
    %v6243 = vpop.f32.mrb[0].mxu0
    %v6244 = vadd.f32 0.0, %v6243
    %v6245 = vpop.f32.mrb[0].mxu0
    %v6246 = vpop.f32.mrb[0].mxu0
    %v6247 = vadd.f32 0.0, %v6246
    %v6248 = vpop.f32.mrb[0].mxu0
    %6249 = vdwg.mxu0
    %v6250 = vadd.f32 %v6118, %v6236
    %v6251 = vadd.f32 %v6119, %v6239
    %v6252 = vadd.f32 %v6120, %v6244
    %v6253 = vadd.f32 %v6121, %v6247
    %s6254 = scalar_lea.vmem [#allocation10], 80
    %v6255 = vld [vmem:[%s6254] sm:$0xf]
    %v6256 = vld [vmem:[%s6254 + $0x4] sm:$0xf]
    %v6257 = vld [vmem:[%s6254 + $0x8] sm:$0xf]
    %v6258 = vld [vmem:[%s6254 + $0xc] sm:$0xf]
    %v6263 = vunpack.c.l.b16 %v6255
    %v6264 = vunpack.c.l.b16 %v6256
    %v6265 = vunpack.c.l.b16 %v6257
    %v6266 = vunpack.c.l.b16 %v6258
    %v6267 = vpack.c.b16 %v6264, %v6263
    %v6268 = vpack.c.b16 %v6266, %v6265
    %6271 = vmatprep.subr.bf16.mxu0 0
    %6272 = vmatpush1.bf16.msra.mxu0 %v5595
    %6273 = vmatprep.subr.bf16.mxu0 0
    %6274 = vmatpush1.bf16.msra.mxu0 %v5596
    %6275 = vmatprep.subr.bf16.mxu0 0
    %6276 = vmatpush1.bf16.msra.mxu0 %v5597
    %6277 = vmatprep.subr.bf16.mxu0 0
    %6278 = vmatpush1.bf16.msra.mxu0 %v5598
    %6279 = vmatprep.subr.bf16.mxu0 0
    %6280 = vmatpush1.bf16.msra.mxu0 %v5599
    %6281 = vmatprep.subr.bf16.mxu0 0
    %6282 = vmatpush1.bf16.msra.mxu0 %v5600
    %6283 = vmatprep.subr.bf16.mxu0 0
    %6284 = vmatpush1.bf16.msra.mxu0 %v5601
    %6285 = vmatprep.subr.bf16.mxu0 0
    %6286 = vmatpush1.bf16.msra.mxu0 %v5602
    %6287 = vmatprep.subr.bf16.mxu0 0
    %6288 = vmatpush1.bf16.msra.mxu0 0
    %6289 = vmatprep.subr.bf16.mxu0 0
    %6290 = vmatpush1.bf16.msra.mxu0 0
    %6291 = vmatprep.subr.bf16.mxu0 0
    %6292 = vmatpush1.bf16.msra.mxu0 0
    %6293 = vmatprep.subr.bf16.mxu0 0
    %6294 = vmatpush1.bf16.msra.mxu0 0
    %6295 = vmatprep.subr.bf16.mxu0 0
    %6296 = vmatpush1.bf16.msra.mxu0 0
    %6297 = vmatprep.subr.bf16.mxu0 0
    %6298 = vmatpush1.bf16.msra.mxu0 0
    %6299 = vmatprep.subr.bf16.mxu0 0
    %6300 = vmatpush1.bf16.msra.mxu0 0
    %6301 = vmatprep.subr.bf16.mxu0 0
    %6302 = vmatpush1.bf16.msra.mxu0 0
    %6303 = vmatprep.mubr.bf16.mxu0 0
    %6304 = vmatmul.mubr.bf16.gmra.mrb[0].mxu0 %v6267
    %v6305 = vpop.f32.mrb[0].mxu0
    %v6306 = vadd.f32 0.0, %v6305
    %v6307 = vpop.f32.mrb[0].mxu0
    %v6308 = vpop.f32.mrb[0].mxu0
    %v6309 = vadd.f32 0.0, %v6308
    %v6310 = vpop.f32.mrb[0].mxu0
    %6311 = vmatprep.mubr.bf16.mxu0 0
    %6312 = vmatmul.mubr.bf16.gmra.mrb[0].mxu0 %v6268
    %v6313 = vpop.f32.mrb[0].mxu0
    %v6314 = vadd.f32 0.0, %v6313
    %v6315 = vpop.f32.mrb[0].mxu0
    %v6316 = vpop.f32.mrb[0].mxu0
    %v6317 = vadd.f32 0.0, %v6316
    %v6318 = vpop.f32.mrb[0].mxu0
    %6319 = vdwg.mxu0
    %v6320 = vpack.c.bf16 %v6309, %v6306
    %v6321 = vpack.c.bf16 %v6317, %v6314
    %s6322 = scalar_lea.vmem [#allocation11], 20
    %v6323 = vld [vmem:[%s6322] sm:$0xf]
    %v6325 = vsel %vm5370, %v6320, 0
    %v6328 = vsel %vm5370, %v6321, 0
    %v6331 = vsel %vm5747, %v6323, 0
    %6333 = vmatprep.subr.bf16.mxu0 0
    %6334 = vmatpush1.bf16.msra.mxu0 %v6331
    %6335 = vmatprep.subr.bf16.mxu0 0
    %6336 = vmatpush1.bf16.msra.mxu0 0
    %6337 = vmatprep.subr.bf16.mxu0 0
    %6338 = vmatpush1.bf16.msra.mxu0 0
    %6339 = vmatprep.subr.bf16.mxu0 0
    %6340 = vmatpush1.bf16.msra.mxu0 0
    %6341 = vmatprep.subr.bf16.mxu0 0
    %6342 = vmatpush1.bf16.msra.mxu0 0
    %6343 = vmatprep.subr.bf16.mxu0 0
    %6344 = vmatpush1.bf16.msra.mxu0 0
    %6345 = vmatprep.subr.bf16.mxu0 0
    %6346 = vmatpush1.bf16.msra.mxu0 0
    %6347 = vmatprep.subr.bf16.mxu0 0
    %6348 = vmatpush1.bf16.msra.mxu0 0
    %6349 = vmatprep.subr.bf16.mxu0 0
    %6350 = vmatpush1.bf16.msra.mxu0 0
    %6351 = vmatprep.subr.bf16.mxu0 0
    %6352 = vmatpush1.bf16.msra.mxu0 0
    %6353 = vmatprep.subr.bf16.mxu0 0
    %6354 = vmatpush1.bf16.msra.mxu0 0
    %6355 = vmatprep.subr.bf16.mxu0 0
    %6356 = vmatpush1.bf16.msra.mxu0 0
    %6357 = vmatprep.subr.bf16.mxu0 0
    %6358 = vmatpush1.bf16.msra.mxu0 0
    %6359 = vmatprep.subr.bf16.mxu0 0
    %6360 = vmatpush1.bf16.msra.mxu0 0
    %6361 = vmatprep.subr.bf16.mxu0 0
    %6362 = vmatpush1.bf16.msra.mxu0 0
    %6363 = vmatprep.subr.bf16.mxu0 0
    %6364 = vmatpush1.bf16.msra.mxu0 0
    %6365 = vmatprep.mubr.bf16.mxu0 0
    %6366 = vmatmul.mubr.bf16.gmra.mrb[0].mxu0 %v6325
    %v6367 = vpop.f32.mrb[0].mxu0
    %v6368 = vadd.f32 0.0, %v6367
    %v6369 = vpop.f32.mrb[0].mxu0
    %v6370 = vpop.f32.mrb[0].mxu0
    %v6371 = vadd.f32 0.0, %v6370
    %v6372 = vpop.f32.mrb[0].mxu0
    %6373 = vmatprep.mubr.bf16.mxu0 0
    %6374 = vmatmul.mubr.bf16.gmra.mrb[0].mxu0 %v6328
    %v6375 = vpop.f32.mrb[0].mxu0
    %v6376 = vadd.f32 0.0, %v6375
    %v6377 = vpop.f32.mrb[0].mxu0
    %v6378 = vpop.f32.mrb[0].mxu0
    %v6379 = vadd.f32 0.0, %v6378
    %v6380 = vpop.f32.mrb[0].mxu0
    %6381 = vdwg.mxu0
    %v6382 = vadd.f32 %v6250, %v6368
    %v6383 = vadd.f32 %v6251, %v6371
    %v6384 = vadd.f32 %v6252, %v6376
    %v6385 = vadd.f32 %v6253, %v6379
    %s6386 = scalar_lea.vmem [#allocation10], 96
    %v6387 = vld [vmem:[%s6386] sm:$0xf]
    %v6388 = vld [vmem:[%s6386 + $0x4] sm:$0xf]
    %v6389 = vld [vmem:[%s6386 + $0x8] sm:$0xf]
    %v6390 = vld [vmem:[%s6386 + $0xc] sm:$0xf]
    %v6395 = vunpack.c.l.b16 %v6387
    %v6396 = vunpack.c.l.b16 %v6388
    %v6397 = vunpack.c.l.b16 %v6389
    %v6398 = vunpack.c.l.b16 %v6390
    %v6399 = vpack.c.b16 %v6396, %v6395
    %v6400 = vpack.c.b16 %v6398, %v6397
    %6403 = vmatprep.subr.bf16.mxu0 0
    %6404 = vmatpush1.bf16.msra.mxu0 %v5595
    %6405 = vmatprep.subr.bf16.mxu0 0
    %6406 = vmatpush1.bf16.msra.mxu0 %v5596
    %6407 = vmatprep.subr.bf16.mxu0 0
    %6408 = vmatpush1.bf16.msra.mxu0 %v5597
    %6409 = vmatprep.subr.bf16.mxu0 0
    %6410 = vmatpush1.bf16.msra.mxu0 %v5598
    %6411 = vmatprep.subr.bf16.mxu0 0
    %6412 = vmatpush1.bf16.msra.mxu0 %v5599
    %6413 = vmatprep.subr.bf16.mxu0 0
    %6414 = vmatpush1.bf16.msra.mxu0 %v5600
    %6415 = vmatprep.subr.bf16.mxu0 0
    %6416 = vmatpush1.bf16.msra.mxu0 %v5601
    %6417 = vmatprep.subr.bf16.mxu0 0
    %6418 = vmatpush1.bf16.msra.mxu0 %v5602
    %6419 = vmatprep.subr.bf16.mxu0 0
    %6420 = vmatpush1.bf16.msra.mxu0 0
    %6421 = vmatprep.subr.bf16.mxu0 0
    %6422 = vmatpush1.bf16.msra.mxu0 0
    %6423 = vmatprep.subr.bf16.mxu0 0
    %6424 = vmatpush1.bf16.msra.mxu0 0
    %6425 = vmatprep.subr.bf16.mxu0 0
    %6426 = vmatpush1.bf16.msra.mxu0 0
    %6427 = vmatprep.subr.bf16.mxu0 0
    %6428 = vmatpush1.bf16.msra.mxu0 0
    %6429 = vmatprep.subr.bf16.mxu0 0
    %6430 = vmatpush1.bf16.msra.mxu0 0
    %6431 = vmatprep.subr.bf16.mxu0 0
    %6432 = vmatpush1.bf16.msra.mxu0 0
    %6433 = vmatprep.subr.bf16.mxu0 0
    %6434 = vmatpush1.bf16.msra.mxu0 0
    %6435 = vmatprep.mubr.bf16.mxu0 0
    %6436 = vmatmul.mubr.bf16.gmra.mrb[0].mxu0 %v6399
    %v6437 = vpop.f32.mrb[0].mxu0
    %v6438 = vadd.f32 0.0, %v6437
    %v6439 = vpop.f32.mrb[0].mxu0
    %v6440 = vpop.f32.mrb[0].mxu0
    %v6441 = vadd.f32 0.0, %v6440
    %v6442 = vpop.f32.mrb[0].mxu0
    %6443 = vmatprep.mubr.bf16.mxu0 0
    %6444 = vmatmul.mubr.bf16.gmra.mrb[0].mxu0 %v6400
    %v6445 = vpop.f32.mrb[0].mxu0
    %v6446 = vadd.f32 0.0, %v6445
    %v6447 = vpop.f32.mrb[0].mxu0
    %v6448 = vpop.f32.mrb[0].mxu0
    %v6449 = vadd.f32 0.0, %v6448
    %v6450 = vpop.f32.mrb[0].mxu0
    %6451 = vdwg.mxu0
    %v6452 = vpack.c.bf16 %v6441, %v6438
    %v6453 = vpack.c.bf16 %v6449, %v6446
    %s6454 = scalar_lea.vmem [#allocation11], 24
    %v6455 = vld [vmem:[%s6454] sm:$0xf]
    %v6457 = vsel %vm5370, %v6452, 0
    %v6460 = vsel %vm5370, %v6453, 0
    %v6463 = vsel %vm5747, %v6455, 0
    %6465 = vmatprep.subr.bf16.mxu0 0
    %6466 = vmatpush1.bf16.msra.mxu0 %v6463
    %6467 = vmatprep.subr.bf16.mxu0 0
    %6468 = vmatpush1.bf16.msra.mxu0 0
    %6469 = vmatprep.subr.bf16.mxu0 0
    %6470 = vmatpush1.bf16.msra.mxu0 0
    %6471 = vmatprep.subr.bf16.mxu0 0
    %6472 = vmatpush1.bf16.msra.mxu0 0
    %6473 = vmatprep.subr.bf16.mxu0 0
    %6474 = vmatpush1.bf16.msra.mxu0 0
    %6475 = vmatprep.subr.bf16.mxu0 0
    %6476 = vmatpush1.bf16.msra.mxu0 0
    %6477 = vmatprep.subr.bf16.mxu0 0
    %6478 = vmatpush1.bf16.msra.mxu0 0
    %6479 = vmatprep.subr.bf16.mxu0 0
    %6480 = vmatpush1.bf16.msra.mxu0 0
    %6481 = vmatprep.subr.bf16.mxu0 0
    %6482 = vmatpush1.bf16.msra.mxu0 0
    %6483 = vmatprep.subr.bf16.mxu0 0
    %6484 = vmatpush1.bf16.msra.mxu0 0
    %6485 = vmatprep.subr.bf16.mxu0 0
    %6486 = vmatpush1.bf16.msra.mxu0 0
    %6487 = vmatprep.subr.bf16.mxu0 0
    %6488 = vmatpush1.bf16.msra.mxu0 0
    %6489 = vmatprep.subr.bf16.mxu0 0
    %6490 = vmatpush1.bf16.msra.mxu0 0
    %6491 = vmatprep.subr.bf16.mxu0 0
    %6492 = vmatpush1.bf16.msra.mxu0 0
    %6493 = vmatprep.subr.bf16.mxu0 0
    %6494 = vmatpush1.bf16.msra.mxu0 0
    %6495 = vmatprep.subr.bf16.mxu0 0
    %6496 = vmatpush1.bf16.msra.mxu0 0
    %6497 = vmatprep.mubr.bf16.mxu0 0
    %6498 = vmatmul.mubr.bf16.gmra.mrb[0].mxu0 %v6457
    %v6499 = vpop.f32.mrb[0].mxu0
    %v6500 = vadd.f32 0.0, %v6499
    %v6501 = vpop.f32.mrb[0].mxu0
    %v6502 = vpop.f32.mrb[0].mxu0
    %v6503 = vadd.f32 0.0, %v6502
    %v6504 = vpop.f32.mrb[0].mxu0
    %6505 = vmatprep.mubr.bf16.mxu0 0
    %6506 = vmatmul.mubr.bf16.gmra.mrb[0].mxu0 %v6460
    %v6507 = vpop.f32.mrb[0].mxu0
    %v6508 = vadd.f32 0.0, %v6507
    %v6509 = vpop.f32.mrb[0].mxu0
    %v6510 = vpop.f32.mrb[0].mxu0
    %v6511 = vadd.f32 0.0, %v6510
    %v6512 = vpop.f32.mrb[0].mxu0
    %6513 = vdwg.mxu0
    %v6514 = vadd.f32 %v6382, %v6500
    %v6515 = vadd.f32 %v6383, %v6503
    %v6516 = vadd.f32 %v6384, %v6508
    %v6517 = vadd.f32 %v6385, %v6511
    %s6518 = scalar_lea.vmem [#allocation10], 112
    %v6519 = vld [vmem:[%s6518] sm:$0xf]
    %v6520 = vld [vmem:[%s6518 + $0x4] sm:$0xf]
    %v6521 = vld [vmem:[%s6518 + $0x8] sm:$0xf]
    %v6522 = vld [vmem:[%s6518 + $0xc] sm:$0xf]
    %v6527 = vunpack.c.l.b16 %v6519
    %v6528 = vunpack.c.l.b16 %v6520
    %v6529 = vunpack.c.l.b16 %v6521
    %v6530 = vunpack.c.l.b16 %v6522
    %v6531 = vpack.c.b16 %v6528, %v6527
    %v6532 = vpack.c.b16 %v6530, %v6529
    %6535 = vmatprep.subr.bf16.mxu0 0
    %6536 = vmatpush1.bf16.msra.mxu0 %v5595
    %6537 = vmatprep.subr.bf16.mxu0 0
    %6538 = vmatpush1.bf16.msra.mxu0 %v5596
    %6539 = vmatprep.subr.bf16.mxu0 0
    %6540 = vmatpush1.bf16.msra.mxu0 %v5597
    %6541 = vmatprep.subr.bf16.mxu0 0
    %6542 = vmatpush1.bf16.msra.mxu0 %v5598
    %6543 = vmatprep.subr.bf16.mxu0 0
    %6544 = vmatpush1.bf16.msra.mxu0 %v5599
    %6545 = vmatprep.subr.bf16.mxu0 0
    %6546 = vmatpush1.bf16.msra.mxu0 %v5600
    %6547 = vmatprep.subr.bf16.mxu0 0
    %6548 = vmatpush1.bf16.msra.mxu0 %v5601
    %6549 = vmatprep.subr.bf16.mxu0 0
    %6550 = vmatpush1.bf16.msra.mxu0 %v5602
    %6551 = vmatprep.subr.bf16.mxu0 0
    %6552 = vmatpush1.bf16.msra.mxu0 0
    %6553 = vmatprep.subr.bf16.mxu0 0
    %6554 = vmatpush1.bf16.msra.mxu0 0
    %6555 = vmatprep.subr.bf16.mxu0 0
    %6556 = vmatpush1.bf16.msra.mxu0 0
    %6557 = vmatprep.subr.bf16.mxu0 0
    %6558 = vmatpush1.bf16.msra.mxu0 0
    %6559 = vmatprep.subr.bf16.mxu0 0
    %6560 = vmatpush1.bf16.msra.mxu0 0
    %6561 = vmatprep.subr.bf16.mxu0 0
    %6562 = vmatpush1.bf16.msra.mxu0 0
    %6563 = vmatprep.subr.bf16.mxu0 0
    %6564 = vmatpush1.bf16.msra.mxu0 0
    %6565 = vmatprep.subr.bf16.mxu0 0
    %6566 = vmatpush1.bf16.msra.mxu0 0
    %6567 = vmatprep.mubr.bf16.mxu0 0
    %6568 = vmatmul.mubr.bf16.gmra.mrb[0].mxu0 %v6531
    %v6569 = vpop.f32.mrb[0].mxu0
    %v6570 = vadd.f32 0.0, %v6569
    %v6571 = vpop.f32.mrb[0].mxu0
    %v6572 = vpop.f32.mrb[0].mxu0
    %v6573 = vadd.f32 0.0, %v6572
    %v6574 = vpop.f32.mrb[0].mxu0
    %6575 = vmatprep.mubr.bf16.mxu0 0
    %6576 = vmatmul.mubr.bf16.gmra.mrb[0].mxu0 %v6532
    %v6577 = vpop.f32.mrb[0].mxu0
    %v6578 = vadd.f32 0.0, %v6577
    %v6579 = vpop.f32.mrb[0].mxu0
    %v6580 = vpop.f32.mrb[0].mxu0
    %v6581 = vadd.f32 0.0, %v6580
    %v6582 = vpop.f32.mrb[0].mxu0
    %6583 = vdwg.mxu0
    %v6584 = vpack.c.bf16 %v6573, %v6570
    %v6585 = vpack.c.bf16 %v6581, %v6578
    %s6586 = scalar_lea.vmem [#allocation11], 28
    %v6587 = vld [vmem:[%s6586] sm:$0xf]
    %v6589 = vsel %vm5370, %v6584, 0
    %v6592 = vsel %vm5370, %v6585, 0
    %v6595 = vsel %vm5747, %v6587, 0
    %6597 = vmatprep.subr.bf16.mxu0 0
    %6598 = vmatpush1.bf16.msra.mxu0 %v6595
    %6599 = vmatprep.subr.bf16.mxu0 0
    %6600 = vmatpush1.bf16.msra.mxu0 0
    %6601 = vmatprep.subr.bf16.mxu0 0
    %6602 = vmatpush1.bf16.msra.mxu0 0
    %6603 = vmatprep.subr.bf16.mxu0 0
    %6604 = vmatpush1.bf16.msra.mxu0 0
    %6605 = vmatprep.subr.bf16.mxu0 0
    %6606 = vmatpush1.bf16.msra.mxu0 0
    %6607 = vmatprep.subr.bf16.mxu0 0
    %6608 = vmatpush1.bf16.msra.mxu0 0
    %6609 = vmatprep.subr.bf16.mxu0 0
    %6610 = vmatpush1.bf16.msra.mxu0 0
    %6611 = vmatprep.subr.bf16.mxu0 0
    %6612 = vmatpush1.bf16.msra.mxu0 0
    %6613 = vmatprep.subr.bf16.mxu0 0
    %6614 = vmatpush1.bf16.msra.mxu0 0
    %6615 = vmatprep.subr.bf16.mxu0 0
    %6616 = vmatpush1.bf16.msra.mxu0 0
    %6617 = vmatprep.subr.bf16.mxu0 0
    %6618 = vmatpush1.bf16.msra.mxu0 0
    %6619 = vmatprep.subr.bf16.mxu0 0
    %6620 = vmatpush1.bf16.msra.mxu0 0
    %6621 = vmatprep.subr.bf16.mxu0 0
    %6622 = vmatpush1.bf16.msra.mxu0 0
    %6623 = vmatprep.subr.bf16.mxu0 0
    %6624 = vmatpush1.bf16.msra.mxu0 0
    %6625 = vmatprep.subr.bf16.mxu0 0
    %6626 = vmatpush1.bf16.msra.mxu0 0
    %6627 = vmatprep.subr.bf16.mxu0 0
    %6628 = vmatpush1.bf16.msra.mxu0 0
    %6629 = vmatprep.mubr.bf16.mxu0 0
    %6630 = vmatmul.mubr.bf16.gmra.mrb[0].mxu0 %v6589
    %v6631 = vpop.f32.mrb[0].mxu0
    %v6632 = vadd.f32 0.0, %v6631
    %v6633 = vpop.f32.mrb[0].mxu0
    %v6634 = vpop.f32.mrb[0].mxu0
    %v6635 = vadd.f32 0.0, %v6634
    %v6636 = vpop.f32.mrb[0].mxu0
    %6637 = vmatprep.mubr.bf16.mxu0 0
    %6638 = vmatmul.mubr.bf16.gmra.mrb[0].mxu0 %v6592
    %v6639 = vpop.f32.mrb[0].mxu0
    %v6640 = vadd.f32 0.0, %v6639
    %v6641 = vpop.f32.mrb[0].mxu0
    %v6642 = vpop.f32.mrb[0].mxu0
    %v6643 = vadd.f32 0.0, %v6642
    %v6644 = vpop.f32.mrb[0].mxu0
    %6645 = vdwg.mxu0
    %v6646 = vadd.f32 %v6514, %v6632
    %v6647 = vadd.f32 %v6515, %v6635
    %v6648 = vadd.f32 %v6516, %v6640
    %v6649 = vadd.f32 %v6517, %v6643
    %s6650 = scalar_lea.vmem [#allocation10], 128
    %v6651 = vld [vmem:[%s6650] sm:$0xf]
    %v6652 = vld [vmem:[%s6650 + $0x4] sm:$0xf]
    %v6653 = vld [vmem:[%s6650 + $0x8] sm:$0xf]
    %v6654 = vld [vmem:[%s6650 + $0xc] sm:$0xf]
    %v6659 = vunpack.c.l.b16 %v6651
    %v6660 = vunpack.c.l.b16 %v6652
    %v6661 = vunpack.c.l.b16 %v6653
    %v6662 = vunpack.c.l.b16 %v6654
    %v6663 = vpack.c.b16 %v6660, %v6659
    %v6664 = vpack.c.b16 %v6662, %v6661
    %6667 = vmatprep.subr.bf16.mxu0 0
    %6668 = vmatpush1.bf16.msra.mxu0 %v5595
    %6669 = vmatprep.subr.bf16.mxu0 0
    %6670 = vmatpush1.bf16.msra.mxu0 %v5596
    %6671 = vmatprep.subr.bf16.mxu0 0
    %6672 = vmatpush1.bf16.msra.mxu0 %v5597
    %6673 = vmatprep.subr.bf16.mxu0 0
    %6674 = vmatpush1.bf16.msra.mxu0 %v5598
    %6675 = vmatprep.subr.bf16.mxu0 0
    %6676 = vmatpush1.bf16.msra.mxu0 %v5599
    %6677 = vmatprep.subr.bf16.mxu0 0
    %6678 = vmatpush1.bf16.msra.mxu0 %v5600
    %6679 = vmatprep.subr.bf16.mxu0 0
    %6680 = vmatpush1.bf16.msra.mxu0 %v5601
    %6681 = vmatprep.subr.bf16.mxu0 0
    %6682 = vmatpush1.bf16.msra.mxu0 %v5602
    %6683 = vmatprep.subr.bf16.mxu0 0
    %6684 = vmatpush1.bf16.msra.mxu0 0
    %6685 = vmatprep.subr.bf16.mxu0 0
    %6686 = vmatpush1.bf16.msra.mxu0 0
    %6687 = vmatprep.subr.bf16.mxu0 0
    %6688 = vmatpush1.bf16.msra.mxu0 0
    %6689 = vmatprep.subr.bf16.mxu0 0
    %6690 = vmatpush1.bf16.msra.mxu0 0
    %6691 = vmatprep.subr.bf16.mxu0 0
    %6692 = vmatpush1.bf16.msra.mxu0 0
    %6693 = vmatprep.subr.bf16.mxu0 0
    %6694 = vmatpush1.bf16.msra.mxu0 0
    %6695 = vmatprep.subr.bf16.mxu0 0
    %6696 = vmatpush1.bf16.msra.mxu0 0
    %6697 = vmatprep.subr.bf16.mxu0 0
    %6698 = vmatpush1.bf16.msra.mxu0 0
    %6699 = vmatprep.mubr.bf16.mxu0 0
    %6700 = vmatmul.mubr.bf16.gmra.mrb[0].mxu0 %v6663
    %v6701 = vpop.f32.mrb[0].mxu0
    %v6702 = vadd.f32 0.0, %v6701
    %v6703 = vpop.f32.mrb[0].mxu0
    %v6704 = vpop.f32.mrb[0].mxu0
    %v6705 = vadd.f32 0.0, %v6704
    %v6706 = vpop.f32.mrb[0].mxu0
    %6707 = vmatprep.mubr.bf16.mxu0 0
    %6708 = vmatmul.mubr.bf16.gmra.mrb[0].mxu0 %v6664
    %v6709 = vpop.f32.mrb[0].mxu0
    %v6710 = vadd.f32 0.0, %v6709
    %v6711 = vpop.f32.mrb[0].mxu0
    %v6712 = vpop.f32.mrb[0].mxu0
    %v6713 = vadd.f32 0.0, %v6712
    %v6714 = vpop.f32.mrb[0].mxu0
    %6715 = vdwg.mxu0
    %v6716 = vpack.c.bf16 %v6705, %v6702
    %v6717 = vpack.c.bf16 %v6713, %v6710
    %s6718 = scalar_lea.vmem [#allocation11], 32
    %v6719 = vld [vmem:[%s6718] sm:$0xf]
    %v6721 = vsel %vm5370, %v6716, 0
    %v6724 = vsel %vm5370, %v6717, 0
    %v6727 = vsel %vm5747, %v6719, 0
    %6729 = vmatprep.subr.bf16.mxu0 0
    %6730 = vmatpush1.bf16.msra.mxu0 %v6727
    %6731 = vmatprep.subr.bf16.mxu0 0
    %6732 = vmatpush1.bf16.msra.mxu0 0
    %6733 = vmatprep.subr.bf16.mxu0 0
    %6734 = vmatpush1.bf16.msra.mxu0 0
    %6735 = vmatprep.subr.bf16.mxu0 0
    %6736 = vmatpush1.bf16.msra.mxu0 0
    %6737 = vmatprep.subr.bf16.mxu0 0
    %6738 = vmatpush1.bf16.msra.mxu0 0
    %6739 = vmatprep.subr.bf16.mxu0 0
    %6740 = vmatpush1.bf16.msra.mxu0 0
    %6741 = vmatprep.subr.bf16.mxu0 0
    %6742 = vmatpush1.bf16.msra.mxu0 0
    %6743 = vmatprep.subr.bf16.mxu0 0
    %6744 = vmatpush1.bf16.msra.mxu0 0
    %6745 = vmatprep.subr.bf16.mxu0 0
    %6746 = vmatpush1.bf16.msra.mxu0 0
    %6747 = vmatprep.subr.bf16.mxu0 0
    %6748 = vmatpush1.bf16.msra.mxu0 0
    %6749 = vmatprep.subr.bf16.mxu0 0
    %6750 = vmatpush1.bf16.msra.mxu0 0
    %6751 = vmatprep.subr.bf16.mxu0 0
    %6752 = vmatpush1.bf16.msra.mxu0 0
    %6753 = vmatprep.subr.bf16.mxu0 0
    %6754 = vmatpush1.bf16.msra.mxu0 0
    %6755 = vmatprep.subr.bf16.mxu0 0
    %6756 = vmatpush1.bf16.msra.mxu0 0
    %6757 = vmatprep.subr.bf16.mxu0 0
    %6758 = vmatpush1.bf16.msra.mxu0 0
    %6759 = vmatprep.subr.bf16.mxu0 0
    %6760 = vmatpush1.bf16.msra.mxu0 0
    %6761 = vmatprep.mubr.bf16.mxu0 0
    %6762 = vmatmul.mubr.bf16.gmra.mrb[0].mxu0 %v6721
    %v6763 = vpop.f32.mrb[0].mxu0
    %v6764 = vadd.f32 0.0, %v6763
    %v6765 = vpop.f32.mrb[0].mxu0
    %v6766 = vpop.f32.mrb[0].mxu0
    %v6767 = vadd.f32 0.0, %v6766
    %v6768 = vpop.f32.mrb[0].mxu0
    %6769 = vmatprep.mubr.bf16.mxu0 0
    %6770 = vmatmul.mubr.bf16.gmra.mrb[0].mxu0 %v6724
    %v6771 = vpop.f32.mrb[0].mxu0
    %v6772 = vadd.f32 0.0, %v6771
    %v6773 = vpop.f32.mrb[0].mxu0
    %v6774 = vpop.f32.mrb[0].mxu0
    %v6775 = vadd.f32 0.0, %v6774
    %v6776 = vpop.f32.mrb[0].mxu0
    %6777 = vdwg.mxu0
    %v6778 = vadd.f32 %v6646, %v6764
    %v6779 = vadd.f32 %v6647, %v6767
    %v6780 = vadd.f32 %v6648, %v6772
    %v6781 = vadd.f32 %v6649, %v6775
    %v6782 = vld [vmem:[#allocation13] sm:$0x1]
    %v6784 = vlaneseq
    %v6785 = vshrl.u32 %v6784, 7
    %v6786 = vsub.s32 0, %v6785
    %v6787 = vrot.slane %v6782, %v6786
    %v6789 = vadd.f32 %v6778, %v6787
    %v6790 = vadd.f32 %v6779, %v6787
    %v6791 = vadd.f32 %v6780, %v6787
    %v6792 = vadd.f32 %v6781, %v6787
    %vm6793 = vcmask 130048
    %v6794 = vsel %vm6793, %v6789, 0.0
    %v6795 = vsel %vm6793, %v6790, 0.0
    %v6796 = vadd.f32 %v6794, %v6795
    %v6797 = vsel %vm6793, %v6791, 0.0
    %v6798 = vadd.f32 %v6796, %v6797
    %v6799 = vsel %vm6793, %v6792, 0.0
    %v6800 = vadd.f32 %v6798, %v6799
    %v6801 = vrot.slane %v6800, 4
    %v6802 = vadd.f32 %v6800, %v6801
    %v6803 = vrot.slane %v6802, 2
    %v6804 = vadd.f32 %v6802, %v6803
    %v6805 = vrot.slane %v6804, 1
    %v6806 = vadd.f32 %v6804, %v6805
    %v6807 = vrcp.pop 32.0
    %v6808 = vmul.f32 %v6806, %v6807
    %v6809 = vmul.f32 %v6789, %v6789
    %v6810 = vmul.f32 %v6790, %v6790
    %v6811 = vmul.f32 %v6791, %v6791
    %v6812 = vmul.f32 %v6792, %v6792
    %v6813 = vsel %vm6793, %v6809, 0.0
    %v6814 = vsel %vm6793, %v6810, 0.0
    %v6815 = vadd.f32 %v6813, %v6814
    %v6816 = vsel %vm6793, %v6811, 0.0
    %v6817 = vadd.f32 %v6815, %v6816
    %v6818 = vsel %vm6793, %v6812, 0.0
    %v6819 = vadd.f32 %v6817, %v6818
    %v6820 = vrot.slane %v6819, 4
    %v6821 = vadd.f32 %v6819, %v6820
    %v6822 = vrot.slane %v6821, 2
    %v6823 = vadd.f32 %v6821, %v6822
    %v6824 = vrot.slane %v6823, 1
    %v6825 = vadd.f32 %v6823, %v6824
    %v6826 = vmul.f32 %v6825, %v6807
    %v6827 = vmul.f32 %v6808, %v6808
    %v6828 = vsub.f32 %v6826, %v6827
    %v6829 = vmax.f32 %v6828, 0.0
    %v6830 = vsub.f32 %v6789, %v6808
    %v6831 = vsub.f32 %v6790, %v6808
    %v6832 = vsub.f32 %v6791, %v6808
    %v6833 = vsub.f32 %v6792, %v6808
    %v6834 = vadd.f32 %v6829, 1e-05
    %v6835 = vrsqrt.pop %v6834
    %v6836 = vmul.f32 %v6830, %v6835
    %v6837 = vmul.f32 %v6831, %v6835
    %v6838 = vmul.f32 %v6832, %v6835
    %v6839 = vmul.f32 %v6833, %v6835
    %v6840 = vld [vmem:[#allocation14] sm:$0x1]
    %v6842 = vlaneseq
    %v6843 = vshrl.u32 %v6842, 7
    %v6844 = vsub.s32 0, %v6843
    %v6845 = vrot.slane %v6840, %v6844
    %v6847 = vmul.f32 %v6836, %v6845
    %v6848 = vmul.f32 %v6837, %v6845
    %v6849 = vmul.f32 %v6838, %v6845
    %v6850 = vmul.f32 %v6839, %v6845
    %v6851 = vld [vmem:[#allocation16] sm:$0x1]
    %v6853 = vlaneseq
    %v6854 = vshrl.u32 %v6853, 7
    %v6855 = vsub.s32 0, %v6854
    %v6856 = vrot.slane %v6851, %v6855
    %v6858 = vadd.f32 %v6847, %v6856
    %v6859 = vadd.f32 %v6848, %v6856
    %v6860 = vadd.f32 %v6849, %v6856
    %v6861 = vadd.f32 %v6850, %v6856
    %vm6862 = vcmp.ge.f32.partialorder %v6858, 0.0
    %vm6863 = vcmp.ge.f32.partialorder %v6859, 0.0
    %vm6864 = vcmp.ge.f32.partialorder %v6860, 0.0
    %vm6865 = vcmp.ge.f32.partialorder %v6861, 0.0
    %v6866 = vmul.f32 %v6858, 0.01
    %v6867 = vmul.f32 %v6859, 0.01
    %v6868 = vmul.f32 %v6860, 0.01
    %v6869 = vmul.f32 %v6861, 0.01
    %v6870 = vsel %vm6862, %v6858, %v6866
    %v6871 = vsel %vm6863, %v6859, %v6867
    %v6872 = vsel %vm6864, %v6860, %v6868
    %v6873 = vsel %vm6865, %v6861, %v6869
    %v6874 = vpack.c.bf16 %v6871, %v6870
    %v6875 = vpack.c.bf16 %v6873, %v6872
    %v6876 = vld [vmem:[#allocation17] sm:$0x1]
    %vm6877 = vcmask 261120
    %v6879 = vsel %vm6877, %v6876, 0
    %6881 = vmatprep.subr.bf16.mxu0 0
    %6882 = vmatpush1.bf16.msra.mxu0 %v6874
    %6883 = vmatprep.subr.bf16.mxu0 0
    %6884 = vmatpush1.bf16.msra.mxu0 %v6875
    %6885 = vmatprep.subr.bf16.mxu0 0
    %6886 = vmatpush1.bf16.msra.mxu0 0
    %6887 = vmatprep.subr.bf16.mxu0 0
    %6888 = vmatpush1.bf16.msra.mxu0 0
    %6889 = vmatprep.subr.bf16.mxu0 0
    %6890 = vmatpush1.bf16.msra.mxu0 0
    %6891 = vmatprep.subr.bf16.mxu0 0
    %6892 = vmatpush1.bf16.msra.mxu0 0
    %6893 = vmatprep.subr.bf16.mxu0 0
    %6894 = vmatpush1.bf16.msra.mxu0 0
    %6895 = vmatprep.subr.bf16.mxu0 0
    %6896 = vmatpush1.bf16.msra.mxu0 0
    %6897 = vmatprep.subr.bf16.mxu0 0
    %6898 = vmatpush1.bf16.msra.mxu0 0
    %6899 = vmatprep.subr.bf16.mxu0 0
    %6900 = vmatpush1.bf16.msra.mxu0 0
    %6901 = vmatprep.subr.bf16.mxu0 0
    %6902 = vmatpush1.bf16.msra.mxu0 0
    %6903 = vmatprep.subr.bf16.mxu0 0
    %6904 = vmatpush1.bf16.msra.mxu0 0
    %6905 = vmatprep.subr.bf16.mxu0 0
    %6906 = vmatpush1.bf16.msra.mxu0 0
    %6907 = vmatprep.subr.bf16.mxu0 0
    %6908 = vmatpush1.bf16.msra.mxu0 0
    %6909 = vmatprep.subr.bf16.mxu0 0
    %6910 = vmatpush1.bf16.msra.mxu0 0
    %6911 = vmatprep.subr.bf16.mxu0 0
    %6912 = vmatpush1.bf16.msra.mxu0 0
    %6913 = vmatprep.mubr.bf16.mxu0 0
    %6914 = vmatmul.mubr.bf16.gmra.mrb[0].mxu0 %v6879
    %v6915 = vpop.f32.mrb[0].mxu0
    %v6916 = vadd.f32 0.0, %v6915
    %v6917 = vpop.f32.mrb[0].mxu0
    %v6918 = vpop.f32.mrb[0].mxu0
    %v6919 = vpop.f32.mrb[0].mxu0
    %6920 = vdwg.mxu0
    %v6921 = vpack.c.bf16 %v6916, %v6916
    %v6922 = vld [vmem:[#allocation19] sm:$0xf]
    %v6923 = vld [vmem:[#allocation19 + $0x4] sm:$0xf]
    %s6924 = scalar_lea.vmem [#allocation17], 1
    %v6925 = vld [vmem:[%s6924] sm:$0x1]
    %v6927 = vsel %vm6877, %v6925, 0
    %6929 = vmatprep.subr.bf16.mxu0 0
    %6930 = vmatpush1.bf16.msra.mxu0 %v6874
    %6931 = vmatprep.subr.bf16.mxu0 0
    %6932 = vmatpush1.bf16.msra.mxu0 %v6875
    %6933 = vmatprep.subr.bf16.mxu0 0
    %6934 = vmatpush1.bf16.msra.mxu0 0
    %6935 = vmatprep.subr.bf16.mxu0 0
    %6936 = vmatpush1.bf16.msra.mxu0 0
    %6937 = vmatprep.subr.bf16.mxu0 0
    %6938 = vmatpush1.bf16.msra.mxu0 0
    %6939 = vmatprep.subr.bf16.mxu0 0
    %6940 = vmatpush1.bf16.msra.mxu0 0
    %6941 = vmatprep.subr.bf16.mxu0 0
    %6942 = vmatpush1.bf16.msra.mxu0 0
    %6943 = vmatprep.subr.bf16.mxu0 0
    %6944 = vmatpush1.bf16.msra.mxu0 0
    %6945 = vmatprep.subr.bf16.mxu0 0
    %6946 = vmatpush1.bf16.msra.mxu0 0
    %6947 = vmatprep.subr.bf16.mxu0 0
    %6948 = vmatpush1.bf16.msra.mxu0 0
    %6949 = vmatprep.subr.bf16.mxu0 0
    %6950 = vmatpush1.bf16.msra.mxu0 0
    %6951 = vmatprep.subr.bf16.mxu0 0
    %6952 = vmatpush1.bf16.msra.mxu0 0
    %6953 = vmatprep.subr.bf16.mxu0 0
    %6954 = vmatpush1.bf16.msra.mxu0 0
    %6955 = vmatprep.subr.bf16.mxu0 0
    %6956 = vmatpush1.bf16.msra.mxu0 0
    %6957 = vmatprep.subr.bf16.mxu0 0
    %6958 = vmatpush1.bf16.msra.mxu0 0
    %6959 = vmatprep.subr.bf16.mxu0 0
    %6960 = vmatpush1.bf16.msra.mxu0 0
    %6961 = vmatprep.mubr.bf16.mxu0 0
    %6962 = vmatmul.mubr.bf16.gmra.mrb[0].mxu0 %v6927
    %v6963 = vpop.f32.mrb[0].mxu0
    %v6964 = vadd.f32 0.0, %v6963
    %v6965 = vpop.f32.mrb[0].mxu0
    %v6966 = vpop.f32.mrb[0].mxu0
    %v6967 = vpop.f32.mrb[0].mxu0
    %6968 = vdwg.mxu0
    %v6969 = vpack.c.bf16 %v6964, %v6964
    %s6970 = scalar_lea.vmem [#allocation19], 8
    %v6971 = vld [vmem:[%s6970] sm:$0xf]
    %v6972 = vld [vmem:[%s6970 + $0x4] sm:$0xf]
    %v6975 = vunpack.c.l.b16 %v6971
    %v6976 = vunpack.c.l.b16 %v6972
    %v6977 = vpack.c.b16 %v6976, %v6975
    %v6980 = vsel %vm6793, %v6969, 0
    %6982 = vmatprep.subr.bf16.mxu0 0
    %6983 = vmatpush1.bf16.msra.mxu0 %v6977
    %6984 = vmatprep.subr.bf16.mxu0 0
    %6985 = vmatpush1.bf16.msra.mxu0 0
    %6986 = vmatprep.subr.bf16.mxu0 0
    %6987 = vmatpush1.bf16.msra.mxu0 0
    %6988 = vmatprep.subr.bf16.mxu0 0
    %6989 = vmatpush1.bf16.msra.mxu0 0
    %6990 = vmatprep.subr.bf16.mxu0 0
    %6991 = vmatpush1.bf16.msra.mxu0 0
    %6992 = vmatprep.subr.bf16.mxu0 0
    %6993 = vmatpush1.bf16.msra.mxu0 0
    %6994 = vmatprep.subr.bf16.mxu0 0
    %6995 = vmatpush1.bf16.msra.mxu0 0
    %6996 = vmatprep.subr.bf16.mxu0 0
    %6997 = vmatpush1.bf16.msra.mxu0 0
    %6998 = vmatprep.subr.bf16.mxu0 0
    %6999 = vmatpush1.bf16.msra.mxu0 0
    %7000 = vmatprep.subr.bf16.mxu0 0
    %7001 = vmatpush1.bf16.msra.mxu0 0
    %7002 = vmatprep.subr.bf16.mxu0 0
    %7003 = vmatpush1.bf16.msra.mxu0 0
    %7004 = vmatprep.subr.bf16.mxu0 0
    %7005 = vmatpush1.bf16.msra.mxu0 0
    %7006 = vmatprep.subr.bf16.mxu0 0
    %7007 = vmatpush1.bf16.msra.mxu0 0
    %7008 = vmatprep.subr.bf16.mxu0 0
    %7009 = vmatpush1.bf16.msra.mxu0 0
    %7010 = vmatprep.subr.bf16.mxu0 0
    %7011 = vmatpush1.bf16.msra.mxu0 0
    %7012 = vmatprep.subr.bf16.mxu0 0
    %7013 = vmatpush1.bf16.msra.mxu0 0
    %7014 = vmatprep.mubr.bf16.mxu0 0
    %7015 = vmatmul.mubr.bf16.gmra.mrb[0].mxu0 %v6980
    %v7016 = vpop.f32.mrb[0].mxu0
    %v7017 = vadd.f32 0.0, %v7016
    %v7018 = vpop.f32.mrb[0].mxu0
    %v7019 = vpop.f32.mrb[0].mxu0
    %v7020 = vpop.f32.mrb[0].mxu0
    %7021 = vdwg.mxu0
    %v7024 = vunpack.c.l.b16 %v6922
    %v7025 = vunpack.c.l.b16 %v6923
    %v7026 = vpack.c.b16 %v7025, %v7024
    %v7029 = vsel %vm6793, %v6921, 0
    %7031 = vmatprep.subr.bf16.mxu0 0
    %7032 = vmatpush1.bf16.msra.mxu0 %v7026
    %7033 = vmatprep.subr.bf16.mxu0 0
    %7034 = vmatpush1.bf16.msra.mxu0 0
    %7035 = vmatprep.subr.bf16.mxu0 0
    %7036 = vmatpush1.bf16.msra.mxu0 0
    %7037 = vmatprep.subr.bf16.mxu0 0
    %7038 = vmatpush1.bf16.msra.mxu0 0
    %7039 = vmatprep.subr.bf16.mxu0 0
    %7040 = vmatpush1.bf16.msra.mxu0 0
    %7041 = vmatprep.subr.bf16.mxu0 0
    %7042 = vmatpush1.bf16.msra.mxu0 0
    %7043 = vmatprep.subr.bf16.mxu0 0
    %7044 = vmatpush1.bf16.msra.mxu0 0
    %7045 = vmatprep.subr.bf16.mxu0 0
    %7046 = vmatpush1.bf16.msra.mxu0 0
    %7047 = vmatprep.subr.bf16.mxu0 0
    %7048 = vmatpush1.bf16.msra.mxu0 0
    %7049 = vmatprep.subr.bf16.mxu0 0
    %7050 = vmatpush1.bf16.msra.mxu0 0
    %7051 = vmatprep.subr.bf16.mxu0 0
    %7052 = vmatpush1.bf16.msra.mxu0 0
    %7053 = vmatprep.subr.bf16.mxu0 0
    %7054 = vmatpush1.bf16.msra.mxu0 0
    %7055 = vmatprep.subr.bf16.mxu0 0
    %7056 = vmatpush1.bf16.msra.mxu0 0
    %7057 = vmatprep.subr.bf16.mxu0 0
    %7058 = vmatpush1.bf16.msra.mxu0 0
    %7059 = vmatprep.subr.bf16.mxu0 0
    %7060 = vmatpush1.bf16.msra.mxu0 0
    %7061 = vmatprep.subr.bf16.mxu0 0
    %7062 = vmatpush1.bf16.msra.mxu0 0
    %7063 = vmatprep.mubr.bf16.mxu0 0
    %7064 = vmatmul.mubr.bf16.gmra.mrb[0].mxu0 %v7029
    %v7065 = vpop.f32.mrb[0].mxu0
    %v7066 = vadd.f32 %v7017, %v7065
    %v7067 = vpop.f32.mrb[0].mxu0
    %v7068 = vpop.f32.mrb[0].mxu0
    %v7069 = vpop.f32.mrb[0].mxu0
    %7070 = vdwg.mxu0
    %s7071 = scalar_lea.vmem [#allocation17], 2
    %v7072 = vld [vmem:[%s7071] sm:$0x1]
    %v7074 = vsel %vm6877, %v7072, 0
    %7076 = vmatprep.subr.bf16.mxu0 0
    %7077 = vmatpush1.bf16.msra.mxu0 %v6874
    %7078 = vmatprep.subr.bf16.mxu0 0
    %7079 = vmatpush1.bf16.msra.mxu0 %v6875
    %7080 = vmatprep.subr.bf16.mxu0 0
    %7081 = vmatpush1.bf16.msra.mxu0 0
    %7082 = vmatprep.subr.bf16.mxu0 0
    %7083 = vmatpush1.bf16.msra.mxu0 0
    %7084 = vmatprep.subr.bf16.mxu0 0
    %7085 = vmatpush1.bf16.msra.mxu0 0
    %7086 = vmatprep.subr.bf16.mxu0 0
    %7087 = vmatpush1.bf16.msra.mxu0 0
    %7088 = vmatprep.subr.bf16.mxu0 0
    %7089 = vmatpush1.bf16.msra.mxu0 0
    %7090 = vmatprep.subr.bf16.mxu0 0
    %7091 = vmatpush1.bf16.msra.mxu0 0
    %7092 = vmatprep.subr.bf16.mxu0 0
    %7093 = vmatpush1.bf16.msra.mxu0 0
    %7094 = vmatprep.subr.bf16.mxu0 0
    %7095 = vmatpush1.bf16.msra.mxu0 0
    %7096 = vmatprep.subr.bf16.mxu0 0
    %7097 = vmatpush1.bf16.msra.mxu0 0
    %7098 = vmatprep.subr.bf16.mxu0 0
    %7099 = vmatpush1.bf16.msra.mxu0 0
    %7100 = vmatprep.subr.bf16.mxu0 0
    %7101 = vmatpush1.bf16.msra.mxu0 0
    %7102 = vmatprep.subr.bf16.mxu0 0
    %7103 = vmatpush1.bf16.msra.mxu0 0
    %7104 = vmatprep.subr.bf16.mxu0 0
    %7105 = vmatpush1.bf16.msra.mxu0 0
    %7106 = vmatprep.subr.bf16.mxu0 0
    %7107 = vmatpush1.bf16.msra.mxu0 0
    %7108 = vmatprep.mubr.bf16.mxu0 0
    %7109 = vmatmul.mubr.bf16.gmra.mrb[0].mxu0 %v7074
    %v7110 = vpop.f32.mrb[0].mxu0
    %v7111 = vadd.f32 0.0, %v7110
    %v7112 = vpop.f32.mrb[0].mxu0
    %v7113 = vpop.f32.mrb[0].mxu0
    %v7114 = vpop.f32.mrb[0].mxu0
    %7115 = vdwg.mxu0
    %v7116 = vpack.c.bf16 %v7111, %v7111
    %s7117 = scalar_lea.vmem [#allocation19], 16
    %v7118 = vld [vmem:[%s7117] sm:$0xf]
    %v7119 = vld [vmem:[%s7117 + $0x4] sm:$0xf]
    %v7122 = vunpack.c.l.b16 %v7118
    %v7123 = vunpack.c.l.b16 %v7119
    %v7124 = vpack.c.b16 %v7123, %v7122
    %v7127 = vsel %vm6793, %v7116, 0
    %7129 = vmatprep.subr.bf16.mxu0 0
    %7130 = vmatpush1.bf16.msra.mxu0 %v7124
    %7131 = vmatprep.subr.bf16.mxu0 0
    %7132 = vmatpush1.bf16.msra.mxu0 0
    %7133 = vmatprep.subr.bf16.mxu0 0
    %7134 = vmatpush1.bf16.msra.mxu0 0
    %7135 = vmatprep.subr.bf16.mxu0 0
    %7136 = vmatpush1.bf16.msra.mxu0 0
    %7137 = vmatprep.subr.bf16.mxu0 0
    %7138 = vmatpush1.bf16.msra.mxu0 0
    %7139 = vmatprep.subr.bf16.mxu0 0
    %7140 = vmatpush1.bf16.msra.mxu0 0
    %7141 = vmatprep.subr.bf16.mxu0 0
    %7142 = vmatpush1.bf16.msra.mxu0 0
    %7143 = vmatprep.subr.bf16.mxu0 0
    %7144 = vmatpush1.bf16.msra.mxu0 0
    %7145 = vmatprep.subr.bf16.mxu0 0
    %7146 = vmatpush1.bf16.msra.mxu0 0
    %7147 = vmatprep.subr.bf16.mxu0 0
    %7148 = vmatpush1.bf16.msra.mxu0 0
    %7149 = vmatprep.subr.bf16.mxu0 0
    %7150 = vmatpush1.bf16.msra.mxu0 0
    %7151 = vmatprep.subr.bf16.mxu0 0
    %7152 = vmatpush1.bf16.msra.mxu0 0
    %7153 = vmatprep.subr.bf16.mxu0 0
    %7154 = vmatpush1.bf16.msra.mxu0 0
    %7155 = vmatprep.subr.bf16.mxu0 0
    %7156 = vmatpush1.bf16.msra.mxu0 0
    %7157 = vmatprep.subr.bf16.mxu0 0
    %7158 = vmatpush1.bf16.msra.mxu0 0
    %7159 = vmatprep.subr.bf16.mxu0 0
    %7160 = vmatpush1.bf16.msra.mxu0 0
    %7161 = vmatprep.mubr.bf16.mxu0 0
    %7162 = vmatmul.mubr.bf16.gmra.mrb[0].mxu0 %v7127
    %v7163 = vpop.f32.mrb[0].mxu0
    %v7164 = vadd.f32 0.0, %v7163
    %v7165 = vpop.f32.mrb[0].mxu0
    %v7166 = vpop.f32.mrb[0].mxu0
    %v7167 = vpop.f32.mrb[0].mxu0
    %7168 = vdwg.mxu0
    %v7169 = vadd.f32 %v7066, %v7164
    %s7170 = scalar_lea.vmem [#allocation17], 3
    %v7171 = vld [vmem:[%s7170] sm:$0x1]
    %v7173 = vsel %vm6877, %v7171, 0
    %7175 = vmatprep.subr.bf16.mxu0 0
    %7176 = vmatpush1.bf16.msra.mxu0 %v6874
    %7177 = vmatprep.subr.bf16.mxu0 0
    %7178 = vmatpush1.bf16.msra.mxu0 %v6875
    %7179 = vmatprep.subr.bf16.mxu0 0
    %7180 = vmatpush1.bf16.msra.mxu0 0
    %7181 = vmatprep.subr.bf16.mxu0 0
    %7182 = vmatpush1.bf16.msra.mxu0 0
    %7183 = vmatprep.subr.bf16.mxu0 0
    %7184 = vmatpush1.bf16.msra.mxu0 0
    %7185 = vmatprep.subr.bf16.mxu0 0
    %7186 = vmatpush1.bf16.msra.mxu0 0
    %7187 = vmatprep.subr.bf16.mxu0 0
    %7188 = vmatpush1.bf16.msra.mxu0 0
    %7189 = vmatprep.subr.bf16.mxu0 0
    %7190 = vmatpush1.bf16.msra.mxu0 0
    %7191 = vmatprep.subr.bf16.mxu0 0
    %7192 = vmatpush1.bf16.msra.mxu0 0
    %7193 = vmatprep.subr.bf16.mxu0 0
    %7194 = vmatpush1.bf16.msra.mxu0 0
    %7195 = vmatprep.subr.bf16.mxu0 0
    %7196 = vmatpush1.bf16.msra.mxu0 0
    %7197 = vmatprep.subr.bf16.mxu0 0
    %7198 = vmatpush1.bf16.msra.mxu0 0
    %7199 = vmatprep.subr.bf16.mxu0 0
    %7200 = vmatpush1.bf16.msra.mxu0 0
    %7201 = vmatprep.subr.bf16.mxu0 0
    %7202 = vmatpush1.bf16.msra.mxu0 0
    %7203 = vmatprep.subr.bf16.mxu0 0
    %7204 = vmatpush1.bf16.msra.mxu0 0
    %7205 = vmatprep.subr.bf16.mxu0 0
    %7206 = vmatpush1.bf16.msra.mxu0 0
    %7207 = vmatprep.mubr.bf16.mxu0 0
    %7208 = vmatmul.mubr.bf16.gmra.mrb[0].mxu0 %v7173
    %v7209 = vpop.f32.mrb[0].mxu0
    %v7210 = vadd.f32 0.0, %v7209
    %v7211 = vpop.f32.mrb[0].mxu0
    %v7212 = vpop.f32.mrb[0].mxu0
    %v7213 = vpop.f32.mrb[0].mxu0
    %7214 = vdwg.mxu0
    %v7215 = vpack.c.bf16 %v7210, %v7210
    %s7216 = scalar_lea.vmem [#allocation19], 24
    %v7217 = vld [vmem:[%s7216] sm:$0xf]
    %v7218 = vld [vmem:[%s7216 + $0x4] sm:$0xf]
    %v7221 = vunpack.c.l.b16 %v7217
    %v7222 = vunpack.c.l.b16 %v7218
    %v7223 = vpack.c.b16 %v7222, %v7221
    %v7226 = vsel %vm6793, %v7215, 0
    %7228 = vmatprep.subr.bf16.mxu0 0
    %7229 = vmatpush1.bf16.msra.mxu0 %v7223
    %7230 = vmatprep.subr.bf16.mxu0 0
    %7231 = vmatpush1.bf16.msra.mxu0 0
    %7232 = vmatprep.subr.bf16.mxu0 0
    %7233 = vmatpush1.bf16.msra.mxu0 0
    %7234 = vmatprep.subr.bf16.mxu0 0
    %7235 = vmatpush1.bf16.msra.mxu0 0
    %7236 = vmatprep.subr.bf16.mxu0 0
    %7237 = vmatpush1.bf16.msra.mxu0 0
    %7238 = vmatprep.subr.bf16.mxu0 0
    %7239 = vmatpush1.bf16.msra.mxu0 0
    %7240 = vmatprep.subr.bf16.mxu0 0
    %7241 = vmatpush1.bf16.msra.mxu0 0
    %7242 = vmatprep.subr.bf16.mxu0 0
    %7243 = vmatpush1.bf16.msra.mxu0 0
    %7244 = vmatprep.subr.bf16.mxu0 0
    %7245 = vmatpush1.bf16.msra.mxu0 0
    %7246 = vmatprep.subr.bf16.mxu0 0
    %7247 = vmatpush1.bf16.msra.mxu0 0
    %7248 = vmatprep.subr.bf16.mxu0 0
    %7249 = vmatpush1.bf16.msra.mxu0 0
    %7250 = vmatprep.subr.bf16.mxu0 0
    %7251 = vmatpush1.bf16.msra.mxu0 0
    %7252 = vmatprep.subr.bf16.mxu0 0
    %7253 = vmatpush1.bf16.msra.mxu0 0
    %7254 = vmatprep.subr.bf16.mxu0 0
    %7255 = vmatpush1.bf16.msra.mxu0 0
    %7256 = vmatprep.subr.bf16.mxu0 0
    %7257 = vmatpush1.bf16.msra.mxu0 0
    %7258 = vmatprep.subr.bf16.mxu0 0
    %7259 = vmatpush1.bf16.msra.mxu0 0
    %7260 = vmatprep.mubr.bf16.mxu0 0
    %7261 = vmatmul.mubr.bf16.gmra.mrb[0].mxu0 %v7226
    %v7262 = vpop.f32.mrb[0].mxu0
    %v7263 = vadd.f32 0.0, %v7262
    %v7264 = vpop.f32.mrb[0].mxu0
    %v7265 = vpop.f32.mrb[0].mxu0
    %v7266 = vpop.f32.mrb[0].mxu0
    %7267 = vdwg.mxu0
    %v7268 = vadd.f32 %v7169, %v7263
    %s7269 = scalar_lea.vmem [#allocation17], 4
    %v7270 = vld [vmem:[%s7269] sm:$0x1]
    %v7272 = vsel %vm6877, %v7270, 0
    %7274 = vmatprep.subr.bf16.mxu0 0
    %7275 = vmatpush1.bf16.msra.mxu0 %v6874
    %7276 = vmatprep.subr.bf16.mxu0 0
    %7277 = vmatpush1.bf16.msra.mxu0 %v6875
    %7278 = vmatprep.subr.bf16.mxu0 0
    %7279 = vmatpush1.bf16.msra.mxu0 0
    %7280 = vmatprep.subr.bf16.mxu0 0
    %7281 = vmatpush1.bf16.msra.mxu0 0
    %7282 = vmatprep.subr.bf16.mxu0 0
    %7283 = vmatpush1.bf16.msra.mxu0 0
    %7284 = vmatprep.subr.bf16.mxu0 0
    %7285 = vmatpush1.bf16.msra.mxu0 0
    %7286 = vmatprep.subr.bf16.mxu0 0
    %7287 = vmatpush1.bf16.msra.mxu0 0
    %7288 = vmatprep.subr.bf16.mxu0 0
    %7289 = vmatpush1.bf16.msra.mxu0 0
    %7290 = vmatprep.subr.bf16.mxu0 0
    %7291 = vmatpush1.bf16.msra.mxu0 0
    %7292 = vmatprep.subr.bf16.mxu0 0
    %7293 = vmatpush1.bf16.msra.mxu0 0
    %7294 = vmatprep.subr.bf16.mxu0 0
    %7295 = vmatpush1.bf16.msra.mxu0 0
    %7296 = vmatprep.subr.bf16.mxu0 0
    %7297 = vmatpush1.bf16.msra.mxu0 0
    %7298 = vmatprep.subr.bf16.mxu0 0
    %7299 = vmatpush1.bf16.msra.mxu0 0
    %7300 = vmatprep.subr.bf16.mxu0 0
    %7301 = vmatpush1.bf16.msra.mxu0 0
    %7302 = vmatprep.subr.bf16.mxu0 0
    %7303 = vmatpush1.bf16.msra.mxu0 0
    %7304 = vmatprep.subr.bf16.mxu0 0
    %7305 = vmatpush1.bf16.msra.mxu0 0
    %7306 = vmatprep.mubr.bf16.mxu0 0
    %7307 = vmatmul.mubr.bf16.gmra.mrb[0].mxu0 %v7272
    %v7308 = vpop.f32.mrb[0].mxu0
    %v7309 = vadd.f32 0.0, %v7308
    %v7310 = vpop.f32.mrb[0].mxu0
    %v7311 = vpop.f32.mrb[0].mxu0
    %v7312 = vpop.f32.mrb[0].mxu0
    %7313 = vdwg.mxu0
    %v7314 = vpack.c.bf16 %v7309, %v7309
    %s7315 = scalar_lea.vmem [#allocation19], 32
    %v7316 = vld [vmem:[%s7315] sm:$0xf]
    %v7317 = vld [vmem:[%s7315 + $0x4] sm:$0xf]
    %v7320 = vunpack.c.l.b16 %v7316
    %v7321 = vunpack.c.l.b16 %v7317
    %v7322 = vpack.c.b16 %v7321, %v7320
    %v7325 = vsel %vm6793, %v7314, 0
    %7327 = vmatprep.subr.bf16.mxu0 0
    %7328 = vmatpush1.bf16.msra.mxu0 %v7322
    %7329 = vmatprep.subr.bf16.mxu0 0
    %7330 = vmatpush1.bf16.msra.mxu0 0
    %7331 = vmatprep.subr.bf16.mxu0 0
    %7332 = vmatpush1.bf16.msra.mxu0 0
    %7333 = vmatprep.subr.bf16.mxu0 0
    %7334 = vmatpush1.bf16.msra.mxu0 0
    %7335 = vmatprep.subr.bf16.mxu0 0
    %7336 = vmatpush1.bf16.msra.mxu0 0
    %7337 = vmatprep.subr.bf16.mxu0 0
    %7338 = vmatpush1.bf16.msra.mxu0 0
    %7339 = vmatprep.subr.bf16.mxu0 0
    %7340 = vmatpush1.bf16.msra.mxu0 0
    %7341 = vmatprep.subr.bf16.mxu0 0
    %7342 = vmatpush1.bf16.msra.mxu0 0
    %7343 = vmatprep.subr.bf16.mxu0 0
    %7344 = vmatpush1.bf16.msra.mxu0 0
    %7345 = vmatprep.subr.bf16.mxu0 0
    %7346 = vmatpush1.bf16.msra.mxu0 0
    %7347 = vmatprep.subr.bf16.mxu0 0
    %7348 = vmatpush1.bf16.msra.mxu0 0
    %7349 = vmatprep.subr.bf16.mxu0 0
    %7350 = vmatpush1.bf16.msra.mxu0 0
    %7351 = vmatprep.subr.bf16.mxu0 0
    %7352 = vmatpush1.bf16.msra.mxu0 0
    %7353 = vmatprep.subr.bf16.mxu0 0
    %7354 = vmatpush1.bf16.msra.mxu0 0
    %7355 = vmatprep.subr.bf16.mxu0 0
    %7356 = vmatpush1.bf16.msra.mxu0 0
    %7357 = vmatprep.subr.bf16.mxu0 0
    %7358 = vmatpush1.bf16.msra.mxu0 0
    %7359 = vmatprep.mubr.bf16.mxu0 0
    %7360 = vmatmul.mubr.bf16.gmra.mrb[0].mxu0 %v7325
    %v7361 = vpop.f32.mrb[0].mxu0
    %v7362 = vadd.f32 0.0, %v7361
    %v7363 = vpop.f32.mrb[0].mxu0
    %v7364 = vpop.f32.mrb[0].mxu0
    %v7365 = vpop.f32.mrb[0].mxu0
    %7366 = vdwg.mxu0
    %v7367 = vadd.f32 %v7268, %v7362
    %s7368 = scalar_lea.vmem [#allocation17], 5
    %v7369 = vld [vmem:[%s7368] sm:$0x1]
    %v7371 = vsel %vm6877, %v7369, 0
    %7373 = vmatprep.subr.bf16.mxu0 0
    %7374 = vmatpush1.bf16.msra.mxu0 %v6874
    %7375 = vmatprep.subr.bf16.mxu0 0
    %7376 = vmatpush1.bf16.msra.mxu0 %v6875
    %7377 = vmatprep.subr.bf16.mxu0 0
    %7378 = vmatpush1.bf16.msra.mxu0 0
    %7379 = vmatprep.subr.bf16.mxu0 0
    %7380 = vmatpush1.bf16.msra.mxu0 0
    %7381 = vmatprep.subr.bf16.mxu0 0
    %7382 = vmatpush1.bf16.msra.mxu0 0
    %7383 = vmatprep.subr.bf16.mxu0 0
    %7384 = vmatpush1.bf16.msra.mxu0 0
    %7385 = vmatprep.subr.bf16.mxu0 0
    %7386 = vmatpush1.bf16.msra.mxu0 0
    %7387 = vmatprep.subr.bf16.mxu0 0
    %7388 = vmatpush1.bf16.msra.mxu0 0
    %7389 = vmatprep.subr.bf16.mxu0 0
    %7390 = vmatpush1.bf16.msra.mxu0 0
    %7391 = vmatprep.subr.bf16.mxu0 0
    %7392 = vmatpush1.bf16.msra.mxu0 0
    %7393 = vmatprep.subr.bf16.mxu0 0
    %7394 = vmatpush1.bf16.msra.mxu0 0
    %7395 = vmatprep.subr.bf16.mxu0 0
    %7396 = vmatpush1.bf16.msra.mxu0 0
    %7397 = vmatprep.subr.bf16.mxu0 0
    %7398 = vmatpush1.bf16.msra.mxu0 0
    %7399 = vmatprep.subr.bf16.mxu0 0
    %7400 = vmatpush1.bf16.msra.mxu0 0
    %7401 = vmatprep.subr.bf16.mxu0 0
    %7402 = vmatpush1.bf16.msra.mxu0 0
    %7403 = vmatprep.subr.bf16.mxu0 0
    %7404 = vmatpush1.bf16.msra.mxu0 0
    %7405 = vmatprep.mubr.bf16.mxu0 0
    %7406 = vmatmul.mubr.bf16.gmra.mrb[0].mxu0 %v7371
    %v7407 = vpop.f32.mrb[0].mxu0
    %v7408 = vadd.f32 0.0, %v7407
    %v7409 = vpop.f32.mrb[0].mxu0
    %v7410 = vpop.f32.mrb[0].mxu0
    %v7411 = vpop.f32.mrb[0].mxu0
    %7412 = vdwg.mxu0
    %v7413 = vpack.c.bf16 %v7408, %v7408
    %s7414 = scalar_lea.vmem [#allocation19], 40
    %v7415 = vld [vmem:[%s7414] sm:$0xf]
    %v7416 = vld [vmem:[%s7414 + $0x4] sm:$0xf]
    %v7419 = vunpack.c.l.b16 %v7415
    %v7420 = vunpack.c.l.b16 %v7416
    %v7421 = vpack.c.b16 %v7420, %v7419
    %v7424 = vsel %vm6793, %v7413, 0
    %7426 = vmatprep.subr.bf16.mxu0 0
    %7427 = vmatpush1.bf16.msra.mxu0 %v7421
    %7428 = vmatprep.subr.bf16.mxu0 0
    %7429 = vmatpush1.bf16.msra.mxu0 0
    %7430 = vmatprep.subr.bf16.mxu0 0
    %7431 = vmatpush1.bf16.msra.mxu0 0
    %7432 = vmatprep.subr.bf16.mxu0 0
    %7433 = vmatpush1.bf16.msra.mxu0 0
    %7434 = vmatprep.subr.bf16.mxu0 0
    %7435 = vmatpush1.bf16.msra.mxu0 0
    %7436 = vmatprep.subr.bf16.mxu0 0
    %7437 = vmatpush1.bf16.msra.mxu0 0
    %7438 = vmatprep.subr.bf16.mxu0 0
    %7439 = vmatpush1.bf16.msra.mxu0 0
    %7440 = vmatprep.subr.bf16.mxu0 0
    %7441 = vmatpush1.bf16.msra.mxu0 0
    %7442 = vmatprep.subr.bf16.mxu0 0
    %7443 = vmatpush1.bf16.msra.mxu0 0
    %7444 = vmatprep.subr.bf16.mxu0 0
    %7445 = vmatpush1.bf16.msra.mxu0 0
    %7446 = vmatprep.subr.bf16.mxu0 0
    %7447 = vmatpush1.bf16.msra.mxu0 0
    %7448 = vmatprep.subr.bf16.mxu0 0
    %7449 = vmatpush1.bf16.msra.mxu0 0
    %7450 = vmatprep.subr.bf16.mxu0 0
    %7451 = vmatpush1.bf16.msra.mxu0 0
    %7452 = vmatprep.subr.bf16.mxu0 0
    %7453 = vmatpush1.bf16.msra.mxu0 0
    %7454 = vmatprep.subr.bf16.mxu0 0
    %7455 = vmatpush1.bf16.msra.mxu0 0
    %7456 = vmatprep.subr.bf16.mxu0 0
    %7457 = vmatpush1.bf16.msra.mxu0 0
    %7458 = vmatprep.mubr.bf16.mxu0 0
    %7459 = vmatmul.mubr.bf16.gmra.mrb[0].mxu0 %v7424
    %v7460 = vpop.f32.mrb[0].mxu0
    %v7461 = vadd.f32 0.0, %v7460
    %v7462 = vpop.f32.mrb[0].mxu0
    %v7463 = vpop.f32.mrb[0].mxu0
    %v7464 = vpop.f32.mrb[0].mxu0
    %7465 = vdwg.mxu0
    %v7466 = vadd.f32 %v7367, %v7461
    %s7467 = scalar_lea.vmem [#allocation17], 6
    %v7468 = vld [vmem:[%s7467] sm:$0x1]
    %v7470 = vsel %vm6877, %v7468, 0
    %7472 = vmatprep.subr.bf16.mxu0 0
    %7473 = vmatpush1.bf16.msra.mxu0 %v6874
    %7474 = vmatprep.subr.bf16.mxu0 0
    %7475 = vmatpush1.bf16.msra.mxu0 %v6875
    %7476 = vmatprep.subr.bf16.mxu0 0
    %7477 = vmatpush1.bf16.msra.mxu0 0
    %7478 = vmatprep.subr.bf16.mxu0 0
    %7479 = vmatpush1.bf16.msra.mxu0 0
    %7480 = vmatprep.subr.bf16.mxu0 0
    %7481 = vmatpush1.bf16.msra.mxu0 0
    %7482 = vmatprep.subr.bf16.mxu0 0
    %7483 = vmatpush1.bf16.msra.mxu0 0
    %7484 = vmatprep.subr.bf16.mxu0 0
    %7485 = vmatpush1.bf16.msra.mxu0 0
    %7486 = vmatprep.subr.bf16.mxu0 0
    %7487 = vmatpush1.bf16.msra.mxu0 0
    %7488 = vmatprep.subr.bf16.mxu0 0
    %7489 = vmatpush1.bf16.msra.mxu0 0
    %7490 = vmatprep.subr.bf16.mxu0 0
    %7491 = vmatpush1.bf16.msra.mxu0 0
    %7492 = vmatprep.subr.bf16.mxu0 0
    %7493 = vmatpush1.bf16.msra.mxu0 0
    %7494 = vmatprep.subr.bf16.mxu0 0
    %7495 = vmatpush1.bf16.msra.mxu0 0
    %7496 = vmatprep.subr.bf16.mxu0 0
    %7497 = vmatpush1.bf16.msra.mxu0 0
    %7498 = vmatprep.subr.bf16.mxu0 0
    %7499 = vmatpush1.bf16.msra.mxu0 0
    %7500 = vmatprep.subr.bf16.mxu0 0
    %7501 = vmatpush1.bf16.msra.mxu0 0
    %7502 = vmatprep.subr.bf16.mxu0 0
    %7503 = vmatpush1.bf16.msra.mxu0 0
    %7504 = vmatprep.mubr.bf16.mxu0 0
    %7505 = vmatmul.mubr.bf16.gmra.mrb[0].mxu0 %v7470
    %v7506 = vpop.f32.mrb[0].mxu0
    %v7507 = vadd.f32 0.0, %v7506
    %v7508 = vpop.f32.mrb[0].mxu0
    %v7509 = vpop.f32.mrb[0].mxu0
    %v7510 = vpop.f32.mrb[0].mxu0
    %7511 = vdwg.mxu0
    %v7512 = vpack.c.bf16 %v7507, %v7507
    %s7513 = scalar_lea.vmem [#allocation19], 48
    %v7514 = vld [vmem:[%s7513] sm:$0xf]
    %v7515 = vld [vmem:[%s7513 + $0x4] sm:$0xf]
    %v7518 = vunpack.c.l.b16 %v7514
    %v7519 = vunpack.c.l.b16 %v7515
    %v7520 = vpack.c.b16 %v7519, %v7518
    %v7523 = vsel %vm6793, %v7512, 0
    %7525 = vmatprep.subr.bf16.mxu0 0
    %7526 = vmatpush1.bf16.msra.mxu0 %v7520
    %7527 = vmatprep.subr.bf16.mxu0 0
    %7528 = vmatpush1.bf16.msra.mxu0 0
    %7529 = vmatprep.subr.bf16.mxu0 0
    %7530 = vmatpush1.bf16.msra.mxu0 0
    %7531 = vmatprep.subr.bf16.mxu0 0
    %7532 = vmatpush1.bf16.msra.mxu0 0
    %7533 = vmatprep.subr.bf16.mxu0 0
    %7534 = vmatpush1.bf16.msra.mxu0 0
    %7535 = vmatprep.subr.bf16.mxu0 0
    %7536 = vmatpush1.bf16.msra.mxu0 0
    %7537 = vmatprep.subr.bf16.mxu0 0
    %7538 = vmatpush1.bf16.msra.mxu0 0
    %7539 = vmatprep.subr.bf16.mxu0 0
    %7540 = vmatpush1.bf16.msra.mxu0 0
    %7541 = vmatprep.subr.bf16.mxu0 0
    %7542 = vmatpush1.bf16.msra.mxu0 0
    %7543 = vmatprep.subr.bf16.mxu0 0
    %7544 = vmatpush1.bf16.msra.mxu0 0
    %7545 = vmatprep.subr.bf16.mxu0 0
    %7546 = vmatpush1.bf16.msra.mxu0 0
    %7547 = vmatprep.subr.bf16.mxu0 0
    %7548 = vmatpush1.bf16.msra.mxu0 0
    %7549 = vmatprep.subr.bf16.mxu0 0
    %7550 = vmatpush1.bf16.msra.mxu0 0
    %7551 = vmatprep.subr.bf16.mxu0 0
    %7552 = vmatpush1.bf16.msra.mxu0 0
    %7553 = vmatprep.subr.bf16.mxu0 0
    %7554 = vmatpush1.bf16.msra.mxu0 0
    %7555 = vmatprep.subr.bf16.mxu0 0
    %7556 = vmatpush1.bf16.msra.mxu0 0
    %7557 = vmatprep.mubr.bf16.mxu0 0
    %7558 = vmatmul.mubr.bf16.gmra.mrb[0].mxu0 %v7523
    %v7559 = vpop.f32.mrb[0].mxu0
    %v7560 = vadd.f32 0.0, %v7559
    %v7561 = vpop.f32.mrb[0].mxu0
    %v7562 = vpop.f32.mrb[0].mxu0
    %v7563 = vpop.f32.mrb[0].mxu0
    %7564 = vdwg.mxu0
    %v7565 = vadd.f32 %v7466, %v7560
    %s7566 = scalar_lea.vmem [#allocation17], 7
    %v7567 = vld [vmem:[%s7566] sm:$0x1]
    %v7569 = vsel %vm6877, %v7567, 0
    %7571 = vmatprep.subr.bf16.mxu0 0
    %7572 = vmatpush1.bf16.msra.mxu0 %v6874
    %7573 = vmatprep.subr.bf16.mxu0 0
    %7574 = vmatpush1.bf16.msra.mxu0 %v6875
    %7575 = vmatprep.subr.bf16.mxu0 0
    %7576 = vmatpush1.bf16.msra.mxu0 0
    %7577 = vmatprep.subr.bf16.mxu0 0
    %7578 = vmatpush1.bf16.msra.mxu0 0
    %7579 = vmatprep.subr.bf16.mxu0 0
    %7580 = vmatpush1.bf16.msra.mxu0 0
    %7581 = vmatprep.subr.bf16.mxu0 0
    %7582 = vmatpush1.bf16.msra.mxu0 0
    %7583 = vmatprep.subr.bf16.mxu0 0
    %7584 = vmatpush1.bf16.msra.mxu0 0
    %7585 = vmatprep.subr.bf16.mxu0 0
    %7586 = vmatpush1.bf16.msra.mxu0 0
    %7587 = vmatprep.subr.bf16.mxu0 0
    %7588 = vmatpush1.bf16.msra.mxu0 0
    %7589 = vmatprep.subr.bf16.mxu0 0
    %7590 = vmatpush1.bf16.msra.mxu0 0
    %7591 = vmatprep.subr.bf16.mxu0 0
    %7592 = vmatpush1.bf16.msra.mxu0 0
    %7593 = vmatprep.subr.bf16.mxu0 0
    %7594 = vmatpush1.bf16.msra.mxu0 0
    %7595 = vmatprep.subr.bf16.mxu0 0
    %7596 = vmatpush1.bf16.msra.mxu0 0
    %7597 = vmatprep.subr.bf16.mxu0 0
    %7598 = vmatpush1.bf16.msra.mxu0 0
    %7599 = vmatprep.subr.bf16.mxu0 0
    %7600 = vmatpush1.bf16.msra.mxu0 0
    %7601 = vmatprep.subr.bf16.mxu0 0
    %7602 = vmatpush1.bf16.msra.mxu0 0
    %7603 = vmatprep.mubr.bf16.mxu0 0
    %7604 = vmatmul.mubr.bf16.gmra.mrb[0].mxu0 %v7569
    %v7605 = vpop.f32.mrb[0].mxu0
    %v7606 = vadd.f32 0.0, %v7605
    %v7607 = vpop.f32.mrb[0].mxu0
    %v7608 = vpop.f32.mrb[0].mxu0
    %v7609 = vpop.f32.mrb[0].mxu0
    %7610 = vdwg.mxu0
    %v7611 = vpack.c.bf16 %v7606, %v7606
    %s7612 = scalar_lea.vmem [#allocation19], 56
    %v7613 = vld [vmem:[%s7612] sm:$0xf]
    %v7614 = vld [vmem:[%s7612 + $0x4] sm:$0xf]
    %v7617 = vunpack.c.l.b16 %v7613
    %v7618 = vunpack.c.l.b16 %v7614
    %v7619 = vpack.c.b16 %v7618, %v7617
    %v7622 = vsel %vm6793, %v7611, 0
    %7624 = vmatprep.subr.bf16.mxu0 0
    %7625 = vmatpush1.bf16.msra.mxu0 %v7619
    %7626 = vmatprep.subr.bf16.mxu0 0
    %7627 = vmatpush1.bf16.msra.mxu0 0
    %7628 = vmatprep.subr.bf16.mxu0 0
    %7629 = vmatpush1.bf16.msra.mxu0 0
    %7630 = vmatprep.subr.bf16.mxu0 0
    %7631 = vmatpush1.bf16.msra.mxu0 0
    %7632 = vmatprep.subr.bf16.mxu0 0
    %7633 = vmatpush1.bf16.msra.mxu0 0
    %7634 = vmatprep.subr.bf16.mxu0 0
    %7635 = vmatpush1.bf16.msra.mxu0 0
    %7636 = vmatprep.subr.bf16.mxu0 0
    %7637 = vmatpush1.bf16.msra.mxu0 0
    %7638 = vmatprep.subr.bf16.mxu0 0
    %7639 = vmatpush1.bf16.msra.mxu0 0
    %7640 = vmatprep.subr.bf16.mxu0 0
    %7641 = vmatpush1.bf16.msra.mxu0 0
    %7642 = vmatprep.subr.bf16.mxu0 0
    %7643 = vmatpush1.bf16.msra.mxu0 0
    %7644 = vmatprep.subr.bf16.mxu0 0
    %7645 = vmatpush1.bf16.msra.mxu0 0
    %7646 = vmatprep.subr.bf16.mxu0 0
    %7647 = vmatpush1.bf16.msra.mxu0 0
    %7648 = vmatprep.subr.bf16.mxu0 0
    %7649 = vmatpush1.bf16.msra.mxu0 0
    %7650 = vmatprep.subr.bf16.mxu0 0
    %7651 = vmatpush1.bf16.msra.mxu0 0
    %7652 = vmatprep.subr.bf16.mxu0 0
    %7653 = vmatpush1.bf16.msra.mxu0 0
    %7654 = vmatprep.subr.bf16.mxu0 0
    %7655 = vmatpush1.bf16.msra.mxu0 0
    %7656 = vmatprep.mubr.bf16.mxu0 0
    %7657 = vmatmul.mubr.bf16.gmra.mrb[0].mxu0 %v7622
    %v7658 = vpop.f32.mrb[0].mxu0
    %v7659 = vadd.f32 0.0, %v7658
    %v7660 = vpop.f32.mrb[0].mxu0
    %v7661 = vpop.f32.mrb[0].mxu0
    %v7662 = vpop.f32.mrb[0].mxu0
    %7663 = vdwg.mxu0
    %v7664 = vadd.f32 %v7565, %v7659
    %s7665 = scalar_lea.vmem [#allocation17], 8
    %v7666 = vld [vmem:[%s7665] sm:$0x1]
    %v7668 = vsel %vm6877, %v7666, 0
    %7670 = vmatprep.subr.bf16.mxu0 0
    %7671 = vmatpush1.bf16.msra.mxu0 %v6874
    %7672 = vmatprep.subr.bf16.mxu0 0
    %7673 = vmatpush1.bf16.msra.mxu0 %v6875
    %7674 = vmatprep.subr.bf16.mxu0 0
    %7675 = vmatpush1.bf16.msra.mxu0 0
    %7676 = vmatprep.subr.bf16.mxu0 0
    %7677 = vmatpush1.bf16.msra.mxu0 0
    %7678 = vmatprep.subr.bf16.mxu0 0
    %7679 = vmatpush1.bf16.msra.mxu0 0
    %7680 = vmatprep.subr.bf16.mxu0 0
    %7681 = vmatpush1.bf16.msra.mxu0 0
    %7682 = vmatprep.subr.bf16.mxu0 0
    %7683 = vmatpush1.bf16.msra.mxu0 0
    %7684 = vmatprep.subr.bf16.mxu0 0
    %7685 = vmatpush1.bf16.msra.mxu0 0
    %7686 = vmatprep.subr.bf16.mxu0 0
    %7687 = vmatpush1.bf16.msra.mxu0 0
    %7688 = vmatprep.subr.bf16.mxu0 0
    %7689 = vmatpush1.bf16.msra.mxu0 0
    %7690 = vmatprep.subr.bf16.mxu0 0
    %7691 = vmatpush1.bf16.msra.mxu0 0
    %7692 = vmatprep.subr.bf16.mxu0 0
    %7693 = vmatpush1.bf16.msra.mxu0 0
    %7694 = vmatprep.subr.bf16.mxu0 0
    %7695 = vmatpush1.bf16.msra.mxu0 0
    %7696 = vmatprep.subr.bf16.mxu0 0
    %7697 = vmatpush1.bf16.msra.mxu0 0
    %7698 = vmatprep.subr.bf16.mxu0 0
    %7699 = vmatpush1.bf16.msra.mxu0 0
    %7700 = vmatprep.subr.bf16.mxu0 0
    %7701 = vmatpush1.bf16.msra.mxu0 0
    %7702 = vmatprep.mubr.bf16.mxu0 0
    %7703 = vmatmul.mubr.bf16.gmra.mrb[0].mxu0 %v7668
    %v7704 = vpop.f32.mrb[0].mxu0
    %v7705 = vadd.f32 0.0, %v7704
    %v7706 = vpop.f32.mrb[0].mxu0
    %v7707 = vpop.f32.mrb[0].mxu0
    %v7708 = vpop.f32.mrb[0].mxu0
    %7709 = vdwg.mxu0
    %v7710 = vpack.c.bf16 %v7705, %v7705
    %s7711 = scalar_lea.vmem [#allocation19], 64
    %v7712 = vld [vmem:[%s7711] sm:$0xf]
    %v7713 = vld [vmem:[%s7711 + $0x4] sm:$0xf]
    %v7716 = vunpack.c.l.b16 %v7712
    %v7717 = vunpack.c.l.b16 %v7713
    %v7718 = vpack.c.b16 %v7717, %v7716
    %v7721 = vsel %vm6793, %v7710, 0
    %7723 = vmatprep.subr.bf16.mxu0 0
    %7724 = vmatpush1.bf16.msra.mxu0 %v7718
    %7725 = vmatprep.subr.bf16.mxu0 0
    %7726 = vmatpush1.bf16.msra.mxu0 0
    %7727 = vmatprep.subr.bf16.mxu0 0
    %7728 = vmatpush1.bf16.msra.mxu0 0
    %7729 = vmatprep.subr.bf16.mxu0 0
    %7730 = vmatpush1.bf16.msra.mxu0 0
    %7731 = vmatprep.subr.bf16.mxu0 0
    %7732 = vmatpush1.bf16.msra.mxu0 0
    %7733 = vmatprep.subr.bf16.mxu0 0
    %7734 = vmatpush1.bf16.msra.mxu0 0
    %7735 = vmatprep.subr.bf16.mxu0 0
    %7736 = vmatpush1.bf16.msra.mxu0 0
    %7737 = vmatprep.subr.bf16.mxu0 0
    %7738 = vmatpush1.bf16.msra.mxu0 0
    %7739 = vmatprep.subr.bf16.mxu0 0
    %7740 = vmatpush1.bf16.msra.mxu0 0
    %7741 = vmatprep.subr.bf16.mxu0 0
    %7742 = vmatpush1.bf16.msra.mxu0 0
    %7743 = vmatprep.subr.bf16.mxu0 0
    %7744 = vmatpush1.bf16.msra.mxu0 0
    %7745 = vmatprep.subr.bf16.mxu0 0
    %7746 = vmatpush1.bf16.msra.mxu0 0
    %7747 = vmatprep.subr.bf16.mxu0 0
    %7748 = vmatpush1.bf16.msra.mxu0 0
    %7749 = vmatprep.subr.bf16.mxu0 0
    %7750 = vmatpush1.bf16.msra.mxu0 0
    %7751 = vmatprep.subr.bf16.mxu0 0
    %7752 = vmatpush1.bf16.msra.mxu0 0
    %7753 = vmatprep.subr.bf16.mxu0 0
    %7754 = vmatpush1.bf16.msra.mxu0 0
    %7755 = vmatprep.mubr.bf16.mxu0 0
    %7756 = vmatmul.mubr.bf16.gmra.mrb[0].mxu0 %v7721
    %v7757 = vpop.f32.mrb[0].mxu0
    %v7758 = vadd.f32 0.0, %v7757
    %v7759 = vpop.f32.mrb[0].mxu0
    %v7760 = vpop.f32.mrb[0].mxu0
    %v7761 = vpop.f32.mrb[0].mxu0
    %7762 = vdwg.mxu0
    %v7763 = vadd.f32 %v7664, %v7758
    %v7764 = vld [vmem:[#allocation20] sm:$0x1]
    %v7766 = vlaneseq
    %v7767 = vshrl.u32 %v7766, 7
    %v7768 = vsub.s32 0, %v7767
    %v7769 = vrot.slane %v7764, %v7768
    %v7771 = vadd.f32 %v7763, %v7769
    %vm7772 = vcmask 254976
    %v7773 = vsel %vm7772, %v7771, 0.0
    %v7774 = vrot.slane %v7773, 4
    %v7775 = vadd.f32 %v7773, %v7774
    %v7776 = vrot.slane %v7775, 2
    %v7777 = vadd.f32 %v7775, %v7776
    %v7778 = vrot.slane %v7777, 1
    %v7779 = vadd.f32 %v7777, %v7778
    %v7780 = vrcp.pop 2.0
    %v7781 = vmul.f32 %v7779, %v7780
    %v7782 = vmul.f32 %v7771, %v7771
    %v7783 = vsel %vm7772, %v7782, 0.0
    %v7784 = vrot.slane %v7783, 4
    %v7785 = vadd.f32 %v7783, %v7784
    %v7786 = vrot.slane %v7785, 2
    %v7787 = vadd.f32 %v7785, %v7786
    %v7788 = vrot.slane %v7787, 1
    %v7789 = vadd.f32 %v7787, %v7788
    %v7790 = vmul.f32 %v7789, %v7780
    %v7791 = vmul.f32 %v7781, %v7781
    %v7792 = vsub.f32 %v7790, %v7791
    %v7793 = vmax.f32 %v7792, 0.0
    %v7794 = vsub.f32 %v7771, %v7781
    %v7795 = vadd.f32 %v7793, 1e-05
    %v7796 = vrsqrt.pop %v7795
    %v7797 = vmul.f32 %v7794, %v7796
    %v7798 = vld [vmem:[#allocation22] sm:$0x1]
    %v7800 = vlaneseq
    %v7801 = vshrl.u32 %v7800, 7
    %v7802 = vsub.s32 0, %v7801
    %v7803 = vrot.slane %v7798, %v7802
    %v7805 = vmul.f32 %v7797, %v7803
    %v7806 = vld [vmem:[#allocation23] sm:$0x1]
    %v7808 = vlaneseq
    %v7809 = vshrl.u32 %v7808, 7
    %v7810 = vsub.s32 0, %v7809
    %v7811 = vrot.slane %v7806, %v7810
    %v7813 = vadd.f32 %v7805, %v7811
    %vm7814 = vcmp.ge.f32.partialorder %v7813, 0.0
    %v7815 = vmul.f32 %v7813, 0.01
    %v7816 = vsel %vm7814, %v7813, %v7815
    %v7817 = vpack.c.bf16 %v7816, %v7816
    %v7818 = vld [vmem:[%s16] sm:$0x1]
    %vm7819 = vcmask 15360
    %v7821 = vsel %vm7819, %v7818, 0
    %vm7823 = vcmask 1040384
    %v7825 = vsel %vm7823, %v7817, 0
    %7827 = vmatprep.subr.bf16.mxu0 0
    %7828 = vmatpush1.bf16.msra.mxu0 %v7825
    %7829 = vmatprep.subr.bf16.mxu0 0
    %7830 = vmatpush1.bf16.msra.mxu0 0
    %7831 = vmatprep.subr.bf16.mxu0 0
    %7832 = vmatpush1.bf16.msra.mxu0 0
    %7833 = vmatprep.subr.bf16.mxu0 0
    %7834 = vmatpush1.bf16.msra.mxu0 0
    %7835 = vmatprep.subr.bf16.mxu0 0
    %7836 = vmatpush1.bf16.msra.mxu0 0
    %7837 = vmatprep.subr.bf16.mxu0 0
    %7838 = vmatpush1.bf16.msra.mxu0 0
    %7839 = vmatprep.subr.bf16.mxu0 0
    %7840 = vmatpush1.bf16.msra.mxu0 0
    %7841 = vmatprep.subr.bf16.mxu0 0
    %7842 = vmatpush1.bf16.msra.mxu0 0
    %7843 = vmatprep.subr.bf16.mxu0 0
    %7844 = vmatpush1.bf16.msra.mxu0 0
    %7845 = vmatprep.subr.bf16.mxu0 0
    %7846 = vmatpush1.bf16.msra.mxu0 0
    %7847 = vmatprep.subr.bf16.mxu0 0
    %7848 = vmatpush1.bf16.msra.mxu0 0
    %7849 = vmatprep.subr.bf16.mxu0 0
    %7850 = vmatpush1.bf16.msra.mxu0 0
    %7851 = vmatprep.subr.bf16.mxu0 0
    %7852 = vmatpush1.bf16.msra.mxu0 0
    %7853 = vmatprep.subr.bf16.mxu0 0
    %7854 = vmatpush1.bf16.msra.mxu0 0
    %7855 = vmatprep.subr.bf16.mxu0 0
    %7856 = vmatpush1.bf16.msra.mxu0 0
    %7857 = vmatprep.subr.bf16.mxu0 0
    %7858 = vmatpush1.bf16.msra.mxu0 0
    %7859 = vmatprep.mubr.bf16.mxu0 0
    %7860 = vmatmul.mubr.bf16.gmra.mrb[0].mxu0 %v7821
    %v7861 = vpop.f32.mrb[0].mxu0
    %v7862 = vadd.f32 0.0, %v7861
    %v7863 = vpop.f32.mrb[0].mxu0
    %v7864 = vpop.f32.mrb[0].mxu0
    %v7865 = vpop.f32.mrb[0].mxu0
    %7866 = vdwg.mxu0
    %v7867 = vpack.c.bf16 %v7862, %v7862
    %v7868 = vld [vmem:[#allocation25] sm:$0xf]
    %v7869 = vld [vmem:[#allocation25 + $0x4] sm:$0xf]
    %v7870 = vld [vmem:[#allocation25 + $0x8] sm:$0xf]
    %v7871 = vld [vmem:[#allocation25 + $0xc] sm:$0xf]
    %s7872 = scalar_lea.vmem %s16, 1
    %v7873 = vld [vmem:[%s7872] sm:$0x1]
    %v7875 = vsel %vm7819, %v7873, 0
    %7877 = vmatprep.subr.bf16.mxu0 0
    %7878 = vmatpush1.bf16.msra.mxu0 %v7825
    %7879 = vmatprep.subr.bf16.mxu0 0
    %7880 = vmatpush1.bf16.msra.mxu0 0
    %7881 = vmatprep.subr.bf16.mxu0 0
    %7882 = vmatpush1.bf16.msra.mxu0 0
    %7883 = vmatprep.subr.bf16.mxu0 0
    %7884 = vmatpush1.bf16.msra.mxu0 0
    %7885 = vmatprep.subr.bf16.mxu0 0
    %7886 = vmatpush1.bf16.msra.mxu0 0
    %7887 = vmatprep.subr.bf16.mxu0 0
    %7888 = vmatpush1.bf16.msra.mxu0 0
    %7889 = vmatprep.subr.bf16.mxu0 0
    %7890 = vmatpush1.bf16.msra.mxu0 0
    %7891 = vmatprep.subr.bf16.mxu0 0
    %7892 = vmatpush1.bf16.msra.mxu0 0
    %7893 = vmatprep.subr.bf16.mxu0 0
    %7894 = vmatpush1.bf16.msra.mxu0 0
    %7895 = vmatprep.subr.bf16.mxu0 0
    %7896 = vmatpush1.bf16.msra.mxu0 0
    %7897 = vmatprep.subr.bf16.mxu0 0
    %7898 = vmatpush1.bf16.msra.mxu0 0
    %7899 = vmatprep.subr.bf16.mxu0 0
    %7900 = vmatpush1.bf16.msra.mxu0 0
    %7901 = vmatprep.subr.bf16.mxu0 0
    %7902 = vmatpush1.bf16.msra.mxu0 0
    %7903 = vmatprep.subr.bf16.mxu0 0
    %7904 = vmatpush1.bf16.msra.mxu0 0
    %7905 = vmatprep.subr.bf16.mxu0 0
    %7906 = vmatpush1.bf16.msra.mxu0 0
    %7907 = vmatprep.subr.bf16.mxu0 0
    %7908 = vmatpush1.bf16.msra.mxu0 0
    %7909 = vmatprep.mubr.bf16.mxu0 0
    %7910 = vmatmul.mubr.bf16.gmra.mrb[0].mxu0 %v7875
    %v7911 = vpop.f32.mrb[0].mxu0
    %v7912 = vadd.f32 0.0, %v7911
    %v7913 = vpop.f32.mrb[0].mxu0
    %v7914 = vpop.f32.mrb[0].mxu0
    %v7915 = vpop.f32.mrb[0].mxu0
    %7916 = vdwg.mxu0
    %v7917 = vpack.c.bf16 %v7912, %v7912
    %s7918 = scalar_lea.vmem [#allocation25], 16
    %v7919 = vld [vmem:[%s7918] sm:$0xf]
    %v7920 = vld [vmem:[%s7918 + $0x4] sm:$0xf]
    %v7921 = vld [vmem:[%s7918 + $0x8] sm:$0xf]
    %v7922 = vld [vmem:[%s7918 + $0xc] sm:$0xf]
    %v7927 = vunpack.c.l.b16 %v7919
    %v7928 = vunpack.c.l.b16 %v7920
    %v7929 = vunpack.c.l.b16 %v7921
    %v7930 = vunpack.c.l.b16 %v7922
    %v7931 = vpack.c.b16 %v7928, %v7927
    %v7932 = vpack.c.b16 %v7930, %v7929
    %v7936 = vsel %vm6877, %v7917, 0
    %7938 = vmatprep.subr.bf16.mxu0 0
    %7939 = vmatpush1.bf16.msra.mxu0 %v7931
    %7940 = vmatprep.subr.bf16.mxu0 0
    %7941 = vmatpush1.bf16.msra.mxu0 %v7932
    %7942 = vmatprep.subr.bf16.mxu0 0
    %7943 = vmatpush1.bf16.msra.mxu0 0
    %7944 = vmatprep.subr.bf16.mxu0 0
    %7945 = vmatpush1.bf16.msra.mxu0 0
    %7946 = vmatprep.subr.bf16.mxu0 0
    %7947 = vmatpush1.bf16.msra.mxu0 0
    %7948 = vmatprep.subr.bf16.mxu0 0
    %7949 = vmatpush1.bf16.msra.mxu0 0
    %7950 = vmatprep.subr.bf16.mxu0 0
    %7951 = vmatpush1.bf16.msra.mxu0 0
    %7952 = vmatprep.subr.bf16.mxu0 0
    %7953 = vmatpush1.bf16.msra.mxu0 0
    %7954 = vmatprep.subr.bf16.mxu0 0
    %7955 = vmatpush1.bf16.msra.mxu0 0
    %7956 = vmatprep.subr.bf16.mxu0 0
    %7957 = vmatpush1.bf16.msra.mxu0 0
    %7958 = vmatprep.subr.bf16.mxu0 0
    %7959 = vmatpush1.bf16.msra.mxu0 0
    %7960 = vmatprep.subr.bf16.mxu0 0
    %7961 = vmatpush1.bf16.msra.mxu0 0
    %7962 = vmatprep.subr.bf16.mxu0 0
    %7963 = vmatpush1.bf16.msra.mxu0 0
    %7964 = vmatprep.subr.bf16.mxu0 0
    %7965 = vmatpush1.bf16.msra.mxu0 0
    %7966 = vmatprep.subr.bf16.mxu0 0
    %7967 = vmatpush1.bf16.msra.mxu0 0
    %7968 = vmatprep.subr.bf16.mxu0 0
    %7969 = vmatpush1.bf16.msra.mxu0 0
    %7970 = vmatprep.mubr.bf16.mxu0 0
    %7971 = vmatmul.mubr.bf16.gmra.mrb[0].mxu0 %v7936
    %v7972 = vpop.f32.mrb[0].mxu0
    %v7973 = vadd.f32 0.0, %v7972
    %v7974 = vpop.f32.mrb[0].mxu0
    %v7975 = vpop.f32.mrb[0].mxu0
    %v7976 = vpop.f32.mrb[0].mxu0
    %7977 = vdwg.mxu0
    %v7982 = vunpack.c.l.b16 %v7868
    %v7983 = vunpack.c.l.b16 %v7869
    %v7984 = vunpack.c.l.b16 %v7870
    %v7985 = vunpack.c.l.b16 %v7871
    %v7986 = vpack.c.b16 %v7983, %v7982
    %v7987 = vpack.c.b16 %v7985, %v7984
    %v7991 = vsel %vm6877, %v7867, 0
    %7993 = vmatprep.subr.bf16.mxu0 0
    %7994 = vmatpush1.bf16.msra.mxu0 %v7986
    %7995 = vmatprep.subr.bf16.mxu0 0
    %7996 = vmatpush1.bf16.msra.mxu0 %v7987
    %7997 = vmatprep.subr.bf16.mxu0 0
    %7998 = vmatpush1.bf16.msra.mxu0 0
    %7999 = vmatprep.subr.bf16.mxu0 0
    %8000 = vmatpush1.bf16.msra.mxu0 0
    %8001 = vmatprep.subr.bf16.mxu0 0
    %8002 = vmatpush1.bf16.msra.mxu0 0
    %8003 = vmatprep.subr.bf16.mxu0 0
    %8004 = vmatpush1.bf16.msra.mxu0 0
    %8005 = vmatprep.subr.bf16.mxu0 0
    %8006 = vmatpush1.bf16.msra.mxu0 0
    %8007 = vmatprep.subr.bf16.mxu0 0
    %8008 = vmatpush1.bf16.msra.mxu0 0
    %8009 = vmatprep.subr.bf16.mxu0 0
    %8010 = vmatpush1.bf16.msra.mxu0 0
    %8011 = vmatprep.subr.bf16.mxu0 0
    %8012 = vmatpush1.bf16.msra.mxu0 0
    %8013 = vmatprep.subr.bf16.mxu0 0
    %8014 = vmatpush1.bf16.msra.mxu0 0
    %8015 = vmatprep.subr.bf16.mxu0 0
    %8016 = vmatpush1.bf16.msra.mxu0 0
    %8017 = vmatprep.subr.bf16.mxu0 0
    %8018 = vmatpush1.bf16.msra.mxu0 0
    %8019 = vmatprep.subr.bf16.mxu0 0
    %8020 = vmatpush1.bf16.msra.mxu0 0
    %8021 = vmatprep.subr.bf16.mxu0 0
    %8022 = vmatpush1.bf16.msra.mxu0 0
    %8023 = vmatprep.subr.bf16.mxu0 0
    %8024 = vmatpush1.bf16.msra.mxu0 0
    %8025 = vmatprep.mubr.bf16.mxu0 0
    %8026 = vmatmul.mubr.bf16.gmra.mrb[0].mxu0 %v7991
    %v8027 = vpop.f32.mrb[0].mxu0
    %v8028 = vadd.f32 %v7973, %v8027
    %v8029 = vpop.f32.mrb[0].mxu0
    %v8030 = vpop.f32.mrb[0].mxu0
    %v8031 = vpop.f32.mrb[0].mxu0
    %8032 = vdwg.mxu0
    %s8033 = scalar_lea.vmem %s16, 2
    %v8034 = vld [vmem:[%s8033] sm:$0x1]
    %v8036 = vsel %vm7819, %v8034, 0
    %8038 = vmatprep.subr.bf16.mxu0 0
    %8039 = vmatpush1.bf16.msra.mxu0 %v7825
    %8040 = vmatprep.subr.bf16.mxu0 0
    %8041 = vmatpush1.bf16.msra.mxu0 0
    %8042 = vmatprep.subr.bf16.mxu0 0
    %8043 = vmatpush1.bf16.msra.mxu0 0
    %8044 = vmatprep.subr.bf16.mxu0 0
    %8045 = vmatpush1.bf16.msra.mxu0 0
    %8046 = vmatprep.subr.bf16.mxu0 0
    %8047 = vmatpush1.bf16.msra.mxu0 0
    %8048 = vmatprep.subr.bf16.mxu0 0
    %8049 = vmatpush1.bf16.msra.mxu0 0
    %8050 = vmatprep.subr.bf16.mxu0 0
    %8051 = vmatpush1.bf16.msra.mxu0 0
    %8052 = vmatprep.subr.bf16.mxu0 0
    %8053 = vmatpush1.bf16.msra.mxu0 0
    %8054 = vmatprep.subr.bf16.mxu0 0
    %8055 = vmatpush1.bf16.msra.mxu0 0
    %8056 = vmatprep.subr.bf16.mxu0 0
    %8057 = vmatpush1.bf16.msra.mxu0 0
    %8058 = vmatprep.subr.bf16.mxu0 0
    %8059 = vmatpush1.bf16.msra.mxu0 0
    %8060 = vmatprep.subr.bf16.mxu0 0
    %8061 = vmatpush1.bf16.msra.mxu0 0
    %8062 = vmatprep.subr.bf16.mxu0 0
    %8063 = vmatpush1.bf16.msra.mxu0 0
    %8064 = vmatprep.subr.bf16.mxu0 0
    %8065 = vmatpush1.bf16.msra.mxu0 0
    %8066 = vmatprep.subr.bf16.mxu0 0
    %8067 = vmatpush1.bf16.msra.mxu0 0
    %8068 = vmatprep.subr.bf16.mxu0 0
    %8069 = vmatpush1.bf16.msra.mxu0 0
    %8070 = vmatprep.mubr.bf16.mxu0 0
    %8071 = vmatmul.mubr.bf16.gmra.mrb[0].mxu0 %v8036
    %v8072 = vpop.f32.mrb[0].mxu0
    %v8073 = vadd.f32 0.0, %v8072
    %v8074 = vpop.f32.mrb[0].mxu0
    %v8075 = vpop.f32.mrb[0].mxu0
    %v8076 = vpop.f32.mrb[0].mxu0
    %8077 = vdwg.mxu0
    %v8078 = vpack.c.bf16 %v8073, %v8073
    %s8079 = scalar_lea.vmem [#allocation25], 32
    %v8080 = vld [vmem:[%s8079] sm:$0xf]
    %v8081 = vld [vmem:[%s8079 + $0x4] sm:$0xf]
    %v8082 = vld [vmem:[%s8079 + $0x8] sm:$0xf]
    %v8083 = vld [vmem:[%s8079 + $0xc] sm:$0xf]
    %v8088 = vunpack.c.l.b16 %v8080
    %v8089 = vunpack.c.l.b16 %v8081
    %v8090 = vunpack.c.l.b16 %v8082
    %v8091 = vunpack.c.l.b16 %v8083
    %v8092 = vpack.c.b16 %v8089, %v8088
    %v8093 = vpack.c.b16 %v8091, %v8090
    %v8097 = vsel %vm6877, %v8078, 0
    %8099 = vmatprep.subr.bf16.mxu0 0
    %8100 = vmatpush1.bf16.msra.mxu0 %v8092
    %8101 = vmatprep.subr.bf16.mxu0 0
    %8102 = vmatpush1.bf16.msra.mxu0 %v8093
    %8103 = vmatprep.subr.bf16.mxu0 0
    %8104 = vmatpush1.bf16.msra.mxu0 0
    %8105 = vmatprep.subr.bf16.mxu0 0
    %8106 = vmatpush1.bf16.msra.mxu0 0
    %8107 = vmatprep.subr.bf16.mxu0 0
    %8108 = vmatpush1.bf16.msra.mxu0 0
    %8109 = vmatprep.subr.bf16.mxu0 0
    %8110 = vmatpush1.bf16.msra.mxu0 0
    %8111 = vmatprep.subr.bf16.mxu0 0
    %8112 = vmatpush1.bf16.msra.mxu0 0
    %8113 = vmatprep.subr.bf16.mxu0 0
    %8114 = vmatpush1.bf16.msra.mxu0 0
    %8115 = vmatprep.subr.bf16.mxu0 0
    %8116 = vmatpush1.bf16.msra.mxu0 0
    %8117 = vmatprep.subr.bf16.mxu0 0
    %8118 = vmatpush1.bf16.msra.mxu0 0
    %8119 = vmatprep.subr.bf16.mxu0 0
    %8120 = vmatpush1.bf16.msra.mxu0 0
    %8121 = vmatprep.subr.bf16.mxu0 0
    %8122 = vmatpush1.bf16.msra.mxu0 0
    %8123 = vmatprep.subr.bf16.mxu0 0
    %8124 = vmatpush1.bf16.msra.mxu0 0
    %8125 = vmatprep.subr.bf16.mxu0 0
    %8126 = vmatpush1.bf16.msra.mxu0 0
    %8127 = vmatprep.subr.bf16.mxu0 0
    %8128 = vmatpush1.bf16.msra.mxu0 0
    %8129 = vmatprep.subr.bf16.mxu0 0
    %8130 = vmatpush1.bf16.msra.mxu0 0
    %8131 = vmatprep.mubr.bf16.mxu0 0
    %8132 = vmatmul.mubr.bf16.gmra.mrb[0].mxu0 %v8097
    %v8133 = vpop.f32.mrb[0].mxu0
    %v8134 = vadd.f32 0.0, %v8133
    %v8135 = vpop.f32.mrb[0].mxu0
    %v8136 = vpop.f32.mrb[0].mxu0
    %v8137 = vpop.f32.mrb[0].mxu0
    %8138 = vdwg.mxu0
    %v8139 = vadd.f32 %v8028, %v8134
    %s8140 = scalar_lea.vmem %s16, 3
    %v8141 = vld [vmem:[%s8140] sm:$0x1]
    %v8143 = vsel %vm7819, %v8141, 0
    %8145 = vmatprep.subr.bf16.mxu0 0
    %8146 = vmatpush1.bf16.msra.mxu0 %v7825
    %8147 = vmatprep.subr.bf16.mxu0 0
    %8148 = vmatpush1.bf16.msra.mxu0 0
    %8149 = vmatprep.subr.bf16.mxu0 0
    %8150 = vmatpush1.bf16.msra.mxu0 0
    %8151 = vmatprep.subr.bf16.mxu0 0
    %8152 = vmatpush1.bf16.msra.mxu0 0
    %8153 = vmatprep.subr.bf16.mxu0 0
    %8154 = vmatpush1.bf16.msra.mxu0 0
    %8155 = vmatprep.subr.bf16.mxu0 0
    %8156 = vmatpush1.bf16.msra.mxu0 0
    %8157 = vmatprep.subr.bf16.mxu0 0
    %8158 = vmatpush1.bf16.msra.mxu0 0
    %8159 = vmatprep.subr.bf16.mxu0 0
    %8160 = vmatpush1.bf16.msra.mxu0 0
    %8161 = vmatprep.subr.bf16.mxu0 0
    %8162 = vmatpush1.bf16.msra.mxu0 0
    %8163 = vmatprep.subr.bf16.mxu0 0
    %8164 = vmatpush1.bf16.msra.mxu0 0
    %8165 = vmatprep.subr.bf16.mxu0 0
    %8166 = vmatpush1.bf16.msra.mxu0 0
    %8167 = vmatprep.subr.bf16.mxu0 0
    %8168 = vmatpush1.bf16.msra.mxu0 0
    %8169 = vmatprep.subr.bf16.mxu0 0
    %8170 = vmatpush1.bf16.msra.mxu0 0
    %8171 = vmatprep.subr.bf16.mxu0 0
    %8172 = vmatpush1.bf16.msra.mxu0 0
    %8173 = vmatprep.subr.bf16.mxu0 0
    %8174 = vmatpush1.bf16.msra.mxu0 0
    %8175 = vmatprep.subr.bf16.mxu0 0
    %8176 = vmatpush1.bf16.msra.mxu0 0
    %8177 = vmatprep.mubr.bf16.mxu0 0
    %8178 = vmatmul.mubr.bf16.gmra.mrb[0].mxu0 %v8143
    %v8179 = vpop.f32.mrb[0].mxu0
    %v8180 = vadd.f32 0.0, %v8179
    %v8181 = vpop.f32.mrb[0].mxu0
    %v8182 = vpop.f32.mrb[0].mxu0
    %v8183 = vpop.f32.mrb[0].mxu0
    %8184 = vdwg.mxu0
    %v8185 = vpack.c.bf16 %v8180, %v8180
    %s8186 = scalar_lea.vmem [#allocation25], 48
    %v8187 = vld [vmem:[%s8186] sm:$0xf]
    %v8188 = vld [vmem:[%s8186 + $0x4] sm:$0xf]
    %v8189 = vld [vmem:[%s8186 + $0x8] sm:$0xf]
    %v8190 = vld [vmem:[%s8186 + $0xc] sm:$0xf]
    %v8195 = vunpack.c.l.b16 %v8187
    %v8196 = vunpack.c.l.b16 %v8188
    %v8197 = vunpack.c.l.b16 %v8189
    %v8198 = vunpack.c.l.b16 %v8190
    %v8199 = vpack.c.b16 %v8196, %v8195
    %v8200 = vpack.c.b16 %v8198, %v8197
    %v8204 = vsel %vm6877, %v8185, 0
    %8206 = vmatprep.subr.bf16.mxu0 0
    %8207 = vmatpush1.bf16.msra.mxu0 %v8199
    %8208 = vmatprep.subr.bf16.mxu0 0
    %8209 = vmatpush1.bf16.msra.mxu0 %v8200
    %8210 = vmatprep.subr.bf16.mxu0 0
    %8211 = vmatpush1.bf16.msra.mxu0 0
    %8212 = vmatprep.subr.bf16.mxu0 0
    %8213 = vmatpush1.bf16.msra.mxu0 0
    %8214 = vmatprep.subr.bf16.mxu0 0
    %8215 = vmatpush1.bf16.msra.mxu0 0
    %8216 = vmatprep.subr.bf16.mxu0 0
    %8217 = vmatpush1.bf16.msra.mxu0 0
    %8218 = vmatprep.subr.bf16.mxu0 0
    %8219 = vmatpush1.bf16.msra.mxu0 0
    %8220 = vmatprep.subr.bf16.mxu0 0
    %8221 = vmatpush1.bf16.msra.mxu0 0
    %8222 = vmatprep.subr.bf16.mxu0 0
    %8223 = vmatpush1.bf16.msra.mxu0 0
    %8224 = vmatprep.subr.bf16.mxu0 0
    %8225 = vmatpush1.bf16.msra.mxu0 0
    %8226 = vmatprep.subr.bf16.mxu0 0
    %8227 = vmatpush1.bf16.msra.mxu0 0
    %8228 = vmatprep.subr.bf16.mxu0 0
    %8229 = vmatpush1.bf16.msra.mxu0 0
    %8230 = vmatprep.subr.bf16.mxu0 0
    %8231 = vmatpush1.bf16.msra.mxu0 0
    %8232 = vmatprep.subr.bf16.mxu0 0
    %8233 = vmatpush1.bf16.msra.mxu0 0
    %8234 = vmatprep.subr.bf16.mxu0 0
    %8235 = vmatpush1.bf16.msra.mxu0 0
    %8236 = vmatprep.subr.bf16.mxu0 0
    %8237 = vmatpush1.bf16.msra.mxu0 0
    %8238 = vmatprep.mubr.bf16.mxu0 0
    %8239 = vmatmul.mubr.bf16.gmra.mrb[0].mxu0 %v8204
    %v8240 = vpop.f32.mrb[0].mxu0
    %v8241 = vadd.f32 0.0, %v8240
    %v8242 = vpop.f32.mrb[0].mxu0
    %v8243 = vpop.f32.mrb[0].mxu0
    %v8244 = vpop.f32.mrb[0].mxu0
    %8245 = vdwg.mxu0
    %v8246 = vadd.f32 %v8139, %v8241
    %s8247 = scalar_lea.vmem %s16, 4
    %v8248 = vld [vmem:[%s8247] sm:$0x1]
    %v8250 = vsel %vm7819, %v8248, 0
    %8252 = vmatprep.subr.bf16.mxu0 0
    %8253 = vmatpush1.bf16.msra.mxu0 %v7825
    %8254 = vmatprep.subr.bf16.mxu0 0
    %8255 = vmatpush1.bf16.msra.mxu0 0
    %8256 = vmatprep.subr.bf16.mxu0 0
    %8257 = vmatpush1.bf16.msra.mxu0 0
    %8258 = vmatprep.subr.bf16.mxu0 0
    %8259 = vmatpush1.bf16.msra.mxu0 0
    %8260 = vmatprep.subr.bf16.mxu0 0
    %8261 = vmatpush1.bf16.msra.mxu0 0
    %8262 = vmatprep.subr.bf16.mxu0 0
    %8263 = vmatpush1.bf16.msra.mxu0 0
    %8264 = vmatprep.subr.bf16.mxu0 0
    %8265 = vmatpush1.bf16.msra.mxu0 0
    %8266 = vmatprep.subr.bf16.mxu0 0
    %8267 = vmatpush1.bf16.msra.mxu0 0
    %8268 = vmatprep.subr.bf16.mxu0 0
    %8269 = vmatpush1.bf16.msra.mxu0 0
    %8270 = vmatprep.subr.bf16.mxu0 0
    %8271 = vmatpush1.bf16.msra.mxu0 0
    %8272 = vmatprep.subr.bf16.mxu0 0
    %8273 = vmatpush1.bf16.msra.mxu0 0
    %8274 = vmatprep.subr.bf16.mxu0 0
    %8275 = vmatpush1.bf16.msra.mxu0 0
    %8276 = vmatprep.subr.bf16.mxu0 0
    %8277 = vmatpush1.bf16.msra.mxu0 0
    %8278 = vmatprep.subr.bf16.mxu0 0
    %8279 = vmatpush1.bf16.msra.mxu0 0
    %8280 = vmatprep.subr.bf16.mxu0 0
    %8281 = vmatpush1.bf16.msra.mxu0 0
    %8282 = vmatprep.subr.bf16.mxu0 0
    %8283 = vmatpush1.bf16.msra.mxu0 0
    %8284 = vmatprep.mubr.bf16.mxu0 0
    %8285 = vmatmul.mubr.bf16.gmra.mrb[0].mxu0 %v8250
    %v8286 = vpop.f32.mrb[0].mxu0
    %v8287 = vadd.f32 0.0, %v8286
    %v8288 = vpop.f32.mrb[0].mxu0
    %v8289 = vpop.f32.mrb[0].mxu0
    %v8290 = vpop.f32.mrb[0].mxu0
    %8291 = vdwg.mxu0
    %v8292 = vpack.c.bf16 %v8287, %v8287
    %s8293 = scalar_lea.vmem [#allocation25], 64
    %v8294 = vld [vmem:[%s8293] sm:$0xf]
    %v8295 = vld [vmem:[%s8293 + $0x4] sm:$0xf]
    %v8296 = vld [vmem:[%s8293 + $0x8] sm:$0xf]
    %v8297 = vld [vmem:[%s8293 + $0xc] sm:$0xf]
    %v8302 = vunpack.c.l.b16 %v8294
    %v8303 = vunpack.c.l.b16 %v8295
    %v8304 = vunpack.c.l.b16 %v8296
    %v8305 = vunpack.c.l.b16 %v8297
    %v8306 = vpack.c.b16 %v8303, %v8302
    %v8307 = vpack.c.b16 %v8305, %v8304
    %v8311 = vsel %vm6877, %v8292, 0
    %8313 = vmatprep.subr.bf16.mxu0 0
    %8314 = vmatpush1.bf16.msra.mxu0 %v8306
    %8315 = vmatprep.subr.bf16.mxu0 0
    %8316 = vmatpush1.bf16.msra.mxu0 %v8307
    %8317 = vmatprep.subr.bf16.mxu0 0
    %8318 = vmatpush1.bf16.msra.mxu0 0
    %8319 = vmatprep.subr.bf16.mxu0 0
    %8320 = vmatpush1.bf16.msra.mxu0 0
    %8321 = vmatprep.subr.bf16.mxu0 0
    %8322 = vmatpush1.bf16.msra.mxu0 0
    %8323 = vmatprep.subr.bf16.mxu0 0
    %8324 = vmatpush1.bf16.msra.mxu0 0
    %8325 = vmatprep.subr.bf16.mxu0 0
    %8326 = vmatpush1.bf16.msra.mxu0 0
    %8327 = vmatprep.subr.bf16.mxu0 0
    %8328 = vmatpush1.bf16.msra.mxu0 0
    %8329 = vmatprep.subr.bf16.mxu0 0
    %8330 = vmatpush1.bf16.msra.mxu0 0
    %8331 = vmatprep.subr.bf16.mxu0 0
    %8332 = vmatpush1.bf16.msra.mxu0 0
    %8333 = vmatprep.subr.bf16.mxu0 0
    %8334 = vmatpush1.bf16.msra.mxu0 0
    %8335 = vmatprep.subr.bf16.mxu0 0
    %8336 = vmatpush1.bf16.msra.mxu0 0
    %8337 = vmatprep.subr.bf16.mxu0 0
    %8338 = vmatpush1.bf16.msra.mxu0 0
    %8339 = vmatprep.subr.bf16.mxu0 0
    %8340 = vmatpush1.bf16.msra.mxu0 0
    %8341 = vmatprep.subr.bf16.mxu0 0
    %8342 = vmatpush1.bf16.msra.mxu0 0
    %8343 = vmatprep.subr.bf16.mxu0 0
    %8344 = vmatpush1.bf16.msra.mxu0 0
    %8345 = vmatprep.mubr.bf16.mxu0 0
    %8346 = vmatmul.mubr.bf16.gmra.mrb[0].mxu0 %v8311
    %v8347 = vpop.f32.mrb[0].mxu0
    %v8348 = vadd.f32 0.0, %v8347
    %v8349 = vpop.f32.mrb[0].mxu0
    %v8350 = vpop.f32.mrb[0].mxu0
    %v8351 = vpop.f32.mrb[0].mxu0
    %8352 = vdwg.mxu0
    %v8353 = vadd.f32 %v8246, %v8348
    %s8354 = scalar_lea.vmem %s16, 5
    %v8355 = vld [vmem:[%s8354] sm:$0x1]
    %v8357 = vsel %vm7819, %v8355, 0
    %8359 = vmatprep.subr.bf16.mxu0 0
    %8360 = vmatpush1.bf16.msra.mxu0 %v7825
    %8361 = vmatprep.subr.bf16.mxu0 0
    %8362 = vmatpush1.bf16.msra.mxu0 0
    %8363 = vmatprep.subr.bf16.mxu0 0
    %8364 = vmatpush1.bf16.msra.mxu0 0
    %8365 = vmatprep.subr.bf16.mxu0 0
    %8366 = vmatpush1.bf16.msra.mxu0 0
    %8367 = vmatprep.subr.bf16.mxu0 0
    %8368 = vmatpush1.bf16.msra.mxu0 0
    %8369 = vmatprep.subr.bf16.mxu0 0
    %8370 = vmatpush1.bf16.msra.mxu0 0
    %8371 = vmatprep.subr.bf16.mxu0 0
    %8372 = vmatpush1.bf16.msra.mxu0 0
    %8373 = vmatprep.subr.bf16.mxu0 0
    %8374 = vmatpush1.bf16.msra.mxu0 0
    %8375 = vmatprep.subr.bf16.mxu0 0
    %8376 = vmatpush1.bf16.msra.mxu0 0
    %8377 = vmatprep.subr.bf16.mxu0 0
    %8378 = vmatpush1.bf16.msra.mxu0 0
    %8379 = vmatprep.subr.bf16.mxu0 0
    %8380 = vmatpush1.bf16.msra.mxu0 0
    %8381 = vmatprep.subr.bf16.mxu0 0
    %8382 = vmatpush1.bf16.msra.mxu0 0
    %8383 = vmatprep.subr.bf16.mxu0 0
    %8384 = vmatpush1.bf16.msra.mxu0 0
    %8385 = vmatprep.subr.bf16.mxu0 0
    %8386 = vmatpush1.bf16.msra.mxu0 0
    %8387 = vmatprep.subr.bf16.mxu0 0
    %8388 = vmatpush1.bf16.msra.mxu0 0
    %8389 = vmatprep.subr.bf16.mxu0 0
    %8390 = vmatpush1.bf16.msra.mxu0 0
    %8391 = vmatprep.mubr.bf16.mxu0 0
    %8392 = vmatmul.mubr.bf16.gmra.mrb[0].mxu0 %v8357
    %v8393 = vpop.f32.mrb[0].mxu0
    %v8394 = vadd.f32 0.0, %v8393
    %v8395 = vpop.f32.mrb[0].mxu0
    %v8396 = vpop.f32.mrb[0].mxu0
    %v8397 = vpop.f32.mrb[0].mxu0
    %8398 = vdwg.mxu0
    %v8399 = vpack.c.bf16 %v8394, %v8394
    %s8400 = scalar_lea.vmem [#allocation25], 80
    %v8401 = vld [vmem:[%s8400] sm:$0xf]
    %v8402 = vld [vmem:[%s8400 + $0x4] sm:$0xf]
    %v8403 = vld [vmem:[%s8400 + $0x8] sm:$0xf]
    %v8404 = vld [vmem:[%s8400 + $0xc] sm:$0xf]
    %v8409 = vunpack.c.l.b16 %v8401
    %v8410 = vunpack.c.l.b16 %v8402
    %v8411 = vunpack.c.l.b16 %v8403
    %v8412 = vunpack.c.l.b16 %v8404
    %v8413 = vpack.c.b16 %v8410, %v8409
    %v8414 = vpack.c.b16 %v8412, %v8411
    %v8418 = vsel %vm6877, %v8399, 0
    %8420 = vmatprep.subr.bf16.mxu0 0
    %8421 = vmatpush1.bf16.msra.mxu0 %v8413
    %8422 = vmatprep.subr.bf16.mxu0 0
    %8423 = vmatpush1.bf16.msra.mxu0 %v8414
    %8424 = vmatprep.subr.bf16.mxu0 0
    %8425 = vmatpush1.bf16.msra.mxu0 0
    %8426 = vmatprep.subr.bf16.mxu0 0
    %8427 = vmatpush1.bf16.msra.mxu0 0
    %8428 = vmatprep.subr.bf16.mxu0 0
    %8429 = vmatpush1.bf16.msra.mxu0 0
    %8430 = vmatprep.subr.bf16.mxu0 0
    %8431 = vmatpush1.bf16.msra.mxu0 0
    %8432 = vmatprep.subr.bf16.mxu0 0
    %8433 = vmatpush1.bf16.msra.mxu0 0
    %8434 = vmatprep.subr.bf16.mxu0 0
    %8435 = vmatpush1.bf16.msra.mxu0 0
    %8436 = vmatprep.subr.bf16.mxu0 0
    %8437 = vmatpush1.bf16.msra.mxu0 0
    %8438 = vmatprep.subr.bf16.mxu0 0
    %8439 = vmatpush1.bf16.msra.mxu0 0
    %8440 = vmatprep.subr.bf16.mxu0 0
    %8441 = vmatpush1.bf16.msra.mxu0 0
    %8442 = vmatprep.subr.bf16.mxu0 0
    %8443 = vmatpush1.bf16.msra.mxu0 0
    %8444 = vmatprep.subr.bf16.mxu0 0
    %8445 = vmatpush1.bf16.msra.mxu0 0
    %8446 = vmatprep.subr.bf16.mxu0 0
    %8447 = vmatpush1.bf16.msra.mxu0 0
    %8448 = vmatprep.subr.bf16.mxu0 0
    %8449 = vmatpush1.bf16.msra.mxu0 0
    %8450 = vmatprep.subr.bf16.mxu0 0
    %8451 = vmatpush1.bf16.msra.mxu0 0
    %8452 = vmatprep.mubr.bf16.mxu0 0
    %8453 = vmatmul.mubr.bf16.gmra.mrb[0].mxu0 %v8418
    %v8454 = vpop.f32.mrb[0].mxu0
    %v8455 = vadd.f32 0.0, %v8454
    %v8456 = vpop.f32.mrb[0].mxu0
    %v8457 = vpop.f32.mrb[0].mxu0
    %v8458 = vpop.f32.mrb[0].mxu0
    %8459 = vdwg.mxu0
    %v8460 = vadd.f32 %v8353, %v8455
    %s8461 = scalar_lea.vmem %s16, 6
    %v8462 = vld [vmem:[%s8461] sm:$0x1]
    %v8464 = vsel %vm7819, %v8462, 0
    %8466 = vmatprep.subr.bf16.mxu0 0
    %8467 = vmatpush1.bf16.msra.mxu0 %v7825
    %8468 = vmatprep.subr.bf16.mxu0 0
    %8469 = vmatpush1.bf16.msra.mxu0 0
    %8470 = vmatprep.subr.bf16.mxu0 0
    %8471 = vmatpush1.bf16.msra.mxu0 0
    %8472 = vmatprep.subr.bf16.mxu0 0
    %8473 = vmatpush1.bf16.msra.mxu0 0
    %8474 = vmatprep.subr.bf16.mxu0 0
    %8475 = vmatpush1.bf16.msra.mxu0 0
    %8476 = vmatprep.subr.bf16.mxu0 0
    %8477 = vmatpush1.bf16.msra.mxu0 0
    %8478 = vmatprep.subr.bf16.mxu0 0
    %8479 = vmatpush1.bf16.msra.mxu0 0
    %8480 = vmatprep.subr.bf16.mxu0 0
    %8481 = vmatpush1.bf16.msra.mxu0 0
    %8482 = vmatprep.subr.bf16.mxu0 0
    %8483 = vmatpush1.bf16.msra.mxu0 0
    %8484 = vmatprep.subr.bf16.mxu0 0
    %8485 = vmatpush1.bf16.msra.mxu0 0
    %8486 = vmatprep.subr.bf16.mxu0 0
    %8487 = vmatpush1.bf16.msra.mxu0 0
    %8488 = vmatprep.subr.bf16.mxu0 0
    %8489 = vmatpush1.bf16.msra.mxu0 0
    %8490 = vmatprep.subr.bf16.mxu0 0
    %8491 = vmatpush1.bf16.msra.mxu0 0
    %8492 = vmatprep.subr.bf16.mxu0 0
    %8493 = vmatpush1.bf16.msra.mxu0 0
    %8494 = vmatprep.subr.bf16.mxu0 0
    %8495 = vmatpush1.bf16.msra.mxu0 0
    %8496 = vmatprep.subr.bf16.mxu0 0
    %8497 = vmatpush1.bf16.msra.mxu0 0
    %8498 = vmatprep.mubr.bf16.mxu0 0
    %8499 = vmatmul.mubr.bf16.gmra.mrb[0].mxu0 %v8464
    %v8500 = vpop.f32.mrb[0].mxu0
    %v8501 = vadd.f32 0.0, %v8500
    %v8502 = vpop.f32.mrb[0].mxu0
    %v8503 = vpop.f32.mrb[0].mxu0
    %v8504 = vpop.f32.mrb[0].mxu0
    %8505 = vdwg.mxu0
    %v8506 = vpack.c.bf16 %v8501, %v8501
    %s8507 = scalar_lea.vmem [#allocation25], 96
    %v8508 = vld [vmem:[%s8507] sm:$0xf]
    %v8509 = vld [vmem:[%s8507 + $0x4] sm:$0xf]
    %v8510 = vld [vmem:[%s8507 + $0x8] sm:$0xf]
    %v8511 = vld [vmem:[%s8507 + $0xc] sm:$0xf]
    %v8516 = vunpack.c.l.b16 %v8508
    %v8517 = vunpack.c.l.b16 %v8509
    %v8518 = vunpack.c.l.b16 %v8510
    %v8519 = vunpack.c.l.b16 %v8511
    %v8520 = vpack.c.b16 %v8517, %v8516
    %v8521 = vpack.c.b16 %v8519, %v8518
    %v8525 = vsel %vm6877, %v8506, 0
    %8527 = vmatprep.subr.bf16.mxu0 0
    %8528 = vmatpush1.bf16.msra.mxu0 %v8520
    %8529 = vmatprep.subr.bf16.mxu0 0
    %8530 = vmatpush1.bf16.msra.mxu0 %v8521
    %8531 = vmatprep.subr.bf16.mxu0 0
    %8532 = vmatpush1.bf16.msra.mxu0 0
    %8533 = vmatprep.subr.bf16.mxu0 0
    %8534 = vmatpush1.bf16.msra.mxu0 0
    %8535 = vmatprep.subr.bf16.mxu0 0
    %8536 = vmatpush1.bf16.msra.mxu0 0
    %8537 = vmatprep.subr.bf16.mxu0 0
    %8538 = vmatpush1.bf16.msra.mxu0 0
    %8539 = vmatprep.subr.bf16.mxu0 0
    %8540 = vmatpush1.bf16.msra.mxu0 0
    %8541 = vmatprep.subr.bf16.mxu0 0
    %8542 = vmatpush1.bf16.msra.mxu0 0
    %8543 = vmatprep.subr.bf16.mxu0 0
    %8544 = vmatpush1.bf16.msra.mxu0 0
    %8545 = vmatprep.subr.bf16.mxu0 0
    %8546 = vmatpush1.bf16.msra.mxu0 0
    %8547 = vmatprep.subr.bf16.mxu0 0
    %8548 = vmatpush1.bf16.msra.mxu0 0
    %8549 = vmatprep.subr.bf16.mxu0 0
    %8550 = vmatpush1.bf16.msra.mxu0 0
    %8551 = vmatprep.subr.bf16.mxu0 0
    %8552 = vmatpush1.bf16.msra.mxu0 0
    %8553 = vmatprep.subr.bf16.mxu0 0
    %8554 = vmatpush1.bf16.msra.mxu0 0
    %8555 = vmatprep.subr.bf16.mxu0 0
    %8556 = vmatpush1.bf16.msra.mxu0 0
    %8557 = vmatprep.subr.bf16.mxu0 0
    %8558 = vmatpush1.bf16.msra.mxu0 0
    %8559 = vmatprep.mubr.bf16.mxu0 0
    %8560 = vmatmul.mubr.bf16.gmra.mrb[0].mxu0 %v8525
    %v8561 = vpop.f32.mrb[0].mxu0
    %v8562 = vadd.f32 0.0, %v8561
    %v8563 = vpop.f32.mrb[0].mxu0
    %v8564 = vpop.f32.mrb[0].mxu0
    %v8565 = vpop.f32.mrb[0].mxu0
    %8566 = vdwg.mxu0
    %v8567 = vadd.f32 %v8460, %v8562
    %s8568 = scalar_lea.vmem %s16, 7
    %v8569 = vld [vmem:[%s8568] sm:$0x1]
    %v8571 = vsel %vm7819, %v8569, 0
    %8573 = vmatprep.subr.bf16.mxu0 0
    %8574 = vmatpush1.bf16.msra.mxu0 %v7825
    %8575 = vmatprep.subr.bf16.mxu0 0
    %8576 = vmatpush1.bf16.msra.mxu0 0
    %8577 = vmatprep.subr.bf16.mxu0 0
    %8578 = vmatpush1.bf16.msra.mxu0 0
    %8579 = vmatprep.subr.bf16.mxu0 0
    %8580 = vmatpush1.bf16.msra.mxu0 0
    %8581 = vmatprep.subr.bf16.mxu0 0
    %8582 = vmatpush1.bf16.msra.mxu0 0
    %8583 = vmatprep.subr.bf16.mxu0 0
    %8584 = vmatpush1.bf16.msra.mxu0 0
    %8585 = vmatprep.subr.bf16.mxu0 0
    %8586 = vmatpush1.bf16.msra.mxu0 0
    %8587 = vmatprep.subr.bf16.mxu0 0
    %8588 = vmatpush1.bf16.msra.mxu0 0
    %8589 = vmatprep.subr.bf16.mxu0 0
    %8590 = vmatpush1.bf16.msra.mxu0 0
    %8591 = vmatprep.subr.bf16.mxu0 0
    %8592 = vmatpush1.bf16.msra.mxu0 0
    %8593 = vmatprep.subr.bf16.mxu0 0
    %8594 = vmatpush1.bf16.msra.mxu0 0
    %8595 = vmatprep.subr.bf16.mxu0 0
    %8596 = vmatpush1.bf16.msra.mxu0 0
    %8597 = vmatprep.subr.bf16.mxu0 0
    %8598 = vmatpush1.bf16.msra.mxu0 0
    %8599 = vmatprep.subr.bf16.mxu0 0
    %8600 = vmatpush1.bf16.msra.mxu0 0
    %8601 = vmatprep.subr.bf16.mxu0 0
    %8602 = vmatpush1.bf16.msra.mxu0 0
    %8603 = vmatprep.subr.bf16.mxu0 0
    %8604 = vmatpush1.bf16.msra.mxu0 0
    %8605 = vmatprep.mubr.bf16.mxu0 0
    %8606 = vmatmul.mubr.bf16.gmra.mrb[0].mxu0 %v8571
    %v8607 = vpop.f32.mrb[0].mxu0
    %v8608 = vadd.f32 0.0, %v8607
    %v8609 = vpop.f32.mrb[0].mxu0
    %v8610 = vpop.f32.mrb[0].mxu0
    %v8611 = vpop.f32.mrb[0].mxu0
    %8612 = vdwg.mxu0
    %v8613 = vpack.c.bf16 %v8608, %v8608
    %s8614 = scalar_lea.vmem [#allocation25], 112
    %v8615 = vld [vmem:[%s8614] sm:$0xf]
    %v8616 = vld [vmem:[%s8614 + $0x4] sm:$0xf]
    %v8617 = vld [vmem:[%s8614 + $0x8] sm:$0xf]
    %v8618 = vld [vmem:[%s8614 + $0xc] sm:$0xf]
    %v8623 = vunpack.c.l.b16 %v8615
    %v8624 = vunpack.c.l.b16 %v8616
    %v8625 = vunpack.c.l.b16 %v8617
    %v8626 = vunpack.c.l.b16 %v8618
    %v8627 = vpack.c.b16 %v8624, %v8623
    %v8628 = vpack.c.b16 %v8626, %v8625
    %v8632 = vsel %vm6877, %v8613, 0
    %8634 = vmatprep.subr.bf16.mxu0 0
    %8635 = vmatpush1.bf16.msra.mxu0 %v8627
    %8636 = vmatprep.subr.bf16.mxu0 0
    %8637 = vmatpush1.bf16.msra.mxu0 %v8628
    %8638 = vmatprep.subr.bf16.mxu0 0
    %8639 = vmatpush1.bf16.msra.mxu0 0
    %8640 = vmatprep.subr.bf16.mxu0 0
    %8641 = vmatpush1.bf16.msra.mxu0 0
    %8642 = vmatprep.subr.bf16.mxu0 0
    %8643 = vmatpush1.bf16.msra.mxu0 0
    %8644 = vmatprep.subr.bf16.mxu0 0
    %8645 = vmatpush1.bf16.msra.mxu0 0
    %8646 = vmatprep.subr.bf16.mxu0 0
    %8647 = vmatpush1.bf16.msra.mxu0 0
    %8648 = vmatprep.subr.bf16.mxu0 0
    %8649 = vmatpush1.bf16.msra.mxu0 0
    %8650 = vmatprep.subr.bf16.mxu0 0
    %8651 = vmatpush1.bf16.msra.mxu0 0
    %8652 = vmatprep.subr.bf16.mxu0 0
    %8653 = vmatpush1.bf16.msra.mxu0 0
    %8654 = vmatprep.subr.bf16.mxu0 0
    %8655 = vmatpush1.bf16.msra.mxu0 0
    %8656 = vmatprep.subr.bf16.mxu0 0
    %8657 = vmatpush1.bf16.msra.mxu0 0
    %8658 = vmatprep.subr.bf16.mxu0 0
    %8659 = vmatpush1.bf16.msra.mxu0 0
    %8660 = vmatprep.subr.bf16.mxu0 0
    %8661 = vmatpush1.bf16.msra.mxu0 0
    %8662 = vmatprep.subr.bf16.mxu0 0
    %8663 = vmatpush1.bf16.msra.mxu0 0
    %8664 = vmatprep.subr.bf16.mxu0 0
    %8665 = vmatpush1.bf16.msra.mxu0 0
    %8666 = vmatprep.mubr.bf16.mxu0 0
    %8667 = vmatmul.mubr.bf16.gmra.mrb[0].mxu0 %v8632
    %v8668 = vpop.f32.mrb[0].mxu0
    %v8669 = vadd.f32 0.0, %v8668
    %v8670 = vpop.f32.mrb[0].mxu0
    %v8671 = vpop.f32.mrb[0].mxu0
    %v8672 = vpop.f32.mrb[0].mxu0
    %8673 = vdwg.mxu0
    %v8674 = vadd.f32 %v8567, %v8669
    %s8675 = scalar_lea.vmem %s16, 8
    %v8676 = vld [vmem:[%s8675] sm:$0x1]
    %v8678 = vsel %vm7819, %v8676, 0
    %8680 = vmatprep.subr.bf16.mxu0 0
    %8681 = vmatpush1.bf16.msra.mxu0 %v7825
    %8682 = vmatprep.subr.bf16.mxu0 0
    %8683 = vmatpush1.bf16.msra.mxu0 0
    %8684 = vmatprep.subr.bf16.mxu0 0
    %8685 = vmatpush1.bf16.msra.mxu0 0
    %8686 = vmatprep.subr.bf16.mxu0 0
    %8687 = vmatpush1.bf16.msra.mxu0 0
    %8688 = vmatprep.subr.bf16.mxu0 0
    %8689 = vmatpush1.bf16.msra.mxu0 0
    %8690 = vmatprep.subr.bf16.mxu0 0
    %8691 = vmatpush1.bf16.msra.mxu0 0
    %8692 = vmatprep.subr.bf16.mxu0 0
    %8693 = vmatpush1.bf16.msra.mxu0 0
    %8694 = vmatprep.subr.bf16.mxu0 0
    %8695 = vmatpush1.bf16.msra.mxu0 0
    %8696 = vmatprep.subr.bf16.mxu0 0
    %8697 = vmatpush1.bf16.msra.mxu0 0
    %8698 = vmatprep.subr.bf16.mxu0 0
    %8699 = vmatpush1.bf16.msra.mxu0 0
    %8700 = vmatprep.subr.bf16.mxu0 0
    %8701 = vmatpush1.bf16.msra.mxu0 0
    %8702 = vmatprep.subr.bf16.mxu0 0
    %8703 = vmatpush1.bf16.msra.mxu0 0
    %8704 = vmatprep.subr.bf16.mxu0 0
    %8705 = vmatpush1.bf16.msra.mxu0 0
    %8706 = vmatprep.subr.bf16.mxu0 0
    %8707 = vmatpush1.bf16.msra.mxu0 0
    %8708 = vmatprep.subr.bf16.mxu0 0
    %8709 = vmatpush1.bf16.msra.mxu0 0
    %8710 = vmatprep.subr.bf16.mxu0 0
    %8711 = vmatpush1.bf16.msra.mxu0 0
    %8712 = vmatprep.mubr.bf16.mxu0 0
    %8713 = vmatmul.mubr.bf16.gmra.mrb[0].mxu0 %v8678
    %v8714 = vpop.f32.mrb[0].mxu0
    %v8715 = vadd.f32 0.0, %v8714
    %v8716 = vpop.f32.mrb[0].mxu0
    %v8717 = vpop.f32.mrb[0].mxu0
    %v8718 = vpop.f32.mrb[0].mxu0
    %8719 = vdwg.mxu0
    %v8720 = vpack.c.bf16 %v8715, %v8715
    %s8721 = scalar_lea.vmem [#allocation25], 128
    %v8722 = vld [vmem:[%s8721] sm:$0xf]
    %v8723 = vld [vmem:[%s8721 + $0x4] sm:$0xf]
    %v8724 = vld [vmem:[%s8721 + $0x8] sm:$0xf]
    %v8725 = vld [vmem:[%s8721 + $0xc] sm:$0xf]
    %v8730 = vunpack.c.l.b16 %v8722
    %v8731 = vunpack.c.l.b16 %v8723
    %v8732 = vunpack.c.l.b16 %v8724
    %v8733 = vunpack.c.l.b16 %v8725
    %v8734 = vpack.c.b16 %v8731, %v8730
    %v8735 = vpack.c.b16 %v8733, %v8732
    %v8739 = vsel %vm6877, %v8720, 0
    %8741 = vmatprep.subr.bf16.mxu0 0
    %8742 = vmatpush1.bf16.msra.mxu0 %v8734
    %8743 = vmatprep.subr.bf16.mxu0 0
    %8744 = vmatpush1.bf16.msra.mxu0 %v8735
    %8745 = vmatprep.subr.bf16.mxu0 0
    %8746 = vmatpush1.bf16.msra.mxu0 0
    %8747 = vmatprep.subr.bf16.mxu0 0
    %8748 = vmatpush1.bf16.msra.mxu0 0
    %8749 = vmatprep.subr.bf16.mxu0 0
    %8750 = vmatpush1.bf16.msra.mxu0 0
    %8751 = vmatprep.subr.bf16.mxu0 0
    %8752 = vmatpush1.bf16.msra.mxu0 0
    %8753 = vmatprep.subr.bf16.mxu0 0
    %8754 = vmatpush1.bf16.msra.mxu0 0
    %8755 = vmatprep.subr.bf16.mxu0 0
    %8756 = vmatpush1.bf16.msra.mxu0 0
    %8757 = vmatprep.subr.bf16.mxu0 0
    %8758 = vmatpush1.bf16.msra.mxu0 0
    %8759 = vmatprep.subr.bf16.mxu0 0
    %8760 = vmatpush1.bf16.msra.mxu0 0
    %8761 = vmatprep.subr.bf16.mxu0 0
    %8762 = vmatpush1.bf16.msra.mxu0 0
    %8763 = vmatprep.subr.bf16.mxu0 0
    %8764 = vmatpush1.bf16.msra.mxu0 0
    %8765 = vmatprep.subr.bf16.mxu0 0
    %8766 = vmatpush1.bf16.msra.mxu0 0
    %8767 = vmatprep.subr.bf16.mxu0 0
    %8768 = vmatpush1.bf16.msra.mxu0 0
    %8769 = vmatprep.subr.bf16.mxu0 0
    %8770 = vmatpush1.bf16.msra.mxu0 0
    %8771 = vmatprep.subr.bf16.mxu0 0
    %8772 = vmatpush1.bf16.msra.mxu0 0
    %8773 = vmatprep.mubr.bf16.mxu0 0
    %8774 = vmatmul.mubr.bf16.gmra.mrb[0].mxu0 %v8739
    %v8775 = vpop.f32.mrb[0].mxu0
    %v8776 = vadd.f32 0.0, %v8775
    %v8777 = vpop.f32.mrb[0].mxu0
    %v8778 = vpop.f32.mrb[0].mxu0
    %v8779 = vpop.f32.mrb[0].mxu0
    %8780 = vdwg.mxu0
    %v8781 = vadd.f32 %v8674, %v8776
    %v8782 = vld [vmem:[#allocation26] sm:$0x1]
    %v8784 = vlaneseq
    %v8785 = vshrl.u32 %v8784, 7
    %v8786 = vsub.s32 0, %v8785
    %v8787 = vrot.slane %v8782, %v8786
    %v8789 = vadd.f32 %v8781, %v8787
    %vm8790 = vcmask 517120
    %v8791 = vsel %vm8790, %v8789, 0.0
    %v8792 = vrot.slane %v8791, 4
    %v8793 = vadd.f32 %v8791, %v8792
    %v8794 = vrot.slane %v8793, 2
    %v8795 = vadd.f32 %v8793, %v8794
    %v8796 = vrot.slane %v8795, 1
    %v8797 = vadd.f32 %v8795, %v8796
    %v8798 = vmul.f32 %v8797, %v7780
    %v8799 = vmul.f32 %v8789, %v8789
    %v8800 = vsel %vm8790, %v8799, 0.0
    %v8801 = vrot.slane %v8800, 4
    %v8802 = vadd.f32 %v8800, %v8801
    %v8803 = vrot.slane %v8802, 2
    %v8804 = vadd.f32 %v8802, %v8803
    %v8805 = vrot.slane %v8804, 1
    %v8806 = vadd.f32 %v8804, %v8805
    %v8807 = vmul.f32 %v8806, %v7780
    %v8808 = vmul.f32 %v8798, %v8798
    %v8809 = vsub.f32 %v8807, %v8808
    %v8810 = vmax.f32 %v8809, 0.0
    %v8811 = vsub.f32 %v8789, %v8798
    %v8812 = vadd.f32 %v8810, 1e-05
    %v8813 = vrsqrt.pop %v8812
    %v8814 = vmul.f32 %v8811, %v8813
    %v8815 = vld [vmem:[#allocation28] sm:$0x1]
    %v8817 = vlaneseq
    %v8818 = vshrl.u32 %v8817, 7
    %v8819 = vsub.s32 0, %v8818
    %v8820 = vrot.slane %v8815, %v8819
    %v8822 = vmul.f32 %v8814, %v8820
    %v8823 = vld [vmem:[#allocation29] sm:$0x1]
    %v8825 = vlaneseq
    %v8826 = vshrl.u32 %v8825, 7
    %v8827 = vsub.s32 0, %v8826
    %v8828 = vrot.slane %v8823, %v8827
    %v8830 = vadd.f32 %v8822, %v8828
    %vm8831 = vcmp.ge.f32.partialorder %v8830, 0.0
    %v8832 = vmul.f32 %v8830, 0.01
    %v8833 = vsel %vm8831, %v8830, %v8832
    %8834 = vst.msk [vmem:[#allocation31] sm:$0x3] %vm8790, %v8833
    // Predicated region
    $region158: #{tpu_custom_call.1} parent=1 // pred_check
      _
    $region159: #{tpu_custom_call.1} parent=1 // pred_check_branch
      %8836 = sbr.rel (0) target = $region161
    $region160: #{tpu_custom_call.1} parent=1 // pred_region
      %s8838 = ssub.s32 32, 32
      %8839 = vsyncadd [#allocation4], %s8838
      %s8841 = sshll.u32 [#allocation31], 4
      %s8842 = int_to_ptr.vmem [resolvable:$true] %s8841
      %8844 = dma.vmem_to_hbm [thread:$0]  %s8842, 32, %s21, [#allocation4]
    $region161: #{tpu_custom_call.1} parent=1 // pred_fallthru
      _
    // Predicated region
    $region162: #{tpu_custom_call.1} parent=1 // pred_check
      _
    $region163: #{tpu_custom_call.1} parent=1 // pred_check_branch
      %8846 = sbr.rel (0) target = $region165
    $region164: #{tpu_custom_call.1} parent=1 // pred_region
      %8847 = dma.done [#allocation4], 32
    $region165: #{tpu_custom_call.1} parent=1 // pred_fallthru
      _
    %8848 = vsyncpa [#allocation3], 1
    %8849 = vsyncpa [#allocation6], 1
    %8850 = vsyncpa [#allocation9], 1
    %8851 = vsyncpa [#allocation12], 1
    %8852 = vsyncpa [#allocation15], 1
    %8853 = vsyncpa [#allocation18], 1
    %8854 = vsyncpa [#allocation21], 1
    %8855 = vsyncpa [#allocation24], 1
    %8856 = vsyncpa [#allocation27], 1
    %8857 = vsyncpa [#allocation30], 1
    %8858 = vsyncpa [#allocation4], 1

</llo_original>
